<compile_context>
chip_gen: v5e
topology: v5e:2x2
jax: 0.10.0
libtpu: 0.0.40
codegen_flags: <defaults>
</compile_context>

<pallas_src>
import math
from functools import partial

import jax
import jax.numpy as jnp
from jax.experimental import pallas as pl
from jax.experimental.pallas import tpu as pltpu

PLANES = ("xz", "xy", "yz")   # concat order used by LocalDecoder(concat_feat=True)


# ----------------------------------------------------------------------------
# Fused LocalDecoder kernel: bilinear plane sampling + fc_p + n_blocks x
# (fc_c + ResnetBlockFC) + fc_out, for one (batch, query-tile) grid cell.
# ----------------------------------------------------------------------------
def _local_decoder_kernel(p_ref, planes_ref, wp_ref, bp_ref, wc_ref, bc_ref,
                          w0_ref, b0_ref, w1_ref, b1_ref, wout_ref, bout_ref,
                          o_ref, *, reso, padding, c_dim):
    f32 = jnp.float32
    bf16 = jnp.bfloat16
    C = c_dim
    r2 = reso * reso
    n_blocks = wc_ref.shape[0]

    eps = 10e-6
    inv_scale = 1.0 / (1.0 + padding + eps)

    p = p_ref[0]                                    # [TQ, 3] f32
    px = p[:, 0:1]
    py = p[:, 1:2]
    pz = p[:, 2:3]
    plane_coords = ((px, pz), (px, py), (py, pz))   # xz, xy, yz (torch concat order)

    # (1, R2) iota; broadcasts against the per-query flat index inside the compare
    # (avoids materializing a [TQ, R2] iota constant).
    bins = jax.lax.broadcasted_iota(jnp.int32, (1, r2), 1)

    def sample_plane(plane_i, u_raw, v_raw):
        # normalize_coordinate (exact GIGA math)
        u = u_raw * inv_scale + 0.5
        v = v_raw * inv_scale + 0.5
        u = jnp.where(u >= 1.0, 1.0 - eps, u)
        u = jnp.where(u < 0.0, 0.0, u)
        v = jnp.where(v >= 1.0, 1.0 - eps, v)
        v = jnp.where(v < 0.0, 0.0, v)
        # grid_sample(align_corners=True): u -> width (x), v -> height (y)
        x = u * (reso - 1)
        y = v * (reso - 1)
        x0 = jnp.floor(x)
        y0 = jnp.floor(y)
        tx = x - x0                                   # [TQ, 1] f32
        ty = y - y0
        x0i = jnp.clip(x0, 0, reso - 1).astype(jnp.int32)
        y0i = jnp.clip(y0, 0, reso - 1).astype(jnp.int32)
        flat = y0i * reso + x0i                       # [TQ, 1] int32

        # Single strictly-0/1 bf16 one-hot row selects the (y0, x0) cell; the other
        # three bilinear corners come from the shifted copies packed along the 4C
        # channel axis, so ONE lane-dense bf16 matmul fetches all four corners.
        onehot = (bins == flat).astype(bf16)          # [TQ, R2]
        plane4 = planes_ref[0, plane_i]               # [R2, 4C] bf16, VMEM-resident
        corners = jnp.dot(onehot, plane4, preferred_element_type=f32)   # [TQ, 4C]

        f00 = corners[:, 0 * C:1 * C]                 # (y0, x0)
        f01 = corners[:, 1 * C:2 * C]                 # (y0, x0+1)
        f10 = corners[:, 2 * C:3 * C]                 # (y0+1, x0)
        f11 = corners[:, 3 * C:4 * C]                 # (y0+1, x0+1)
        # Exact f32 bilinear corner weights applied AFTER the matmul.
        return (f00 * ((1.0 - tx) * (1.0 - ty)) + f01 * (tx * (1.0 - ty))
                + f10 * ((1.0 - tx) * ty) + f11 * (tx * ty))            # [TQ, C] f32

    feats = [sample_plane(i, u, v) for i, (u, v) in enumerate(plane_coords)]
    # One lane-concat builds the virtual torch `c` [TQ, 3C]; cast to bf16 once and
    # reuse across all n_blocks fc_c matmuls.
    c_cat = jnp.concatenate(feats, axis=-1).astype(bf16)                # [TQ, 3C]

    # fc_p as three VPU broadcast-FMAs (a K=3 matmul wastes an MXU push/pop).
    wp = wp_ref[...]                                                    # [3, H] f32
    net = px * wp[0:1, :] + py * wp[1:2, :] + pz * wp[2:3, :] + bp_ref[...]

    for i in range(n_blocks):                         # static unroll (n_blocks = 5)
        # fc_c[i]: one fused K=3C bf16 matmul on the concatenated feature.
        net = net + jnp.dot(c_cat, wc_ref[i], preferred_element_type=f32) + bc_ref[i]
        # ResnetBlockFC: fc_0(relu(x)), fc_1(relu(h)), identity shortcut.
        h = jnp.dot(jnp.maximum(net, 0.0).astype(bf16), w0_ref[i],
                    preferred_element_type=f32) + b0_ref[i]
        dx = jnp.dot(jnp.maximum(h, 0.0).astype(bf16), w1_ref[i],
                     preferred_element_type=f32) + b1_ref[i]
        net = net + dx

    out = jnp.dot(jnp.maximum(net, 0.0).astype(bf16), wout_ref[...],
                  preferred_element_type=f32) + bout_ref[...]
    o_ref[0] = out


# ----------------------------------------------------------------------------
# Wrapper
# ----------------------------------------------------------------------------
def local_decoder_forward(params, p, c_planes, *, reso, padding=0.1, tq=256):
    """LocalDecoder(concat_feat=True) forward.

    params  : dict of f32 master weights (see init_params).
    p       : [B, Nq, 3] query points.
    c_planes: dict plane -> [B, C, reso, reso] (PyTorch NCHW plane features).
    returns : [B, Nq] if out_dim == 1 else [B, Nq, out_dim].
    """
    B, nq, _ = p.shape
    C = c_planes["xz"].shape[1]
    r2 = reso * reso
    out_dim = params["wout"].shape[1]

    # Plane prep: channels-last plus x+1 / y+1 / (x+1,y+1) border-clamped shifted copies
    # packed along channels -> [B, 3, R2, 4C] bf16.  Flat index = y*reso + x, matching
    # the kernel.  bf16 halves the once-per-batch plane DMA / VMEM footprint.
    def _prep(cp):                              # [B, C, R, R] NCHW (rows=y, cols=x)
        q = cp.transpose(0, 2, 3, 1)                                      # [B, R, R, C]
        qx = jnp.concatenate([q[:, :, 1:, :], q[:, :, -1:, :]], axis=2)   # x+1 (border)
        qy = jnp.concatenate([q[:, 1:, :, :], q[:, -1:, :, :]], axis=1)   # y+1 (border)
        qxy = jnp.concatenate([qx[:, 1:, :, :], qx[:, -1:, :, :]], axis=1)
        return jnp.concatenate([q, qx, qy, qxy], axis=-1).reshape(B, r2, 4 * C)

    planes = jnp.stack([_prep(c_planes[k]) for k in PLANES],
                       axis=1).astype(jnp.bfloat16)                       # [B, 3, R2, 4C]

    # bf16 weights for the MXU (f32 accumulation in-kernel); biases + fc_p stay f32.
    wc_b = params["wc"].astype(jnp.bfloat16)        # [n_blocks, 3C, H] (fused fc_c)
    w0_b = params["w0"].astype(jnp.bfloat16)
    w1_b = params["w1"].astype(jnp.bfloat16)
    wout_b = params["wout"].astype(jnp.bfloat16)

    # Pad queries to a multiple of the row tile.
    n_qt = pl.cdiv(nq, tq)
    nq_pad = n_qt * tq
    p_pad = p.astype(jnp.float32)
    if nq_pad != nq:
        p_pad = jnp.pad(p_pad, ((0, 0), (0, nq_pad - nq), (0, 0)))

    w_args = (params["wp"], params["bp"], wc_b, params["bc"],
              w0_b, params["b0"], w1_b, params["b1"], wout_b, params["bout"])

    def _const_spec(arr):
        zeros = (0,) * arr.ndim
        return pl.BlockSpec(arr.shape, lambda b, q, _z=zeros: _z)   # VMEM-resident

    in_specs = [
        pl.BlockSpec((1, tq, 3), lambda b, q: (b, q, 0)),           # query tile
        pl.BlockSpec((1, 3, r2, 4 * C), lambda b, q: (b, 0, 0, 0)),  # planes, per batch
    ] + [_const_spec(w) for w in w_args]

    out = pl.pallas_call(
        partial(_local_decoder_kernel, reso=reso, padding=padding, c_dim=C),
        out_shape=jax.ShapeDtypeStruct((B, nq_pad, out_dim), jnp.float32),
        grid=(B, n_qt),
        in_specs=in_specs,
        out_specs=pl.BlockSpec((1, tq, out_dim), lambda b, q: (b, q, 0)),
        compiler_params=pltpu.CompilerParams(
            dimension_semantics=("parallel", "parallel"),
            vmem_limit_bytes=32 * 1024 * 1024),
    )(p_pad, planes, *w_args)

    out = out[:, :nq]
    if out_dim == 1:            # torch .squeeze(-1)
        out = out[..., 0]
    return out


# ----------------------------------------------------------------------------
# Pure-JAX reference (f32) for a correctness check.
# ----------------------------------------------------------------------------
def reference_forward(params, p, c_planes, *, reso, padding=0.1):
    B, nq, _ = p.shape
    C = c_planes["xz"].shape[1]
    r2 = reso * reso
    eps = 10e-6
    feats = []
    for plane in PLANES:
        if plane == "xz":
            xy = jnp.stack([p[..., 0], p[..., 2]], axis=-1)
        elif plane == "xy":
            xy = jnp.stack([p[..., 0], p[..., 1]], axis=-1)
        else:
            xy = jnp.stack([p[..., 1], p[..., 2]], axis=-1)
        xy = xy / (1.0 + padding + eps) + 0.5
        xy = jnp.where(xy >= 1.0, 1.0 - eps, xy)
        xy = jnp.where(xy < 0.0, 0.0, xy)
        x = xy[..., 0] * (reso - 1)
        y = xy[..., 1] * (reso - 1)
        x0 = jnp.floor(x); y0 = jnp.floor(y)
        tx = x - x0;       ty = y - y0
        x0i = jnp.clip(x0, 0, reso - 1).astype(jnp.int32)
        x1i = jnp.clip(x0 + 1, 0, reso - 1).astype(jnp.int32)
        y0i = jnp.clip(y0, 0, reso - 1).astype(jnp.int32)
        y1i = jnp.clip(y0 + 1, 0, reso - 1).astype(jnp.int32)
        cp = c_planes[plane].transpose(0, 2, 3, 1).reshape(B, r2, C)
        g = jax.vmap(lambda cb, ib: cb[ib])
        f = (g(cp, y0i * reso + x0i) * ((1 - tx) * (1 - ty))[..., None]
             + g(cp, y0i * reso + x1i) * (tx * (1 - ty))[..., None]
             + g(cp, y1i * reso + x0i) * ((1 - tx) * ty)[..., None]
             + g(cp, y1i * reso + x1i) * (tx * ty)[..., None])
        feats.append(f)
    c = jnp.concatenate(feats, axis=-1)                       # [B, Nq, 3C]

    net = p @ params["wp"] + params["bp"]
    for i in range(params["wc"].shape[0]):
        net = net + c @ params["wc"][i] + params["bc"][i]
        h = jax.nn.relu(net) @ params["w0"][i] + params["b0"][i]
        dx = jax.nn.relu(h) @ params["w1"][i] + params["b1"][i]
        net = net + dx
    out = jax.nn.relu(net) @ params["wout"] + params["bout"]
    if params["wout"].shape[1] == 1:
        out = out[..., 0]
    return out


# ----------------------------------------------------------------------------
# Deterministic synthetic parameters (shapes mirror LocalDecoder, concat_feat=True).
# ----------------------------------------------------------------------------
def init_params(key, c_dim, hidden, n_blocks, out_dim):
    ccat = 3 * c_dim          # concat_feat=True => c_dim *= 3

    def xavier(k, fi, fo):
        a = math.sqrt(6.0 / (fi + fo))
        return jax.random.uniform(k, (fi, fo), jnp.float32, -a, a)

    keys = jax.random.split(key, 2 + 3 * n_blocks)
    it = iter(keys)
    return {
        "wp": xavier(next(it), 3, hidden),
        "bp": jnp.zeros((1, hidden), jnp.float32),
        "wc": jnp.stack([xavier(next(it), ccat, hidden) for _ in range(n_blocks)]),
        "bc": jnp.zeros((n_blocks, 1, hidden), jnp.float32),
        "w0": jnp.stack([xavier(next(it), hidden, hidden) for _ in range(n_blocks)]),
        "b0": jnp.zeros((n_blocks, 1, hidden), jnp.float32),
        "w1": jnp.stack([xavier(next(it), hidden, hidden) for _ in range(n_blocks)]),
        "b1": jnp.zeros((n_blocks, 1, hidden), jnp.float32),
        "wout": xavier(next(it), hidden, out_dim),
        "bout": jnp.zeros((1, out_dim), jnp.float32),
    }


# ----------------------------------------------------------------------------
if __name__ == "__main__":
    key = jax.random.PRNGKey(0)
    k_param, k_plane, k_pts = jax.random.split(key, 3)

    B, C_DIM, RESO = 2, 32, 16            # plane features [B, C, reso, reso]
    HIDDEN, N_BLOCKS, OUT_DIM = 32, 5, 1  # decoder config (scaled down)
    NQ = 300                              # exercises multi-tile + row-tile padding

    params = init_params(k_param, C_DIM, HIDDEN, N_BLOCKS, OUT_DIM)
    kp1, kp2, kp3 = jax.random.split(k_plane, 3)
    c_planes = {
        "xz": jax.random.normal(kp1, (B, C_DIM, RESO, RESO), jnp.float32),
        "xy": jax.random.normal(kp2, (B, C_DIM, RESO, RESO), jnp.float32),
        "yz": jax.random.normal(kp3, (B, C_DIM, RESO, RESO), jnp.float32),
    }
    p = jax.random.uniform(k_pts, (B, NQ, 3), jnp.float32, -0.55, 0.55)

    fwd = jax.jit(partial(local_decoder_forward, reso=RESO, padding=0.1))
    out = fwd(params, p, c_planes)
    jax.block_until_ready(out)
    assert out.shape == (B, NQ)

    ref = reference_forward(params, p, c_planes, reso=RESO, padding=0.1)
    err = float(jnp.max(jnp.abs(out - ref)))
    scale = 1.0 + float(jnp.max(jnp.abs(ref)))
    assert err <= 0.05 * scale, f"kernel/reference mismatch: err={err}, scale={scale}"

    print("KERNEL_OK")
</pallas_src>

<mosaic_0001>
module attributes {stable_mosaic.version = 11 : i64} {
  func.func @_local_decoder_kernel(%arg0: i32, %arg1: i32, %arg2: memref<1x256x3xf32, #tpu.memory_space<vmem>>, %arg3: memref<1x3x256x128xbf16, #tpu.memory_space<vmem>>, %arg4: memref<3x32xf32, #tpu.memory_space<vmem>>, %arg5: memref<1x32xf32, #tpu.memory_space<vmem>>, %arg6: memref<5x96x32xbf16, #tpu.memory_space<vmem>>, %arg7: memref<5x1x32xf32, #tpu.memory_space<vmem>>, %arg8: memref<5x32x32xbf16, #tpu.memory_space<vmem>>, %arg9: memref<5x1x32xf32, #tpu.memory_space<vmem>>, %arg10: memref<5x32x32xbf16, #tpu.memory_space<vmem>>, %arg11: memref<5x1x32xf32, #tpu.memory_space<vmem>>, %arg12: memref<32x1xbf16, #tpu.memory_space<vmem>>, %arg13: memref<1x1xf32, #tpu.memory_space<vmem>>, %arg14: memref<1x256x1xf32, #tpu.memory_space<vmem>>) attributes {dimension_semantics = [#tpu.dimension_semantics<parallel>, #tpu.dimension_semantics<parallel>], iteration_bounds = array<i64: 2, 2>, scalar_prefetch = 0 : i64, scratch_operands = 0 : i64, tpu.core_type = #tpu.core_type<tc>, window_params = [{transform_indices = @transform_0, window_bounds = array<i64: 1, 256, 3>}, {transform_indices = @transform_1, window_bounds = array<i64: 1, 3, 256, 128>}, {pipeline_mode = #tpu.pipeline_mode<synchronous>, transform_indices = @transform_2, window_bounds = array<i64: 3, 32>}, {pipeline_mode = #tpu.pipeline_mode<synchronous>, transform_indices = @transform_3, window_bounds = array<i64: 1, 32>}, {pipeline_mode = #tpu.pipeline_mode<synchronous>, transform_indices = @transform_4, window_bounds = array<i64: 5, 96, 32>}, {pipeline_mode = #tpu.pipeline_mode<synchronous>, transform_indices = @transform_5, window_bounds = array<i64: 5, 1, 32>}, {pipeline_mode = #tpu.pipeline_mode<synchronous>, transform_indices = @transform_6, window_bounds = array<i64: 5, 32, 32>}, {pipeline_mode = #tpu.pipeline_mode<synchronous>, transform_indices = @transform_7, window_bounds = array<i64: 5, 1, 32>}, {pipeline_mode = #tpu.pipeline_mode<synchronous>, transform_indices = @transform_8, window_bounds = array<i64: 5, 32, 32>}, {pipeline_mode = #tpu.pipeline_mode<synchronous>, transform_indices = @transform_9, window_bounds = array<i64: 5, 1, 32>}, {pipeline_mode = #tpu.pipeline_mode<synchronous>, transform_indices = @transform_10, window_bounds = array<i64: 32, 1>}, {pipeline_mode = #tpu.pipeline_mode<synchronous>, transform_indices = @transform_11, window_bounds = array<i64: 1, 1>}, {transform_indices = @transform_12, window_bounds = array<i64: 1, 256, 1>}]} {
    %c0 = arith.constant 0 : index
    %c0_0 = arith.constant 0 : index
    %c0_1 = arith.constant 0 : index
    %0 = vector.load %arg2[%c0, %c0_0, %c0_1] : memref<1x256x3xf32, #tpu.memory_space<vmem>>, vector<1x256x3xf32>
    %1 = vector.shape_cast %0 : vector<1x256x3xf32> to vector<256x3xf32>
    %2 = vector.extract_strided_slice %1 {offsets = [0, 0], sizes = [256, 1], strides = [1, 1]} : vector<256x3xf32> to vector<256x1xf32>
    %3 = vector.extract_strided_slice %1 {offsets = [0, 1], sizes = [256, 1], strides = [1, 1]} : vector<256x3xf32> to vector<256x1xf32>
    %4 = vector.extract_strided_slice %1 {offsets = [0, 2], sizes = [256, 1], strides = [1, 1]} : vector<256x3xf32> to vector<256x1xf32>
    %5 = tpu.iota {dimensions = array<i32: 1>} : vector<1x256xi32>
    %cst = arith.constant 0.909082651 : f32
    %6 = vector.broadcast %cst : f32 to vector<256x1xf32>
    %7 = arith.mulf %2, %6 : vector<256x1xf32>
    %cst_2 = arith.constant 5.000000e-01 : f32
    %8 = vector.broadcast %cst_2 : f32 to vector<256x1xf32>
    %9 = arith.addf %7, %8 : vector<256x1xf32>
    %cst_3 = arith.constant 0.909082651 : f32
    %10 = vector.broadcast %cst_3 : f32 to vector<256x1xf32>
    %11 = arith.mulf %4, %10 : vector<256x1xf32>
    %cst_4 = arith.constant 5.000000e-01 : f32
    %12 = vector.broadcast %cst_4 : f32 to vector<256x1xf32>
    %13 = arith.addf %11, %12 : vector<256x1xf32>
    %cst_5 = arith.constant 1.000000e+00 : f32
    %14 = vector.broadcast %cst_5 : f32 to vector<256x1xf32>
    %15 = arith.cmpf oge, %9, %14 : vector<256x1xf32>
    %cst_6 = arith.constant 0.999989986 : f32
    %16 = vector.broadcast %cst_6 : f32 to vector<256x1xf32>
    %17 = arith.select %15, %16, %9 : vector<256x1xi1>, vector<256x1xf32>
    %cst_7 = arith.constant 0.000000e+00 : f32
    %18 = vector.broadcast %cst_7 : f32 to vector<256x1xf32>
    %19 = arith.cmpf olt, %17, %18 : vector<256x1xf32>
    %cst_8 = arith.constant 0.000000e+00 : f32
    %20 = vector.broadcast %cst_8 : f32 to vector<256x1xf32>
    %21 = arith.select %19, %20, %17 : vector<256x1xi1>, vector<256x1xf32>
    %cst_9 = arith.constant 1.000000e+00 : f32
    %22 = vector.broadcast %cst_9 : f32 to vector<256x1xf32>
    %23 = arith.cmpf oge, %13, %22 : vector<256x1xf32>
    %cst_10 = arith.constant 0.999989986 : f32
    %24 = vector.broadcast %cst_10 : f32 to vector<256x1xf32>
    %25 = arith.select %23, %24, %13 : vector<256x1xi1>, vector<256x1xf32>
    %cst_11 = arith.constant 0.000000e+00 : f32
    %26 = vector.broadcast %cst_11 : f32 to vector<256x1xf32>
    %27 = arith.cmpf olt, %25, %26 : vector<256x1xf32>
    %cst_12 = arith.constant 0.000000e+00 : f32
    %28 = vector.broadcast %cst_12 : f32 to vector<256x1xf32>
    %29 = arith.select %27, %28, %25 : vector<256x1xi1>, vector<256x1xf32>
    %cst_13 = arith.constant 1.500000e+01 : f32
    %30 = vector.broadcast %cst_13 : f32 to vector<256x1xf32>
    %31 = arith.mulf %21, %30 : vector<256x1xf32>
    %cst_14 = arith.constant 1.500000e+01 : f32
    %32 = vector.broadcast %cst_14 : f32 to vector<256x1xf32>
    %33 = arith.mulf %29, %32 : vector<256x1xf32>
    %34 = math.floor %31 : vector<256x1xf32>
    %35 = math.floor %33 : vector<256x1xf32>
    %36 = arith.subf %31, %34 : vector<256x1xf32>
    %37 = arith.subf %33, %35 : vector<256x1xf32>
    %c0_i32 = arith.constant 0 : i32
    %c15_i32 = arith.constant 15 : i32
    %38 = arith.sitofp %c0_i32 : i32 to f32
    %39 = vector.broadcast %38 : f32 to vector<256x1xf32>
    %40 = arith.maximumf %39, %34 : vector<256x1xf32>
    %41 = arith.sitofp %c15_i32 : i32 to f32
    %42 = vector.broadcast %41 : f32 to vector<256x1xf32>
    %43 = arith.minimumf %42, %40 : vector<256x1xf32>
    %44 = arith.fptosi %43 : vector<256x1xf32> to vector<256x1xi32>
    %c0_i32_15 = arith.constant 0 : i32
    %c15_i32_16 = arith.constant 15 : i32
    %45 = arith.sitofp %c0_i32_15 : i32 to f32
    %46 = vector.broadcast %45 : f32 to vector<256x1xf32>
    %47 = arith.maximumf %46, %35 : vector<256x1xf32>
    %48 = arith.sitofp %c15_i32_16 : i32 to f32
    %49 = vector.broadcast %48 : f32 to vector<256x1xf32>
    %50 = arith.minimumf %49, %47 : vector<256x1xf32>
    %51 = arith.fptosi %50 : vector<256x1xf32> to vector<256x1xi32>
    %c16_i32 = arith.constant 16 : i32
    %52 = vector.broadcast %c16_i32 : i32 to vector<256x1xi32>
    %53 = arith.muli %51, %52 : vector<256x1xi32>
    %54 = arith.addi %53, %44 : vector<256x1xi32>
    %55 = vector.broadcast %5 : vector<1x256xi32> to vector<256x256xi32>
    %56 = vector.broadcast %54 : vector<256x1xi32> to vector<256x256xi32>
    %57 = arith.cmpi eq, %55, %56 : vector<256x256xi32>
    %58 = arith.extui %57 : vector<256x256xi1> to vector<256x256xi32>
    %59 = arith.sitofp %58 : vector<256x256xi32> to vector<256x256xf32>
    %60 = arith.truncf %59 : vector<256x256xf32> to vector<256x256xbf16>
    %c0_17 = arith.constant 0 : index
    %c0_18 = arith.constant 0 : index
    %c0_19 = arith.constant 0 : index
    %c0_20 = arith.constant 0 : index
    %61 = vector.load %arg3[%c0_17, %c0_18, %c0_19, %c0_20] : memref<1x3x256x128xbf16, #tpu.memory_space<vmem>>, vector<1x1x256x128xbf16>
    %62 = vector.shape_cast %61 : vector<1x1x256x128xbf16> to vector<256x128xbf16>
    %cst_21 = arith.constant dense<0.000000e+00> : vector<256x128xf32>
    %63 = tpu.matmul %60, %62, %cst_21 {dimension_numbers = #tpu.dot_dimension_numbers<[1], [0], [0], [1], [0, 0, 1, 1], [], []>} : vector<256x256xbf16>, vector<256x128xbf16>, vector<256x128xf32> -> vector<256x128xf32>
    %64 = vector.extract_strided_slice %63 {offsets = [0, 0], sizes = [256, 32], strides = [1, 1]} : vector<256x128xf32> to vector<256x32xf32>
    %65 = vector.extract_strided_slice %63 {offsets = [0, 32], sizes = [256, 32], strides = [1, 1]} : vector<256x128xf32> to vector<256x32xf32>
    %66 = vector.extract_strided_slice %63 {offsets = [0, 64], sizes = [256, 32], strides = [1, 1]} : vector<256x128xf32> to vector<256x32xf32>
    %67 = vector.extract_strided_slice %63 {offsets = [0, 96], sizes = [256, 32], strides = [1, 1]} : vector<256x128xf32> to vector<256x32xf32>
    %cst_22 = arith.constant 1.000000e+00 : f32
    %68 = vector.broadcast %cst_22 : f32 to vector<256x1xf32>
    %69 = arith.subf %68, %36 : vector<256x1xf32>
    %cst_23 = arith.constant 1.000000e+00 : f32
    %70 = vector.broadcast %cst_23 : f32 to vector<256x1xf32>
    %71 = arith.subf %70, %37 : vector<256x1xf32>
    %72 = arith.mulf %69, %71 : vector<256x1xf32>
    %73 = vector.broadcast %72 : vector<256x1xf32> to vector<256x32xf32>
    %74 = arith.mulf %64, %73 : vector<256x32xf32>
    %cst_24 = arith.constant 1.000000e+00 : f32
    %75 = vector.broadcast %cst_24 : f32 to vector<256x1xf32>
    %76 = arith.subf %75, %37 : vector<256x1xf32>
    %77 = arith.mulf %36, %76 : vector<256x1xf32>
    %78 = vector.broadcast %77 : vector<256x1xf32> to vector<256x32xf32>
    %79 = arith.mulf %65, %78 : vector<256x32xf32>
    %80 = arith.addf %74, %79 : vector<256x32xf32>
    %cst_25 = arith.constant 1.000000e+00 : f32
    %81 = vector.broadcast %cst_25 : f32 to vector<256x1xf32>
    %82 = arith.subf %81, %36 : vector<256x1xf32>
    %83 = arith.mulf %82, %37 : vector<256x1xf32>
    %84 = vector.broadcast %83 : vector<256x1xf32> to vector<256x32xf32>
    %85 = arith.mulf %66, %84 : vector<256x32xf32>
    %86 = arith.addf %80, %85 : vector<256x32xf32>
    %87 = arith.mulf %36, %37 : vector<256x1xf32>
    %88 = vector.broadcast %87 : vector<256x1xf32> to vector<256x32xf32>
    %89 = arith.mulf %67, %88 : vector<256x32xf32>
    %90 = arith.addf %86, %89 : vector<256x32xf32>
    %cst_26 = arith.constant 0.909082651 : f32
    %91 = vector.broadcast %cst_26 : f32 to vector<256x1xf32>
    %92 = arith.mulf %2, %91 : vector<256x1xf32>
    %cst_27 = arith.constant 5.000000e-01 : f32
    %93 = vector.broadcast %cst_27 : f32 to vector<256x1xf32>
    %94 = arith.addf %92, %93 : vector<256x1xf32>
    %cst_28 = arith.constant 0.909082651 : f32
    %95 = vector.broadcast %cst_28 : f32 to vector<256x1xf32>
    %96 = arith.mulf %3, %95 : vector<256x1xf32>
    %cst_29 = arith.constant 5.000000e-01 : f32
    %97 = vector.broadcast %cst_29 : f32 to vector<256x1xf32>
    %98 = arith.addf %96, %97 : vector<256x1xf32>
    %cst_30 = arith.constant 1.000000e+00 : f32
    %99 = vector.broadcast %cst_30 : f32 to vector<256x1xf32>
    %100 = arith.cmpf oge, %94, %99 : vector<256x1xf32>
    %cst_31 = arith.constant 0.999989986 : f32
    %101 = vector.broadcast %cst_31 : f32 to vector<256x1xf32>
    %102 = arith.select %100, %101, %94 : vector<256x1xi1>, vector<256x1xf32>
    %cst_32 = arith.constant 0.000000e+00 : f32
    %103 = vector.broadcast %cst_32 : f32 to vector<256x1xf32>
    %104 = arith.cmpf olt, %102, %103 : vector<256x1xf32>
    %cst_33 = arith.constant 0.000000e+00 : f32
    %105 = vector.broadcast %cst_33 : f32 to vector<256x1xf32>
    %106 = arith.select %104, %105, %102 : vector<256x1xi1>, vector<256x1xf32>
    %cst_34 = arith.constant 1.000000e+00 : f32
    %107 = vector.broadcast %cst_34 : f32 to vector<256x1xf32>
    %108 = arith.cmpf oge, %98, %107 : vector<256x1xf32>
    %cst_35 = arith.constant 0.999989986 : f32
    %109 = vector.broadcast %cst_35 : f32 to vector<256x1xf32>
    %110 = arith.select %108, %109, %98 : vector<256x1xi1>, vector<256x1xf32>
    %cst_36 = arith.constant 0.000000e+00 : f32
    %111 = vector.broadcast %cst_36 : f32 to vector<256x1xf32>
    %112 = arith.cmpf olt, %110, %111 : vector<256x1xf32>
    %cst_37 = arith.constant 0.000000e+00 : f32
    %113 = vector.broadcast %cst_37 : f32 to vector<256x1xf32>
    %114 = arith.select %112, %113, %110 : vector<256x1xi1>, vector<256x1xf32>
    %cst_38 = arith.constant 1.500000e+01 : f32
    %115 = vector.broadcast %cst_38 : f32 to vector<256x1xf32>
    %116 = arith.mulf %106, %115 : vector<256x1xf32>
    %cst_39 = arith.constant 1.500000e+01 : f32
    %117 = vector.broadcast %cst_39 : f32 to vector<256x1xf32>
    %118 = arith.mulf %114, %117 : vector<256x1xf32>
    %119 = math.floor %116 : vector<256x1xf32>
    %120 = math.floor %118 : vector<256x1xf32>
    %121 = arith.subf %116, %119 : vector<256x1xf32>
    %122 = arith.subf %118, %120 : vector<256x1xf32>
    %c0_i32_40 = arith.constant 0 : i32
    %c15_i32_41 = arith.constant 15 : i32
    %123 = arith.sitofp %c0_i32_40 : i32 to f32
    %124 = vector.broadcast %123 : f32 to vector<256x1xf32>
    %125 = arith.maximumf %124, %119 : vector<256x1xf32>
    %126 = arith.sitofp %c15_i32_41 : i32 to f32
    %127 = vector.broadcast %126 : f32 to vector<256x1xf32>
    %128 = arith.minimumf %127, %125 : vector<256x1xf32>
    %129 = arith.fptosi %128 : vector<256x1xf32> to vector<256x1xi32>
    %c0_i32_42 = arith.constant 0 : i32
    %c15_i32_43 = arith.constant 15 : i32
    %130 = arith.sitofp %c0_i32_42 : i32 to f32
    %131 = vector.broadcast %130 : f32 to vector<256x1xf32>
    %132 = arith.maximumf %131, %120 : vector<256x1xf32>
    %133 = arith.sitofp %c15_i32_43 : i32 to f32
    %134 = vector.broadcast %133 : f32 to vector<256x1xf32>
    %135 = arith.minimumf %134, %132 : vector<256x1xf32>
    %136 = arith.fptosi %135 : vector<256x1xf32> to vector<256x1xi32>
    %c16_i32_44 = arith.constant 16 : i32
    %137 = vector.broadcast %c16_i32_44 : i32 to vector<256x1xi32>
    %138 = arith.muli %136, %137 : vector<256x1xi32>
    %139 = arith.addi %138, %129 : vector<256x1xi32>
    %140 = vector.broadcast %5 : vector<1x256xi32> to vector<256x256xi32>
    %141 = vector.broadcast %139 : vector<256x1xi32> to vector<256x256xi32>
    %142 = arith.cmpi eq, %140, %141 : vector<256x256xi32>
    %143 = arith.extui %142 : vector<256x256xi1> to vector<256x256xi32>
    %144 = arith.sitofp %143 : vector<256x256xi32> to vector<256x256xf32>
    %145 = arith.truncf %144 : vector<256x256xf32> to vector<256x256xbf16>
    %c0_45 = arith.constant 0 : index
    %c1 = arith.constant 1 : index
    %c0_46 = arith.constant 0 : index
    %c0_47 = arith.constant 0 : index
    %146 = vector.load %arg3[%c0_45, %c1, %c0_46, %c0_47] : memref<1x3x256x128xbf16, #tpu.memory_space<vmem>>, vector<1x1x256x128xbf16>
    %147 = vector.shape_cast %146 : vector<1x1x256x128xbf16> to vector<256x128xbf16>
    %cst_48 = arith.constant dense<0.000000e+00> : vector<256x128xf32>
    %148 = tpu.matmul %145, %147, %cst_48 {dimension_numbers = #tpu.dot_dimension_numbers<[1], [0], [0], [1], [0, 0, 1, 1], [], []>} : vector<256x256xbf16>, vector<256x128xbf16>, vector<256x128xf32> -> vector<256x128xf32>
    %149 = vector.extract_strided_slice %148 {offsets = [0, 0], sizes = [256, 32], strides = [1, 1]} : vector<256x128xf32> to vector<256x32xf32>
    %150 = vector.extract_strided_slice %148 {offsets = [0, 32], sizes = [256, 32], strides = [1, 1]} : vector<256x128xf32> to vector<256x32xf32>
    %151 = vector.extract_strided_slice %148 {offsets = [0, 64], sizes = [256, 32], strides = [1, 1]} : vector<256x128xf32> to vector<256x32xf32>
    %152 = vector.extract_strided_slice %148 {offsets = [0, 96], sizes = [256, 32], strides = [1, 1]} : vector<256x128xf32> to vector<256x32xf32>
    %cst_49 = arith.constant 1.000000e+00 : f32
    %153 = vector.broadcast %cst_49 : f32 to vector<256x1xf32>
    %154 = arith.subf %153, %121 : vector<256x1xf32>
    %cst_50 = arith.constant 1.000000e+00 : f32
    %155 = vector.broadcast %cst_50 : f32 to vector<256x1xf32>
    %156 = arith.subf %155, %122 : vector<256x1xf32>
    %157 = arith.mulf %154, %156 : vector<256x1xf32>
    %158 = vector.broadcast %157 : vector<256x1xf32> to vector<256x32xf32>
    %159 = arith.mulf %149, %158 : vector<256x32xf32>
    %cst_51 = arith.constant 1.000000e+00 : f32
    %160 = vector.broadcast %cst_51 : f32 to vector<256x1xf32>
    %161 = arith.subf %160, %122 : vector<256x1xf32>
    %162 = arith.mulf %121, %161 : vector<256x1xf32>
    %163 = vector.broadcast %162 : vector<256x1xf32> to vector<256x32xf32>
    %164 = arith.mulf %150, %163 : vector<256x32xf32>
    %165 = arith.addf %159, %164 : vector<256x32xf32>
    %cst_52 = arith.constant 1.000000e+00 : f32
    %166 = vector.broadcast %cst_52 : f32 to vector<256x1xf32>
    %167 = arith.subf %166, %121 : vector<256x1xf32>
    %168 = arith.mulf %167, %122 : vector<256x1xf32>
    %169 = vector.broadcast %168 : vector<256x1xf32> to vector<256x32xf32>
    %170 = arith.mulf %151, %169 : vector<256x32xf32>
    %171 = arith.addf %165, %170 : vector<256x32xf32>
    %172 = arith.mulf %121, %122 : vector<256x1xf32>
    %173 = vector.broadcast %172 : vector<256x1xf32> to vector<256x32xf32>
    %174 = arith.mulf %152, %173 : vector<256x32xf32>
    %175 = arith.addf %171, %174 : vector<256x32xf32>
    %cst_53 = arith.constant 0.909082651 : f32
    %176 = vector.broadcast %cst_53 : f32 to vector<256x1xf32>
    %177 = arith.mulf %3, %176 : vector<256x1xf32>
    %cst_54 = arith.constant 5.000000e-01 : f32
    %178 = vector.broadcast %cst_54 : f32 to vector<256x1xf32>
    %179 = arith.addf %177, %178 : vector<256x1xf32>
    %cst_55 = arith.constant 0.909082651 : f32
    %180 = vector.broadcast %cst_55 : f32 to vector<256x1xf32>
    %181 = arith.mulf %4, %180 : vector<256x1xf32>
    %cst_56 = arith.constant 5.000000e-01 : f32
    %182 = vector.broadcast %cst_56 : f32 to vector<256x1xf32>
    %183 = arith.addf %181, %182 : vector<256x1xf32>
    %cst_57 = arith.constant 1.000000e+00 : f32
    %184 = vector.broadcast %cst_57 : f32 to vector<256x1xf32>
    %185 = arith.cmpf oge, %179, %184 : vector<256x1xf32>
    %cst_58 = arith.constant 0.999989986 : f32
    %186 = vector.broadcast %cst_58 : f32 to vector<256x1xf32>
    %187 = arith.select %185, %186, %179 : vector<256x1xi1>, vector<256x1xf32>
    %cst_59 = arith.constant 0.000000e+00 : f32
    %188 = vector.broadcast %cst_59 : f32 to vector<256x1xf32>
    %189 = arith.cmpf olt, %187, %188 : vector<256x1xf32>
    %cst_60 = arith.constant 0.000000e+00 : f32
    %190 = vector.broadcast %cst_60 : f32 to vector<256x1xf32>
    %191 = arith.select %189, %190, %187 : vector<256x1xi1>, vector<256x1xf32>
    %cst_61 = arith.constant 1.000000e+00 : f32
    %192 = vector.broadcast %cst_61 : f32 to vector<256x1xf32>
    %193 = arith.cmpf oge, %183, %192 : vector<256x1xf32>
    %cst_62 = arith.constant 0.999989986 : f32
    %194 = vector.broadcast %cst_62 : f32 to vector<256x1xf32>
    %195 = arith.select %193, %194, %183 : vector<256x1xi1>, vector<256x1xf32>
    %cst_63 = arith.constant 0.000000e+00 : f32
    %196 = vector.broadcast %cst_63 : f32 to vector<256x1xf32>
    %197 = arith.cmpf olt, %195, %196 : vector<256x1xf32>
    %cst_64 = arith.constant 0.000000e+00 : f32
    %198 = vector.broadcast %cst_64 : f32 to vector<256x1xf32>
    %199 = arith.select %197, %198, %195 : vector<256x1xi1>, vector<256x1xf32>
    %cst_65 = arith.constant 1.500000e+01 : f32
    %200 = vector.broadcast %cst_65 : f32 to vector<256x1xf32>
    %201 = arith.mulf %191, %200 : vector<256x1xf32>
    %cst_66 = arith.constant 1.500000e+01 : f32
    %202 = vector.broadcast %cst_66 : f32 to vector<256x1xf32>
    %203 = arith.mulf %199, %202 : vector<256x1xf32>
    %204 = math.floor %201 : vector<256x1xf32>
    %205 = math.floor %203 : vector<256x1xf32>
    %206 = arith.subf %201, %204 : vector<256x1xf32>
    %207 = arith.subf %203, %205 : vector<256x1xf32>
    %c0_i32_67 = arith.constant 0 : i32
    %c15_i32_68 = arith.constant 15 : i32
    %208 = arith.sitofp %c0_i32_67 : i32 to f32
    %209 = vector.broadcast %208 : f32 to vector<256x1xf32>
    %210 = arith.maximumf %209, %204 : vector<256x1xf32>
    %211 = arith.sitofp %c15_i32_68 : i32 to f32
    %212 = vector.broadcast %211 : f32 to vector<256x1xf32>
    %213 = arith.minimumf %212, %210 : vector<256x1xf32>
    %214 = arith.fptosi %213 : vector<256x1xf32> to vector<256x1xi32>
    %c0_i32_69 = arith.constant 0 : i32
    %c15_i32_70 = arith.constant 15 : i32
    %215 = arith.sitofp %c0_i32_69 : i32 to f32
    %216 = vector.broadcast %215 : f32 to vector<256x1xf32>
    %217 = arith.maximumf %216, %205 : vector<256x1xf32>
    %218 = arith.sitofp %c15_i32_70 : i32 to f32
    %219 = vector.broadcast %218 : f32 to vector<256x1xf32>
    %220 = arith.minimumf %219, %217 : vector<256x1xf32>
    %221 = arith.fptosi %220 : vector<256x1xf32> to vector<256x1xi32>
    %c16_i32_71 = arith.constant 16 : i32
    %222 = vector.broadcast %c16_i32_71 : i32 to vector<256x1xi32>
    %223 = arith.muli %221, %222 : vector<256x1xi32>
    %224 = arith.addi %223, %214 : vector<256x1xi32>
    %225 = vector.broadcast %5 : vector<1x256xi32> to vector<256x256xi32>
    %226 = vector.broadcast %224 : vector<256x1xi32> to vector<256x256xi32>
    %227 = arith.cmpi eq, %225, %226 : vector<256x256xi32>
    %228 = arith.extui %227 : vector<256x256xi1> to vector<256x256xi32>
    %229 = arith.sitofp %228 : vector<256x256xi32> to vector<256x256xf32>
    %230 = arith.truncf %229 : vector<256x256xf32> to vector<256x256xbf16>
    %c0_72 = arith.constant 0 : index
    %c2 = arith.constant 2 : index
    %c0_73 = arith.constant 0 : index
    %c0_74 = arith.constant 0 : index
    %231 = vector.load %arg3[%c0_72, %c2, %c0_73, %c0_74] : memref<1x3x256x128xbf16, #tpu.memory_space<vmem>>, vector<1x1x256x128xbf16>
    %232 = vector.shape_cast %231 : vector<1x1x256x128xbf16> to vector<256x128xbf16>
    %cst_75 = arith.constant dense<0.000000e+00> : vector<256x128xf32>
    %233 = tpu.matmul %230, %232, %cst_75 {dimension_numbers = #tpu.dot_dimension_numbers<[1], [0], [0], [1], [0, 0, 1, 1], [], []>} : vector<256x256xbf16>, vector<256x128xbf16>, vector<256x128xf32> -> vector<256x128xf32>
    %234 = vector.extract_strided_slice %233 {offsets = [0, 0], sizes = [256, 32], strides = [1, 1]} : vector<256x128xf32> to vector<256x32xf32>
    %235 = vector.extract_strided_slice %233 {offsets = [0, 32], sizes = [256, 32], strides = [1, 1]} : vector<256x128xf32> to vector<256x32xf32>
    %236 = vector.extract_strided_slice %233 {offsets = [0, 64], sizes = [256, 32], strides = [1, 1]} : vector<256x128xf32> to vector<256x32xf32>
    %237 = vector.extract_strided_slice %233 {offsets = [0, 96], sizes = [256, 32], strides = [1, 1]} : vector<256x128xf32> to vector<256x32xf32>
    %cst_76 = arith.constant 1.000000e+00 : f32
    %238 = vector.broadcast %cst_76 : f32 to vector<256x1xf32>
    %239 = arith.subf %238, %206 : vector<256x1xf32>
    %cst_77 = arith.constant 1.000000e+00 : f32
    %240 = vector.broadcast %cst_77 : f32 to vector<256x1xf32>
    %241 = arith.subf %240, %207 : vector<256x1xf32>
    %242 = arith.mulf %239, %241 : vector<256x1xf32>
    %243 = vector.broadcast %242 : vector<256x1xf32> to vector<256x32xf32>
    %244 = arith.mulf %234, %243 : vector<256x32xf32>
    %cst_78 = arith.constant 1.000000e+00 : f32
    %245 = vector.broadcast %cst_78 : f32 to vector<256x1xf32>
    %246 = arith.subf %245, %207 : vector<256x1xf32>
    %247 = arith.mulf %206, %246 : vector<256x1xf32>
    %248 = vector.broadcast %247 : vector<256x1xf32> to vector<256x32xf32>
    %249 = arith.mulf %235, %248 : vector<256x32xf32>
    %250 = arith.addf %244, %249 : vector<256x32xf32>
    %cst_79 = arith.constant 1.000000e+00 : f32
    %251 = vector.broadcast %cst_79 : f32 to vector<256x1xf32>
    %252 = arith.subf %251, %206 : vector<256x1xf32>
    %253 = arith.mulf %252, %207 : vector<256x1xf32>
    %254 = vector.broadcast %253 : vector<256x1xf32> to vector<256x32xf32>
    %255 = arith.mulf %236, %254 : vector<256x32xf32>
    %256 = arith.addf %250, %255 : vector<256x32xf32>
    %257 = arith.mulf %206, %207 : vector<256x1xf32>
    %258 = vector.broadcast %257 : vector<256x1xf32> to vector<256x32xf32>
    %259 = arith.mulf %237, %258 : vector<256x32xf32>
    %260 = arith.addf %256, %259 : vector<256x32xf32>
    %261 = tpu.concatenate %90, %175, %260 in 1 : vector<256x32xf32>, vector<256x32xf32>, vector<256x32xf32> -> vector<256x96xf32>
    %262 = arith.truncf %261 : vector<256x96xf32> to vector<256x96xbf16>
    %c0_80 = arith.constant 0 : index
    %c0_81 = arith.constant 0 : index
    %263 = vector.load %arg4[%c0_80, %c0_81] : memref<3x32xf32, #tpu.memory_space<vmem>>, vector<3x32xf32>
    %264 = vector.extract_strided_slice %263 {offsets = [0, 0], sizes = [1, 32], strides = [1, 1]} : vector<3x32xf32> to vector<1x32xf32>
    %265 = vector.broadcast %2 : vector<256x1xf32> to vector<256x32xf32>
    %266 = vector.broadcast %264 : vector<1x32xf32> to vector<256x32xf32>
    %267 = arith.mulf %265, %266 : vector<256x32xf32>
    %268 = vector.extract_strided_slice %263 {offsets = [1, 0], sizes = [1, 32], strides = [1, 1]} : vector<3x32xf32> to vector<1x32xf32>
    %269 = vector.broadcast %3 : vector<256x1xf32> to vector<256x32xf32>
    %270 = vector.broadcast %268 : vector<1x32xf32> to vector<256x32xf32>
    %271 = arith.mulf %269, %270 : vector<256x32xf32>
    %272 = arith.addf %267, %271 : vector<256x32xf32>
    %273 = vector.extract_strided_slice %263 {offsets = [2, 0], sizes = [1, 32], strides = [1, 1]} : vector<3x32xf32> to vector<1x32xf32>
    %274 = vector.broadcast %4 : vector<256x1xf32> to vector<256x32xf32>
    %275 = vector.broadcast %273 : vector<1x32xf32> to vector<256x32xf32>
    %276 = arith.mulf %274, %275 : vector<256x32xf32>
    %277 = arith.addf %272, %276 : vector<256x32xf32>
    %c0_82 = arith.constant 0 : index
    %c0_83 = arith.constant 0 : index
    %278 = vector.load %arg5[%c0_82, %c0_83] : memref<1x32xf32, #tpu.memory_space<vmem>>, vector<1x32xf32>
    %279 = vector.broadcast %278 : vector<1x32xf32> to vector<256x32xf32>
    %280 = arith.addf %277, %279 : vector<256x32xf32>
    %c0_84 = arith.constant 0 : index
    %c0_85 = arith.constant 0 : index
    %c0_86 = arith.constant 0 : index
    %281 = vector.load %arg6[%c0_84, %c0_85, %c0_86] : memref<5x96x32xbf16, #tpu.memory_space<vmem>>, vector<1x96x32xbf16>
    %282 = vector.shape_cast %281 : vector<1x96x32xbf16> to vector<96x32xbf16>
    %cst_87 = arith.constant dense<0.000000e+00> : vector<256x32xf32>
    %283 = tpu.matmul %262, %282, %cst_87 {dimension_numbers = #tpu.dot_dimension_numbers<[1], [0], [0], [1], [0, 0, 1, 1], [], []>} : vector<256x96xbf16>, vector<96x32xbf16>, vector<256x32xf32> -> vector<256x32xf32>
    %284 = arith.addf %280, %283 : vector<256x32xf32>
    %c0_88 = arith.constant 0 : index
    %c0_89 = arith.constant 0 : index
    %c0_90 = arith.constant 0 : index
    %285 = vector.load %arg7[%c0_88, %c0_89, %c0_90] : memref<5x1x32xf32, #tpu.memory_space<vmem>>, vector<1x1x32xf32>
    %286 = vector.shape_cast %285 : vector<1x1x32xf32> to vector<1x32xf32>
    %287 = vector.broadcast %286 : vector<1x32xf32> to vector<256x32xf32>
    %288 = arith.addf %284, %287 : vector<256x32xf32>
    %cst_91 = arith.constant 0.000000e+00 : f32
    %289 = vector.broadcast %cst_91 : f32 to vector<256x32xf32>
    %290 = arith.maximumf %288, %289 : vector<256x32xf32>
    %291 = arith.truncf %290 : vector<256x32xf32> to vector<256x32xbf16>
    %c0_92 = arith.constant 0 : index
    %c0_93 = arith.constant 0 : index
    %c0_94 = arith.constant 0 : index
    %292 = vector.load %arg8[%c0_92, %c0_93, %c0_94] : memref<5x32x32xbf16, #tpu.memory_space<vmem>>, vector<1x32x32xbf16>
    %293 = vector.shape_cast %292 : vector<1x32x32xbf16> to vector<32x32xbf16>
    %cst_95 = arith.constant dense<0.000000e+00> : vector<256x32xf32>
    %294 = tpu.matmul %291, %293, %cst_95 {dimension_numbers = #tpu.dot_dimension_numbers<[1], [0], [0], [1], [0, 0, 1, 1], [], []>} : vector<256x32xbf16>, vector<32x32xbf16>, vector<256x32xf32> -> vector<256x32xf32>
    %c0_96 = arith.constant 0 : index
    %c0_97 = arith.constant 0 : index
    %c0_98 = arith.constant 0 : index
    %295 = vector.load %arg9[%c0_96, %c0_97, %c0_98] : memref<5x1x32xf32, #tpu.memory_space<vmem>>, vector<1x1x32xf32>
    %296 = vector.shape_cast %295 : vector<1x1x32xf32> to vector<1x32xf32>
    %297 = vector.broadcast %296 : vector<1x32xf32> to vector<256x32xf32>
    %298 = arith.addf %294, %297 : vector<256x32xf32>
    %cst_99 = arith.constant 0.000000e+00 : f32
    %299 = vector.broadcast %cst_99 : f32 to vector<256x32xf32>
    %300 = arith.maximumf %298, %299 : vector<256x32xf32>
    %301 = arith.truncf %300 : vector<256x32xf32> to vector<256x32xbf16>
    %c0_100 = arith.constant 0 : index
    %c0_101 = arith.constant 0 : index
    %c0_102 = arith.constant 0 : index
    %302 = vector.load %arg10[%c0_100, %c0_101, %c0_102] : memref<5x32x32xbf16, #tpu.memory_space<vmem>>, vector<1x32x32xbf16>
    %303 = vector.shape_cast %302 : vector<1x32x32xbf16> to vector<32x32xbf16>
    %cst_103 = arith.constant dense<0.000000e+00> : vector<256x32xf32>
    %304 = tpu.matmul %301, %303, %cst_103 {dimension_numbers = #tpu.dot_dimension_numbers<[1], [0], [0], [1], [0, 0, 1, 1], [], []>} : vector<256x32xbf16>, vector<32x32xbf16>, vector<256x32xf32> -> vector<256x32xf32>
    %c0_104 = arith.constant 0 : index
    %c0_105 = arith.constant 0 : index
    %c0_106 = arith.constant 0 : index
    %305 = vector.load %arg11[%c0_104, %c0_105, %c0_106] : memref<5x1x32xf32, #tpu.memory_space<vmem>>, vector<1x1x32xf32>
    %306 = vector.shape_cast %305 : vector<1x1x32xf32> to vector<1x32xf32>
    %307 = vector.broadcast %306 : vector<1x32xf32> to vector<256x32xf32>
    %308 = arith.addf %304, %307 : vector<256x32xf32>
    %309 = arith.addf %288, %308 : vector<256x32xf32>
    %c1_107 = arith.constant 1 : index
    %c0_108 = arith.constant 0 : index
    %c0_109 = arith.constant 0 : index
    %310 = vector.load %arg6[%c1_107, %c0_108, %c0_109] : memref<5x96x32xbf16, #tpu.memory_space<vmem>>, vector<1x96x32xbf16>
    %311 = vector.shape_cast %310 : vector<1x96x32xbf16> to vector<96x32xbf16>
    %cst_110 = arith.constant dense<0.000000e+00> : vector<256x32xf32>
    %312 = tpu.matmul %262, %311, %cst_110 {dimension_numbers = #tpu.dot_dimension_numbers<[1], [0], [0], [1], [0, 0, 1, 1], [], []>} : vector<256x96xbf16>, vector<96x32xbf16>, vector<256x32xf32> -> vector<256x32xf32>
    %313 = arith.addf %309, %312 : vector<256x32xf32>
    %c1_111 = arith.constant 1 : index
    %c0_112 = arith.constant 0 : index
    %c0_113 = arith.constant 0 : index
    %314 = vector.load %arg7[%c1_111, %c0_112, %c0_113] : memref<5x1x32xf32, #tpu.memory_space<vmem>>, vector<1x1x32xf32>
    %315 = vector.shape_cast %314 : vector<1x1x32xf32> to vector<1x32xf32>
    %316 = vector.broadcast %315 : vector<1x32xf32> to vector<256x32xf32>
    %317 = arith.addf %313, %316 : vector<256x32xf32>
    %cst_114 = arith.constant 0.000000e+00 : f32
    %318 = vector.broadcast %cst_114 : f32 to vector<256x32xf32>
    %319 = arith.maximumf %317, %318 : vector<256x32xf32>
    %320 = arith.truncf %319 : vector<256x32xf32> to vector<256x32xbf16>
    %c1_115 = arith.constant 1 : index
    %c0_116 = arith.constant 0 : index
    %c0_117 = arith.constant 0 : index
    %321 = vector.load %arg8[%c1_115, %c0_116, %c0_117] : memref<5x32x32xbf16, #tpu.memory_space<vmem>>, vector<1x32x32xbf16>
    %322 = vector.shape_cast %321 : vector<1x32x32xbf16> to vector<32x32xbf16>
    %cst_118 = arith.constant dense<0.000000e+00> : vector<256x32xf32>
    %323 = tpu.matmul %320, %322, %cst_118 {dimension_numbers = #tpu.dot_dimension_numbers<[1], [0], [0], [1], [0, 0, 1, 1], [], []>} : vector<256x32xbf16>, vector<32x32xbf16>, vector<256x32xf32> -> vector<256x32xf32>
    %c1_119 = arith.constant 1 : index
    %c0_120 = arith.constant 0 : index
    %c0_121 = arith.constant 0 : index
    %324 = vector.load %arg9[%c1_119, %c0_120, %c0_121] : memref<5x1x32xf32, #tpu.memory_space<vmem>>, vector<1x1x32xf32>
    %325 = vector.shape_cast %324 : vector<1x1x32xf32> to vector<1x32xf32>
    %326 = vector.broadcast %325 : vector<1x32xf32> to vector<256x32xf32>
    %327 = arith.addf %323, %326 : vector<256x32xf32>
    %cst_122 = arith.constant 0.000000e+00 : f32
    %328 = vector.broadcast %cst_122 : f32 to vector<256x32xf32>
    %329 = arith.maximumf %327, %328 : vector<256x32xf32>
    %330 = arith.truncf %329 : vector<256x32xf32> to vector<256x32xbf16>
    %c1_123 = arith.constant 1 : index
    %c0_124 = arith.constant 0 : index
    %c0_125 = arith.constant 0 : index
    %331 = vector.load %arg10[%c1_123, %c0_124, %c0_125] : memref<5x32x32xbf16, #tpu.memory_space<vmem>>, vector<1x32x32xbf16>
    %332 = vector.shape_cast %331 : vector<1x32x32xbf16> to vector<32x32xbf16>
    %cst_126 = arith.constant dense<0.000000e+00> : vector<256x32xf32>
    %333 = tpu.matmul %330, %332, %cst_126 {dimension_numbers = #tpu.dot_dimension_numbers<[1], [0], [0], [1], [0, 0, 1, 1], [], []>} : vector<256x32xbf16>, vector<32x32xbf16>, vector<256x32xf32> -> vector<256x32xf32>
    %c1_127 = arith.constant 1 : index
    %c0_128 = arith.constant 0 : index
    %c0_129 = arith.constant 0 : index
    %334 = vector.load %arg11[%c1_127, %c0_128, %c0_129] : memref<5x1x32xf32, #tpu.memory_space<vmem>>, vector<1x1x32xf32>
    %335 = vector.shape_cast %334 : vector<1x1x32xf32> to vector<1x32xf32>
    %336 = vector.broadcast %335 : vector<1x32xf32> to vector<256x32xf32>
    %337 = arith.addf %333, %336 : vector<256x32xf32>
    %338 = arith.addf %317, %337 : vector<256x32xf32>
    %c2_130 = arith.constant 2 : index
    %c0_131 = arith.constant 0 : index
    %c0_132 = arith.constant 0 : index
    %339 = vector.load %arg6[%c2_130, %c0_131, %c0_132] : memref<5x96x32xbf16, #tpu.memory_space<vmem>>, vector<1x96x32xbf16>
    %340 = vector.shape_cast %339 : vector<1x96x32xbf16> to vector<96x32xbf16>
    %cst_133 = arith.constant dense<0.000000e+00> : vector<256x32xf32>
    %341 = tpu.matmul %262, %340, %cst_133 {dimension_numbers = #tpu.dot_dimension_numbers<[1], [0], [0], [1], [0, 0, 1, 1], [], []>} : vector<256x96xbf16>, vector<96x32xbf16>, vector<256x32xf32> -> vector<256x32xf32>
    %342 = arith.addf %338, %341 : vector<256x32xf32>
    %c2_134 = arith.constant 2 : index
    %c0_135 = arith.constant 0 : index
    %c0_136 = arith.constant 0 : index
    %343 = vector.load %arg7[%c2_134, %c0_135, %c0_136] : memref<5x1x32xf32, #tpu.memory_space<vmem>>, vector<1x1x32xf32>
    %344 = vector.shape_cast %343 : vector<1x1x32xf32> to vector<1x32xf32>
    %345 = vector.broadcast %344 : vector<1x32xf32> to vector<256x32xf32>
    %346 = arith.addf %342, %345 : vector<256x32xf32>
    %cst_137 = arith.constant 0.000000e+00 : f32
    %347 = vector.broadcast %cst_137 : f32 to vector<256x32xf32>
    %348 = arith.maximumf %346, %347 : vector<256x32xf32>
    %349 = arith.truncf %348 : vector<256x32xf32> to vector<256x32xbf16>
    %c2_138 = arith.constant 2 : index
    %c0_139 = arith.constant 0 : index
    %c0_140 = arith.constant 0 : index
    %350 = vector.load %arg8[%c2_138, %c0_139, %c0_140] : memref<5x32x32xbf16, #tpu.memory_space<vmem>>, vector<1x32x32xbf16>
    %351 = vector.shape_cast %350 : vector<1x32x32xbf16> to vector<32x32xbf16>
    %cst_141 = arith.constant dense<0.000000e+00> : vector<256x32xf32>
    %352 = tpu.matmul %349, %351, %cst_141 {dimension_numbers = #tpu.dot_dimension_numbers<[1], [0], [0], [1], [0, 0, 1, 1], [], []>} : vector<256x32xbf16>, vector<32x32xbf16>, vector<256x32xf32> -> vector<256x32xf32>
    %c2_142 = arith.constant 2 : index
    %c0_143 = arith.constant 0 : index
    %c0_144 = arith.constant 0 : index
    %353 = vector.load %arg9[%c2_142, %c0_143, %c0_144] : memref<5x1x32xf32, #tpu.memory_space<vmem>>, vector<1x1x32xf32>
    %354 = vector.shape_cast %353 : vector<1x1x32xf32> to vector<1x32xf32>
    %355 = vector.broadcast %354 : vector<1x32xf32> to vector<256x32xf32>
    %356 = arith.addf %352, %355 : vector<256x32xf32>
    %cst_145 = arith.constant 0.000000e+00 : f32
    %357 = vector.broadcast %cst_145 : f32 to vector<256x32xf32>
    %358 = arith.maximumf %356, %357 : vector<256x32xf32>
    %359 = arith.truncf %358 : vector<256x32xf32> to vector<256x32xbf16>
    %c2_146 = arith.constant 2 : index
    %c0_147 = arith.constant 0 : index
    %c0_148 = arith.constant 0 : index
    %360 = vector.load %arg10[%c2_146, %c0_147, %c0_148] : memref<5x32x32xbf16, #tpu.memory_space<vmem>>, vector<1x32x32xbf16>
    %361 = vector.shape_cast %360 : vector<1x32x32xbf16> to vector<32x32xbf16>
    %cst_149 = arith.constant dense<0.000000e+00> : vector<256x32xf32>
    %362 = tpu.matmul %359, %361, %cst_149 {dimension_numbers = #tpu.dot_dimension_numbers<[1], [0], [0], [1], [0, 0, 1, 1], [], []>} : vector<256x32xbf16>, vector<32x32xbf16>, vector<256x32xf32> -> vector<256x32xf32>
    %c2_150 = arith.constant 2 : index
    %c0_151 = arith.constant 0 : index
    %c0_152 = arith.constant 0 : index
    %363 = vector.load %arg11[%c2_150, %c0_151, %c0_152] : memref<5x1x32xf32, #tpu.memory_space<vmem>>, vector<1x1x32xf32>
    %364 = vector.shape_cast %363 : vector<1x1x32xf32> to vector<1x32xf32>
    %365 = vector.broadcast %364 : vector<1x32xf32> to vector<256x32xf32>
    %366 = arith.addf %362, %365 : vector<256x32xf32>
    %367 = arith.addf %346, %366 : vector<256x32xf32>
    %c3 = arith.constant 3 : index
    %c0_153 = arith.constant 0 : index
    %c0_154 = arith.constant 0 : index
    %368 = vector.load %arg6[%c3, %c0_153, %c0_154] : memref<5x96x32xbf16, #tpu.memory_space<vmem>>, vector<1x96x32xbf16>
    %369 = vector.shape_cast %368 : vector<1x96x32xbf16> to vector<96x32xbf16>
    %cst_155 = arith.constant dense<0.000000e+00> : vector<256x32xf32>
    %370 = tpu.matmul %262, %369, %cst_155 {dimension_numbers = #tpu.dot_dimension_numbers<[1], [0], [0], [1], [0, 0, 1, 1], [], []>} : vector<256x96xbf16>, vector<96x32xbf16>, vector<256x32xf32> -> vector<256x32xf32>
    %371 = arith.addf %367, %370 : vector<256x32xf32>
    %c3_156 = arith.constant 3 : index
    %c0_157 = arith.constant 0 : index
    %c0_158 = arith.constant 0 : index
    %372 = vector.load %arg7[%c3_156, %c0_157, %c0_158] : memref<5x1x32xf32, #tpu.memory_space<vmem>>, vector<1x1x32xf32>
    %373 = vector.shape_cast %372 : vector<1x1x32xf32> to vector<1x32xf32>
    %374 = vector.broadcast %373 : vector<1x32xf32> to vector<256x32xf32>
    %375 = arith.addf %371, %374 : vector<256x32xf32>
    %cst_159 = arith.constant 0.000000e+00 : f32
    %376 = vector.broadcast %cst_159 : f32 to vector<256x32xf32>
    %377 = arith.maximumf %375, %376 : vector<256x32xf32>
    %378 = arith.truncf %377 : vector<256x32xf32> to vector<256x32xbf16>
    %c3_160 = arith.constant 3 : index
    %c0_161 = arith.constant 0 : index
    %c0_162 = arith.constant 0 : index
    %379 = vector.load %arg8[%c3_160, %c0_161, %c0_162] : memref<5x32x32xbf16, #tpu.memory_space<vmem>>, vector<1x32x32xbf16>
    %380 = vector.shape_cast %379 : vector<1x32x32xbf16> to vector<32x32xbf16>
    %cst_163 = arith.constant dense<0.000000e+00> : vector<256x32xf32>
    %381 = tpu.matmul %378, %380, %cst_163 {dimension_numbers = #tpu.dot_dimension_numbers<[1], [0], [0], [1], [0, 0, 1, 1], [], []>} : vector<256x32xbf16>, vector<32x32xbf16>, vector<256x32xf32> -> vector<256x32xf32>
    %c3_164 = arith.constant 3 : index
    %c0_165 = arith.constant 0 : index
    %c0_166 = arith.constant 0 : index
    %382 = vector.load %arg9[%c3_164, %c0_165, %c0_166] : memref<5x1x32xf32, #tpu.memory_space<vmem>>, vector<1x1x32xf32>
    %383 = vector.shape_cast %382 : vector<1x1x32xf32> to vector<1x32xf32>
    %384 = vector.broadcast %383 : vector<1x32xf32> to vector<256x32xf32>
    %385 = arith.addf %381, %384 : vector<256x32xf32>
    %cst_167 = arith.constant 0.000000e+00 : f32
    %386 = vector.broadcast %cst_167 : f32 to vector<256x32xf32>
    %387 = arith.maximumf %385, %386 : vector<256x32xf32>
    %388 = arith.truncf %387 : vector<256x32xf32> to vector<256x32xbf16>
    %c3_168 = arith.constant 3 : index
    %c0_169 = arith.constant 0 : index
    %c0_170 = arith.constant 0 : index
    %389 = vector.load %arg10[%c3_168, %c0_169, %c0_170] : memref<5x32x32xbf16, #tpu.memory_space<vmem>>, vector<1x32x32xbf16>
    %390 = vector.shape_cast %389 : vector<1x32x32xbf16> to vector<32x32xbf16>
    %cst_171 = arith.constant dense<0.000000e+00> : vector<256x32xf32>
    %391 = tpu.matmul %388, %390, %cst_171 {dimension_numbers = #tpu.dot_dimension_numbers<[1], [0], [0], [1], [0, 0, 1, 1], [], []>} : vector<256x32xbf16>, vector<32x32xbf16>, vector<256x32xf32> -> vector<256x32xf32>
    %c3_172 = arith.constant 3 : index
    %c0_173 = arith.constant 0 : index
    %c0_174 = arith.constant 0 : index
    %392 = vector.load %arg11[%c3_172, %c0_173, %c0_174] : memref<5x1x32xf32, #tpu.memory_space<vmem>>, vector<1x1x32xf32>
    %393 = vector.shape_cast %392 : vector<1x1x32xf32> to vector<1x32xf32>
    %394 = vector.broadcast %393 : vector<1x32xf32> to vector<256x32xf32>
    %395 = arith.addf %391, %394 : vector<256x32xf32>
    %396 = arith.addf %375, %395 : vector<256x32xf32>
    %c4 = arith.constant 4 : index
    %c0_175 = arith.constant 0 : index
    %c0_176 = arith.constant 0 : index
    %397 = vector.load %arg6[%c4, %c0_175, %c0_176] : memref<5x96x32xbf16, #tpu.memory_space<vmem>>, vector<1x96x32xbf16>
    %398 = vector.shape_cast %397 : vector<1x96x32xbf16> to vector<96x32xbf16>
    %cst_177 = arith.constant dense<0.000000e+00> : vector<256x32xf32>
    %399 = tpu.matmul %262, %398, %cst_177 {dimension_numbers = #tpu.dot_dimension_numbers<[1], [0], [0], [1], [0, 0, 1, 1], [], []>} : vector<256x96xbf16>, vector<96x32xbf16>, vector<256x32xf32> -> vector<256x32xf32>
    %400 = arith.addf %396, %399 : vector<256x32xf32>
    %c4_178 = arith.constant 4 : index
    %c0_179 = arith.constant 0 : index
    %c0_180 = arith.constant 0 : index
    %401 = vector.load %arg7[%c4_178, %c0_179, %c0_180] : memref<5x1x32xf32, #tpu.memory_space<vmem>>, vector<1x1x32xf32>
    %402 = vector.shape_cast %401 : vector<1x1x32xf32> to vector<1x32xf32>
    %403 = vector.broadcast %402 : vector<1x32xf32> to vector<256x32xf32>
    %404 = arith.addf %400, %403 : vector<256x32xf32>
    %cst_181 = arith.constant 0.000000e+00 : f32
    %405 = vector.broadcast %cst_181 : f32 to vector<256x32xf32>
    %406 = arith.maximumf %404, %405 : vector<256x32xf32>
    %407 = arith.truncf %406 : vector<256x32xf32> to vector<256x32xbf16>
    %c4_182 = arith.constant 4 : index
    %c0_183 = arith.constant 0 : index
    %c0_184 = arith.constant 0 : index
    %408 = vector.load %arg8[%c4_182, %c0_183, %c0_184] : memref<5x32x32xbf16, #tpu.memory_space<vmem>>, vector<1x32x32xbf16>
    %409 = vector.shape_cast %408 : vector<1x32x32xbf16> to vector<32x32xbf16>
    %cst_185 = arith.constant dense<0.000000e+00> : vector<256x32xf32>
    %410 = tpu.matmul %407, %409, %cst_185 {dimension_numbers = #tpu.dot_dimension_numbers<[1], [0], [0], [1], [0, 0, 1, 1], [], []>} : vector<256x32xbf16>, vector<32x32xbf16>, vector<256x32xf32> -> vector<256x32xf32>
    %c4_186 = arith.constant 4 : index
    %c0_187 = arith.constant 0 : index
    %c0_188 = arith.constant 0 : index
    %411 = vector.load %arg9[%c4_186, %c0_187, %c0_188] : memref<5x1x32xf32, #tpu.memory_space<vmem>>, vector<1x1x32xf32>
    %412 = vector.shape_cast %411 : vector<1x1x32xf32> to vector<1x32xf32>
    %413 = vector.broadcast %412 : vector<1x32xf32> to vector<256x32xf32>
    %414 = arith.addf %410, %413 : vector<256x32xf32>
    %cst_189 = arith.constant 0.000000e+00 : f32
    %415 = vector.broadcast %cst_189 : f32 to vector<256x32xf32>
    %416 = arith.maximumf %414, %415 : vector<256x32xf32>
    %417 = arith.truncf %416 : vector<256x32xf32> to vector<256x32xbf16>
    %c4_190 = arith.constant 4 : index
    %c0_191 = arith.constant 0 : index
    %c0_192 = arith.constant 0 : index
    %418 = vector.load %arg10[%c4_190, %c0_191, %c0_192] : memref<5x32x32xbf16, #tpu.memory_space<vmem>>, vector<1x32x32xbf16>
    %419 = vector.shape_cast %418 : vector<1x32x32xbf16> to vector<32x32xbf16>
    %cst_193 = arith.constant dense<0.000000e+00> : vector<256x32xf32>
    %420 = tpu.matmul %417, %419, %cst_193 {dimension_numbers = #tpu.dot_dimension_numbers<[1], [0], [0], [1], [0, 0, 1, 1], [], []>} : vector<256x32xbf16>, vector<32x32xbf16>, vector<256x32xf32> -> vector<256x32xf32>
    %c4_194 = arith.constant 4 : index
    %c0_195 = arith.constant 0 : index
    %c0_196 = arith.constant 0 : index
    %421 = vector.load %arg11[%c4_194, %c0_195, %c0_196] : memref<5x1x32xf32, #tpu.memory_space<vmem>>, vector<1x1x32xf32>
    %422 = vector.shape_cast %421 : vector<1x1x32xf32> to vector<1x32xf32>
    %423 = vector.broadcast %422 : vector<1x32xf32> to vector<256x32xf32>
    %424 = arith.addf %420, %423 : vector<256x32xf32>
    %425 = arith.addf %404, %424 : vector<256x32xf32>
    %cst_197 = arith.constant 0.000000e+00 : f32
    %426 = vector.broadcast %cst_197 : f32 to vector<256x32xf32>
    %427 = arith.maximumf %425, %426 : vector<256x32xf32>
    %428 = arith.truncf %427 : vector<256x32xf32> to vector<256x32xbf16>
    %c0_198 = arith.constant 0 : index
    %c0_199 = arith.constant 0 : index
    %429 = vector.load %arg12[%c0_198, %c0_199] : memref<32x1xbf16, #tpu.memory_space<vmem>>, vector<32x1xbf16>
    %cst_200 = arith.constant dense<0.000000e+00> : vector<256x1xf32>
    %430 = tpu.matmul %428, %429, %cst_200 {dimension_numbers = #tpu.dot_dimension_numbers<[1], [0], [0], [1], [0, 0, 1, 1], [], []>} : vector<256x32xbf16>, vector<32x1xbf16>, vector<256x1xf32> -> vector<256x1xf32>
    %c0_201 = arith.constant 0 : index
    %c0_202 = arith.constant 0 : index
    %431 = vector.load %arg13[%c0_201, %c0_202] : memref<1x1xf32, #tpu.memory_space<vmem>>, vector<1x1xf32>
    %432 = vector.broadcast %431 : vector<1x1xf32> to vector<256x1xf32>
    %433 = arith.addf %430, %432 : vector<256x1xf32>
    %c0_203 = arith.constant 0 : index
    %c0_204 = arith.constant 0 : index
    %c0_205 = arith.constant 0 : index
    %434 = vector.load %arg14[%c0_203, %c0_204, %c0_205] : memref<1x256x1xf32, #tpu.memory_space<vmem>>, vector<1x256x1xf32>
    %435 = vector.shape_cast %434 : vector<1x256x1xf32> to vector<256x1xf32>
    %436 = vector.shape_cast %433 : vector<256x1xf32> to vector<1x256x1xf32>
    tpu.vector_store %arg14[%c0_203, %c0_204, %c0_205], %436 {strides = array<i32>} : memref<1x256x1xf32, #tpu.memory_space<vmem>>, vector<1x256x1xf32>,
    return
  }
  func.func @transform_0(%arg0: i32, %arg1: i32) -> (i32, i32, i32) {
    %c0_i32 = arith.constant 0 : i32
    %c0_i32_0 = arith.constant 0 : i32
    return %arg0, %arg1, %c0_i32 : i32, i32, i32
  }
  func.func @transform_1(%arg0: i32, %arg1: i32) -> (i32, i32, i32, i32) {
    %c0_i32 = arith.constant 0 : i32
    %c0_i32_0 = arith.constant 0 : i32
    %c0_i32_1 = arith.constant 0 : i32
    %c0_i32_2 = arith.constant 0 : i32
    return %arg0, %c0_i32, %c0_i32_0, %c0_i32_1 : i32, i32, i32, i32
  }
  func.func @transform_2(%arg0: i32, %arg1: i32) -> (i32, i32) {
    %c0_i32 = arith.constant 0 : i32
    %c0_i32_0 = arith.constant 0 : i32
    %c0_i32_1 = arith.constant 0 : i32
    return %c0_i32, %c0_i32_0 : i32, i32
  }
  func.func @transform_3(%arg0: i32, %arg1: i32) -> (i32, i32) {
    %c0_i32 = arith.constant 0 : i32
    %c0_i32_0 = arith.constant 0 : i32
    %c0_i32_1 = arith.constant 0 : i32
    return %c0_i32, %c0_i32_0 : i32, i32
  }
  func.func @transform_4(%arg0: i32, %arg1: i32) -> (i32, i32, i32) {
    %c0_i32 = arith.constant 0 : i32
    %c0_i32_0 = arith.constant 0 : i32
    %c0_i32_1 = arith.constant 0 : i32
    %c0_i32_2 = arith.constant 0 : i32
    return %c0_i32, %c0_i32_0, %c0_i32_1 : i32, i32, i32
  }
  func.func @transform_5(%arg0: i32, %arg1: i32) -> (i32, i32, i32) {
    %c0_i32 = arith.constant 0 : i32
    %c0_i32_0 = arith.constant 0 : i32
    %c0_i32_1 = arith.constant 0 : i32
    %c0_i32_2 = arith.constant 0 : i32
    return %c0_i32, %c0_i32_0, %c0_i32_1 : i32, i32, i32
  }
  func.func @transform_6(%arg0: i32, %arg1: i32) -> (i32, i32, i32) {
    %c0_i32 = arith.constant 0 : i32
    %c0_i32_0 = arith.constant 0 : i32
    %c0_i32_1 = arith.constant 0 : i32
    %c0_i32_2 = arith.constant 0 : i32
    return %c0_i32, %c0_i32_0, %c0_i32_1 : i32, i32, i32
  }
  func.func @transform_7(%arg0: i32, %arg1: i32) -> (i32, i32, i32) {
    %c0_i32 = arith.constant 0 : i32
    %c0_i32_0 = arith.constant 0 : i32
    %c0_i32_1 = arith.constant 0 : i32
    %c0_i32_2 = arith.constant 0 : i32
    return %c0_i32, %c0_i32_0, %c0_i32_1 : i32, i32, i32
  }
  func.func @transform_8(%arg0: i32, %arg1: i32) -> (i32, i32, i32) {
    %c0_i32 = arith.constant 0 : i32
    %c0_i32_0 = arith.constant 0 : i32
    %c0_i32_1 = arith.constant 0 : i32
    %c0_i32_2 = arith.constant 0 : i32
    return %c0_i32, %c0_i32_0, %c0_i32_1 : i32, i32, i32
  }
  func.func @transform_9(%arg0: i32, %arg1: i32) -> (i32, i32, i32) {
    %c0_i32 = arith.constant 0 : i32
    %c0_i32_0 = arith.constant 0 : i32
    %c0_i32_1 = arith.constant 0 : i32
    %c0_i32_2 = arith.constant 0 : i32
    return %c0_i32, %c0_i32_0, %c0_i32_1 : i32, i32, i32
  }
  func.func @transform_10(%arg0: i32, %arg1: i32) -> (i32, i32) {
    %c0_i32 = arith.constant 0 : i32
    %c0_i32_0 = arith.constant 0 : i32
    %c0_i32_1 = arith.constant 0 : i32
    return %c0_i32, %c0_i32_0 : i32, i32
  }
  func.func @transform_11(%arg0: i32, %arg1: i32) -> (i32, i32) {
    %c0_i32 = arith.constant 0 : i32
    %c0_i32_0 = arith.constant 0 : i32
    %c0_i32_1 = arith.constant 0 : i32
    return %c0_i32, %c0_i32_0 : i32, i32
  }
  func.func @transform_12(%arg0: i32, %arg1: i32) -> (i32, i32, i32) {
    %c0_i32 = arith.constant 0 : i32
    %c0_i32_0 = arith.constant 0 : i32
    return %arg0, %arg1, %c0_i32 : i32, i32, i32
  }
}

</mosaic_0001>

<llo_original>
// kernel: local_decoder_forward.1
$region0: #{local_decoder_forward.1}
  #allocation0 [shape = 'u32[]', space=smem, size = 0x4, offset = 0x4, fixed_abs, tag = 'smem constant byte address 0x4 - core index']
  #allocation1 [shape = 'u32[72,128]{1,0:T(1,128)}', space=vmem, size = 0x9000, scoped, tag = 'internal scratch']
  #allocation2 [shape = 'f32[1,1]{1,0:T(1,128)S(1)}', space=vmem, size = 0x200, scoped, tag = 'scoped memory for local_decoder_forward.1']
  %s0 = inlined_call_operand.vmem [shape: f32[2,512,3], index: 0, kind: input, shape index: {}]
  %s1 = inlined_call_operand.vmem [shape: bf16[2,3,256,128], index: 1, kind: input, shape index: {}]
  %s2 = inlined_call_operand.vmem [shape: f32[3,32], index: 2, kind: input, shape index: {}]
  %s3 = inlined_call_operand.vmem [shape: f32[1,32], index: 3, kind: input, shape index: {}]
  %s4 = inlined_call_operand.vmem [shape: bf16[5,96,32], index: 4, kind: input, shape index: {}]
  %s5 = inlined_call_operand.vmem [shape: f32[5,1,32], index: 5, kind: input, shape index: {}]
  %s6 = inlined_call_operand.vmem [shape: bf16[5,32,32], index: 6, kind: input, shape index: {}]
  %s7 = inlined_call_operand.vmem [shape: f32[5,1,32], index: 7, kind: input, shape index: {}]
  %s8 = inlined_call_operand.vmem [shape: bf16[5,32,32], index: 8, kind: input, shape index: {}]
  %s9 = inlined_call_operand.vmem [shape: f32[5,1,32], index: 9, kind: input, shape index: {}]
  %s10 = inlined_call_operand.vmem [shape: bf16[32,1], index: 10, kind: input, shape index: {}]
  %s11 = inlined_call_operand.<no memory space> [shape: f32[1,1], index: 11, kind: input, shape index: {}]
  %s12 = inlined_call_operand.vmem [shape: f32[2,512,1], index: 12, kind: output, shape index: {}]
  %s13 = sld [smem:[#allocation0]]
  $region81: #{local_decoder_forward.1} parent=0
    _
  %s15 = ssub.s32 1, %s13
  %s16 = scalar_select 0, %s15, %s13
  %v17 = vstv %s11
  %18 = vst [vmem:[#allocation2] sm:$0x1] %v17
  loop: start=0, step=1, limit=6
  $region2: #{local_decoder_forward.1} parent=0 // loop_pre_header
    _
  $region3: #{local_decoder_forward.1} parent=0 // loop_header
    %s20 = sphi 0, %s24
    %p21 = scmp.ge.s32.totalorder %s20, 6
    %s27 = sphi 0, %s39
    %s28 = sphi 0, %s35
    %s29 = sphi 0, %s27
    %s30 = sphi 0, %s28
    %s31 = sphi 0, %s29
    %s32 = sphi 0, %s30
    %s44 = sphi 0, %s46
    %s47 = sphi 0, %s44
    %s48 = sphi 0, %s47
    %s64 = sphi 0, %s48
    %s70 = sphi 0, %s72
    %s73 = sphi 0, %s70
    %s74 = sphi 0, %s73
    %s90 = sphi 0, %s74
    %s94 = sphi 0, %s94
    %s96 = sphi 0, %s94
    %s97 = sphi 0, %s96
    %s111 = sphi 0, %s97
    %s115 = sphi 0, %s115
    %s117 = sphi 0, %s115
    %s118 = sphi 0, %s117
    %s132 = sphi 0, %s118
    %s136 = sphi 0, %s136
    %s138 = sphi 0, %s136
    %s139 = sphi 0, %s138
    %s153 = sphi 0, %s139
    %s157 = sphi 0, %s157
    %s159 = sphi 0, %s157
    %s160 = sphi 0, %s159
    %s174 = sphi 0, %s160
    %s178 = sphi 0, %s178
    %s180 = sphi 0, %s178
    %s181 = sphi 0, %s180
    %s195 = sphi 0, %s181
    %s199 = sphi 0, %s199
    %s201 = sphi 0, %s199
    %s202 = sphi 0, %s201
    %s216 = sphi 0, %s202
    %s220 = sphi 0, %s220
    %s222 = sphi 0, %s220
    %s223 = sphi 0, %s222
    %s237 = sphi 0, %s223
    %s241 = sphi 0, %s241
    %s243 = sphi 0, %s241
    %s244 = sphi 0, %s243
    %s258 = sphi 0, %s244
    %s262 = sphi 0, %s262
    %s264 = sphi 0, %s262
    %s265 = sphi 0, %s264
    %s279 = sphi 0, %s265
    %s283 = sphi 0, %s283
    %s285 = sphi 0, %s283
    %s286 = sphi 0, %s285
    %s300 = sphi 0, %s286
    %s308 = sphi 0, %s310
    %s311 = sphi 0, %s308
    %s312 = sphi 0, %s311
    %s328 = sphi 0, %s312
  $region4: #{local_decoder_forward.1} parent=0 // loop_header_branch
    %23 = sbr.rel (%p21) target = $region8
  $region5: #{local_decoder_forward.1} parent=0 // loop_body
    %s25 = ssub.s32 %s20, 1
    %s26 = ssub.s32 %s20, 2
    %s33 = sadd.s32 1, %s28
    %p34 = scmp.ge.s32.totalorder %s33, 2
    %s35 = scalar_select %p34, 0, %s33
    %s36 = sadd.s32 1, %s27
    %s37 = scalar_select %p34, %s36, %s27
    %p38 = scmp.ge.s32.totalorder %s37, 2
    %s39 = scalar_select %p38, 0, %s37
    %s40 = ssub.s32 %s27, %s39
    %s41 = ssub.s32 %s28, %s35
    %s42 = sor.u32 %s40, %s41
    %p43 = scmp.eq.s32.totalorder %s42, 0
    %s45 = sadd.s32 %s44, 1
    %s46 = scalar_select %p43, %s44, %s45
    %p49 = pneg %p43
    %p50 = scmp.eq.s32.totalorder %s20, 3
    %p51 = por %p49, %p50
    %p52 = scmp.ne.s32.totalorder %s44, %s47
    %p53 = scmp.eq.s32.totalorder %s20, 0
    %p54 = por %p52, %p53
    %p55 = scmp.ne.s32.totalorder %s44, %s47
    %p56 = scmp.eq.s32.totalorder %s25, 3
    %p57 = por %p55, %p56
    %p58 = scmp.ne.s32.totalorder %s47, %s48
    %p59 = scmp.eq.s32.totalorder %s25, 0
    %p60 = por %p58, %p59
    %p61 = scmp.ne.s32.totalorder %s47, %s48
    %p62 = scmp.eq.s32.totalorder %s26, 3
    %p63 = por %p61, %p62
    %p65 = scmp.ne.s32.totalorder %s48, %s64
    %p66 = scmp.eq.s32.totalorder %s26, 0
    %p67 = por %p65, %p66
    %s68 = ssub.s32 %s27, %s39
    %p69 = scmp.eq.s32.totalorder %s68, 0
    %s71 = sadd.s32 %s70, 1
    %s72 = scalar_select %p69, %s70, %s71
    %p75 = pneg %p69
    %p76 = scmp.eq.s32.totalorder %s20, 3
    %p77 = por %p75, %p76
    %p78 = scmp.ne.s32.totalorder %s70, %s73
    %p79 = scmp.eq.s32.totalorder %s20, 0
    %p80 = por %p78, %p79
    %p81 = scmp.ne.s32.totalorder %s70, %s73
    %p82 = scmp.eq.s32.totalorder %s25, 3
    %p83 = por %p81, %p82
    %p84 = scmp.ne.s32.totalorder %s73, %s74
    %p85 = scmp.eq.s32.totalorder %s25, 0
    %p86 = por %p84, %p85
    %p87 = scmp.ne.s32.totalorder %s73, %s74
    %p88 = scmp.eq.s32.totalorder %s26, 3
    %p89 = por %p87, %p88
    %p91 = scmp.ne.s32.totalorder %s74, %s90
    %p92 = scmp.eq.s32.totalorder %s26, 0
    %p93 = por %p91, %p92
    %s95 = sadd.s32 %s94, 1
    %p98 = scmp.eq.s32.totalorder %s20, 3
    %p99 = scmp.ne.s32.totalorder %s94, %s96
    %p100 = scmp.eq.s32.totalorder %s20, 0
    %p101 = por %p99, %p100
    %p102 = scmp.ne.s32.totalorder %s94, %s96
    %p103 = scmp.eq.s32.totalorder %s25, 3
    %p104 = por %p102, %p103
    %p105 = scmp.ne.s32.totalorder %s96, %s97
    %p106 = scmp.eq.s32.totalorder %s25, 0
    %p107 = por %p105, %p106
    %p108 = scmp.ne.s32.totalorder %s96, %s97
    %p109 = scmp.eq.s32.totalorder %s26, 3
    %p110 = por %p108, %p109
    %p112 = scmp.ne.s32.totalorder %s97, %s111
    %p113 = scmp.eq.s32.totalorder %s26, 0
    %p114 = por %p112, %p113
    %s116 = sadd.s32 %s115, 1
    %p119 = scmp.eq.s32.totalorder %s20, 3
    %p120 = scmp.ne.s32.totalorder %s115, %s117
    %p121 = scmp.eq.s32.totalorder %s20, 0
    %p122 = por %p120, %p121
    %p123 = scmp.ne.s32.totalorder %s115, %s117
    %p124 = scmp.eq.s32.totalorder %s25, 3
    %p125 = por %p123, %p124
    %p126 = scmp.ne.s32.totalorder %s117, %s118
    %p127 = scmp.eq.s32.totalorder %s25, 0
    %p128 = por %p126, %p127
    %p129 = scmp.ne.s32.totalorder %s117, %s118
    %p130 = scmp.eq.s32.totalorder %s26, 3
    %p131 = por %p129, %p130
    %p133 = scmp.ne.s32.totalorder %s118, %s132
    %p134 = scmp.eq.s32.totalorder %s26, 0
    %p135 = por %p133, %p134
    %s137 = sadd.s32 %s136, 1
    %p140 = scmp.eq.s32.totalorder %s20, 3
    %p141 = scmp.ne.s32.totalorder %s136, %s138
    %p142 = scmp.eq.s32.totalorder %s20, 0
    %p143 = por %p141, %p142
    %p144 = scmp.ne.s32.totalorder %s136, %s138
    %p145 = scmp.eq.s32.totalorder %s25, 3
    %p146 = por %p144, %p145
    %p147 = scmp.ne.s32.totalorder %s138, %s139
    %p148 = scmp.eq.s32.totalorder %s25, 0
    %p149 = por %p147, %p148
    %p150 = scmp.ne.s32.totalorder %s138, %s139
    %p151 = scmp.eq.s32.totalorder %s26, 3
    %p152 = por %p150, %p151
    %p154 = scmp.ne.s32.totalorder %s139, %s153
    %p155 = scmp.eq.s32.totalorder %s26, 0
    %p156 = por %p154, %p155
    %s158 = sadd.s32 %s157, 1
    %p161 = scmp.eq.s32.totalorder %s20, 3
    %p162 = scmp.ne.s32.totalorder %s157, %s159
    %p163 = scmp.eq.s32.totalorder %s20, 0
    %p164 = por %p162, %p163
    %p165 = scmp.ne.s32.totalorder %s157, %s159
    %p166 = scmp.eq.s32.totalorder %s25, 3
    %p167 = por %p165, %p166
    %p168 = scmp.ne.s32.totalorder %s159, %s160
    %p169 = scmp.eq.s32.totalorder %s25, 0
    %p170 = por %p168, %p169
    %p171 = scmp.ne.s32.totalorder %s159, %s160
    %p172 = scmp.eq.s32.totalorder %s26, 3
    %p173 = por %p171, %p172
    %p175 = scmp.ne.s32.totalorder %s160, %s174
    %p176 = scmp.eq.s32.totalorder %s26, 0
    %p177 = por %p175, %p176
    %s179 = sadd.s32 %s178, 1
    %p182 = scmp.eq.s32.totalorder %s20, 3
    %p183 = scmp.ne.s32.totalorder %s178, %s180
    %p184 = scmp.eq.s32.totalorder %s20, 0
    %p185 = por %p183, %p184
    %p186 = scmp.ne.s32.totalorder %s178, %s180
    %p187 = scmp.eq.s32.totalorder %s25, 3
    %p188 = por %p186, %p187
    %p189 = scmp.ne.s32.totalorder %s180, %s181
    %p190 = scmp.eq.s32.totalorder %s25, 0
    %p191 = por %p189, %p190
    %p192 = scmp.ne.s32.totalorder %s180, %s181
    %p193 = scmp.eq.s32.totalorder %s26, 3
    %p194 = por %p192, %p193
    %p196 = scmp.ne.s32.totalorder %s181, %s195
    %p197 = scmp.eq.s32.totalorder %s26, 0
    %p198 = por %p196, %p197
    %s200 = sadd.s32 %s199, 1
    %p203 = scmp.eq.s32.totalorder %s20, 3
    %p204 = scmp.ne.s32.totalorder %s199, %s201
    %p205 = scmp.eq.s32.totalorder %s20, 0
    %p206 = por %p204, %p205
    %p207 = scmp.ne.s32.totalorder %s199, %s201
    %p208 = scmp.eq.s32.totalorder %s25, 3
    %p209 = por %p207, %p208
    %p210 = scmp.ne.s32.totalorder %s201, %s202
    %p211 = scmp.eq.s32.totalorder %s25, 0
    %p212 = por %p210, %p211
    %p213 = scmp.ne.s32.totalorder %s201, %s202
    %p214 = scmp.eq.s32.totalorder %s26, 3
    %p215 = por %p213, %p214
    %p217 = scmp.ne.s32.totalorder %s202, %s216
    %p218 = scmp.eq.s32.totalorder %s26, 0
    %p219 = por %p217, %p218
    %s221 = sadd.s32 %s220, 1
    %p224 = scmp.eq.s32.totalorder %s20, 3
    %p225 = scmp.ne.s32.totalorder %s220, %s222
    %p226 = scmp.eq.s32.totalorder %s20, 0
    %p227 = por %p225, %p226
    %p228 = scmp.ne.s32.totalorder %s220, %s222
    %p229 = scmp.eq.s32.totalorder %s25, 3
    %p230 = por %p228, %p229
    %p231 = scmp.ne.s32.totalorder %s222, %s223
    %p232 = scmp.eq.s32.totalorder %s25, 0
    %p233 = por %p231, %p232
    %p234 = scmp.ne.s32.totalorder %s222, %s223
    %p235 = scmp.eq.s32.totalorder %s26, 3
    %p236 = por %p234, %p235
    %p238 = scmp.ne.s32.totalorder %s223, %s237
    %p239 = scmp.eq.s32.totalorder %s26, 0
    %p240 = por %p238, %p239
    %s242 = sadd.s32 %s241, 1
    %p245 = scmp.eq.s32.totalorder %s20, 3
    %p246 = scmp.ne.s32.totalorder %s241, %s243
    %p247 = scmp.eq.s32.totalorder %s20, 0
    %p248 = por %p246, %p247
    %p249 = scmp.ne.s32.totalorder %s241, %s243
    %p250 = scmp.eq.s32.totalorder %s25, 3
    %p251 = por %p249, %p250
    %p252 = scmp.ne.s32.totalorder %s243, %s244
    %p253 = scmp.eq.s32.totalorder %s25, 0
    %p254 = por %p252, %p253
    %p255 = scmp.ne.s32.totalorder %s243, %s244
    %p256 = scmp.eq.s32.totalorder %s26, 3
    %p257 = por %p255, %p256
    %p259 = scmp.ne.s32.totalorder %s244, %s258
    %p260 = scmp.eq.s32.totalorder %s26, 0
    %p261 = por %p259, %p260
    %s263 = sadd.s32 %s262, 1
    %p266 = scmp.eq.s32.totalorder %s20, 3
    %p267 = scmp.ne.s32.totalorder %s262, %s264
    %p268 = scmp.eq.s32.totalorder %s20, 0
    %p269 = por %p267, %p268
    %p270 = scmp.ne.s32.totalorder %s262, %s264
    %p271 = scmp.eq.s32.totalorder %s25, 3
    %p272 = por %p270, %p271
    %p273 = scmp.ne.s32.totalorder %s264, %s265
    %p274 = scmp.eq.s32.totalorder %s25, 0
    %p275 = por %p273, %p274
    %p276 = scmp.ne.s32.totalorder %s264, %s265
    %p277 = scmp.eq.s32.totalorder %s26, 3
    %p278 = por %p276, %p277
    %p280 = scmp.ne.s32.totalorder %s265, %s279
    %p281 = scmp.eq.s32.totalorder %s26, 0
    %p282 = por %p280, %p281
    %s284 = sadd.s32 %s283, 1
    %p287 = scmp.eq.s32.totalorder %s20, 3
    %p288 = scmp.ne.s32.totalorder %s283, %s285
    %p289 = scmp.eq.s32.totalorder %s20, 0
    %p290 = por %p288, %p289
    %p291 = scmp.ne.s32.totalorder %s283, %s285
    %p292 = scmp.eq.s32.totalorder %s25, 3
    %p293 = por %p291, %p292
    %p294 = scmp.ne.s32.totalorder %s285, %s286
    %p295 = scmp.eq.s32.totalorder %s25, 0
    %p296 = por %p294, %p295
    %p297 = scmp.ne.s32.totalorder %s285, %s286
    %p298 = scmp.eq.s32.totalorder %s26, 3
    %p299 = por %p297, %p298
    %p301 = scmp.ne.s32.totalorder %s286, %s300
    %p302 = scmp.eq.s32.totalorder %s26, 0
    %p303 = por %p301, %p302
    %s304 = ssub.s32 %s27, %s39
    %s305 = ssub.s32 %s28, %s35
    %s306 = sor.u32 %s304, %s305
    %p307 = scmp.eq.s32.totalorder %s306, 0
    %s309 = sadd.s32 %s308, 1
    %s310 = scalar_select %p307, %s308, %s309
    %p313 = pneg %p307
    %p314 = scmp.eq.s32.totalorder %s20, 3
    %p315 = por %p313, %p314
    %p316 = scmp.ne.s32.totalorder %s308, %s311
    %p317 = scmp.eq.s32.totalorder %s20, 0
    %p318 = por %p316, %p317
    %p319 = scmp.ne.s32.totalorder %s308, %s311
    %p320 = scmp.eq.s32.totalorder %s25, 3
    %p321 = por %p319, %p320
    %p322 = scmp.ne.s32.totalorder %s311, %s312
    %p323 = scmp.eq.s32.totalorder %s25, 0
    %p324 = por %p322, %p323
    %p325 = scmp.ne.s32.totalorder %s311, %s312
    %p326 = scmp.eq.s32.totalorder %s26, 3
    %p327 = por %p325, %p326
    %p329 = scmp.ne.s32.totalorder %s312, %s328
    %p330 = scmp.eq.s32.totalorder %s26, 0
    %p331 = por %p329, %p330
    %p332 = scmp.le.s32.totalorder 1, %s20
    %p333 = scmp.lt.s32.totalorder %s20, 5
    %p334 = pnand %p332, %p333
    %p335 = pneg %p334
    // Predicated region
    $region9: #{local_decoder_forward.1} parent=5 // pred_check
      _
    $region10: #{local_decoder_forward.1} parent=5 // pred_check_branch
      %337 = sbr.rel (%p334) target = $region12
    $region11: #{local_decoder_forward.1} parent=5 // pred_region
      %s338 = ssub.s32 %s20, 1
      // Predicated region
      $region13: #{local_decoder_forward.1} parent=11 // pred_check
        %p339 = pneg %p107
      $region14: #{local_decoder_forward.1} parent=11 // pred_check_branch
        %341 = sbr.rel (%p339) target = $region16
      $region15: #{local_decoder_forward.1} parent=11 // pred_region
        _
      $region16: #{local_decoder_forward.1} parent=11 // pred_fallthru
        _
      // Predicated region
      $region17: #{local_decoder_forward.1} parent=11 // pred_check
        %p342 = pneg %p128
      $region18: #{local_decoder_forward.1} parent=11 // pred_check_branch
        %344 = sbr.rel (%p342) target = $region20
      $region19: #{local_decoder_forward.1} parent=11 // pred_region
        _
      $region20: #{local_decoder_forward.1} parent=11 // pred_fallthru
        _
      // Predicated region
      $region21: #{local_decoder_forward.1} parent=11 // pred_check
        %p345 = pneg %p149
      $region22: #{local_decoder_forward.1} parent=11 // pred_check_branch
        %347 = sbr.rel (%p345) target = $region24
      $region23: #{local_decoder_forward.1} parent=11 // pred_region
        _
      $region24: #{local_decoder_forward.1} parent=11 // pred_fallthru
        _
      // Predicated region
      $region25: #{local_decoder_forward.1} parent=11 // pred_check
        %p348 = pneg %p170
      $region26: #{local_decoder_forward.1} parent=11 // pred_check_branch
        %350 = sbr.rel (%p348) target = $region28
      $region27: #{local_decoder_forward.1} parent=11 // pred_region
        _
      $region28: #{local_decoder_forward.1} parent=11 // pred_fallthru
        _
      // Predicated region
      $region29: #{local_decoder_forward.1} parent=11 // pred_check
        %p351 = pneg %p191
      $region30: #{local_decoder_forward.1} parent=11 // pred_check_branch
        %353 = sbr.rel (%p351) target = $region32
      $region31: #{local_decoder_forward.1} parent=11 // pred_region
        _
      $region32: #{local_decoder_forward.1} parent=11 // pred_fallthru
        _
      // Predicated region
      $region33: #{local_decoder_forward.1} parent=11 // pred_check
        %p354 = pneg %p212
      $region34: #{local_decoder_forward.1} parent=11 // pred_check_branch
        %356 = sbr.rel (%p354) target = $region36
      $region35: #{local_decoder_forward.1} parent=11 // pred_region
        _
      $region36: #{local_decoder_forward.1} parent=11 // pred_fallthru
        _
      // Predicated region
      $region37: #{local_decoder_forward.1} parent=11 // pred_check
        %p357 = pneg %p233
      $region38: #{local_decoder_forward.1} parent=11 // pred_check_branch
        %359 = sbr.rel (%p357) target = $region40
      $region39: #{local_decoder_forward.1} parent=11 // pred_region
        _
      $region40: #{local_decoder_forward.1} parent=11 // pred_fallthru
        _
      // Predicated region
      $region41: #{local_decoder_forward.1} parent=11 // pred_check
        %p360 = pneg %p254
      $region42: #{local_decoder_forward.1} parent=11 // pred_check_branch
        %362 = sbr.rel (%p360) target = $region44
      $region43: #{local_decoder_forward.1} parent=11 // pred_region
        _
      $region44: #{local_decoder_forward.1} parent=11 // pred_fallthru
        _
      // Predicated region
      $region45: #{local_decoder_forward.1} parent=11 // pred_check
        %p363 = pneg %p275
      $region46: #{local_decoder_forward.1} parent=11 // pred_check_branch
        %365 = sbr.rel (%p363) target = $region48
      $region47: #{local_decoder_forward.1} parent=11 // pred_region
        _
      $region48: #{local_decoder_forward.1} parent=11 // pred_fallthru
        _
      // Predicated region
      $region49: #{local_decoder_forward.1} parent=11 // pred_check
        %p366 = pneg %p296
      $region50: #{local_decoder_forward.1} parent=11 // pred_check_branch
        %368 = sbr.rel (%p366) target = $region52
      $region51: #{local_decoder_forward.1} parent=11 // pred_region
        _
      $region52: #{local_decoder_forward.1} parent=11 // pred_fallthru
        _
    $region12: #{local_decoder_forward.1} parent=5 // pred_fallthru
      _
    %p369 = scmp.lt.s32.totalorder %s20, 4
    // Predicated region
    $region53: #{local_decoder_forward.1} parent=5 // pred_check
      %p370 = pneg %p369
    $region54: #{local_decoder_forward.1} parent=5 // pred_check_branch
      %372 = sbr.rel (%p370) target = $region56
    $region55: #{local_decoder_forward.1} parent=5 // pred_region
      // Predicated region
      $region57: #{local_decoder_forward.1} parent=55 // pred_check
        %p373 = pneg %p54
      $region58: #{local_decoder_forward.1} parent=55 // pred_check_branch
        %375 = sbr.rel (%p373) target = $region60
      $region59: #{local_decoder_forward.1} parent=55 // pred_region
        %s376 = smul.u32 32, %s28
        %p377 = scmp.lt.s32.totalorder %s27, 1
        %s378 = scalar_select %p377, %s27, 1
        %p379 = scmp.lt.s32.totalorder %s376, 63
        %s380 = scalar_select %p379, %s376, 63
        %s381 = smul.addr %s378, 64
        %s382 = sadd.s32 %s380, %s381
        %s383 = smul.addr %s382, 8
        %s384 = scalar_lea.vmem %s0, %s383
        %s385 = smul.u32 32, %s28
      $region60: #{local_decoder_forward.1} parent=55 // pred_fallthru
        _
      // Predicated region
      $region61: #{local_decoder_forward.1} parent=55 // pred_check
        %p386 = pneg %p80
      $region62: #{local_decoder_forward.1} parent=55 // pred_check_branch
        %388 = sbr.rel (%p386) target = $region64
      $region63: #{local_decoder_forward.1} parent=55 // pred_region
        %p389 = scmp.lt.s32.totalorder %s27, 1
        %s390 = scalar_select %p389, %s27, 1
        %s391 = smul.addr %s390, 96
        %s392 = smul.addr %s391, 4
        %s393 = scalar_lea.vmem %s1, %s392
      $region64: #{local_decoder_forward.1} parent=55 // pred_fallthru
        _
    $region56: #{local_decoder_forward.1} parent=5 // pred_fallthru
      _
    %p394 = scmp.le.s32.totalorder 1, %s20
    %p395 = scmp.lt.s32.totalorder %s20, 5
    %p396 = pnand %p394, %p395
    %p397 = pneg %p396
    // Predicated region
    $region65: #{local_decoder_forward.1} parent=5 // pred_check
      _
    $region66: #{local_decoder_forward.1} parent=5 // pred_check_branch
      %399 = sbr.rel (%p396) target = $region68
    $region67: #{local_decoder_forward.1} parent=5 // pred_region
      %s400 = ssub.s32 %s20, 1
      %s401 = smul.u32 32, %s30
      %p402 = scmp.lt.s32.totalorder %s29, 1
      %s403 = scalar_select %p402, %s29, 1
      %p404 = scmp.lt.s32.totalorder %s401, 63
      %s405 = scalar_select %p404, %s401, 63
      %s406 = smul.addr %s403, 64
      %s407 = sadd.s32 %s405, %s406
      %s408 = smul.addr %s407, 8
      %s409 = scalar_lea.vmem %s0, %s408
      %p410 = pneg %p60
      %p411 = pneg %p57
      %p412 = scmp.lt.s32.totalorder %s29, 1
      %s413 = scalar_select %p412, %s29, 1
      %s414 = smul.addr %s413, 96
      %s415 = smul.addr %s414, 4
      %s416 = scalar_lea.vmem %s1, %s415
      %p417 = pneg %p86
      %p418 = pneg %p83
      %p419 = pneg %p107
      %p420 = pneg %p104
      %p421 = pneg %p128
      %p422 = pneg %p125
      %p423 = pneg %p149
      %p424 = pneg %p146
      %p425 = pneg %p170
      %p426 = pneg %p167
      %p427 = pneg %p191
      %p428 = pneg %p188
      %p429 = pneg %p212
      %p430 = pneg %p209
      %p431 = pneg %p233
      %p432 = pneg %p230
      %p433 = pneg %p254
      %p434 = pneg %p251
      %p435 = pneg %p275
      %p436 = pneg %p272
      %p437 = pneg %p296
      %p438 = pneg %p293
      %p439 = pneg %p324
      %p440 = pneg %p321
      %s441 = smul.u32 32, %s30
      %p442 = scmp.lt.s32.totalorder %s29, 1
      %s443 = scalar_select %p442, %s29, 1
      %p444 = scmp.lt.s32.totalorder %s441, 63
      %s445 = scalar_select %p444, %s441, 63
      %s446 = smul.addr %s443, 64
      %s447 = sadd.s32 %s445, %s446
      %s448 = smul.addr %s447, 8
      %s449 = scalar_lea.vmem %s12, %s448
      %s450 = smul.u32 32, %s30
      %p451 = scmp.lt.s32.totalorder %s29, 1
      %s452 = scalar_select %p451, %s29, 1
      %p453 = scmp.lt.s32.totalorder %s450, 63
      %s454 = scalar_select %p453, %s450, 63
      %s455 = smul.addr %s452, 64
      %s456 = sadd.s32 %s454, %s455
      %s457 = smul.addr %s456, 8
      %s458 = scalar_lea.vmem %s0, %s457
      %s459 = smul.u32 32, %s30
      %p460 = scmp.lt.s32.totalorder %s29, 1
      %s461 = scalar_select %p460, %s29, 1
      %s462 = smul.addr %s461, 96
      %s463 = smul.addr %s462, 4
      %s464 = scalar_lea.vmem %s1, %s463
      %s465 = smul.u32 32, %s30
      %p466 = scmp.lt.s32.totalorder %s29, 1
      %s467 = scalar_select %p466, %s29, 1
      %p468 = scmp.lt.s32.totalorder %s465, 63
      %s469 = scalar_select %p468, %s465, 63
      %s470 = smul.addr %s467, 64
      %s471 = sadd.s32 %s469, %s470
      %s472 = smul.addr %s471, 8
      %s473 = scalar_lea.vmem %s12, %s472
      %s474 = smul.u32 32, %s30
      %v476 = vld [vmem:[%s458] sm:$0xff]
      %v477 = vld [vmem:[%s458 + $0x8] sm:$0xff]
      %v478 = vld [vmem:[%s458 + $0x10] sm:$0xff]
      %v479 = vld [vmem:[%s458 + $0x18] sm:$0xff]
      %v480 = vld [vmem:[%s458 + $0x20] sm:$0xff]
      %v481 = vld [vmem:[%s458 + $0x28] sm:$0xff]
      %v482 = vld [vmem:[%s458 + $0x30] sm:$0xff]
      %v483 = vld [vmem:[%s458 + $0x38] sm:$0xff]
      %v484 = vld [vmem:[%s458 + $0x40] sm:$0xff]
      %v485 = vld [vmem:[%s458 + $0x48] sm:$0xff]
      %v486 = vld [vmem:[%s458 + $0x50] sm:$0xff]
      %v487 = vld [vmem:[%s458 + $0x58] sm:$0xff]
      %v488 = vld [vmem:[%s458 + $0x60] sm:$0xff]
      %v489 = vld [vmem:[%s458 + $0x68] sm:$0xff]
      %v490 = vld [vmem:[%s458 + $0x70] sm:$0xff]
      %v491 = vld [vmem:[%s458 + $0x78] sm:$0xff]
      %v492 = vld [vmem:[%s458 + $0x80] sm:$0xff]
      %v493 = vld [vmem:[%s458 + $0x88] sm:$0xff]
      %v494 = vld [vmem:[%s458 + $0x90] sm:$0xff]
      %v495 = vld [vmem:[%s458 + $0x98] sm:$0xff]
      %v496 = vld [vmem:[%s458 + $0xa0] sm:$0xff]
      %v497 = vld [vmem:[%s458 + $0xa8] sm:$0xff]
      %v498 = vld [vmem:[%s458 + $0xb0] sm:$0xff]
      %v499 = vld [vmem:[%s458 + $0xb8] sm:$0xff]
      %v500 = vld [vmem:[%s458 + $0xc0] sm:$0xff]
      %v501 = vld [vmem:[%s458 + $0xc8] sm:$0xff]
      %v502 = vld [vmem:[%s458 + $0xd0] sm:$0xff]
      %v503 = vld [vmem:[%s458 + $0xd8] sm:$0xff]
      %v504 = vld [vmem:[%s458 + $0xe0] sm:$0xff]
      %v505 = vld [vmem:[%s458 + $0xe8] sm:$0xff]
      %v506 = vld [vmem:[%s458 + $0xf0] sm:$0xff]
      %v507 = vld [vmem:[%s458 + $0xf8] sm:$0xff]
      %v508 = vlaneseq
      %v509 = vand.u32 %v508, 127
      %v510 = vadd.s32 %v509, 128
      %v511 = vmul.f32 %v476, 0.90908265
      %v512 = vmul.f32 %v477, 0.90908265
      %v513 = vmul.f32 %v478, 0.90908265
      %v514 = vmul.f32 %v479, 0.90908265
      %v515 = vmul.f32 %v480, 0.90908265
      %v516 = vmul.f32 %v481, 0.90908265
      %v517 = vmul.f32 %v482, 0.90908265
      %v518 = vmul.f32 %v483, 0.90908265
      %v519 = vmul.f32 %v484, 0.90908265
      %v520 = vmul.f32 %v485, 0.90908265
      %v521 = vmul.f32 %v486, 0.90908265
      %v522 = vmul.f32 %v487, 0.90908265
      %v523 = vmul.f32 %v488, 0.90908265
      %v524 = vmul.f32 %v489, 0.90908265
      %v525 = vmul.f32 %v490, 0.90908265
      %v526 = vmul.f32 %v491, 0.90908265
      %v527 = vmul.f32 %v492, 0.90908265
      %v528 = vmul.f32 %v493, 0.90908265
      %v529 = vmul.f32 %v494, 0.90908265
      %v530 = vmul.f32 %v495, 0.90908265
      %v531 = vmul.f32 %v496, 0.90908265
      %v532 = vmul.f32 %v497, 0.90908265
      %v533 = vmul.f32 %v498, 0.90908265
      %v534 = vmul.f32 %v499, 0.90908265
      %v535 = vmul.f32 %v500, 0.90908265
      %v536 = vmul.f32 %v501, 0.90908265
      %v537 = vmul.f32 %v502, 0.90908265
      %v538 = vmul.f32 %v503, 0.90908265
      %v539 = vmul.f32 %v504, 0.90908265
      %v540 = vmul.f32 %v505, 0.90908265
      %v541 = vmul.f32 %v506, 0.90908265
      %v542 = vmul.f32 %v507, 0.90908265
      %v543 = vadd.f32 %v511, 0.5
      %v544 = vadd.f32 %v512, 0.5
      %v545 = vadd.f32 %v513, 0.5
      %v546 = vadd.f32 %v514, 0.5
      %v547 = vadd.f32 %v515, 0.5
      %v548 = vadd.f32 %v516, 0.5
      %v549 = vadd.f32 %v517, 0.5
      %v550 = vadd.f32 %v518, 0.5
      %v551 = vadd.f32 %v519, 0.5
      %v552 = vadd.f32 %v520, 0.5
      %v553 = vadd.f32 %v521, 0.5
      %v554 = vadd.f32 %v522, 0.5
      %v555 = vadd.f32 %v523, 0.5
      %v556 = vadd.f32 %v524, 0.5
      %v557 = vadd.f32 %v525, 0.5
      %v558 = vadd.f32 %v526, 0.5
      %v559 = vadd.f32 %v527, 0.5
      %v560 = vadd.f32 %v528, 0.5
      %v561 = vadd.f32 %v529, 0.5
      %v562 = vadd.f32 %v530, 0.5
      %v563 = vadd.f32 %v531, 0.5
      %v564 = vadd.f32 %v532, 0.5
      %v565 = vadd.f32 %v533, 0.5
      %v566 = vadd.f32 %v534, 0.5
      %v567 = vadd.f32 %v535, 0.5
      %v568 = vadd.f32 %v536, 0.5
      %v569 = vadd.f32 %v537, 0.5
      %v570 = vadd.f32 %v538, 0.5
      %v571 = vadd.f32 %v539, 0.5
      %v572 = vadd.f32 %v540, 0.5
      %v573 = vadd.f32 %v541, 0.5
      %v574 = vadd.f32 %v542, 0.5
      %vm575 = vcmp.ge.f32.partialorder %v543, 1.0
      %vm576 = vcmp.ge.f32.partialorder %v544, 1.0
      %vm577 = vcmp.ge.f32.partialorder %v545, 1.0
      %vm578 = vcmp.ge.f32.partialorder %v546, 1.0
      %vm579 = vcmp.ge.f32.partialorder %v547, 1.0
      %vm580 = vcmp.ge.f32.partialorder %v548, 1.0
      %vm581 = vcmp.ge.f32.partialorder %v549, 1.0
      %vm582 = vcmp.ge.f32.partialorder %v550, 1.0
      %vm583 = vcmp.ge.f32.partialorder %v551, 1.0
      %vm584 = vcmp.ge.f32.partialorder %v552, 1.0
      %vm585 = vcmp.ge.f32.partialorder %v553, 1.0
      %vm586 = vcmp.ge.f32.partialorder %v554, 1.0
      %vm587 = vcmp.ge.f32.partialorder %v555, 1.0
      %vm588 = vcmp.ge.f32.partialorder %v556, 1.0
      %vm589 = vcmp.ge.f32.partialorder %v557, 1.0
      %vm590 = vcmp.ge.f32.partialorder %v558, 1.0
      %vm591 = vcmp.ge.f32.partialorder %v559, 1.0
      %vm592 = vcmp.ge.f32.partialorder %v560, 1.0
      %vm593 = vcmp.ge.f32.partialorder %v561, 1.0
      %vm594 = vcmp.ge.f32.partialorder %v562, 1.0
      %vm595 = vcmp.ge.f32.partialorder %v563, 1.0
      %vm596 = vcmp.ge.f32.partialorder %v564, 1.0
      %vm597 = vcmp.ge.f32.partialorder %v565, 1.0
      %vm598 = vcmp.ge.f32.partialorder %v566, 1.0
      %vm599 = vcmp.ge.f32.partialorder %v567, 1.0
      %vm600 = vcmp.ge.f32.partialorder %v568, 1.0
      %vm601 = vcmp.ge.f32.partialorder %v569, 1.0
      %vm602 = vcmp.ge.f32.partialorder %v570, 1.0
      %vm603 = vcmp.ge.f32.partialorder %v571, 1.0
      %vm604 = vcmp.ge.f32.partialorder %v572, 1.0
      %vm605 = vcmp.ge.f32.partialorder %v573, 1.0
      %vm606 = vcmp.ge.f32.partialorder %v574, 1.0
      %v607 = vsel %vm575, 0.99999, %v543
      %v608 = vsel %vm576, 0.99999, %v544
      %v609 = vsel %vm577, 0.99999, %v545
      %v610 = vsel %vm578, 0.99999, %v546
      %v611 = vsel %vm579, 0.99999, %v547
      %v612 = vsel %vm580, 0.99999, %v548
      %v613 = vsel %vm581, 0.99999, %v549
      %v614 = vsel %vm582, 0.99999, %v550
      %v615 = vsel %vm583, 0.99999, %v551
      %v616 = vsel %vm584, 0.99999, %v552
      %v617 = vsel %vm585, 0.99999, %v553
      %v618 = vsel %vm586, 0.99999, %v554
      %v619 = vsel %vm587, 0.99999, %v555
      %v620 = vsel %vm588, 0.99999, %v556
      %v621 = vsel %vm589, 0.99999, %v557
      %v622 = vsel %vm590, 0.99999, %v558
      %v623 = vsel %vm591, 0.99999, %v559
      %v624 = vsel %vm592, 0.99999, %v560
      %v625 = vsel %vm593, 0.99999, %v561
      %v626 = vsel %vm594, 0.99999, %v562
      %v627 = vsel %vm595, 0.99999, %v563
      %v628 = vsel %vm596, 0.99999, %v564
      %v629 = vsel %vm597, 0.99999, %v565
      %v630 = vsel %vm598, 0.99999, %v566
      %v631 = vsel %vm599, 0.99999, %v567
      %v632 = vsel %vm600, 0.99999, %v568
      %v633 = vsel %vm601, 0.99999, %v569
      %v634 = vsel %vm602, 0.99999, %v570
      %v635 = vsel %vm603, 0.99999, %v571
      %v636 = vsel %vm604, 0.99999, %v572
      %v637 = vsel %vm605, 0.99999, %v573
      %v638 = vsel %vm606, 0.99999, %v574
      %vm639 = vcmp.lt.f32.partialorder %v607, 0.0
      %vm640 = vcmp.lt.f32.partialorder %v608, 0.0
      %vm641 = vcmp.lt.f32.partialorder %v609, 0.0
      %vm642 = vcmp.lt.f32.partialorder %v610, 0.0
      %vm643 = vcmp.lt.f32.partialorder %v611, 0.0
      %vm644 = vcmp.lt.f32.partialorder %v612, 0.0
      %vm645 = vcmp.lt.f32.partialorder %v613, 0.0
      %vm646 = vcmp.lt.f32.partialorder %v614, 0.0
      %vm647 = vcmp.lt.f32.partialorder %v615, 0.0
      %vm648 = vcmp.lt.f32.partialorder %v616, 0.0
      %vm649 = vcmp.lt.f32.partialorder %v617, 0.0
      %vm650 = vcmp.lt.f32.partialorder %v618, 0.0
      %vm651 = vcmp.lt.f32.partialorder %v619, 0.0
      %vm652 = vcmp.lt.f32.partialorder %v620, 0.0
      %vm653 = vcmp.lt.f32.partialorder %v621, 0.0
      %vm654 = vcmp.lt.f32.partialorder %v622, 0.0
      %vm655 = vcmp.lt.f32.partialorder %v623, 0.0
      %vm656 = vcmp.lt.f32.partialorder %v624, 0.0
      %vm657 = vcmp.lt.f32.partialorder %v625, 0.0
      %vm658 = vcmp.lt.f32.partialorder %v626, 0.0
      %vm659 = vcmp.lt.f32.partialorder %v627, 0.0
      %vm660 = vcmp.lt.f32.partialorder %v628, 0.0
      %vm661 = vcmp.lt.f32.partialorder %v629, 0.0
      %vm662 = vcmp.lt.f32.partialorder %v630, 0.0
      %vm663 = vcmp.lt.f32.partialorder %v631, 0.0
      %vm664 = vcmp.lt.f32.partialorder %v632, 0.0
      %vm665 = vcmp.lt.f32.partialorder %v633, 0.0
      %vm666 = vcmp.lt.f32.partialorder %v634, 0.0
      %vm667 = vcmp.lt.f32.partialorder %v635, 0.0
      %vm668 = vcmp.lt.f32.partialorder %v636, 0.0
      %vm669 = vcmp.lt.f32.partialorder %v637, 0.0
      %vm670 = vcmp.lt.f32.partialorder %v638, 0.0
      %v671 = vsel %vm639, 0.0, %v607
      %v672 = vsel %vm640, 0.0, %v608
      %v673 = vsel %vm641, 0.0, %v609
      %v674 = vsel %vm642, 0.0, %v610
      %v675 = vsel %vm643, 0.0, %v611
      %v676 = vsel %vm644, 0.0, %v612
      %v677 = vsel %vm645, 0.0, %v613
      %v678 = vsel %vm646, 0.0, %v614
      %v679 = vsel %vm647, 0.0, %v615
      %v680 = vsel %vm648, 0.0, %v616
      %v681 = vsel %vm649, 0.0, %v617
      %v682 = vsel %vm650, 0.0, %v618
      %v683 = vsel %vm651, 0.0, %v619
      %v684 = vsel %vm652, 0.0, %v620
      %v685 = vsel %vm653, 0.0, %v621
      %v686 = vsel %vm654, 0.0, %v622
      %v687 = vsel %vm655, 0.0, %v623
      %v688 = vsel %vm656, 0.0, %v624
      %v689 = vsel %vm657, 0.0, %v625
      %v690 = vsel %vm658, 0.0, %v626
      %v691 = vsel %vm659, 0.0, %v627
      %v692 = vsel %vm660, 0.0, %v628
      %v693 = vsel %vm661, 0.0, %v629
      %v694 = vsel %vm662, 0.0, %v630
      %v695 = vsel %vm663, 0.0, %v631
      %v696 = vsel %vm664, 0.0, %v632
      %v697 = vsel %vm665, 0.0, %v633
      %v698 = vsel %vm666, 0.0, %v634
      %v699 = vsel %vm667, 0.0, %v635
      %v700 = vsel %vm668, 0.0, %v636
      %v701 = vsel %vm669, 0.0, %v637
      %v702 = vsel %vm670, 0.0, %v638
      %v703 = vmul.f32 %v671, 15.0
      %v704 = vmul.f32 %v672, 15.0
      %v705 = vmul.f32 %v673, 15.0
      %v706 = vmul.f32 %v674, 15.0
      %v707 = vmul.f32 %v675, 15.0
      %v708 = vmul.f32 %v676, 15.0
      %v709 = vmul.f32 %v677, 15.0
      %v710 = vmul.f32 %v678, 15.0
      %v711 = vmul.f32 %v679, 15.0
      %v712 = vmul.f32 %v680, 15.0
      %v713 = vmul.f32 %v681, 15.0
      %v714 = vmul.f32 %v682, 15.0
      %v715 = vmul.f32 %v683, 15.0
      %v716 = vmul.f32 %v684, 15.0
      %v717 = vmul.f32 %v685, 15.0
      %v718 = vmul.f32 %v686, 15.0
      %v719 = vmul.f32 %v687, 15.0
      %v720 = vmul.f32 %v688, 15.0
      %v721 = vmul.f32 %v689, 15.0
      %v722 = vmul.f32 %v690, 15.0
      %v723 = vmul.f32 %v691, 15.0
      %v724 = vmul.f32 %v692, 15.0
      %v725 = vmul.f32 %v693, 15.0
      %v726 = vmul.f32 %v694, 15.0
      %v727 = vmul.f32 %v695, 15.0
      %v728 = vmul.f32 %v696, 15.0
      %v729 = vmul.f32 %v697, 15.0
      %v730 = vmul.f32 %v698, 15.0
      %v731 = vmul.f32 %v699, 15.0
      %v732 = vmul.f32 %v700, 15.0
      %v733 = vmul.f32 %v701, 15.0
      %v734 = vmul.f32 %v702, 15.0
      %v735 = vfloor.f32 %v703
      %v736 = vfloor.f32 %v704
      %v737 = vfloor.f32 %v705
      %v738 = vfloor.f32 %v706
      %v739 = vfloor.f32 %v707
      %v740 = vfloor.f32 %v708
      %v741 = vfloor.f32 %v709
      %v742 = vfloor.f32 %v710
      %v743 = vfloor.f32 %v711
      %v744 = vfloor.f32 %v712
      %v745 = vfloor.f32 %v713
      %v746 = vfloor.f32 %v714
      %v747 = vfloor.f32 %v715
      %v748 = vfloor.f32 %v716
      %v749 = vfloor.f32 %v717
      %v750 = vfloor.f32 %v718
      %v751 = vfloor.f32 %v719
      %v752 = vfloor.f32 %v720
      %v753 = vfloor.f32 %v721
      %v754 = vfloor.f32 %v722
      %v755 = vfloor.f32 %v723
      %v756 = vfloor.f32 %v724
      %v757 = vfloor.f32 %v725
      %v758 = vfloor.f32 %v726
      %v759 = vfloor.f32 %v727
      %v760 = vfloor.f32 %v728
      %v761 = vfloor.f32 %v729
      %v762 = vfloor.f32 %v730
      %v763 = vfloor.f32 %v731
      %v764 = vfloor.f32 %v732
      %v765 = vfloor.f32 %v733
      %v766 = vfloor.f32 %v734
      %v767 = vsub.f32 %v703, %v735
      %v768 = vsub.f32 %v704, %v736
      %v769 = vsub.f32 %v705, %v737
      %v770 = vsub.f32 %v706, %v738
      %v771 = vsub.f32 %v707, %v739
      %v772 = vsub.f32 %v708, %v740
      %v773 = vsub.f32 %v709, %v741
      %v774 = vsub.f32 %v710, %v742
      %v775 = vsub.f32 %v711, %v743
      %v776 = vsub.f32 %v712, %v744
      %v777 = vsub.f32 %v713, %v745
      %v778 = vsub.f32 %v714, %v746
      %v779 = vsub.f32 %v715, %v747
      %v780 = vsub.f32 %v716, %v748
      %v781 = vsub.f32 %v717, %v749
      %v782 = vsub.f32 %v718, %v750
      %v783 = vsub.f32 %v719, %v751
      %v784 = vsub.f32 %v720, %v752
      %v785 = vsub.f32 %v721, %v753
      %v786 = vsub.f32 %v722, %v754
      %v787 = vsub.f32 %v723, %v755
      %v788 = vsub.f32 %v724, %v756
      %v789 = vsub.f32 %v725, %v757
      %v790 = vsub.f32 %v726, %v758
      %v791 = vsub.f32 %v727, %v759
      %v792 = vsub.f32 %v728, %v760
      %v793 = vsub.f32 %v729, %v761
      %v794 = vsub.f32 %v730, %v762
      %v795 = vsub.f32 %v731, %v763
      %v796 = vsub.f32 %v732, %v764
      %v797 = vsub.f32 %v733, %v765
      %v798 = vsub.f32 %v734, %v766
      %v799 = vmax.f32 %v735, 0.0
      %v800 = vmax.f32 %v736, 0.0
      %v801 = vmax.f32 %v737, 0.0
      %v802 = vmax.f32 %v738, 0.0
      %v803 = vmax.f32 %v739, 0.0
      %v804 = vmax.f32 %v740, 0.0
      %v805 = vmax.f32 %v741, 0.0
      %v806 = vmax.f32 %v742, 0.0
      %v807 = vmax.f32 %v743, 0.0
      %v808 = vmax.f32 %v744, 0.0
      %v809 = vmax.f32 %v745, 0.0
      %v810 = vmax.f32 %v746, 0.0
      %v811 = vmax.f32 %v747, 0.0
      %v812 = vmax.f32 %v748, 0.0
      %v813 = vmax.f32 %v749, 0.0
      %v814 = vmax.f32 %v750, 0.0
      %v815 = vmax.f32 %v751, 0.0
      %v816 = vmax.f32 %v752, 0.0
      %v817 = vmax.f32 %v753, 0.0
      %v818 = vmax.f32 %v754, 0.0
      %v819 = vmax.f32 %v755, 0.0
      %v820 = vmax.f32 %v756, 0.0
      %v821 = vmax.f32 %v757, 0.0
      %v822 = vmax.f32 %v758, 0.0
      %v823 = vmax.f32 %v759, 0.0
      %v824 = vmax.f32 %v760, 0.0
      %v825 = vmax.f32 %v761, 0.0
      %v826 = vmax.f32 %v762, 0.0
      %v827 = vmax.f32 %v763, 0.0
      %v828 = vmax.f32 %v764, 0.0
      %v829 = vmax.f32 %v765, 0.0
      %v830 = vmax.f32 %v766, 0.0
      %v831 = vmin.f32 %v799, 15.0
      %v832 = vmin.f32 %v800, 15.0
      %v833 = vmin.f32 %v801, 15.0
      %v834 = vmin.f32 %v802, 15.0
      %v835 = vmin.f32 %v803, 15.0
      %v836 = vmin.f32 %v804, 15.0
      %v837 = vmin.f32 %v805, 15.0
      %v838 = vmin.f32 %v806, 15.0
      %v839 = vmin.f32 %v807, 15.0
      %v840 = vmin.f32 %v808, 15.0
      %v841 = vmin.f32 %v809, 15.0
      %v842 = vmin.f32 %v810, 15.0
      %v843 = vmin.f32 %v811, 15.0
      %v844 = vmin.f32 %v812, 15.0
      %v845 = vmin.f32 %v813, 15.0
      %v846 = vmin.f32 %v814, 15.0
      %v847 = vmin.f32 %v815, 15.0
      %v848 = vmin.f32 %v816, 15.0
      %v849 = vmin.f32 %v817, 15.0
      %v850 = vmin.f32 %v818, 15.0
      %v851 = vmin.f32 %v819, 15.0
      %v852 = vmin.f32 %v820, 15.0
      %v853 = vmin.f32 %v821, 15.0
      %v854 = vmin.f32 %v822, 15.0
      %v855 = vmin.f32 %v823, 15.0
      %v856 = vmin.f32 %v824, 15.0
      %v857 = vmin.f32 %v825, 15.0
      %v858 = vmin.f32 %v826, 15.0
      %v859 = vmin.f32 %v827, 15.0
      %v860 = vmin.f32 %v828, 15.0
      %v861 = vmin.f32 %v829, 15.0
      %v862 = vmin.f32 %v830, 15.0
      %v863 = vcvt.f32.s32.to.zero.pseudo %v831
      %v864 = vcvt.f32.s32.to.zero.pseudo %v832
      %v865 = vcvt.f32.s32.to.zero.pseudo %v833
      %v866 = vcvt.f32.s32.to.zero.pseudo %v834
      %v867 = vcvt.f32.s32.to.zero.pseudo %v835
      %v868 = vcvt.f32.s32.to.zero.pseudo %v836
      %v869 = vcvt.f32.s32.to.zero.pseudo %v837
      %v870 = vcvt.f32.s32.to.zero.pseudo %v838
      %v871 = vcvt.f32.s32.to.zero.pseudo %v839
      %v872 = vcvt.f32.s32.to.zero.pseudo %v840
      %v873 = vcvt.f32.s32.to.zero.pseudo %v841
      %v874 = vcvt.f32.s32.to.zero.pseudo %v842
      %v875 = vcvt.f32.s32.to.zero.pseudo %v843
      %v876 = vcvt.f32.s32.to.zero.pseudo %v844
      %v877 = vcvt.f32.s32.to.zero.pseudo %v845
      %v878 = vcvt.f32.s32.to.zero.pseudo %v846
      %v879 = vcvt.f32.s32.to.zero.pseudo %v847
      %v880 = vcvt.f32.s32.to.zero.pseudo %v848
      %v881 = vcvt.f32.s32.to.zero.pseudo %v849
      %v882 = vcvt.f32.s32.to.zero.pseudo %v850
      %v883 = vcvt.f32.s32.to.zero.pseudo %v851
      %v884 = vcvt.f32.s32.to.zero.pseudo %v852
      %v885 = vcvt.f32.s32.to.zero.pseudo %v853
      %v886 = vcvt.f32.s32.to.zero.pseudo %v854
      %v887 = vcvt.f32.s32.to.zero.pseudo %v855
      %v888 = vcvt.f32.s32.to.zero.pseudo %v856
      %v889 = vcvt.f32.s32.to.zero.pseudo %v857
      %v890 = vcvt.f32.s32.to.zero.pseudo %v858
      %v891 = vcvt.f32.s32.to.zero.pseudo %v859
      %v892 = vcvt.f32.s32.to.zero.pseudo %v860
      %v893 = vcvt.f32.s32.to.zero.pseudo %v861
      %v894 = vcvt.f32.s32.to.zero.pseudo %v862
      %v895 = vmul.u32 %v863, 16
      %v896 = vmul.u32 %v864, 16
      %v897 = vmul.u32 %v865, 16
      %v898 = vmul.u32 %v866, 16
      %v899 = vmul.u32 %v867, 16
      %v900 = vmul.u32 %v868, 16
      %v901 = vmul.u32 %v869, 16
      %v902 = vmul.u32 %v870, 16
      %v903 = vmul.u32 %v871, 16
      %v904 = vmul.u32 %v872, 16
      %v905 = vmul.u32 %v873, 16
      %v906 = vmul.u32 %v874, 16
      %v907 = vmul.u32 %v875, 16
      %v908 = vmul.u32 %v876, 16
      %v909 = vmul.u32 %v877, 16
      %v910 = vmul.u32 %v878, 16
      %v911 = vmul.u32 %v879, 16
      %v912 = vmul.u32 %v880, 16
      %v913 = vmul.u32 %v881, 16
      %v914 = vmul.u32 %v882, 16
      %v915 = vmul.u32 %v883, 16
      %v916 = vmul.u32 %v884, 16
      %v917 = vmul.u32 %v885, 16
      %v918 = vmul.u32 %v886, 16
      %v919 = vmul.u32 %v887, 16
      %v920 = vmul.u32 %v888, 16
      %v921 = vmul.u32 %v889, 16
      %v922 = vmul.u32 %v890, 16
      %v923 = vmul.u32 %v891, 16
      %v924 = vmul.u32 %v892, 16
      %v925 = vmul.u32 %v893, 16
      %v926 = vmul.u32 %v894, 16
      %927 = vrot.lane.b32.xlu0 %v863, 2
      %v928 = vpop.permute.xlu0 %927
      %929 = vrot.lane.b32.xlu0 %v864, 2
      %v930 = vpop.permute.xlu0 %929
      %931 = vrot.lane.b32.xlu0 %v865, 2
      %v932 = vpop.permute.xlu0 %931
      %933 = vrot.lane.b32.xlu0 %v866, 2
      %v934 = vpop.permute.xlu0 %933
      %935 = vrot.lane.b32.xlu0 %v867, 2
      %v936 = vpop.permute.xlu0 %935
      %937 = vrot.lane.b32.xlu0 %v868, 2
      %v938 = vpop.permute.xlu0 %937
      %939 = vrot.lane.b32.xlu0 %v869, 2
      %v940 = vpop.permute.xlu0 %939
      %941 = vrot.lane.b32.xlu0 %v870, 2
      %v942 = vpop.permute.xlu0 %941
      %943 = vrot.lane.b32.xlu0 %v871, 2
      %v944 = vpop.permute.xlu0 %943
      %945 = vrot.lane.b32.xlu0 %v872, 2
      %v946 = vpop.permute.xlu0 %945
      %947 = vrot.lane.b32.xlu0 %v873, 2
      %v948 = vpop.permute.xlu0 %947
      %949 = vrot.lane.b32.xlu0 %v874, 2
      %v950 = vpop.permute.xlu0 %949
      %951 = vrot.lane.b32.xlu0 %v875, 2
      %v952 = vpop.permute.xlu0 %951
      %953 = vrot.lane.b32.xlu0 %v876, 2
      %v954 = vpop.permute.xlu0 %953
      %955 = vrot.lane.b32.xlu0 %v877, 2
      %v956 = vpop.permute.xlu0 %955
      %957 = vrot.lane.b32.xlu0 %v878, 2
      %v958 = vpop.permute.xlu0 %957
      %959 = vrot.lane.b32.xlu0 %v879, 2
      %v960 = vpop.permute.xlu0 %959
      %961 = vrot.lane.b32.xlu0 %v880, 2
      %v962 = vpop.permute.xlu0 %961
      %963 = vrot.lane.b32.xlu0 %v881, 2
      %v964 = vpop.permute.xlu0 %963
      %965 = vrot.lane.b32.xlu0 %v882, 2
      %v966 = vpop.permute.xlu0 %965
      %967 = vrot.lane.b32.xlu0 %v883, 2
      %v968 = vpop.permute.xlu0 %967
      %969 = vrot.lane.b32.xlu0 %v884, 2
      %v970 = vpop.permute.xlu0 %969
      %971 = vrot.lane.b32.xlu0 %v885, 2
      %v972 = vpop.permute.xlu0 %971
      %973 = vrot.lane.b32.xlu0 %v886, 2
      %v974 = vpop.permute.xlu0 %973
      %975 = vrot.lane.b32.xlu0 %v887, 2
      %v976 = vpop.permute.xlu0 %975
      %977 = vrot.lane.b32.xlu0 %v888, 2
      %v978 = vpop.permute.xlu0 %977
      %979 = vrot.lane.b32.xlu0 %v889, 2
      %v980 = vpop.permute.xlu0 %979
      %981 = vrot.lane.b32.xlu0 %v890, 2
      %v982 = vpop.permute.xlu0 %981
      %983 = vrot.lane.b32.xlu0 %v891, 2
      %v984 = vpop.permute.xlu0 %983
      %985 = vrot.lane.b32.xlu0 %v892, 2
      %v986 = vpop.permute.xlu0 %985
      %987 = vrot.lane.b32.xlu0 %v893, 2
      %v988 = vpop.permute.xlu0 %987
      %989 = vrot.lane.b32.xlu0 %v894, 2
      %v990 = vpop.permute.xlu0 %989
      %v991 = vadd.s32 %v895, %v928
      %v992 = vadd.s32 %v896, %v930
      %v993 = vadd.s32 %v897, %v932
      %v994 = vadd.s32 %v898, %v934
      %v995 = vadd.s32 %v899, %v936
      %v996 = vadd.s32 %v900, %v938
      %v997 = vadd.s32 %v901, %v940
      %v998 = vadd.s32 %v902, %v942
      %v999 = vadd.s32 %v903, %v944
      %v1000 = vadd.s32 %v904, %v946
      %v1001 = vadd.s32 %v905, %v948
      %v1002 = vadd.s32 %v906, %v950
      %v1003 = vadd.s32 %v907, %v952
      %v1004 = vadd.s32 %v908, %v954
      %v1005 = vadd.s32 %v909, %v956
      %v1006 = vadd.s32 %v910, %v958
      %v1007 = vadd.s32 %v911, %v960
      %v1008 = vadd.s32 %v912, %v962
      %v1009 = vadd.s32 %v913, %v964
      %v1010 = vadd.s32 %v914, %v966
      %v1011 = vadd.s32 %v915, %v968
      %v1012 = vadd.s32 %v916, %v970
      %v1013 = vadd.s32 %v917, %v972
      %v1014 = vadd.s32 %v918, %v974
      %v1015 = vadd.s32 %v919, %v976
      %v1016 = vadd.s32 %v920, %v978
      %v1017 = vadd.s32 %v921, %v980
      %v1018 = vadd.s32 %v922, %v982
      %v1019 = vadd.s32 %v923, %v984
      %v1020 = vadd.s32 %v924, %v986
      %v1021 = vadd.s32 %v925, %v988
      %v1022 = vadd.s32 %v926, %v990
      %1023 = vset.pattern.permute.xlu0 2
      %1024 = vperm.xlu0 %1023, %v991
      %v1025 = vpop.permute.xlu0 %1024
      %1026 = vset.pattern.permute.xlu0 2
      %1027 = vperm.xlu0 %1026, %v992
      %v1028 = vpop.permute.xlu0 %1027
      %1029 = vset.pattern.permute.xlu0 2
      %1030 = vperm.xlu0 %1029, %v993
      %v1031 = vpop.permute.xlu0 %1030
      %1032 = vset.pattern.permute.xlu0 2
      %1033 = vperm.xlu0 %1032, %v994
      %v1034 = vpop.permute.xlu0 %1033
      %1035 = vset.pattern.permute.xlu0 2
      %1036 = vperm.xlu0 %1035, %v995
      %v1037 = vpop.permute.xlu0 %1036
      %1038 = vset.pattern.permute.xlu0 2
      %1039 = vperm.xlu0 %1038, %v996
      %v1040 = vpop.permute.xlu0 %1039
      %1041 = vset.pattern.permute.xlu0 2
      %1042 = vperm.xlu0 %1041, %v997
      %v1043 = vpop.permute.xlu0 %1042
      %1044 = vset.pattern.permute.xlu0 2
      %1045 = vperm.xlu0 %1044, %v998
      %v1046 = vpop.permute.xlu0 %1045
      %1047 = vset.pattern.permute.xlu0 2
      %1048 = vperm.xlu0 %1047, %v999
      %v1049 = vpop.permute.xlu0 %1048
      %1050 = vset.pattern.permute.xlu0 2
      %1051 = vperm.xlu0 %1050, %v1000
      %v1052 = vpop.permute.xlu0 %1051
      %1053 = vset.pattern.permute.xlu0 2
      %1054 = vperm.xlu0 %1053, %v1001
      %v1055 = vpop.permute.xlu0 %1054
      %1056 = vset.pattern.permute.xlu0 2
      %1057 = vperm.xlu0 %1056, %v1002
      %v1058 = vpop.permute.xlu0 %1057
      %1059 = vset.pattern.permute.xlu0 2
      %1060 = vperm.xlu0 %1059, %v1003
      %v1061 = vpop.permute.xlu0 %1060
      %1062 = vset.pattern.permute.xlu0 2
      %1063 = vperm.xlu0 %1062, %v1004
      %v1064 = vpop.permute.xlu0 %1063
      %1065 = vset.pattern.permute.xlu0 2
      %1066 = vperm.xlu0 %1065, %v1005
      %v1067 = vpop.permute.xlu0 %1066
      %1068 = vset.pattern.permute.xlu0 2
      %1069 = vperm.xlu0 %1068, %v1006
      %v1070 = vpop.permute.xlu0 %1069
      %1071 = vset.pattern.permute.xlu0 2
      %1072 = vperm.xlu0 %1071, %v1007
      %v1073 = vpop.permute.xlu0 %1072
      %1074 = vset.pattern.permute.xlu0 2
      %1075 = vperm.xlu0 %1074, %v1008
      %v1076 = vpop.permute.xlu0 %1075
      %1077 = vset.pattern.permute.xlu0 2
      %1078 = vperm.xlu0 %1077, %v1009
      %v1079 = vpop.permute.xlu0 %1078
      %1080 = vset.pattern.permute.xlu0 2
      %1081 = vperm.xlu0 %1080, %v1010
      %v1082 = vpop.permute.xlu0 %1081
      %1083 = vset.pattern.permute.xlu0 2
      %1084 = vperm.xlu0 %1083, %v1011
      %v1085 = vpop.permute.xlu0 %1084
      %1086 = vset.pattern.permute.xlu0 2
      %1087 = vperm.xlu0 %1086, %v1012
      %v1088 = vpop.permute.xlu0 %1087
      %1089 = vset.pattern.permute.xlu0 2
      %1090 = vperm.xlu0 %1089, %v1013
      %v1091 = vpop.permute.xlu0 %1090
      %1092 = vset.pattern.permute.xlu0 2
      %1093 = vperm.xlu0 %1092, %v1014
      %v1094 = vpop.permute.xlu0 %1093
      %1095 = vset.pattern.permute.xlu0 2
      %1096 = vperm.xlu0 %1095, %v1015
      %v1097 = vpop.permute.xlu0 %1096
      %1098 = vset.pattern.permute.xlu0 2
      %1099 = vperm.xlu0 %1098, %v1016
      %v1100 = vpop.permute.xlu0 %1099
      %1101 = vset.pattern.permute.xlu0 2
      %1102 = vperm.xlu0 %1101, %v1017
      %v1103 = vpop.permute.xlu0 %1102
      %1104 = vset.pattern.permute.xlu0 2
      %1105 = vperm.xlu0 %1104, %v1018
      %v1106 = vpop.permute.xlu0 %1105
      %1107 = vset.pattern.permute.xlu0 2
      %1108 = vperm.xlu0 %1107, %v1019
      %v1109 = vpop.permute.xlu0 %1108
      %1110 = vset.pattern.permute.xlu0 2
      %1111 = vperm.xlu0 %1110, %v1020
      %v1112 = vpop.permute.xlu0 %1111
      %1113 = vset.pattern.permute.xlu0 2
      %1114 = vperm.xlu0 %1113, %v1021
      %v1115 = vpop.permute.xlu0 %1114
      %1116 = vset.pattern.permute.xlu0 2
      %1117 = vperm.xlu0 %1116, %v1022
      %v1118 = vpop.permute.xlu0 %1117
      %vm1119 = vcmp.eq.s32.totalorder %v509, %v1025
      %vm1120 = vcmp.eq.s32.totalorder %v510, %v1025
      %vm1121 = vcmp.eq.s32.totalorder %v509, %v1028
      %vm1122 = vcmp.eq.s32.totalorder %v510, %v1028
      %vm1123 = vcmp.eq.s32.totalorder %v509, %v1031
      %vm1124 = vcmp.eq.s32.totalorder %v510, %v1031
      %vm1125 = vcmp.eq.s32.totalorder %v509, %v1034
      %vm1126 = vcmp.eq.s32.totalorder %v510, %v1034
      %vm1127 = vcmp.eq.s32.totalorder %v509, %v1037
      %vm1128 = vcmp.eq.s32.totalorder %v510, %v1037
      %vm1129 = vcmp.eq.s32.totalorder %v509, %v1040
      %vm1130 = vcmp.eq.s32.totalorder %v510, %v1040
      %vm1131 = vcmp.eq.s32.totalorder %v509, %v1043
      %vm1132 = vcmp.eq.s32.totalorder %v510, %v1043
      %vm1133 = vcmp.eq.s32.totalorder %v509, %v1046
      %vm1134 = vcmp.eq.s32.totalorder %v510, %v1046
      %vm1135 = vcmp.eq.s32.totalorder %v509, %v1049
      %vm1136 = vcmp.eq.s32.totalorder %v510, %v1049
      %vm1137 = vcmp.eq.s32.totalorder %v509, %v1052
      %vm1138 = vcmp.eq.s32.totalorder %v510, %v1052
      %vm1139 = vcmp.eq.s32.totalorder %v509, %v1055
      %vm1140 = vcmp.eq.s32.totalorder %v510, %v1055
      %vm1141 = vcmp.eq.s32.totalorder %v509, %v1058
      %vm1142 = vcmp.eq.s32.totalorder %v510, %v1058
      %vm1143 = vcmp.eq.s32.totalorder %v509, %v1061
      %vm1144 = vcmp.eq.s32.totalorder %v510, %v1061
      %vm1145 = vcmp.eq.s32.totalorder %v509, %v1064
      %vm1146 = vcmp.eq.s32.totalorder %v510, %v1064
      %vm1147 = vcmp.eq.s32.totalorder %v509, %v1067
      %vm1148 = vcmp.eq.s32.totalorder %v510, %v1067
      %vm1149 = vcmp.eq.s32.totalorder %v509, %v1070
      %vm1150 = vcmp.eq.s32.totalorder %v510, %v1070
      %vm1151 = vcmp.eq.s32.totalorder %v509, %v1073
      %vm1152 = vcmp.eq.s32.totalorder %v510, %v1073
      %vm1153 = vcmp.eq.s32.totalorder %v509, %v1076
      %vm1154 = vcmp.eq.s32.totalorder %v510, %v1076
      %vm1155 = vcmp.eq.s32.totalorder %v509, %v1079
      %vm1156 = vcmp.eq.s32.totalorder %v510, %v1079
      %vm1157 = vcmp.eq.s32.totalorder %v509, %v1082
      %vm1158 = vcmp.eq.s32.totalorder %v510, %v1082
      %vm1159 = vcmp.eq.s32.totalorder %v509, %v1085
      %vm1160 = vcmp.eq.s32.totalorder %v510, %v1085
      %vm1161 = vcmp.eq.s32.totalorder %v509, %v1088
      %vm1162 = vcmp.eq.s32.totalorder %v510, %v1088
      %vm1163 = vcmp.eq.s32.totalorder %v509, %v1091
      %vm1164 = vcmp.eq.s32.totalorder %v510, %v1091
      %vm1165 = vcmp.eq.s32.totalorder %v509, %v1094
      %vm1166 = vcmp.eq.s32.totalorder %v510, %v1094
      %vm1167 = vcmp.eq.s32.totalorder %v509, %v1097
      %vm1168 = vcmp.eq.s32.totalorder %v510, %v1097
      %vm1169 = vcmp.eq.s32.totalorder %v509, %v1100
      %vm1170 = vcmp.eq.s32.totalorder %v510, %v1100
      %vm1171 = vcmp.eq.s32.totalorder %v509, %v1103
      %vm1172 = vcmp.eq.s32.totalorder %v510, %v1103
      %vm1173 = vcmp.eq.s32.totalorder %v509, %v1106
      %vm1174 = vcmp.eq.s32.totalorder %v510, %v1106
      %vm1175 = vcmp.eq.s32.totalorder %v509, %v1109
      %vm1176 = vcmp.eq.s32.totalorder %v510, %v1109
      %vm1177 = vcmp.eq.s32.totalorder %v509, %v1112
      %vm1178 = vcmp.eq.s32.totalorder %v510, %v1112
      %vm1179 = vcmp.eq.s32.totalorder %v509, %v1115
      %vm1180 = vcmp.eq.s32.totalorder %v510, %v1115
      %vm1181 = vcmp.eq.s32.totalorder %v509, %v1118
      %vm1182 = vcmp.eq.s32.totalorder %v510, %v1118
      %v1183 = vsel %vm1119, 1, 0
      %v1184 = vsel %vm1120, 1, 0
      %v1185 = vsel %vm1121, 1, 0
      %v1186 = vsel %vm1122, 1, 0
      %v1187 = vsel %vm1123, 1, 0
      %v1188 = vsel %vm1124, 1, 0
      %v1189 = vsel %vm1125, 1, 0
      %v1190 = vsel %vm1126, 1, 0
      %v1191 = vsel %vm1127, 1, 0
      %v1192 = vsel %vm1128, 1, 0
      %v1193 = vsel %vm1129, 1, 0
      %v1194 = vsel %vm1130, 1, 0
      %v1195 = vsel %vm1131, 1, 0
      %v1196 = vsel %vm1132, 1, 0
      %v1197 = vsel %vm1133, 1, 0
      %v1198 = vsel %vm1134, 1, 0
      %v1199 = vsel %vm1135, 1, 0
      %v1200 = vsel %vm1136, 1, 0
      %v1201 = vsel %vm1137, 1, 0
      %v1202 = vsel %vm1138, 1, 0
      %v1203 = vsel %vm1139, 1, 0
      %v1204 = vsel %vm1140, 1, 0
      %v1205 = vsel %vm1141, 1, 0
      %v1206 = vsel %vm1142, 1, 0
      %v1207 = vsel %vm1143, 1, 0
      %v1208 = vsel %vm1144, 1, 0
      %v1209 = vsel %vm1145, 1, 0
      %v1210 = vsel %vm1146, 1, 0
      %v1211 = vsel %vm1147, 1, 0
      %v1212 = vsel %vm1148, 1, 0
      %v1213 = vsel %vm1149, 1, 0
      %v1214 = vsel %vm1150, 1, 0
      %v1215 = vsel %vm1151, 1, 0
      %v1216 = vsel %vm1152, 1, 0
      %v1217 = vsel %vm1153, 1, 0
      %v1218 = vsel %vm1154, 1, 0
      %v1219 = vsel %vm1155, 1, 0
      %v1220 = vsel %vm1156, 1, 0
      %v1221 = vsel %vm1157, 1, 0
      %v1222 = vsel %vm1158, 1, 0
      %v1223 = vsel %vm1159, 1, 0
      %v1224 = vsel %vm1160, 1, 0
      %v1225 = vsel %vm1161, 1, 0
      %v1226 = vsel %vm1162, 1, 0
      %v1227 = vsel %vm1163, 1, 0
      %v1228 = vsel %vm1164, 1, 0
      %v1229 = vsel %vm1165, 1, 0
      %v1230 = vsel %vm1166, 1, 0
      %v1231 = vsel %vm1167, 1, 0
      %v1232 = vsel %vm1168, 1, 0
      %v1233 = vsel %vm1169, 1, 0
      %v1234 = vsel %vm1170, 1, 0
      %v1235 = vsel %vm1171, 1, 0
      %v1236 = vsel %vm1172, 1, 0
      %v1237 = vsel %vm1173, 1, 0
      %v1238 = vsel %vm1174, 1, 0
      %v1239 = vsel %vm1175, 1, 0
      %v1240 = vsel %vm1176, 1, 0
      %v1241 = vsel %vm1177, 1, 0
      %v1242 = vsel %vm1178, 1, 0
      %v1243 = vsel %vm1179, 1, 0
      %v1244 = vsel %vm1180, 1, 0
      %v1245 = vsel %vm1181, 1, 0
      %v1246 = vsel %vm1182, 1, 0
      %v1247 = vcvt.s32.f32 %v1183
      %v1248 = vcvt.s32.f32 %v1184
      %v1249 = vcvt.s32.f32 %v1185
      %v1250 = vcvt.s32.f32 %v1186
      %v1251 = vcvt.s32.f32 %v1187
      %v1252 = vcvt.s32.f32 %v1188
      %v1253 = vcvt.s32.f32 %v1189
      %v1254 = vcvt.s32.f32 %v1190
      %v1255 = vcvt.s32.f32 %v1191
      %v1256 = vcvt.s32.f32 %v1192
      %v1257 = vcvt.s32.f32 %v1193
      %v1258 = vcvt.s32.f32 %v1194
      %v1259 = vcvt.s32.f32 %v1195
      %v1260 = vcvt.s32.f32 %v1196
      %v1261 = vcvt.s32.f32 %v1197
      %v1262 = vcvt.s32.f32 %v1198
      %v1263 = vcvt.s32.f32 %v1199
      %v1264 = vcvt.s32.f32 %v1200
      %v1265 = vcvt.s32.f32 %v1201
      %v1266 = vcvt.s32.f32 %v1202
      %v1267 = vcvt.s32.f32 %v1203
      %v1268 = vcvt.s32.f32 %v1204
      %v1269 = vcvt.s32.f32 %v1205
      %v1270 = vcvt.s32.f32 %v1206
      %v1271 = vcvt.s32.f32 %v1207
      %v1272 = vcvt.s32.f32 %v1208
      %v1273 = vcvt.s32.f32 %v1209
      %v1274 = vcvt.s32.f32 %v1210
      %v1275 = vcvt.s32.f32 %v1211
      %v1276 = vcvt.s32.f32 %v1212
      %v1277 = vcvt.s32.f32 %v1213
      %v1278 = vcvt.s32.f32 %v1214
      %v1279 = vcvt.s32.f32 %v1215
      %v1280 = vcvt.s32.f32 %v1216
      %v1281 = vcvt.s32.f32 %v1217
      %v1282 = vcvt.s32.f32 %v1218
      %v1283 = vcvt.s32.f32 %v1219
      %v1284 = vcvt.s32.f32 %v1220
      %v1285 = vcvt.s32.f32 %v1221
      %v1286 = vcvt.s32.f32 %v1222
      %v1287 = vcvt.s32.f32 %v1223
      %v1288 = vcvt.s32.f32 %v1224
      %v1289 = vcvt.s32.f32 %v1225
      %v1290 = vcvt.s32.f32 %v1226
      %v1291 = vcvt.s32.f32 %v1227
      %v1292 = vcvt.s32.f32 %v1228
      %v1293 = vcvt.s32.f32 %v1229
      %v1294 = vcvt.s32.f32 %v1230
      %v1295 = vcvt.s32.f32 %v1231
      %v1296 = vcvt.s32.f32 %v1232
      %v1297 = vcvt.s32.f32 %v1233
      %v1298 = vcvt.s32.f32 %v1234
      %v1299 = vcvt.s32.f32 %v1235
      %v1300 = vcvt.s32.f32 %v1236
      %v1301 = vcvt.s32.f32 %v1237
      %v1302 = vcvt.s32.f32 %v1238
      %v1303 = vcvt.s32.f32 %v1239
      %v1304 = vcvt.s32.f32 %v1240
      %v1305 = vcvt.s32.f32 %v1241
      %v1306 = vcvt.s32.f32 %v1242
      %v1307 = vcvt.s32.f32 %v1243
      %v1308 = vcvt.s32.f32 %v1244
      %v1309 = vcvt.s32.f32 %v1245
      %v1310 = vcvt.s32.f32 %v1246
      %v1311 = vpack.c.bf16 %v1249, %v1247
      %v1312 = vpack.c.bf16 %v1250, %v1248
      %v1313 = vpack.c.bf16 %v1253, %v1251
      %v1314 = vpack.c.bf16 %v1254, %v1252
      %v1315 = vpack.c.bf16 %v1257, %v1255
      %v1316 = vpack.c.bf16 %v1258, %v1256
      %v1317 = vpack.c.bf16 %v1261, %v1259
      %v1318 = vpack.c.bf16 %v1262, %v1260
      %v1319 = vpack.c.bf16 %v1265, %v1263
      %v1320 = vpack.c.bf16 %v1266, %v1264
      %v1321 = vpack.c.bf16 %v1269, %v1267
      %v1322 = vpack.c.bf16 %v1270, %v1268
      %v1323 = vpack.c.bf16 %v1273, %v1271
      %v1324 = vpack.c.bf16 %v1274, %v1272
      %v1325 = vpack.c.bf16 %v1277, %v1275
      %v1326 = vpack.c.bf16 %v1278, %v1276
      %v1327 = vpack.c.bf16 %v1281, %v1279
      %v1328 = vpack.c.bf16 %v1282, %v1280
      %v1329 = vpack.c.bf16 %v1285, %v1283
      %v1330 = vpack.c.bf16 %v1286, %v1284
      %v1331 = vpack.c.bf16 %v1289, %v1287
      %v1332 = vpack.c.bf16 %v1290, %v1288
      %v1333 = vpack.c.bf16 %v1293, %v1291
      %v1334 = vpack.c.bf16 %v1294, %v1292
      %v1335 = vpack.c.bf16 %v1297, %v1295
      %v1336 = vpack.c.bf16 %v1298, %v1296
      %v1337 = vpack.c.bf16 %v1301, %v1299
      %v1338 = vpack.c.bf16 %v1302, %v1300
      %v1339 = vpack.c.bf16 %v1305, %v1303
      %v1340 = vpack.c.bf16 %v1306, %v1304
      %v1341 = vpack.c.bf16 %v1309, %v1307
      %v1342 = vpack.c.bf16 %v1310, %v1308
      %v1343 = vld [vmem:[%s464] sm:$0xf]
      %v1344 = vld [vmem:[%s464 + $0x4] sm:$0xf]
      %v1345 = vld [vmem:[%s464 + $0x8] sm:$0xf]
      %v1346 = vld [vmem:[%s464 + $0xc] sm:$0xf]
      %v1347 = vld [vmem:[%s464 + $0x10] sm:$0xf]
      %v1348 = vld [vmem:[%s464 + $0x14] sm:$0xf]
      %v1349 = vld [vmem:[%s464 + $0x18] sm:$0xf]
      %v1350 = vld [vmem:[%s464 + $0x1c] sm:$0xf]
      %v1351 = vld [vmem:[%s464 + $0x20] sm:$0xf]
      %v1352 = vld [vmem:[%s464 + $0x24] sm:$0xf]
      %v1353 = vld [vmem:[%s464 + $0x28] sm:$0xf]
      %v1354 = vld [vmem:[%s464 + $0x2c] sm:$0xf]
      %v1355 = vld [vmem:[%s464 + $0x30] sm:$0xf]
      %v1356 = vld [vmem:[%s464 + $0x34] sm:$0xf]
      %v1357 = vld [vmem:[%s464 + $0x38] sm:$0xf]
      %v1358 = vld [vmem:[%s464 + $0x3c] sm:$0xf]
      %v1359 = vld [vmem:[%s464 + $0x40] sm:$0xf]
      %v1360 = vld [vmem:[%s464 + $0x44] sm:$0xf]
      %v1361 = vld [vmem:[%s464 + $0x48] sm:$0xf]
      %v1362 = vld [vmem:[%s464 + $0x4c] sm:$0xf]
      %v1363 = vld [vmem:[%s464 + $0x50] sm:$0xf]
      %v1364 = vld [vmem:[%s464 + $0x54] sm:$0xf]
      %v1365 = vld [vmem:[%s464 + $0x58] sm:$0xf]
      %v1366 = vld [vmem:[%s464 + $0x5c] sm:$0xf]
      %v1367 = vld [vmem:[%s464 + $0x60] sm:$0xf]
      %v1368 = vld [vmem:[%s464 + $0x64] sm:$0xf]
      %v1369 = vld [vmem:[%s464 + $0x68] sm:$0xf]
      %v1370 = vld [vmem:[%s464 + $0x6c] sm:$0xf]
      %v1371 = vld [vmem:[%s464 + $0x70] sm:$0xf]
      %v1372 = vld [vmem:[%s464 + $0x74] sm:$0xf]
      %v1373 = vld [vmem:[%s464 + $0x78] sm:$0xf]
      %v1374 = vld [vmem:[%s464 + $0x7c] sm:$0xf]
      %v1407 = vunpack.c.l.b16 %v1343
      %v1408 = vunpack.c.l.b16 %v1344
      %v1409 = vunpack.c.l.b16 %v1345
      %v1410 = vunpack.c.l.b16 %v1346
      %v1411 = vunpack.c.l.b16 %v1347
      %v1412 = vunpack.c.l.b16 %v1348
      %v1413 = vunpack.c.l.b16 %v1349
      %v1414 = vunpack.c.l.b16 %v1350
      %v1415 = vunpack.c.l.b16 %v1351
      %v1416 = vunpack.c.l.b16 %v1352
      %v1417 = vunpack.c.l.b16 %v1353
      %v1418 = vunpack.c.l.b16 %v1354
      %v1419 = vunpack.c.l.b16 %v1355
      %v1420 = vunpack.c.l.b16 %v1356
      %v1421 = vunpack.c.l.b16 %v1357
      %v1422 = vunpack.c.l.b16 %v1358
      %v1423 = vunpack.c.l.b16 %v1359
      %v1424 = vunpack.c.l.b16 %v1360
      %v1425 = vunpack.c.l.b16 %v1361
      %v1426 = vunpack.c.l.b16 %v1362
      %v1427 = vunpack.c.l.b16 %v1363
      %v1428 = vunpack.c.l.b16 %v1364
      %v1429 = vunpack.c.l.b16 %v1365
      %v1430 = vunpack.c.l.b16 %v1366
      %v1431 = vunpack.c.l.b16 %v1367
      %v1432 = vunpack.c.l.b16 %v1368
      %v1433 = vunpack.c.l.b16 %v1369
      %v1434 = vunpack.c.l.b16 %v1370
      %v1435 = vunpack.c.l.b16 %v1371
      %v1436 = vunpack.c.l.b16 %v1372
      %v1437 = vunpack.c.l.b16 %v1373
      %v1438 = vunpack.c.l.b16 %v1374
      %v1439 = vpack.c.b16 %v1408, %v1407
      %v1440 = vpack.c.b16 %v1410, %v1409
      %v1441 = vpack.c.b16 %v1412, %v1411
      %v1442 = vpack.c.b16 %v1414, %v1413
      %v1443 = vpack.c.b16 %v1416, %v1415
      %v1444 = vpack.c.b16 %v1418, %v1417
      %v1445 = vpack.c.b16 %v1420, %v1419
      %v1446 = vpack.c.b16 %v1422, %v1421
      %v1447 = vpack.c.b16 %v1424, %v1423
      %v1448 = vpack.c.b16 %v1426, %v1425
      %v1449 = vpack.c.b16 %v1428, %v1427
      %v1450 = vpack.c.b16 %v1430, %v1429
      %v1451 = vpack.c.b16 %v1432, %v1431
      %v1452 = vpack.c.b16 %v1434, %v1433
      %v1453 = vpack.c.b16 %v1436, %v1435
      %v1454 = vpack.c.b16 %v1438, %v1437
      %1471 = vmatpush.bf16.msra.mxu0 %v1446
      %1472 = vmatpush.bf16.msra.mxu0 %v1445
      %1473 = vmatpush.bf16.msra.mxu0 %v1444
      %1474 = vmatpush.bf16.msra.mxu0 %v1443
      %1475 = vmatpush.bf16.msra.mxu0 %v1442
      %1476 = vmatpush.bf16.msra.mxu0 %v1441
      %1477 = vmatpush.bf16.msra.mxu0 %v1440
      %1478 = vmatpush.bf16.msra.mxu0 %v1439
      %1479 = vmatmul.bf16.gmra.mxu0 %v1311
      %v1480 = vpop.f32.mrf.mxu0
      %v1481 = vadd.f32 0.0, %v1480
      %v1482 = vpop.f32.mrf.mxu0
      %v1483 = vadd.f32 0.0, %v1482
      %1484 = vmatmul.bf16.gmra.mxu0 %v1313
      %v1485 = vpop.f32.mrf.mxu0
      %v1486 = vadd.f32 0.0, %v1485
      %v1487 = vpop.f32.mrf.mxu0
      %v1488 = vadd.f32 0.0, %v1487
      %1489 = vmatmul.bf16.gmra.mxu0 %v1315
      %v1490 = vpop.f32.mrf.mxu0
      %v1491 = vadd.f32 0.0, %v1490
      %v1492 = vpop.f32.mrf.mxu0
      %v1493 = vadd.f32 0.0, %v1492
      %1494 = vmatmul.bf16.gmra.mxu0 %v1317
      %v1495 = vpop.f32.mrf.mxu0
      %v1496 = vadd.f32 0.0, %v1495
      %v1497 = vpop.f32.mrf.mxu0
      %v1498 = vadd.f32 0.0, %v1497
      %1499 = vmatmul.bf16.gmra.mxu0 %v1319
      %v1500 = vpop.f32.mrf.mxu0
      %v1501 = vadd.f32 0.0, %v1500
      %v1502 = vpop.f32.mrf.mxu0
      %v1503 = vadd.f32 0.0, %v1502
      %1504 = vmatmul.bf16.gmra.mxu0 %v1321
      %v1505 = vpop.f32.mrf.mxu0
      %v1506 = vadd.f32 0.0, %v1505
      %v1507 = vpop.f32.mrf.mxu0
      %v1508 = vadd.f32 0.0, %v1507
      %1509 = vmatmul.bf16.gmra.mxu0 %v1323
      %v1510 = vpop.f32.mrf.mxu0
      %v1511 = vadd.f32 0.0, %v1510
      %v1512 = vpop.f32.mrf.mxu0
      %v1513 = vadd.f32 0.0, %v1512
      %1514 = vmatmul.bf16.gmra.mxu0 %v1325
      %v1515 = vpop.f32.mrf.mxu0
      %v1516 = vadd.f32 0.0, %v1515
      %v1517 = vpop.f32.mrf.mxu0
      %v1518 = vadd.f32 0.0, %v1517
      %1519 = vmatmul.bf16.gmra.mxu0 %v1327
      %v1520 = vpop.f32.mrf.mxu0
      %v1521 = vadd.f32 0.0, %v1520
      %v1522 = vpop.f32.mrf.mxu0
      %v1523 = vadd.f32 0.0, %v1522
      %1524 = vmatmul.bf16.gmra.mxu0 %v1329
      %v1525 = vpop.f32.mrf.mxu0
      %v1526 = vadd.f32 0.0, %v1525
      %v1527 = vpop.f32.mrf.mxu0
      %v1528 = vadd.f32 0.0, %v1527
      %1529 = vmatmul.bf16.gmra.mxu0 %v1331
      %v1530 = vpop.f32.mrf.mxu0
      %v1531 = vadd.f32 0.0, %v1530
      %v1532 = vpop.f32.mrf.mxu0
      %v1533 = vadd.f32 0.0, %v1532
      %1534 = vmatmul.bf16.gmra.mxu0 %v1333
      %v1535 = vpop.f32.mrf.mxu0
      %v1536 = vadd.f32 0.0, %v1535
      %v1537 = vpop.f32.mrf.mxu0
      %v1538 = vadd.f32 0.0, %v1537
      %1539 = vmatmul.bf16.gmra.mxu0 %v1335
      %v1540 = vpop.f32.mrf.mxu0
      %v1541 = vadd.f32 0.0, %v1540
      %v1542 = vpop.f32.mrf.mxu0
      %v1543 = vadd.f32 0.0, %v1542
      %1544 = vmatmul.bf16.gmra.mxu0 %v1337
      %v1545 = vpop.f32.mrf.mxu0
      %v1546 = vadd.f32 0.0, %v1545
      %v1547 = vpop.f32.mrf.mxu0
      %v1548 = vadd.f32 0.0, %v1547
      %1549 = vmatmul.bf16.gmra.mxu0 %v1339
      %v1550 = vpop.f32.mrf.mxu0
      %v1551 = vadd.f32 0.0, %v1550
      %v1552 = vpop.f32.mrf.mxu0
      %v1553 = vadd.f32 0.0, %v1552
      %1554 = vmatmul.bf16.gmra.mxu0 %v1341
      %v1555 = vpop.f32.mrf.mxu0
      %v1556 = vadd.f32 0.0, %v1555
      %v1557 = vpop.f32.mrf.mxu0
      %v1558 = vadd.f32 0.0, %v1557
      %1559 = vdwg.mxu0
      %1560 = vmatpush.bf16.msra.mxu0 %v1454
      %1561 = vmatpush.bf16.msra.mxu0 %v1453
      %1562 = vmatpush.bf16.msra.mxu0 %v1452
      %1563 = vmatpush.bf16.msra.mxu0 %v1451
      %1564 = vmatpush.bf16.msra.mxu0 %v1450
      %1565 = vmatpush.bf16.msra.mxu0 %v1449
      %1566 = vmatpush.bf16.msra.mxu0 %v1448
      %1567 = vmatpush.bf16.msra.mxu0 %v1447
      %1568 = vmatmul.bf16.gmra.mxu0 %v1312
      %v1569 = vpop.f32.mrf.mxu0
      %v1570 = vadd.f32 %v1481, %v1569
      %v1571 = vpop.f32.mrf.mxu0
      %v1572 = vadd.f32 %v1483, %v1571
      %1573 = vmatmul.bf16.gmra.mxu0 %v1314
      %v1574 = vpop.f32.mrf.mxu0
      %v1575 = vadd.f32 %v1486, %v1574
      %v1576 = vpop.f32.mrf.mxu0
      %v1577 = vadd.f32 %v1488, %v1576
      %1578 = vmatmul.bf16.gmra.mxu0 %v1316
      %v1579 = vpop.f32.mrf.mxu0
      %v1580 = vadd.f32 %v1491, %v1579
      %v1581 = vpop.f32.mrf.mxu0
      %v1582 = vadd.f32 %v1493, %v1581
      %1583 = vmatmul.bf16.gmra.mxu0 %v1318
      %v1584 = vpop.f32.mrf.mxu0
      %v1585 = vadd.f32 %v1496, %v1584
      %v1586 = vpop.f32.mrf.mxu0
      %v1587 = vadd.f32 %v1498, %v1586
      %1588 = vmatmul.bf16.gmra.mxu0 %v1320
      %v1589 = vpop.f32.mrf.mxu0
      %v1590 = vadd.f32 %v1501, %v1589
      %v1591 = vpop.f32.mrf.mxu0
      %v1592 = vadd.f32 %v1503, %v1591
      %1593 = vmatmul.bf16.gmra.mxu0 %v1322
      %v1594 = vpop.f32.mrf.mxu0
      %v1595 = vadd.f32 %v1506, %v1594
      %v1596 = vpop.f32.mrf.mxu0
      %v1597 = vadd.f32 %v1508, %v1596
      %1598 = vmatmul.bf16.gmra.mxu0 %v1324
      %v1599 = vpop.f32.mrf.mxu0
      %v1600 = vadd.f32 %v1511, %v1599
      %v1601 = vpop.f32.mrf.mxu0
      %v1602 = vadd.f32 %v1513, %v1601
      %1603 = vmatmul.bf16.gmra.mxu0 %v1326
      %v1604 = vpop.f32.mrf.mxu0
      %v1605 = vadd.f32 %v1516, %v1604
      %v1606 = vpop.f32.mrf.mxu0
      %v1607 = vadd.f32 %v1518, %v1606
      %1608 = vmatmul.bf16.gmra.mxu0 %v1328
      %v1609 = vpop.f32.mrf.mxu0
      %v1610 = vadd.f32 %v1521, %v1609
      %v1611 = vpop.f32.mrf.mxu0
      %v1612 = vadd.f32 %v1523, %v1611
      %1613 = vmatmul.bf16.gmra.mxu0 %v1330
      %v1614 = vpop.f32.mrf.mxu0
      %v1615 = vadd.f32 %v1526, %v1614
      %v1616 = vpop.f32.mrf.mxu0
      %v1617 = vadd.f32 %v1528, %v1616
      %1618 = vmatmul.bf16.gmra.mxu0 %v1332
      %v1619 = vpop.f32.mrf.mxu0
      %v1620 = vadd.f32 %v1531, %v1619
      %v1621 = vpop.f32.mrf.mxu0
      %v1622 = vadd.f32 %v1533, %v1621
      %1623 = vmatmul.bf16.gmra.mxu0 %v1334
      %v1624 = vpop.f32.mrf.mxu0
      %v1625 = vadd.f32 %v1536, %v1624
      %v1626 = vpop.f32.mrf.mxu0
      %v1627 = vadd.f32 %v1538, %v1626
      %1628 = vmatmul.bf16.gmra.mxu0 %v1336
      %v1629 = vpop.f32.mrf.mxu0
      %v1630 = vadd.f32 %v1541, %v1629
      %v1631 = vpop.f32.mrf.mxu0
      %v1632 = vadd.f32 %v1543, %v1631
      %1633 = vmatmul.bf16.gmra.mxu0 %v1338
      %v1634 = vpop.f32.mrf.mxu0
      %v1635 = vadd.f32 %v1546, %v1634
      %v1636 = vpop.f32.mrf.mxu0
      %v1637 = vadd.f32 %v1548, %v1636
      %1638 = vmatmul.bf16.gmra.mxu0 %v1340
      %v1639 = vpop.f32.mrf.mxu0
      %v1640 = vadd.f32 %v1551, %v1639
      %v1641 = vpop.f32.mrf.mxu0
      %v1642 = vadd.f32 %v1553, %v1641
      %1643 = vmatmul.bf16.gmra.mxu0 %v1342
      %v1644 = vpop.f32.mrf.mxu0
      %v1645 = vadd.f32 %v1556, %v1644
      %v1646 = vpop.f32.mrf.mxu0
      %v1647 = vadd.f32 %v1558, %v1646
      %1648 = vdwg.mxu0
      %v1649 = vsub.f32 1.0, %v767
      %v1650 = vsub.f32 1.0, %v768
      %v1651 = vsub.f32 1.0, %v769
      %v1652 = vsub.f32 1.0, %v770
      %v1653 = vsub.f32 1.0, %v771
      %v1654 = vsub.f32 1.0, %v772
      %v1655 = vsub.f32 1.0, %v773
      %v1656 = vsub.f32 1.0, %v774
      %v1657 = vsub.f32 1.0, %v775
      %v1658 = vsub.f32 1.0, %v776
      %v1659 = vsub.f32 1.0, %v777
      %v1660 = vsub.f32 1.0, %v778
      %v1661 = vsub.f32 1.0, %v779
      %v1662 = vsub.f32 1.0, %v780
      %v1663 = vsub.f32 1.0, %v781
      %v1664 = vsub.f32 1.0, %v782
      %v1665 = vsub.f32 1.0, %v783
      %v1666 = vsub.f32 1.0, %v784
      %v1667 = vsub.f32 1.0, %v785
      %v1668 = vsub.f32 1.0, %v786
      %v1669 = vsub.f32 1.0, %v787
      %v1670 = vsub.f32 1.0, %v788
      %v1671 = vsub.f32 1.0, %v789
      %v1672 = vsub.f32 1.0, %v790
      %v1673 = vsub.f32 1.0, %v791
      %v1674 = vsub.f32 1.0, %v792
      %v1675 = vsub.f32 1.0, %v793
      %v1676 = vsub.f32 1.0, %v794
      %v1677 = vsub.f32 1.0, %v795
      %v1678 = vsub.f32 1.0, %v796
      %v1679 = vsub.f32 1.0, %v797
      %v1680 = vsub.f32 1.0, %v798
      %1713 = vrot.lane.b32.xlu0 %v1649, 126
      %v1714 = vpop.permute.xlu0 %1713
      %1715 = vrot.lane.b32.xlu0 %v1650, 126
      %v1716 = vpop.permute.xlu0 %1715
      %1717 = vrot.lane.b32.xlu0 %v1651, 126
      %v1718 = vpop.permute.xlu0 %1717
      %1719 = vrot.lane.b32.xlu0 %v1652, 126
      %v1720 = vpop.permute.xlu0 %1719
      %1721 = vrot.lane.b32.xlu0 %v1653, 126
      %v1722 = vpop.permute.xlu0 %1721
      %1723 = vrot.lane.b32.xlu0 %v1654, 126
      %v1724 = vpop.permute.xlu0 %1723
      %1725 = vrot.lane.b32.xlu0 %v1655, 126
      %v1726 = vpop.permute.xlu0 %1725
      %1727 = vrot.lane.b32.xlu0 %v1656, 126
      %v1728 = vpop.permute.xlu0 %1727
      %1729 = vrot.lane.b32.xlu0 %v1657, 126
      %v1730 = vpop.permute.xlu0 %1729
      %1731 = vrot.lane.b32.xlu0 %v1658, 126
      %v1732 = vpop.permute.xlu0 %1731
      %1733 = vrot.lane.b32.xlu0 %v1659, 126
      %v1734 = vpop.permute.xlu0 %1733
      %1735 = vrot.lane.b32.xlu0 %v1660, 126
      %v1736 = vpop.permute.xlu0 %1735
      %1737 = vrot.lane.b32.xlu0 %v1661, 126
      %v1738 = vpop.permute.xlu0 %1737
      %1739 = vrot.lane.b32.xlu0 %v1662, 126
      %v1740 = vpop.permute.xlu0 %1739
      %1741 = vrot.lane.b32.xlu0 %v1663, 126
      %v1742 = vpop.permute.xlu0 %1741
      %1743 = vrot.lane.b32.xlu0 %v1664, 126
      %v1744 = vpop.permute.xlu0 %1743
      %1745 = vrot.lane.b32.xlu0 %v1665, 126
      %v1746 = vpop.permute.xlu0 %1745
      %1747 = vrot.lane.b32.xlu0 %v1666, 126
      %v1748 = vpop.permute.xlu0 %1747
      %1749 = vrot.lane.b32.xlu0 %v1667, 126
      %v1750 = vpop.permute.xlu0 %1749
      %1751 = vrot.lane.b32.xlu0 %v1668, 126
      %v1752 = vpop.permute.xlu0 %1751
      %1753 = vrot.lane.b32.xlu0 %v1669, 126
      %v1754 = vpop.permute.xlu0 %1753
      %1755 = vrot.lane.b32.xlu0 %v1670, 126
      %v1756 = vpop.permute.xlu0 %1755
      %1757 = vrot.lane.b32.xlu0 %v1671, 126
      %v1758 = vpop.permute.xlu0 %1757
      %1759 = vrot.lane.b32.xlu0 %v1672, 126
      %v1760 = vpop.permute.xlu0 %1759
      %1761 = vrot.lane.b32.xlu0 %v1673, 126
      %v1762 = vpop.permute.xlu0 %1761
      %1763 = vrot.lane.b32.xlu0 %v1674, 126
      %v1764 = vpop.permute.xlu0 %1763
      %1765 = vrot.lane.b32.xlu0 %v1675, 126
      %v1766 = vpop.permute.xlu0 %1765
      %1767 = vrot.lane.b32.xlu0 %v1676, 126
      %v1768 = vpop.permute.xlu0 %1767
      %1769 = vrot.lane.b32.xlu0 %v1677, 126
      %v1770 = vpop.permute.xlu0 %1769
      %1771 = vrot.lane.b32.xlu0 %v1678, 126
      %v1772 = vpop.permute.xlu0 %1771
      %1773 = vrot.lane.b32.xlu0 %v1679, 126
      %v1774 = vpop.permute.xlu0 %1773
      %1775 = vrot.lane.b32.xlu0 %v1680, 126
      %v1776 = vpop.permute.xlu0 %1775
      %v1809 = vmul.f32 %v1649, %v1714
      %v1810 = vmul.f32 %v1650, %v1716
      %v1811 = vmul.f32 %v1651, %v1718
      %v1812 = vmul.f32 %v1652, %v1720
      %v1813 = vmul.f32 %v1653, %v1722
      %v1814 = vmul.f32 %v1654, %v1724
      %v1815 = vmul.f32 %v1655, %v1726
      %v1816 = vmul.f32 %v1656, %v1728
      %v1817 = vmul.f32 %v1657, %v1730
      %v1818 = vmul.f32 %v1658, %v1732
      %v1819 = vmul.f32 %v1659, %v1734
      %v1820 = vmul.f32 %v1660, %v1736
      %v1821 = vmul.f32 %v1661, %v1738
      %v1822 = vmul.f32 %v1662, %v1740
      %v1823 = vmul.f32 %v1663, %v1742
      %v1824 = vmul.f32 %v1664, %v1744
      %v1825 = vmul.f32 %v1665, %v1746
      %v1826 = vmul.f32 %v1666, %v1748
      %v1827 = vmul.f32 %v1667, %v1750
      %v1828 = vmul.f32 %v1668, %v1752
      %v1829 = vmul.f32 %v1669, %v1754
      %v1830 = vmul.f32 %v1670, %v1756
      %v1831 = vmul.f32 %v1671, %v1758
      %v1832 = vmul.f32 %v1672, %v1760
      %v1833 = vmul.f32 %v1673, %v1762
      %v1834 = vmul.f32 %v1674, %v1764
      %v1835 = vmul.f32 %v1675, %v1766
      %v1836 = vmul.f32 %v1676, %v1768
      %v1837 = vmul.f32 %v1677, %v1770
      %v1838 = vmul.f32 %v1678, %v1772
      %v1839 = vmul.f32 %v1679, %v1774
      %v1840 = vmul.f32 %v1680, %v1776
      %1842 = vset.pattern.permute.xlu0 0
      %1843 = vperm.xlu0 %1842, %v1809
      %v1844 = vpop.permute.xlu0 %1843
      %1847 = vset.pattern.permute.xlu0 0
      %1848 = vperm.xlu0 %1847, %v1810
      %v1849 = vpop.permute.xlu0 %1848
      %1852 = vset.pattern.permute.xlu0 0
      %1853 = vperm.xlu0 %1852, %v1811
      %v1854 = vpop.permute.xlu0 %1853
      %1857 = vset.pattern.permute.xlu0 0
      %1858 = vperm.xlu0 %1857, %v1812
      %v1859 = vpop.permute.xlu0 %1858
      %1862 = vset.pattern.permute.xlu0 0
      %1863 = vperm.xlu0 %1862, %v1813
      %v1864 = vpop.permute.xlu0 %1863
      %1867 = vset.pattern.permute.xlu0 0
      %1868 = vperm.xlu0 %1867, %v1814
      %v1869 = vpop.permute.xlu0 %1868
      %1872 = vset.pattern.permute.xlu0 0
      %1873 = vperm.xlu0 %1872, %v1815
      %v1874 = vpop.permute.xlu0 %1873
      %1877 = vset.pattern.permute.xlu0 0
      %1878 = vperm.xlu0 %1877, %v1816
      %v1879 = vpop.permute.xlu0 %1878
      %1882 = vset.pattern.permute.xlu0 0
      %1883 = vperm.xlu0 %1882, %v1817
      %v1884 = vpop.permute.xlu0 %1883
      %1887 = vset.pattern.permute.xlu0 0
      %1888 = vperm.xlu0 %1887, %v1818
      %v1889 = vpop.permute.xlu0 %1888
      %1892 = vset.pattern.permute.xlu0 0
      %1893 = vperm.xlu0 %1892, %v1819
      %v1894 = vpop.permute.xlu0 %1893
      %1897 = vset.pattern.permute.xlu0 0
      %1898 = vperm.xlu0 %1897, %v1820
      %v1899 = vpop.permute.xlu0 %1898
      %1902 = vset.pattern.permute.xlu0 0
      %1903 = vperm.xlu0 %1902, %v1821
      %v1904 = vpop.permute.xlu0 %1903
      %1907 = vset.pattern.permute.xlu0 0
      %1908 = vperm.xlu0 %1907, %v1822
      %v1909 = vpop.permute.xlu0 %1908
      %1912 = vset.pattern.permute.xlu0 0
      %1913 = vperm.xlu0 %1912, %v1823
      %v1914 = vpop.permute.xlu0 %1913
      %1917 = vset.pattern.permute.xlu0 0
      %1918 = vperm.xlu0 %1917, %v1824
      %v1919 = vpop.permute.xlu0 %1918
      %1922 = vset.pattern.permute.xlu0 0
      %1923 = vperm.xlu0 %1922, %v1825
      %v1924 = vpop.permute.xlu0 %1923
      %1927 = vset.pattern.permute.xlu0 0
      %1928 = vperm.xlu0 %1927, %v1826
      %v1929 = vpop.permute.xlu0 %1928
      %1932 = vset.pattern.permute.xlu0 0
      %1933 = vperm.xlu0 %1932, %v1827
      %v1934 = vpop.permute.xlu0 %1933
      %1937 = vset.pattern.permute.xlu0 0
      %1938 = vperm.xlu0 %1937, %v1828
      %v1939 = vpop.permute.xlu0 %1938
      %1942 = vset.pattern.permute.xlu0 0
      %1943 = vperm.xlu0 %1942, %v1829
      %v1944 = vpop.permute.xlu0 %1943
      %1947 = vset.pattern.permute.xlu0 0
      %1948 = vperm.xlu0 %1947, %v1830
      %v1949 = vpop.permute.xlu0 %1948
      %1952 = vset.pattern.permute.xlu0 0
      %1953 = vperm.xlu0 %1952, %v1831
      %v1954 = vpop.permute.xlu0 %1953
      %1957 = vset.pattern.permute.xlu0 0
      %1958 = vperm.xlu0 %1957, %v1832
      %v1959 = vpop.permute.xlu0 %1958
      %1962 = vset.pattern.permute.xlu0 0
      %1963 = vperm.xlu0 %1962, %v1833
      %v1964 = vpop.permute.xlu0 %1963
      %1967 = vset.pattern.permute.xlu0 0
      %1968 = vperm.xlu0 %1967, %v1834
      %v1969 = vpop.permute.xlu0 %1968
      %1972 = vset.pattern.permute.xlu0 0
      %1973 = vperm.xlu0 %1972, %v1835
      %v1974 = vpop.permute.xlu0 %1973
      %1977 = vset.pattern.permute.xlu0 0
      %1978 = vperm.xlu0 %1977, %v1836
      %v1979 = vpop.permute.xlu0 %1978
      %1982 = vset.pattern.permute.xlu0 0
      %1983 = vperm.xlu0 %1982, %v1837
      %v1984 = vpop.permute.xlu0 %1983
      %1987 = vset.pattern.permute.xlu0 0
      %1988 = vperm.xlu0 %1987, %v1838
      %v1989 = vpop.permute.xlu0 %1988
      %1992 = vset.pattern.permute.xlu0 0
      %1993 = vperm.xlu0 %1992, %v1839
      %v1994 = vpop.permute.xlu0 %1993
      %1997 = vset.pattern.permute.xlu0 0
      %1998 = vperm.xlu0 %1997, %v1840
      %v1999 = vpop.permute.xlu0 %1998
      %v2001 = vmul.f32 %v1570, %v1844
      %v2002 = vmul.f32 %v1572, %v1849
      %v2003 = vmul.f32 %v1575, %v1854
      %v2004 = vmul.f32 %v1577, %v1859
      %v2005 = vmul.f32 %v1580, %v1864
      %v2006 = vmul.f32 %v1582, %v1869
      %v2007 = vmul.f32 %v1585, %v1874
      %v2008 = vmul.f32 %v1587, %v1879
      %v2009 = vmul.f32 %v1590, %v1884
      %v2010 = vmul.f32 %v1592, %v1889
      %v2011 = vmul.f32 %v1595, %v1894
      %v2012 = vmul.f32 %v1597, %v1899
      %v2013 = vmul.f32 %v1600, %v1904
      %v2014 = vmul.f32 %v1602, %v1909
      %v2015 = vmul.f32 %v1605, %v1914
      %v2016 = vmul.f32 %v1607, %v1919
      %v2017 = vmul.f32 %v1610, %v1924
      %v2018 = vmul.f32 %v1612, %v1929
      %v2019 = vmul.f32 %v1615, %v1934
      %v2020 = vmul.f32 %v1617, %v1939
      %v2021 = vmul.f32 %v1620, %v1944
      %v2022 = vmul.f32 %v1622, %v1949
      %v2023 = vmul.f32 %v1625, %v1954
      %v2024 = vmul.f32 %v1627, %v1959
      %v2025 = vmul.f32 %v1630, %v1964
      %v2026 = vmul.f32 %v1632, %v1969
      %v2027 = vmul.f32 %v1635, %v1974
      %v2028 = vmul.f32 %v1637, %v1979
      %v2029 = vmul.f32 %v1640, %v1984
      %v2030 = vmul.f32 %v1642, %v1989
      %v2031 = vmul.f32 %v1645, %v1994
      %v2032 = vmul.f32 %v1647, %v1999
      %v2033 = vmul.f32 %v767, %v1714
      %v2034 = vmul.f32 %v768, %v1716
      %v2035 = vmul.f32 %v769, %v1718
      %v2036 = vmul.f32 %v770, %v1720
      %v2037 = vmul.f32 %v771, %v1722
      %v2038 = vmul.f32 %v772, %v1724
      %v2039 = vmul.f32 %v773, %v1726
      %v2040 = vmul.f32 %v774, %v1728
      %v2041 = vmul.f32 %v775, %v1730
      %v2042 = vmul.f32 %v776, %v1732
      %v2043 = vmul.f32 %v777, %v1734
      %v2044 = vmul.f32 %v778, %v1736
      %v2045 = vmul.f32 %v779, %v1738
      %v2046 = vmul.f32 %v780, %v1740
      %v2047 = vmul.f32 %v781, %v1742
      %v2048 = vmul.f32 %v782, %v1744
      %v2049 = vmul.f32 %v783, %v1746
      %v2050 = vmul.f32 %v784, %v1748
      %v2051 = vmul.f32 %v785, %v1750
      %v2052 = vmul.f32 %v786, %v1752
      %v2053 = vmul.f32 %v787, %v1754
      %v2054 = vmul.f32 %v788, %v1756
      %v2055 = vmul.f32 %v789, %v1758
      %v2056 = vmul.f32 %v790, %v1760
      %v2057 = vmul.f32 %v791, %v1762
      %v2058 = vmul.f32 %v792, %v1764
      %v2059 = vmul.f32 %v793, %v1766
      %v2060 = vmul.f32 %v794, %v1768
      %v2061 = vmul.f32 %v795, %v1770
      %v2062 = vmul.f32 %v796, %v1772
      %v2063 = vmul.f32 %v797, %v1774
      %v2064 = vmul.f32 %v798, %v1776
      %2066 = vset.pattern.permute.xlu0 0
      %2067 = vperm.xlu0 %2066, %v2033
      %v2068 = vpop.permute.xlu0 %2067
      %2071 = vset.pattern.permute.xlu0 0
      %2072 = vperm.xlu0 %2071, %v2034
      %v2073 = vpop.permute.xlu0 %2072
      %2076 = vset.pattern.permute.xlu0 0
      %2077 = vperm.xlu0 %2076, %v2035
      %v2078 = vpop.permute.xlu0 %2077
      %2081 = vset.pattern.permute.xlu0 0
      %2082 = vperm.xlu0 %2081, %v2036
      %v2083 = vpop.permute.xlu0 %2082
      %2086 = vset.pattern.permute.xlu0 0
      %2087 = vperm.xlu0 %2086, %v2037
      %v2088 = vpop.permute.xlu0 %2087
      %2091 = vset.pattern.permute.xlu0 0
      %2092 = vperm.xlu0 %2091, %v2038
      %v2093 = vpop.permute.xlu0 %2092
      %2096 = vset.pattern.permute.xlu0 0
      %2097 = vperm.xlu0 %2096, %v2039
      %v2098 = vpop.permute.xlu0 %2097
      %2101 = vset.pattern.permute.xlu0 0
      %2102 = vperm.xlu0 %2101, %v2040
      %v2103 = vpop.permute.xlu0 %2102
      %2106 = vset.pattern.permute.xlu0 0
      %2107 = vperm.xlu0 %2106, %v2041
      %v2108 = vpop.permute.xlu0 %2107
      %2111 = vset.pattern.permute.xlu0 0
      %2112 = vperm.xlu0 %2111, %v2042
      %v2113 = vpop.permute.xlu0 %2112
      %2116 = vset.pattern.permute.xlu0 0
      %2117 = vperm.xlu0 %2116, %v2043
      %v2118 = vpop.permute.xlu0 %2117
      %2121 = vset.pattern.permute.xlu0 0
      %2122 = vperm.xlu0 %2121, %v2044
      %v2123 = vpop.permute.xlu0 %2122
      %2126 = vset.pattern.permute.xlu0 0
      %2127 = vperm.xlu0 %2126, %v2045
      %v2128 = vpop.permute.xlu0 %2127
      %2131 = vset.pattern.permute.xlu0 0
      %2132 = vperm.xlu0 %2131, %v2046
      %v2133 = vpop.permute.xlu0 %2132
      %2136 = vset.pattern.permute.xlu0 0
      %2137 = vperm.xlu0 %2136, %v2047
      %v2138 = vpop.permute.xlu0 %2137
      %2141 = vset.pattern.permute.xlu0 0
      %2142 = vperm.xlu0 %2141, %v2048
      %v2143 = vpop.permute.xlu0 %2142
      %2146 = vset.pattern.permute.xlu0 0
      %2147 = vperm.xlu0 %2146, %v2049
      %v2148 = vpop.permute.xlu0 %2147
      %2151 = vset.pattern.permute.xlu0 0
      %2152 = vperm.xlu0 %2151, %v2050
      %v2153 = vpop.permute.xlu0 %2152
      %2156 = vset.pattern.permute.xlu0 0
      %2157 = vperm.xlu0 %2156, %v2051
      %v2158 = vpop.permute.xlu0 %2157
      %2161 = vset.pattern.permute.xlu0 0
      %2162 = vperm.xlu0 %2161, %v2052
      %v2163 = vpop.permute.xlu0 %2162
      %2166 = vset.pattern.permute.xlu0 0
      %2167 = vperm.xlu0 %2166, %v2053
      %v2168 = vpop.permute.xlu0 %2167
      %2171 = vset.pattern.permute.xlu0 0
      %2172 = vperm.xlu0 %2171, %v2054
      %v2173 = vpop.permute.xlu0 %2172
      %2176 = vset.pattern.permute.xlu0 0
      %2177 = vperm.xlu0 %2176, %v2055
      %v2178 = vpop.permute.xlu0 %2177
      %2181 = vset.pattern.permute.xlu0 0
      %2182 = vperm.xlu0 %2181, %v2056
      %v2183 = vpop.permute.xlu0 %2182
      %2186 = vset.pattern.permute.xlu0 0
      %2187 = vperm.xlu0 %2186, %v2057
      %v2188 = vpop.permute.xlu0 %2187
      %2191 = vset.pattern.permute.xlu0 0
      %2192 = vperm.xlu0 %2191, %v2058
      %v2193 = vpop.permute.xlu0 %2192
      %2196 = vset.pattern.permute.xlu0 0
      %2197 = vperm.xlu0 %2196, %v2059
      %v2198 = vpop.permute.xlu0 %2197
      %2201 = vset.pattern.permute.xlu0 0
      %2202 = vperm.xlu0 %2201, %v2060
      %v2203 = vpop.permute.xlu0 %2202
      %2206 = vset.pattern.permute.xlu0 0
      %2207 = vperm.xlu0 %2206, %v2061
      %v2208 = vpop.permute.xlu0 %2207
      %2211 = vset.pattern.permute.xlu0 0
      %2212 = vperm.xlu0 %2211, %v2062
      %v2213 = vpop.permute.xlu0 %2212
      %2216 = vset.pattern.permute.xlu0 0
      %2217 = vperm.xlu0 %2216, %v2063
      %v2218 = vpop.permute.xlu0 %2217
      %2221 = vset.pattern.permute.xlu0 0
      %2222 = vperm.xlu0 %2221, %v2064
      %v2223 = vpop.permute.xlu0 %2222
      %v2225 = vmul.f32 %v1570, %v2068
      %v2226 = vmul.f32 %v1572, %v2073
      %v2227 = vmul.f32 %v1575, %v2078
      %v2228 = vmul.f32 %v1577, %v2083
      %v2229 = vmul.f32 %v1580, %v2088
      %v2230 = vmul.f32 %v1582, %v2093
      %v2231 = vmul.f32 %v1585, %v2098
      %v2232 = vmul.f32 %v1587, %v2103
      %v2233 = vmul.f32 %v1590, %v2108
      %v2234 = vmul.f32 %v1592, %v2113
      %v2235 = vmul.f32 %v1595, %v2118
      %v2236 = vmul.f32 %v1597, %v2123
      %v2237 = vmul.f32 %v1600, %v2128
      %v2238 = vmul.f32 %v1602, %v2133
      %v2239 = vmul.f32 %v1605, %v2138
      %v2240 = vmul.f32 %v1607, %v2143
      %v2241 = vmul.f32 %v1610, %v2148
      %v2242 = vmul.f32 %v1612, %v2153
      %v2243 = vmul.f32 %v1615, %v2158
      %v2244 = vmul.f32 %v1617, %v2163
      %v2245 = vmul.f32 %v1620, %v2168
      %v2246 = vmul.f32 %v1622, %v2173
      %v2247 = vmul.f32 %v1625, %v2178
      %v2248 = vmul.f32 %v1627, %v2183
      %v2249 = vmul.f32 %v1630, %v2188
      %v2250 = vmul.f32 %v1632, %v2193
      %v2251 = vmul.f32 %v1635, %v2198
      %v2252 = vmul.f32 %v1637, %v2203
      %v2253 = vmul.f32 %v1640, %v2208
      %v2254 = vmul.f32 %v1642, %v2213
      %v2255 = vmul.f32 %v1645, %v2218
      %v2256 = vmul.f32 %v1647, %v2223
      %2289 = vrot.lane.b32.xlu0 %v2225, 96
      %v2290 = vpop.permute.xlu0 %2289
      %2291 = vrot.lane.b32.xlu0 %v2226, 96
      %v2292 = vpop.permute.xlu0 %2291
      %2293 = vrot.lane.b32.xlu0 %v2227, 96
      %v2294 = vpop.permute.xlu0 %2293
      %2295 = vrot.lane.b32.xlu0 %v2228, 96
      %v2296 = vpop.permute.xlu0 %2295
      %2297 = vrot.lane.b32.xlu0 %v2229, 96
      %v2298 = vpop.permute.xlu0 %2297
      %2299 = vrot.lane.b32.xlu0 %v2230, 96
      %v2300 = vpop.permute.xlu0 %2299
      %2301 = vrot.lane.b32.xlu0 %v2231, 96
      %v2302 = vpop.permute.xlu0 %2301
      %2303 = vrot.lane.b32.xlu0 %v2232, 96
      %v2304 = vpop.permute.xlu0 %2303
      %2305 = vrot.lane.b32.xlu0 %v2233, 96
      %v2306 = vpop.permute.xlu0 %2305
      %2307 = vrot.lane.b32.xlu0 %v2234, 96
      %v2308 = vpop.permute.xlu0 %2307
      %2309 = vrot.lane.b32.xlu0 %v2235, 96
      %v2310 = vpop.permute.xlu0 %2309
      %2311 = vrot.lane.b32.xlu0 %v2236, 96
      %v2312 = vpop.permute.xlu0 %2311
      %2313 = vrot.lane.b32.xlu0 %v2237, 96
      %v2314 = vpop.permute.xlu0 %2313
      %2315 = vrot.lane.b32.xlu0 %v2238, 96
      %v2316 = vpop.permute.xlu0 %2315
      %2317 = vrot.lane.b32.xlu0 %v2239, 96
      %v2318 = vpop.permute.xlu0 %2317
      %2319 = vrot.lane.b32.xlu0 %v2240, 96
      %v2320 = vpop.permute.xlu0 %2319
      %2321 = vrot.lane.b32.xlu0 %v2241, 96
      %v2322 = vpop.permute.xlu0 %2321
      %2323 = vrot.lane.b32.xlu0 %v2242, 96
      %v2324 = vpop.permute.xlu0 %2323
      %2325 = vrot.lane.b32.xlu0 %v2243, 96
      %v2326 = vpop.permute.xlu0 %2325
      %2327 = vrot.lane.b32.xlu0 %v2244, 96
      %v2328 = vpop.permute.xlu0 %2327
      %2329 = vrot.lane.b32.xlu0 %v2245, 96
      %v2330 = vpop.permute.xlu0 %2329
      %2331 = vrot.lane.b32.xlu0 %v2246, 96
      %v2332 = vpop.permute.xlu0 %2331
      %2333 = vrot.lane.b32.xlu0 %v2247, 96
      %v2334 = vpop.permute.xlu0 %2333
      %2335 = vrot.lane.b32.xlu0 %v2248, 96
      %v2336 = vpop.permute.xlu0 %2335
      %2337 = vrot.lane.b32.xlu0 %v2249, 96
      %v2338 = vpop.permute.xlu0 %2337
      %2339 = vrot.lane.b32.xlu0 %v2250, 96
      %v2340 = vpop.permute.xlu0 %2339
      %2341 = vrot.lane.b32.xlu0 %v2251, 96
      %v2342 = vpop.permute.xlu0 %2341
      %2343 = vrot.lane.b32.xlu0 %v2252, 96
      %v2344 = vpop.permute.xlu0 %2343
      %2345 = vrot.lane.b32.xlu0 %v2253, 96
      %v2346 = vpop.permute.xlu0 %2345
      %2347 = vrot.lane.b32.xlu0 %v2254, 96
      %v2348 = vpop.permute.xlu0 %2347
      %2349 = vrot.lane.b32.xlu0 %v2255, 96
      %v2350 = vpop.permute.xlu0 %2349
      %2351 = vrot.lane.b32.xlu0 %v2256, 96
      %v2352 = vpop.permute.xlu0 %2351
      %v2385 = vadd.f32 %v2001, %v2290
      %v2386 = vadd.f32 %v2002, %v2292
      %v2387 = vadd.f32 %v2003, %v2294
      %v2388 = vadd.f32 %v2004, %v2296
      %v2389 = vadd.f32 %v2005, %v2298
      %v2390 = vadd.f32 %v2006, %v2300
      %v2391 = vadd.f32 %v2007, %v2302
      %v2392 = vadd.f32 %v2008, %v2304
      %v2393 = vadd.f32 %v2009, %v2306
      %v2394 = vadd.f32 %v2010, %v2308
      %v2395 = vadd.f32 %v2011, %v2310
      %v2396 = vadd.f32 %v2012, %v2312
      %v2397 = vadd.f32 %v2013, %v2314
      %v2398 = vadd.f32 %v2014, %v2316
      %v2399 = vadd.f32 %v2015, %v2318
      %v2400 = vadd.f32 %v2016, %v2320
      %v2401 = vadd.f32 %v2017, %v2322
      %v2402 = vadd.f32 %v2018, %v2324
      %v2403 = vadd.f32 %v2019, %v2326
      %v2404 = vadd.f32 %v2020, %v2328
      %v2405 = vadd.f32 %v2021, %v2330
      %v2406 = vadd.f32 %v2022, %v2332
      %v2407 = vadd.f32 %v2023, %v2334
      %v2408 = vadd.f32 %v2024, %v2336
      %v2409 = vadd.f32 %v2025, %v2338
      %v2410 = vadd.f32 %v2026, %v2340
      %v2411 = vadd.f32 %v2027, %v2342
      %v2412 = vadd.f32 %v2028, %v2344
      %v2413 = vadd.f32 %v2029, %v2346
      %v2414 = vadd.f32 %v2030, %v2348
      %v2415 = vadd.f32 %v2031, %v2350
      %v2416 = vadd.f32 %v2032, %v2352
      %2449 = vrot.lane.b32.xlu0 %v767, 126
      %v2450 = vpop.permute.xlu0 %2449
      %2451 = vrot.lane.b32.xlu0 %v768, 126
      %v2452 = vpop.permute.xlu0 %2451
      %2453 = vrot.lane.b32.xlu0 %v769, 126
      %v2454 = vpop.permute.xlu0 %2453
      %2455 = vrot.lane.b32.xlu0 %v770, 126
      %v2456 = vpop.permute.xlu0 %2455
      %2457 = vrot.lane.b32.xlu0 %v771, 126
      %v2458 = vpop.permute.xlu0 %2457
      %2459 = vrot.lane.b32.xlu0 %v772, 126
      %v2460 = vpop.permute.xlu0 %2459
      %2461 = vrot.lane.b32.xlu0 %v773, 126
      %v2462 = vpop.permute.xlu0 %2461
      %2463 = vrot.lane.b32.xlu0 %v774, 126
      %v2464 = vpop.permute.xlu0 %2463
      %2465 = vrot.lane.b32.xlu0 %v775, 126
      %v2466 = vpop.permute.xlu0 %2465
      %2467 = vrot.lane.b32.xlu0 %v776, 126
      %v2468 = vpop.permute.xlu0 %2467
      %2469 = vrot.lane.b32.xlu0 %v777, 126
      %v2470 = vpop.permute.xlu0 %2469
      %2471 = vrot.lane.b32.xlu0 %v778, 126
      %v2472 = vpop.permute.xlu0 %2471
      %2473 = vrot.lane.b32.xlu0 %v779, 126
      %v2474 = vpop.permute.xlu0 %2473
      %2475 = vrot.lane.b32.xlu0 %v780, 126
      %v2476 = vpop.permute.xlu0 %2475
      %2477 = vrot.lane.b32.xlu0 %v781, 126
      %v2478 = vpop.permute.xlu0 %2477
      %2479 = vrot.lane.b32.xlu0 %v782, 126
      %v2480 = vpop.permute.xlu0 %2479
      %2481 = vrot.lane.b32.xlu0 %v783, 126
      %v2482 = vpop.permute.xlu0 %2481
      %2483 = vrot.lane.b32.xlu0 %v784, 126
      %v2484 = vpop.permute.xlu0 %2483
      %2485 = vrot.lane.b32.xlu0 %v785, 126
      %v2486 = vpop.permute.xlu0 %2485
      %2487 = vrot.lane.b32.xlu0 %v786, 126
      %v2488 = vpop.permute.xlu0 %2487
      %2489 = vrot.lane.b32.xlu0 %v787, 126
      %v2490 = vpop.permute.xlu0 %2489
      %2491 = vrot.lane.b32.xlu0 %v788, 126
      %v2492 = vpop.permute.xlu0 %2491
      %2493 = vrot.lane.b32.xlu0 %v789, 126
      %v2494 = vpop.permute.xlu0 %2493
      %2495 = vrot.lane.b32.xlu0 %v790, 126
      %v2496 = vpop.permute.xlu0 %2495
      %2497 = vrot.lane.b32.xlu0 %v791, 126
      %v2498 = vpop.permute.xlu0 %2497
      %2499 = vrot.lane.b32.xlu0 %v792, 126
      %v2500 = vpop.permute.xlu0 %2499
      %2501 = vrot.lane.b32.xlu0 %v793, 126
      %v2502 = vpop.permute.xlu0 %2501
      %2503 = vrot.lane.b32.xlu0 %v794, 126
      %v2504 = vpop.permute.xlu0 %2503
      %2505 = vrot.lane.b32.xlu0 %v795, 126
      %v2506 = vpop.permute.xlu0 %2505
      %2507 = vrot.lane.b32.xlu0 %v796, 126
      %v2508 = vpop.permute.xlu0 %2507
      %2509 = vrot.lane.b32.xlu0 %v797, 126
      %v2510 = vpop.permute.xlu0 %2509
      %2511 = vrot.lane.b32.xlu0 %v798, 126
      %v2512 = vpop.permute.xlu0 %2511
      %v2545 = vmul.f32 %v1649, %v2450
      %v2546 = vmul.f32 %v1650, %v2452
      %v2547 = vmul.f32 %v1651, %v2454
      %v2548 = vmul.f32 %v1652, %v2456
      %v2549 = vmul.f32 %v1653, %v2458
      %v2550 = vmul.f32 %v1654, %v2460
      %v2551 = vmul.f32 %v1655, %v2462
      %v2552 = vmul.f32 %v1656, %v2464
      %v2553 = vmul.f32 %v1657, %v2466
      %v2554 = vmul.f32 %v1658, %v2468
      %v2555 = vmul.f32 %v1659, %v2470
      %v2556 = vmul.f32 %v1660, %v2472
      %v2557 = vmul.f32 %v1661, %v2474
      %v2558 = vmul.f32 %v1662, %v2476
      %v2559 = vmul.f32 %v1663, %v2478
      %v2560 = vmul.f32 %v1664, %v2480
      %v2561 = vmul.f32 %v1665, %v2482
      %v2562 = vmul.f32 %v1666, %v2484
      %v2563 = vmul.f32 %v1667, %v2486
      %v2564 = vmul.f32 %v1668, %v2488
      %v2565 = vmul.f32 %v1669, %v2490
      %v2566 = vmul.f32 %v1670, %v2492
      %v2567 = vmul.f32 %v1671, %v2494
      %v2568 = vmul.f32 %v1672, %v2496
      %v2569 = vmul.f32 %v1673, %v2498
      %v2570 = vmul.f32 %v1674, %v2500
      %v2571 = vmul.f32 %v1675, %v2502
      %v2572 = vmul.f32 %v1676, %v2504
      %v2573 = vmul.f32 %v1677, %v2506
      %v2574 = vmul.f32 %v1678, %v2508
      %v2575 = vmul.f32 %v1679, %v2510
      %v2576 = vmul.f32 %v1680, %v2512
      %2578 = vset.pattern.permute.xlu0 0
      %2579 = vperm.xlu0 %2578, %v2545
      %v2580 = vpop.permute.xlu0 %2579
      %2583 = vset.pattern.permute.xlu0 0
      %2584 = vperm.xlu0 %2583, %v2546
      %v2585 = vpop.permute.xlu0 %2584
      %2588 = vset.pattern.permute.xlu0 0
      %2589 = vperm.xlu0 %2588, %v2547
      %v2590 = vpop.permute.xlu0 %2589
      %2593 = vset.pattern.permute.xlu0 0
      %2594 = vperm.xlu0 %2593, %v2548
      %v2595 = vpop.permute.xlu0 %2594
      %2598 = vset.pattern.permute.xlu0 0
      %2599 = vperm.xlu0 %2598, %v2549
      %v2600 = vpop.permute.xlu0 %2599
      %2603 = vset.pattern.permute.xlu0 0
      %2604 = vperm.xlu0 %2603, %v2550
      %v2605 = vpop.permute.xlu0 %2604
      %2608 = vset.pattern.permute.xlu0 0
      %2609 = vperm.xlu0 %2608, %v2551
      %v2610 = vpop.permute.xlu0 %2609
      %2613 = vset.pattern.permute.xlu0 0
      %2614 = vperm.xlu0 %2613, %v2552
      %v2615 = vpop.permute.xlu0 %2614
      %2618 = vset.pattern.permute.xlu0 0
      %2619 = vperm.xlu0 %2618, %v2553
      %v2620 = vpop.permute.xlu0 %2619
      %2623 = vset.pattern.permute.xlu0 0
      %2624 = vperm.xlu0 %2623, %v2554
      %v2625 = vpop.permute.xlu0 %2624
      %2628 = vset.pattern.permute.xlu0 0
      %2629 = vperm.xlu0 %2628, %v2555
      %v2630 = vpop.permute.xlu0 %2629
      %2633 = vset.pattern.permute.xlu0 0
      %2634 = vperm.xlu0 %2633, %v2556
      %v2635 = vpop.permute.xlu0 %2634
      %2638 = vset.pattern.permute.xlu0 0
      %2639 = vperm.xlu0 %2638, %v2557
      %v2640 = vpop.permute.xlu0 %2639
      %2643 = vset.pattern.permute.xlu0 0
      %2644 = vperm.xlu0 %2643, %v2558
      %v2645 = vpop.permute.xlu0 %2644
      %2648 = vset.pattern.permute.xlu0 0
      %2649 = vperm.xlu0 %2648, %v2559
      %v2650 = vpop.permute.xlu0 %2649
      %2653 = vset.pattern.permute.xlu0 0
      %2654 = vperm.xlu0 %2653, %v2560
      %v2655 = vpop.permute.xlu0 %2654
      %2658 = vset.pattern.permute.xlu0 0
      %2659 = vperm.xlu0 %2658, %v2561
      %v2660 = vpop.permute.xlu0 %2659
      %2663 = vset.pattern.permute.xlu0 0
      %2664 = vperm.xlu0 %2663, %v2562
      %v2665 = vpop.permute.xlu0 %2664
      %2668 = vset.pattern.permute.xlu0 0
      %2669 = vperm.xlu0 %2668, %v2563
      %v2670 = vpop.permute.xlu0 %2669
      %2673 = vset.pattern.permute.xlu0 0
      %2674 = vperm.xlu0 %2673, %v2564
      %v2675 = vpop.permute.xlu0 %2674
      %2678 = vset.pattern.permute.xlu0 0
      %2679 = vperm.xlu0 %2678, %v2565
      %v2680 = vpop.permute.xlu0 %2679
      %2683 = vset.pattern.permute.xlu0 0
      %2684 = vperm.xlu0 %2683, %v2566
      %v2685 = vpop.permute.xlu0 %2684
      %2688 = vset.pattern.permute.xlu0 0
      %2689 = vperm.xlu0 %2688, %v2567
      %v2690 = vpop.permute.xlu0 %2689
      %2693 = vset.pattern.permute.xlu0 0
      %2694 = vperm.xlu0 %2693, %v2568
      %v2695 = vpop.permute.xlu0 %2694
      %2698 = vset.pattern.permute.xlu0 0
      %2699 = vperm.xlu0 %2698, %v2569
      %v2700 = vpop.permute.xlu0 %2699
      %2703 = vset.pattern.permute.xlu0 0
      %2704 = vperm.xlu0 %2703, %v2570
      %v2705 = vpop.permute.xlu0 %2704
      %2708 = vset.pattern.permute.xlu0 0
      %2709 = vperm.xlu0 %2708, %v2571
      %v2710 = vpop.permute.xlu0 %2709
      %2713 = vset.pattern.permute.xlu0 0
      %2714 = vperm.xlu0 %2713, %v2572
      %v2715 = vpop.permute.xlu0 %2714
      %2718 = vset.pattern.permute.xlu0 0
      %2719 = vperm.xlu0 %2718, %v2573
      %v2720 = vpop.permute.xlu0 %2719
      %2723 = vset.pattern.permute.xlu0 0
      %2724 = vperm.xlu0 %2723, %v2574
      %v2725 = vpop.permute.xlu0 %2724
      %2728 = vset.pattern.permute.xlu0 0
      %2729 = vperm.xlu0 %2728, %v2575
      %v2730 = vpop.permute.xlu0 %2729
      %2733 = vset.pattern.permute.xlu0 0
      %2734 = vperm.xlu0 %2733, %v2576
      %v2735 = vpop.permute.xlu0 %2734
      %v2737 = vmul.f32 %v1570, %v2580
      %v2738 = vmul.f32 %v1572, %v2585
      %v2739 = vmul.f32 %v1575, %v2590
      %v2740 = vmul.f32 %v1577, %v2595
      %v2741 = vmul.f32 %v1580, %v2600
      %v2742 = vmul.f32 %v1582, %v2605
      %v2743 = vmul.f32 %v1585, %v2610
      %v2744 = vmul.f32 %v1587, %v2615
      %v2745 = vmul.f32 %v1590, %v2620
      %v2746 = vmul.f32 %v1592, %v2625
      %v2747 = vmul.f32 %v1595, %v2630
      %v2748 = vmul.f32 %v1597, %v2635
      %v2749 = vmul.f32 %v1600, %v2640
      %v2750 = vmul.f32 %v1602, %v2645
      %v2751 = vmul.f32 %v1605, %v2650
      %v2752 = vmul.f32 %v1607, %v2655
      %v2753 = vmul.f32 %v1610, %v2660
      %v2754 = vmul.f32 %v1612, %v2665
      %v2755 = vmul.f32 %v1615, %v2670
      %v2756 = vmul.f32 %v1617, %v2675
      %v2757 = vmul.f32 %v1620, %v2680
      %v2758 = vmul.f32 %v1622, %v2685
      %v2759 = vmul.f32 %v1625, %v2690
      %v2760 = vmul.f32 %v1627, %v2695
      %v2761 = vmul.f32 %v1630, %v2700
      %v2762 = vmul.f32 %v1632, %v2705
      %v2763 = vmul.f32 %v1635, %v2710
      %v2764 = vmul.f32 %v1637, %v2715
      %v2765 = vmul.f32 %v1640, %v2720
      %v2766 = vmul.f32 %v1642, %v2725
      %v2767 = vmul.f32 %v1645, %v2730
      %v2768 = vmul.f32 %v1647, %v2735
      %2801 = vrot.lane.b32.xlu0 %v2737, 64
      %v2802 = vpop.permute.xlu0 %2801
      %2803 = vrot.lane.b32.xlu0 %v2738, 64
      %v2804 = vpop.permute.xlu0 %2803
      %2805 = vrot.lane.b32.xlu0 %v2739, 64
      %v2806 = vpop.permute.xlu0 %2805
      %2807 = vrot.lane.b32.xlu0 %v2740, 64
      %v2808 = vpop.permute.xlu0 %2807
      %2809 = vrot.lane.b32.xlu0 %v2741, 64
      %v2810 = vpop.permute.xlu0 %2809
      %2811 = vrot.lane.b32.xlu0 %v2742, 64
      %v2812 = vpop.permute.xlu0 %2811
      %2813 = vrot.lane.b32.xlu0 %v2743, 64
      %v2814 = vpop.permute.xlu0 %2813
      %2815 = vrot.lane.b32.xlu0 %v2744, 64
      %v2816 = vpop.permute.xlu0 %2815
      %2817 = vrot.lane.b32.xlu0 %v2745, 64
      %v2818 = vpop.permute.xlu0 %2817
      %2819 = vrot.lane.b32.xlu0 %v2746, 64
      %v2820 = vpop.permute.xlu0 %2819
      %2821 = vrot.lane.b32.xlu0 %v2747, 64
      %v2822 = vpop.permute.xlu0 %2821
      %2823 = vrot.lane.b32.xlu0 %v2748, 64
      %v2824 = vpop.permute.xlu0 %2823
      %2825 = vrot.lane.b32.xlu0 %v2749, 64
      %v2826 = vpop.permute.xlu0 %2825
      %2827 = vrot.lane.b32.xlu0 %v2750, 64
      %v2828 = vpop.permute.xlu0 %2827
      %2829 = vrot.lane.b32.xlu0 %v2751, 64
      %v2830 = vpop.permute.xlu0 %2829
      %2831 = vrot.lane.b32.xlu0 %v2752, 64
      %v2832 = vpop.permute.xlu0 %2831
      %2833 = vrot.lane.b32.xlu0 %v2753, 64
      %v2834 = vpop.permute.xlu0 %2833
      %2835 = vrot.lane.b32.xlu0 %v2754, 64
      %v2836 = vpop.permute.xlu0 %2835
      %2837 = vrot.lane.b32.xlu0 %v2755, 64
      %v2838 = vpop.permute.xlu0 %2837
      %2839 = vrot.lane.b32.xlu0 %v2756, 64
      %v2840 = vpop.permute.xlu0 %2839
      %2841 = vrot.lane.b32.xlu0 %v2757, 64
      %v2842 = vpop.permute.xlu0 %2841
      %2843 = vrot.lane.b32.xlu0 %v2758, 64
      %v2844 = vpop.permute.xlu0 %2843
      %2845 = vrot.lane.b32.xlu0 %v2759, 64
      %v2846 = vpop.permute.xlu0 %2845
      %2847 = vrot.lane.b32.xlu0 %v2760, 64
      %v2848 = vpop.permute.xlu0 %2847
      %2849 = vrot.lane.b32.xlu0 %v2761, 64
      %v2850 = vpop.permute.xlu0 %2849
      %2851 = vrot.lane.b32.xlu0 %v2762, 64
      %v2852 = vpop.permute.xlu0 %2851
      %2853 = vrot.lane.b32.xlu0 %v2763, 64
      %v2854 = vpop.permute.xlu0 %2853
      %2855 = vrot.lane.b32.xlu0 %v2764, 64
      %v2856 = vpop.permute.xlu0 %2855
      %2857 = vrot.lane.b32.xlu0 %v2765, 64
      %v2858 = vpop.permute.xlu0 %2857
      %2859 = vrot.lane.b32.xlu0 %v2766, 64
      %v2860 = vpop.permute.xlu0 %2859
      %2861 = vrot.lane.b32.xlu0 %v2767, 64
      %v2862 = vpop.permute.xlu0 %2861
      %2863 = vrot.lane.b32.xlu0 %v2768, 64
      %v2864 = vpop.permute.xlu0 %2863
      %v2897 = vadd.f32 %v2385, %v2802
      %v2898 = vadd.f32 %v2386, %v2804
      %v2899 = vadd.f32 %v2387, %v2806
      %v2900 = vadd.f32 %v2388, %v2808
      %v2901 = vadd.f32 %v2389, %v2810
      %v2902 = vadd.f32 %v2390, %v2812
      %v2903 = vadd.f32 %v2391, %v2814
      %v2904 = vadd.f32 %v2392, %v2816
      %v2905 = vadd.f32 %v2393, %v2818
      %v2906 = vadd.f32 %v2394, %v2820
      %v2907 = vadd.f32 %v2395, %v2822
      %v2908 = vadd.f32 %v2396, %v2824
      %v2909 = vadd.f32 %v2397, %v2826
      %v2910 = vadd.f32 %v2398, %v2828
      %v2911 = vadd.f32 %v2399, %v2830
      %v2912 = vadd.f32 %v2400, %v2832
      %v2913 = vadd.f32 %v2401, %v2834
      %v2914 = vadd.f32 %v2402, %v2836
      %v2915 = vadd.f32 %v2403, %v2838
      %v2916 = vadd.f32 %v2404, %v2840
      %v2917 = vadd.f32 %v2405, %v2842
      %v2918 = vadd.f32 %v2406, %v2844
      %v2919 = vadd.f32 %v2407, %v2846
      %v2920 = vadd.f32 %v2408, %v2848
      %v2921 = vadd.f32 %v2409, %v2850
      %v2922 = vadd.f32 %v2410, %v2852
      %v2923 = vadd.f32 %v2411, %v2854
      %v2924 = vadd.f32 %v2412, %v2856
      %v2925 = vadd.f32 %v2413, %v2858
      %v2926 = vadd.f32 %v2414, %v2860
      %v2927 = vadd.f32 %v2415, %v2862
      %v2928 = vadd.f32 %v2416, %v2864
      %v2929 = vmul.f32 %v767, %v2450
      %v2930 = vmul.f32 %v768, %v2452
      %v2931 = vmul.f32 %v769, %v2454
      %v2932 = vmul.f32 %v770, %v2456
      %v2933 = vmul.f32 %v771, %v2458
      %v2934 = vmul.f32 %v772, %v2460
      %v2935 = vmul.f32 %v773, %v2462
      %v2936 = vmul.f32 %v774, %v2464
      %v2937 = vmul.f32 %v775, %v2466
      %v2938 = vmul.f32 %v776, %v2468
      %v2939 = vmul.f32 %v777, %v2470
      %v2940 = vmul.f32 %v778, %v2472
      %v2941 = vmul.f32 %v779, %v2474
      %v2942 = vmul.f32 %v780, %v2476
      %v2943 = vmul.f32 %v781, %v2478
      %v2944 = vmul.f32 %v782, %v2480
      %v2945 = vmul.f32 %v783, %v2482
      %v2946 = vmul.f32 %v784, %v2484
      %v2947 = vmul.f32 %v785, %v2486
      %v2948 = vmul.f32 %v786, %v2488
      %v2949 = vmul.f32 %v787, %v2490
      %v2950 = vmul.f32 %v788, %v2492
      %v2951 = vmul.f32 %v789, %v2494
      %v2952 = vmul.f32 %v790, %v2496
      %v2953 = vmul.f32 %v791, %v2498
      %v2954 = vmul.f32 %v792, %v2500
      %v2955 = vmul.f32 %v793, %v2502
      %v2956 = vmul.f32 %v794, %v2504
      %v2957 = vmul.f32 %v795, %v2506
      %v2958 = vmul.f32 %v796, %v2508
      %v2959 = vmul.f32 %v797, %v2510
      %v2960 = vmul.f32 %v798, %v2512
      %2962 = vset.pattern.permute.xlu0 0
      %2963 = vperm.xlu0 %2962, %v2929
      %v2964 = vpop.permute.xlu0 %2963
      %2967 = vset.pattern.permute.xlu0 0
      %2968 = vperm.xlu0 %2967, %v2930
      %v2969 = vpop.permute.xlu0 %2968
      %2972 = vset.pattern.permute.xlu0 0
      %2973 = vperm.xlu0 %2972, %v2931
      %v2974 = vpop.permute.xlu0 %2973
      %2977 = vset.pattern.permute.xlu0 0
      %2978 = vperm.xlu0 %2977, %v2932
      %v2979 = vpop.permute.xlu0 %2978
      %2982 = vset.pattern.permute.xlu0 0
      %2983 = vperm.xlu0 %2982, %v2933
      %v2984 = vpop.permute.xlu0 %2983
      %2987 = vset.pattern.permute.xlu0 0
      %2988 = vperm.xlu0 %2987, %v2934
      %v2989 = vpop.permute.xlu0 %2988
      %2992 = vset.pattern.permute.xlu0 0
      %2993 = vperm.xlu0 %2992, %v2935
      %v2994 = vpop.permute.xlu0 %2993
      %2997 = vset.pattern.permute.xlu0 0
      %2998 = vperm.xlu0 %2997, %v2936
      %v2999 = vpop.permute.xlu0 %2998
      %3002 = vset.pattern.permute.xlu0 0
      %3003 = vperm.xlu0 %3002, %v2937
      %v3004 = vpop.permute.xlu0 %3003
      %3007 = vset.pattern.permute.xlu0 0
      %3008 = vperm.xlu0 %3007, %v2938
      %v3009 = vpop.permute.xlu0 %3008
      %3012 = vset.pattern.permute.xlu0 0
      %3013 = vperm.xlu0 %3012, %v2939
      %v3014 = vpop.permute.xlu0 %3013
      %3017 = vset.pattern.permute.xlu0 0
      %3018 = vperm.xlu0 %3017, %v2940
      %v3019 = vpop.permute.xlu0 %3018
      %3022 = vset.pattern.permute.xlu0 0
      %3023 = vperm.xlu0 %3022, %v2941
      %v3024 = vpop.permute.xlu0 %3023
      %3027 = vset.pattern.permute.xlu0 0
      %3028 = vperm.xlu0 %3027, %v2942
      %v3029 = vpop.permute.xlu0 %3028
      %3032 = vset.pattern.permute.xlu0 0
      %3033 = vperm.xlu0 %3032, %v2943
      %v3034 = vpop.permute.xlu0 %3033
      %3037 = vset.pattern.permute.xlu0 0
      %3038 = vperm.xlu0 %3037, %v2944
      %v3039 = vpop.permute.xlu0 %3038
      %3042 = vset.pattern.permute.xlu0 0
      %3043 = vperm.xlu0 %3042, %v2945
      %v3044 = vpop.permute.xlu0 %3043
      %3047 = vset.pattern.permute.xlu0 0
      %3048 = vperm.xlu0 %3047, %v2946
      %v3049 = vpop.permute.xlu0 %3048
      %3052 = vset.pattern.permute.xlu0 0
      %3053 = vperm.xlu0 %3052, %v2947
      %v3054 = vpop.permute.xlu0 %3053
      %3057 = vset.pattern.permute.xlu0 0
      %3058 = vperm.xlu0 %3057, %v2948
      %v3059 = vpop.permute.xlu0 %3058
      %3062 = vset.pattern.permute.xlu0 0
      %3063 = vperm.xlu0 %3062, %v2949
      %v3064 = vpop.permute.xlu0 %3063
      %3067 = vset.pattern.permute.xlu0 0
      %3068 = vperm.xlu0 %3067, %v2950
      %v3069 = vpop.permute.xlu0 %3068
      %3072 = vset.pattern.permute.xlu0 0
      %3073 = vperm.xlu0 %3072, %v2951
      %v3074 = vpop.permute.xlu0 %3073
      %3077 = vset.pattern.permute.xlu0 0
      %3078 = vperm.xlu0 %3077, %v2952
      %v3079 = vpop.permute.xlu0 %3078
      %3082 = vset.pattern.permute.xlu0 0
      %3083 = vperm.xlu0 %3082, %v2953
      %v3084 = vpop.permute.xlu0 %3083
      %3087 = vset.pattern.permute.xlu0 0
      %3088 = vperm.xlu0 %3087, %v2954
      %v3089 = vpop.permute.xlu0 %3088
      %3092 = vset.pattern.permute.xlu0 0
      %3093 = vperm.xlu0 %3092, %v2955
      %v3094 = vpop.permute.xlu0 %3093
      %3097 = vset.pattern.permute.xlu0 0
      %3098 = vperm.xlu0 %3097, %v2956
      %v3099 = vpop.permute.xlu0 %3098
      %3102 = vset.pattern.permute.xlu0 0
      %3103 = vperm.xlu0 %3102, %v2957
      %v3104 = vpop.permute.xlu0 %3103
      %3107 = vset.pattern.permute.xlu0 0
      %3108 = vperm.xlu0 %3107, %v2958
      %v3109 = vpop.permute.xlu0 %3108
      %3112 = vset.pattern.permute.xlu0 0
      %3113 = vperm.xlu0 %3112, %v2959
      %v3114 = vpop.permute.xlu0 %3113
      %3117 = vset.pattern.permute.xlu0 0
      %3118 = vperm.xlu0 %3117, %v2960
      %v3119 = vpop.permute.xlu0 %3118
      %v3121 = vmul.f32 %v1570, %v2964
      %v3122 = vmul.f32 %v1572, %v2969
      %v3123 = vmul.f32 %v1575, %v2974
      %v3124 = vmul.f32 %v1577, %v2979
      %v3125 = vmul.f32 %v1580, %v2984
      %v3126 = vmul.f32 %v1582, %v2989
      %v3127 = vmul.f32 %v1585, %v2994
      %v3128 = vmul.f32 %v1587, %v2999
      %v3129 = vmul.f32 %v1590, %v3004
      %v3130 = vmul.f32 %v1592, %v3009
      %v3131 = vmul.f32 %v1595, %v3014
      %v3132 = vmul.f32 %v1597, %v3019
      %v3133 = vmul.f32 %v1600, %v3024
      %v3134 = vmul.f32 %v1602, %v3029
      %v3135 = vmul.f32 %v1605, %v3034
      %v3136 = vmul.f32 %v1607, %v3039
      %v3137 = vmul.f32 %v1610, %v3044
      %v3138 = vmul.f32 %v1612, %v3049
      %v3139 = vmul.f32 %v1615, %v3054
      %v3140 = vmul.f32 %v1617, %v3059
      %v3141 = vmul.f32 %v1620, %v3064
      %v3142 = vmul.f32 %v1622, %v3069
      %v3143 = vmul.f32 %v1625, %v3074
      %v3144 = vmul.f32 %v1627, %v3079
      %v3145 = vmul.f32 %v1630, %v3084
      %v3146 = vmul.f32 %v1632, %v3089
      %v3147 = vmul.f32 %v1635, %v3094
      %v3148 = vmul.f32 %v1637, %v3099
      %v3149 = vmul.f32 %v1640, %v3104
      %v3150 = vmul.f32 %v1642, %v3109
      %v3151 = vmul.f32 %v1645, %v3114
      %v3152 = vmul.f32 %v1647, %v3119
      %3185 = vrot.lane.b32.xlu0 %v3121, 32
      %v3186 = vpop.permute.xlu0 %3185
      %3187 = vrot.lane.b32.xlu0 %v3122, 32
      %v3188 = vpop.permute.xlu0 %3187
      %3189 = vrot.lane.b32.xlu0 %v3123, 32
      %v3190 = vpop.permute.xlu0 %3189
      %3191 = vrot.lane.b32.xlu0 %v3124, 32
      %v3192 = vpop.permute.xlu0 %3191
      %3193 = vrot.lane.b32.xlu0 %v3125, 32
      %v3194 = vpop.permute.xlu0 %3193
      %3195 = vrot.lane.b32.xlu0 %v3126, 32
      %v3196 = vpop.permute.xlu0 %3195
      %3197 = vrot.lane.b32.xlu0 %v3127, 32
      %v3198 = vpop.permute.xlu0 %3197
      %3199 = vrot.lane.b32.xlu0 %v3128, 32
      %v3200 = vpop.permute.xlu0 %3199
      %3201 = vrot.lane.b32.xlu0 %v3129, 32
      %v3202 = vpop.permute.xlu0 %3201
      %3203 = vrot.lane.b32.xlu0 %v3130, 32
      %v3204 = vpop.permute.xlu0 %3203
      %3205 = vrot.lane.b32.xlu0 %v3131, 32
      %v3206 = vpop.permute.xlu0 %3205
      %3207 = vrot.lane.b32.xlu0 %v3132, 32
      %v3208 = vpop.permute.xlu0 %3207
      %3209 = vrot.lane.b32.xlu0 %v3133, 32
      %v3210 = vpop.permute.xlu0 %3209
      %3211 = vrot.lane.b32.xlu0 %v3134, 32
      %v3212 = vpop.permute.xlu0 %3211
      %3213 = vrot.lane.b32.xlu0 %v3135, 32
      %v3214 = vpop.permute.xlu0 %3213
      %3215 = vrot.lane.b32.xlu0 %v3136, 32
      %v3216 = vpop.permute.xlu0 %3215
      %3217 = vrot.lane.b32.xlu0 %v3137, 32
      %v3218 = vpop.permute.xlu0 %3217
      %3219 = vrot.lane.b32.xlu0 %v3138, 32
      %v3220 = vpop.permute.xlu0 %3219
      %3221 = vrot.lane.b32.xlu0 %v3139, 32
      %v3222 = vpop.permute.xlu0 %3221
      %3223 = vrot.lane.b32.xlu0 %v3140, 32
      %v3224 = vpop.permute.xlu0 %3223
      %3225 = vrot.lane.b32.xlu0 %v3141, 32
      %v3226 = vpop.permute.xlu0 %3225
      %3227 = vrot.lane.b32.xlu0 %v3142, 32
      %v3228 = vpop.permute.xlu0 %3227
      %3229 = vrot.lane.b32.xlu0 %v3143, 32
      %v3230 = vpop.permute.xlu0 %3229
      %3231 = vrot.lane.b32.xlu0 %v3144, 32
      %v3232 = vpop.permute.xlu0 %3231
      %3233 = vrot.lane.b32.xlu0 %v3145, 32
      %v3234 = vpop.permute.xlu0 %3233
      %3235 = vrot.lane.b32.xlu0 %v3146, 32
      %v3236 = vpop.permute.xlu0 %3235
      %3237 = vrot.lane.b32.xlu0 %v3147, 32
      %v3238 = vpop.permute.xlu0 %3237
      %3239 = vrot.lane.b32.xlu0 %v3148, 32
      %v3240 = vpop.permute.xlu0 %3239
      %3241 = vrot.lane.b32.xlu0 %v3149, 32
      %v3242 = vpop.permute.xlu0 %3241
      %3243 = vrot.lane.b32.xlu0 %v3150, 32
      %v3244 = vpop.permute.xlu0 %3243
      %3245 = vrot.lane.b32.xlu0 %v3151, 32
      %v3246 = vpop.permute.xlu0 %3245
      %3247 = vrot.lane.b32.xlu0 %v3152, 32
      %v3248 = vpop.permute.xlu0 %3247
      %v3281 = vadd.f32 %v2897, %v3186
      %v3282 = vadd.f32 %v2898, %v3188
      %v3283 = vadd.f32 %v2899, %v3190
      %v3284 = vadd.f32 %v2900, %v3192
      %v3285 = vadd.f32 %v2901, %v3194
      %v3286 = vadd.f32 %v2902, %v3196
      %v3287 = vadd.f32 %v2903, %v3198
      %v3288 = vadd.f32 %v2904, %v3200
      %v3289 = vadd.f32 %v2905, %v3202
      %v3290 = vadd.f32 %v2906, %v3204
      %v3291 = vadd.f32 %v2907, %v3206
      %v3292 = vadd.f32 %v2908, %v3208
      %v3293 = vadd.f32 %v2909, %v3210
      %v3294 = vadd.f32 %v2910, %v3212
      %v3295 = vadd.f32 %v2911, %v3214
      %v3296 = vadd.f32 %v2912, %v3216
      %v3297 = vadd.f32 %v2913, %v3218
      %v3298 = vadd.f32 %v2914, %v3220
      %v3299 = vadd.f32 %v2915, %v3222
      %v3300 = vadd.f32 %v2916, %v3224
      %v3301 = vadd.f32 %v2917, %v3226
      %v3302 = vadd.f32 %v2918, %v3228
      %v3303 = vadd.f32 %v2919, %v3230
      %v3304 = vadd.f32 %v2920, %v3232
      %v3305 = vadd.f32 %v2921, %v3234
      %v3306 = vadd.f32 %v2922, %v3236
      %v3307 = vadd.f32 %v2923, %v3238
      %v3308 = vadd.f32 %v2924, %v3240
      %v3309 = vadd.f32 %v2925, %v3242
      %v3310 = vadd.f32 %v2926, %v3244
      %v3311 = vadd.f32 %v2927, %v3246
      %v3312 = vadd.f32 %v2928, %v3248
      %3313 = vrot.lane.b32.xlu0 %v863, 1
      %v3314 = vpop.permute.xlu0 %3313
      %3315 = vrot.lane.b32.xlu0 %v864, 1
      %v3316 = vpop.permute.xlu0 %3315
      %3317 = vrot.lane.b32.xlu0 %v865, 1
      %v3318 = vpop.permute.xlu0 %3317
      %3319 = vrot.lane.b32.xlu0 %v866, 1
      %v3320 = vpop.permute.xlu0 %3319
      %3321 = vrot.lane.b32.xlu0 %v867, 1
      %v3322 = vpop.permute.xlu0 %3321
      %3323 = vrot.lane.b32.xlu0 %v868, 1
      %v3324 = vpop.permute.xlu0 %3323
      %3325 = vrot.lane.b32.xlu0 %v869, 1
      %v3326 = vpop.permute.xlu0 %3325
      %3327 = vrot.lane.b32.xlu0 %v870, 1
      %v3328 = vpop.permute.xlu0 %3327
      %3329 = vrot.lane.b32.xlu0 %v871, 1
      %v3330 = vpop.permute.xlu0 %3329
      %3331 = vrot.lane.b32.xlu0 %v872, 1
      %v3332 = vpop.permute.xlu0 %3331
      %3333 = vrot.lane.b32.xlu0 %v873, 1
      %v3334 = vpop.permute.xlu0 %3333
      %3335 = vrot.lane.b32.xlu0 %v874, 1
      %v3336 = vpop.permute.xlu0 %3335
      %3337 = vrot.lane.b32.xlu0 %v875, 1
      %v3338 = vpop.permute.xlu0 %3337
      %3339 = vrot.lane.b32.xlu0 %v876, 1
      %v3340 = vpop.permute.xlu0 %3339
      %3341 = vrot.lane.b32.xlu0 %v877, 1
      %v3342 = vpop.permute.xlu0 %3341
      %3343 = vrot.lane.b32.xlu0 %v878, 1
      %v3344 = vpop.permute.xlu0 %3343
      %3345 = vrot.lane.b32.xlu0 %v879, 1
      %v3346 = vpop.permute.xlu0 %3345
      %3347 = vrot.lane.b32.xlu0 %v880, 1
      %v3348 = vpop.permute.xlu0 %3347
      %3349 = vrot.lane.b32.xlu0 %v881, 1
      %v3350 = vpop.permute.xlu0 %3349
      %3351 = vrot.lane.b32.xlu0 %v882, 1
      %v3352 = vpop.permute.xlu0 %3351
      %3353 = vrot.lane.b32.xlu0 %v883, 1
      %v3354 = vpop.permute.xlu0 %3353
      %3355 = vrot.lane.b32.xlu0 %v884, 1
      %v3356 = vpop.permute.xlu0 %3355
      %3357 = vrot.lane.b32.xlu0 %v885, 1
      %v3358 = vpop.permute.xlu0 %3357
      %3359 = vrot.lane.b32.xlu0 %v886, 1
      %v3360 = vpop.permute.xlu0 %3359
      %3361 = vrot.lane.b32.xlu0 %v887, 1
      %v3362 = vpop.permute.xlu0 %3361
      %3363 = vrot.lane.b32.xlu0 %v888, 1
      %v3364 = vpop.permute.xlu0 %3363
      %3365 = vrot.lane.b32.xlu0 %v889, 1
      %v3366 = vpop.permute.xlu0 %3365
      %3367 = vrot.lane.b32.xlu0 %v890, 1
      %v3368 = vpop.permute.xlu0 %3367
      %3369 = vrot.lane.b32.xlu0 %v891, 1
      %v3370 = vpop.permute.xlu0 %3369
      %3371 = vrot.lane.b32.xlu0 %v892, 1
      %v3372 = vpop.permute.xlu0 %3371
      %3373 = vrot.lane.b32.xlu0 %v893, 1
      %v3374 = vpop.permute.xlu0 %3373
      %3375 = vrot.lane.b32.xlu0 %v894, 1
      %v3376 = vpop.permute.xlu0 %3375
      %v3377 = vadd.s32 %v895, %v3314
      %v3378 = vadd.s32 %v896, %v3316
      %v3379 = vadd.s32 %v897, %v3318
      %v3380 = vadd.s32 %v898, %v3320
      %v3381 = vadd.s32 %v899, %v3322
      %v3382 = vadd.s32 %v900, %v3324
      %v3383 = vadd.s32 %v901, %v3326
      %v3384 = vadd.s32 %v902, %v3328
      %v3385 = vadd.s32 %v903, %v3330
      %v3386 = vadd.s32 %v904, %v3332
      %v3387 = vadd.s32 %v905, %v3334
      %v3388 = vadd.s32 %v906, %v3336
      %v3389 = vadd.s32 %v907, %v3338
      %v3390 = vadd.s32 %v908, %v3340
      %v3391 = vadd.s32 %v909, %v3342
      %v3392 = vadd.s32 %v910, %v3344
      %v3393 = vadd.s32 %v911, %v3346
      %v3394 = vadd.s32 %v912, %v3348
      %v3395 = vadd.s32 %v913, %v3350
      %v3396 = vadd.s32 %v914, %v3352
      %v3397 = vadd.s32 %v915, %v3354
      %v3398 = vadd.s32 %v916, %v3356
      %v3399 = vadd.s32 %v917, %v3358
      %v3400 = vadd.s32 %v918, %v3360
      %v3401 = vadd.s32 %v919, %v3362
      %v3402 = vadd.s32 %v920, %v3364
      %v3403 = vadd.s32 %v921, %v3366
      %v3404 = vadd.s32 %v922, %v3368
      %v3405 = vadd.s32 %v923, %v3370
      %v3406 = vadd.s32 %v924, %v3372
      %v3407 = vadd.s32 %v925, %v3374
      %v3408 = vadd.s32 %v926, %v3376
      %3409 = vset.pattern.permute.xlu0 1
      %3410 = vperm.xlu0 %3409, %v3377
      %v3411 = vpop.permute.xlu0 %3410
      %3412 = vset.pattern.permute.xlu0 1
      %3413 = vperm.xlu0 %3412, %v3378
      %v3414 = vpop.permute.xlu0 %3413
      %3415 = vset.pattern.permute.xlu0 1
      %3416 = vperm.xlu0 %3415, %v3379
      %v3417 = vpop.permute.xlu0 %3416
      %3418 = vset.pattern.permute.xlu0 1
      %3419 = vperm.xlu0 %3418, %v3380
      %v3420 = vpop.permute.xlu0 %3419
      %3421 = vset.pattern.permute.xlu0 1
      %3422 = vperm.xlu0 %3421, %v3381
      %v3423 = vpop.permute.xlu0 %3422
      %3424 = vset.pattern.permute.xlu0 1
      %3425 = vperm.xlu0 %3424, %v3382
      %v3426 = vpop.permute.xlu0 %3425
      %3427 = vset.pattern.permute.xlu0 1
      %3428 = vperm.xlu0 %3427, %v3383
      %v3429 = vpop.permute.xlu0 %3428
      %3430 = vset.pattern.permute.xlu0 1
      %3431 = vperm.xlu0 %3430, %v3384
      %v3432 = vpop.permute.xlu0 %3431
      %3433 = vset.pattern.permute.xlu0 1
      %3434 = vperm.xlu0 %3433, %v3385
      %v3435 = vpop.permute.xlu0 %3434
      %3436 = vset.pattern.permute.xlu0 1
      %3437 = vperm.xlu0 %3436, %v3386
      %v3438 = vpop.permute.xlu0 %3437
      %3439 = vset.pattern.permute.xlu0 1
      %3440 = vperm.xlu0 %3439, %v3387
      %v3441 = vpop.permute.xlu0 %3440
      %3442 = vset.pattern.permute.xlu0 1
      %3443 = vperm.xlu0 %3442, %v3388
      %v3444 = vpop.permute.xlu0 %3443
      %3445 = vset.pattern.permute.xlu0 1
      %3446 = vperm.xlu0 %3445, %v3389
      %v3447 = vpop.permute.xlu0 %3446
      %3448 = vset.pattern.permute.xlu0 1
      %3449 = vperm.xlu0 %3448, %v3390
      %v3450 = vpop.permute.xlu0 %3449
      %3451 = vset.pattern.permute.xlu0 1
      %3452 = vperm.xlu0 %3451, %v3391
      %v3453 = vpop.permute.xlu0 %3452
      %3454 = vset.pattern.permute.xlu0 1
      %3455 = vperm.xlu0 %3454, %v3392
      %v3456 = vpop.permute.xlu0 %3455
      %3457 = vset.pattern.permute.xlu0 1
      %3458 = vperm.xlu0 %3457, %v3393
      %v3459 = vpop.permute.xlu0 %3458
      %3460 = vset.pattern.permute.xlu0 1
      %3461 = vperm.xlu0 %3460, %v3394
      %v3462 = vpop.permute.xlu0 %3461
      %3463 = vset.pattern.permute.xlu0 1
      %3464 = vperm.xlu0 %3463, %v3395
      %v3465 = vpop.permute.xlu0 %3464
      %3466 = vset.pattern.permute.xlu0 1
      %3467 = vperm.xlu0 %3466, %v3396
      %v3468 = vpop.permute.xlu0 %3467
      %3469 = vset.pattern.permute.xlu0 1
      %3470 = vperm.xlu0 %3469, %v3397
      %v3471 = vpop.permute.xlu0 %3470
      %3472 = vset.pattern.permute.xlu0 1
      %3473 = vperm.xlu0 %3472, %v3398
      %v3474 = vpop.permute.xlu0 %3473
      %3475 = vset.pattern.permute.xlu0 1
      %3476 = vperm.xlu0 %3475, %v3399
      %v3477 = vpop.permute.xlu0 %3476
      %3478 = vset.pattern.permute.xlu0 1
      %3479 = vperm.xlu0 %3478, %v3400
      %v3480 = vpop.permute.xlu0 %3479
      %3481 = vset.pattern.permute.xlu0 1
      %3482 = vperm.xlu0 %3481, %v3401
      %v3483 = vpop.permute.xlu0 %3482
      %3484 = vset.pattern.permute.xlu0 1
      %3485 = vperm.xlu0 %3484, %v3402
      %v3486 = vpop.permute.xlu0 %3485
      %3487 = vset.pattern.permute.xlu0 1
      %3488 = vperm.xlu0 %3487, %v3403
      %v3489 = vpop.permute.xlu0 %3488
      %3490 = vset.pattern.permute.xlu0 1
      %3491 = vperm.xlu0 %3490, %v3404
      %v3492 = vpop.permute.xlu0 %3491
      %3493 = vset.pattern.permute.xlu0 1
      %3494 = vperm.xlu0 %3493, %v3405
      %v3495 = vpop.permute.xlu0 %3494
      %3496 = vset.pattern.permute.xlu0 1
      %3497 = vperm.xlu0 %3496, %v3406
      %v3498 = vpop.permute.xlu0 %3497
      %3499 = vset.pattern.permute.xlu0 1
      %3500 = vperm.xlu0 %3499, %v3407
      %v3501 = vpop.permute.xlu0 %3500
      %3502 = vset.pattern.permute.xlu0 1
      %3503 = vperm.xlu0 %3502, %v3408
      %v3504 = vpop.permute.xlu0 %3503
      %vm3505 = vcmp.eq.s32.totalorder %v509, %v3411
      %vm3506 = vcmp.eq.s32.totalorder %v510, %v3411
      %vm3507 = vcmp.eq.s32.totalorder %v509, %v3414
      %vm3508 = vcmp.eq.s32.totalorder %v510, %v3414
      %vm3509 = vcmp.eq.s32.totalorder %v509, %v3417
      %vm3510 = vcmp.eq.s32.totalorder %v510, %v3417
      %vm3511 = vcmp.eq.s32.totalorder %v509, %v3420
      %vm3512 = vcmp.eq.s32.totalorder %v510, %v3420
      %vm3513 = vcmp.eq.s32.totalorder %v509, %v3423
      %vm3514 = vcmp.eq.s32.totalorder %v510, %v3423
      %vm3515 = vcmp.eq.s32.totalorder %v509, %v3426
      %vm3516 = vcmp.eq.s32.totalorder %v510, %v3426
      %vm3517 = vcmp.eq.s32.totalorder %v509, %v3429
      %vm3518 = vcmp.eq.s32.totalorder %v510, %v3429
      %vm3519 = vcmp.eq.s32.totalorder %v509, %v3432
      %vm3520 = vcmp.eq.s32.totalorder %v510, %v3432
      %vm3521 = vcmp.eq.s32.totalorder %v509, %v3435
      %vm3522 = vcmp.eq.s32.totalorder %v510, %v3435
      %vm3523 = vcmp.eq.s32.totalorder %v509, %v3438
      %vm3524 = vcmp.eq.s32.totalorder %v510, %v3438
      %vm3525 = vcmp.eq.s32.totalorder %v509, %v3441
      %vm3526 = vcmp.eq.s32.totalorder %v510, %v3441
      %vm3527 = vcmp.eq.s32.totalorder %v509, %v3444
      %vm3528 = vcmp.eq.s32.totalorder %v510, %v3444
      %vm3529 = vcmp.eq.s32.totalorder %v509, %v3447
      %vm3530 = vcmp.eq.s32.totalorder %v510, %v3447
      %vm3531 = vcmp.eq.s32.totalorder %v509, %v3450
      %vm3532 = vcmp.eq.s32.totalorder %v510, %v3450
      %vm3533 = vcmp.eq.s32.totalorder %v509, %v3453
      %vm3534 = vcmp.eq.s32.totalorder %v510, %v3453
      %vm3535 = vcmp.eq.s32.totalorder %v509, %v3456
      %vm3536 = vcmp.eq.s32.totalorder %v510, %v3456
      %vm3537 = vcmp.eq.s32.totalorder %v509, %v3459
      %vm3538 = vcmp.eq.s32.totalorder %v510, %v3459
      %vm3539 = vcmp.eq.s32.totalorder %v509, %v3462
      %vm3540 = vcmp.eq.s32.totalorder %v510, %v3462
      %vm3541 = vcmp.eq.s32.totalorder %v509, %v3465
      %vm3542 = vcmp.eq.s32.totalorder %v510, %v3465
      %vm3543 = vcmp.eq.s32.totalorder %v509, %v3468
      %vm3544 = vcmp.eq.s32.totalorder %v510, %v3468
      %vm3545 = vcmp.eq.s32.totalorder %v509, %v3471
      %vm3546 = vcmp.eq.s32.totalorder %v510, %v3471
      %vm3547 = vcmp.eq.s32.totalorder %v509, %v3474
      %vm3548 = vcmp.eq.s32.totalorder %v510, %v3474
      %vm3549 = vcmp.eq.s32.totalorder %v509, %v3477
      %vm3550 = vcmp.eq.s32.totalorder %v510, %v3477
      %vm3551 = vcmp.eq.s32.totalorder %v509, %v3480
      %vm3552 = vcmp.eq.s32.totalorder %v510, %v3480
      %vm3553 = vcmp.eq.s32.totalorder %v509, %v3483
      %vm3554 = vcmp.eq.s32.totalorder %v510, %v3483
      %vm3555 = vcmp.eq.s32.totalorder %v509, %v3486
      %vm3556 = vcmp.eq.s32.totalorder %v510, %v3486
      %vm3557 = vcmp.eq.s32.totalorder %v509, %v3489
      %vm3558 = vcmp.eq.s32.totalorder %v510, %v3489
      %vm3559 = vcmp.eq.s32.totalorder %v509, %v3492
      %vm3560 = vcmp.eq.s32.totalorder %v510, %v3492
      %vm3561 = vcmp.eq.s32.totalorder %v509, %v3495
      %vm3562 = vcmp.eq.s32.totalorder %v510, %v3495
      %vm3563 = vcmp.eq.s32.totalorder %v509, %v3498
      %vm3564 = vcmp.eq.s32.totalorder %v510, %v3498
      %vm3565 = vcmp.eq.s32.totalorder %v509, %v3501
      %vm3566 = vcmp.eq.s32.totalorder %v510, %v3501
      %vm3567 = vcmp.eq.s32.totalorder %v509, %v3504
      %vm3568 = vcmp.eq.s32.totalorder %v510, %v3504
      %v3569 = vsel %vm3505, 1, 0
      %v3570 = vsel %vm3506, 1, 0
      %v3571 = vsel %vm3507, 1, 0
      %v3572 = vsel %vm3508, 1, 0
      %v3573 = vsel %vm3509, 1, 0
      %v3574 = vsel %vm3510, 1, 0
      %v3575 = vsel %vm3511, 1, 0
      %v3576 = vsel %vm3512, 1, 0
      %v3577 = vsel %vm3513, 1, 0
      %v3578 = vsel %vm3514, 1, 0
      %v3579 = vsel %vm3515, 1, 0
      %v3580 = vsel %vm3516, 1, 0
      %v3581 = vsel %vm3517, 1, 0
      %v3582 = vsel %vm3518, 1, 0
      %v3583 = vsel %vm3519, 1, 0
      %v3584 = vsel %vm3520, 1, 0
      %v3585 = vsel %vm3521, 1, 0
      %v3586 = vsel %vm3522, 1, 0
      %v3587 = vsel %vm3523, 1, 0
      %v3588 = vsel %vm3524, 1, 0
      %v3589 = vsel %vm3525, 1, 0
      %v3590 = vsel %vm3526, 1, 0
      %v3591 = vsel %vm3527, 1, 0
      %v3592 = vsel %vm3528, 1, 0
      %v3593 = vsel %vm3529, 1, 0
      %v3594 = vsel %vm3530, 1, 0
      %v3595 = vsel %vm3531, 1, 0
      %v3596 = vsel %vm3532, 1, 0
      %v3597 = vsel %vm3533, 1, 0
      %v3598 = vsel %vm3534, 1, 0
      %v3599 = vsel %vm3535, 1, 0
      %v3600 = vsel %vm3536, 1, 0
      %v3601 = vsel %vm3537, 1, 0
      %v3602 = vsel %vm3538, 1, 0
      %v3603 = vsel %vm3539, 1, 0
      %v3604 = vsel %vm3540, 1, 0
      %v3605 = vsel %vm3541, 1, 0
      %v3606 = vsel %vm3542, 1, 0
      %v3607 = vsel %vm3543, 1, 0
      %v3608 = vsel %vm3544, 1, 0
      %v3609 = vsel %vm3545, 1, 0
      %v3610 = vsel %vm3546, 1, 0
      %v3611 = vsel %vm3547, 1, 0
      %v3612 = vsel %vm3548, 1, 0
      %v3613 = vsel %vm3549, 1, 0
      %v3614 = vsel %vm3550, 1, 0
      %v3615 = vsel %vm3551, 1, 0
      %v3616 = vsel %vm3552, 1, 0
      %v3617 = vsel %vm3553, 1, 0
      %v3618 = vsel %vm3554, 1, 0
      %v3619 = vsel %vm3555, 1, 0
      %v3620 = vsel %vm3556, 1, 0
      %v3621 = vsel %vm3557, 1, 0
      %v3622 = vsel %vm3558, 1, 0
      %v3623 = vsel %vm3559, 1, 0
      %v3624 = vsel %vm3560, 1, 0
      %v3625 = vsel %vm3561, 1, 0
      %v3626 = vsel %vm3562, 1, 0
      %v3627 = vsel %vm3563, 1, 0
      %v3628 = vsel %vm3564, 1, 0
      %v3629 = vsel %vm3565, 1, 0
      %v3630 = vsel %vm3566, 1, 0
      %v3631 = vsel %vm3567, 1, 0
      %v3632 = vsel %vm3568, 1, 0
      %v3633 = vcvt.s32.f32 %v3569
      %v3634 = vcvt.s32.f32 %v3570
      %v3635 = vcvt.s32.f32 %v3571
      %v3636 = vcvt.s32.f32 %v3572
      %v3637 = vcvt.s32.f32 %v3573
      %v3638 = vcvt.s32.f32 %v3574
      %v3639 = vcvt.s32.f32 %v3575
      %v3640 = vcvt.s32.f32 %v3576
      %v3641 = vcvt.s32.f32 %v3577
      %v3642 = vcvt.s32.f32 %v3578
      %v3643 = vcvt.s32.f32 %v3579
      %v3644 = vcvt.s32.f32 %v3580
      %v3645 = vcvt.s32.f32 %v3581
      %v3646 = vcvt.s32.f32 %v3582
      %v3647 = vcvt.s32.f32 %v3583
      %v3648 = vcvt.s32.f32 %v3584
      %v3649 = vcvt.s32.f32 %v3585
      %v3650 = vcvt.s32.f32 %v3586
      %v3651 = vcvt.s32.f32 %v3587
      %v3652 = vcvt.s32.f32 %v3588
      %v3653 = vcvt.s32.f32 %v3589
      %v3654 = vcvt.s32.f32 %v3590
      %v3655 = vcvt.s32.f32 %v3591
      %v3656 = vcvt.s32.f32 %v3592
      %v3657 = vcvt.s32.f32 %v3593
      %v3658 = vcvt.s32.f32 %v3594
      %v3659 = vcvt.s32.f32 %v3595
      %v3660 = vcvt.s32.f32 %v3596
      %v3661 = vcvt.s32.f32 %v3597
      %v3662 = vcvt.s32.f32 %v3598
      %v3663 = vcvt.s32.f32 %v3599
      %v3664 = vcvt.s32.f32 %v3600
      %v3665 = vcvt.s32.f32 %v3601
      %v3666 = vcvt.s32.f32 %v3602
      %v3667 = vcvt.s32.f32 %v3603
      %v3668 = vcvt.s32.f32 %v3604
      %v3669 = vcvt.s32.f32 %v3605
      %v3670 = vcvt.s32.f32 %v3606
      %v3671 = vcvt.s32.f32 %v3607
      %v3672 = vcvt.s32.f32 %v3608
      %v3673 = vcvt.s32.f32 %v3609
      %v3674 = vcvt.s32.f32 %v3610
      %v3675 = vcvt.s32.f32 %v3611
      %v3676 = vcvt.s32.f32 %v3612
      %v3677 = vcvt.s32.f32 %v3613
      %v3678 = vcvt.s32.f32 %v3614
      %v3679 = vcvt.s32.f32 %v3615
      %v3680 = vcvt.s32.f32 %v3616
      %v3681 = vcvt.s32.f32 %v3617
      %v3682 = vcvt.s32.f32 %v3618
      %v3683 = vcvt.s32.f32 %v3619
      %v3684 = vcvt.s32.f32 %v3620
      %v3685 = vcvt.s32.f32 %v3621
      %v3686 = vcvt.s32.f32 %v3622
      %v3687 = vcvt.s32.f32 %v3623
      %v3688 = vcvt.s32.f32 %v3624
      %v3689 = vcvt.s32.f32 %v3625
      %v3690 = vcvt.s32.f32 %v3626
      %v3691 = vcvt.s32.f32 %v3627
      %v3692 = vcvt.s32.f32 %v3628
      %v3693 = vcvt.s32.f32 %v3629
      %v3694 = vcvt.s32.f32 %v3630
      %v3695 = vcvt.s32.f32 %v3631
      %v3696 = vcvt.s32.f32 %v3632
      %v3697 = vpack.c.bf16 %v3635, %v3633
      %v3698 = vpack.c.bf16 %v3636, %v3634
      %v3699 = vpack.c.bf16 %v3639, %v3637
      %v3700 = vpack.c.bf16 %v3640, %v3638
      %v3701 = vpack.c.bf16 %v3643, %v3641
      %v3702 = vpack.c.bf16 %v3644, %v3642
      %v3703 = vpack.c.bf16 %v3647, %v3645
      %v3704 = vpack.c.bf16 %v3648, %v3646
      %v3705 = vpack.c.bf16 %v3651, %v3649
      %v3706 = vpack.c.bf16 %v3652, %v3650
      %v3707 = vpack.c.bf16 %v3655, %v3653
      %v3708 = vpack.c.bf16 %v3656, %v3654
      %v3709 = vpack.c.bf16 %v3659, %v3657
      %v3710 = vpack.c.bf16 %v3660, %v3658
      %v3711 = vpack.c.bf16 %v3663, %v3661
      %v3712 = vpack.c.bf16 %v3664, %v3662
      %v3713 = vpack.c.bf16 %v3667, %v3665
      %v3714 = vpack.c.bf16 %v3668, %v3666
      %v3715 = vpack.c.bf16 %v3671, %v3669
      %v3716 = vpack.c.bf16 %v3672, %v3670
      %v3717 = vpack.c.bf16 %v3675, %v3673
      %v3718 = vpack.c.bf16 %v3676, %v3674
      %v3719 = vpack.c.bf16 %v3679, %v3677
      %v3720 = vpack.c.bf16 %v3680, %v3678
      %v3721 = vpack.c.bf16 %v3683, %v3681
      %v3722 = vpack.c.bf16 %v3684, %v3682
      %v3723 = vpack.c.bf16 %v3687, %v3685
      %v3724 = vpack.c.bf16 %v3688, %v3686
      %v3725 = vpack.c.bf16 %v3691, %v3689
      %v3726 = vpack.c.bf16 %v3692, %v3690
      %v3727 = vpack.c.bf16 %v3695, %v3693
      %v3728 = vpack.c.bf16 %v3696, %v3694
      %s3729 = scalar_lea.vmem %s464, 128
      %v3730 = vld [vmem:[%s3729] sm:$0xf]
      %v3731 = vld [vmem:[%s3729 + $0x4] sm:$0xf]
      %v3732 = vld [vmem:[%s3729 + $0x8] sm:$0xf]
      %v3733 = vld [vmem:[%s3729 + $0xc] sm:$0xf]
      %v3734 = vld [vmem:[%s3729 + $0x10] sm:$0xf]
      %v3735 = vld [vmem:[%s3729 + $0x14] sm:$0xf]
      %v3736 = vld [vmem:[%s3729 + $0x18] sm:$0xf]
      %v3737 = vld [vmem:[%s3729 + $0x1c] sm:$0xf]
      %v3738 = vld [vmem:[%s3729 + $0x20] sm:$0xf]
      %v3739 = vld [vmem:[%s3729 + $0x24] sm:$0xf]
      %v3740 = vld [vmem:[%s3729 + $0x28] sm:$0xf]
      %v3741 = vld [vmem:[%s3729 + $0x2c] sm:$0xf]
      %v3742 = vld [vmem:[%s3729 + $0x30] sm:$0xf]
      %v3743 = vld [vmem:[%s3729 + $0x34] sm:$0xf]
      %v3744 = vld [vmem:[%s3729 + $0x38] sm:$0xf]
      %v3745 = vld [vmem:[%s3729 + $0x3c] sm:$0xf]
      %v3746 = vld [vmem:[%s3729 + $0x40] sm:$0xf]
      %v3747 = vld [vmem:[%s3729 + $0x44] sm:$0xf]
      %v3748 = vld [vmem:[%s3729 + $0x48] sm:$0xf]
      %v3749 = vld [vmem:[%s3729 + $0x4c] sm:$0xf]
      %v3750 = vld [vmem:[%s3729 + $0x50] sm:$0xf]
      %v3751 = vld [vmem:[%s3729 + $0x54] sm:$0xf]
      %v3752 = vld [vmem:[%s3729 + $0x58] sm:$0xf]
      %v3753 = vld [vmem:[%s3729 + $0x5c] sm:$0xf]
      %v3754 = vld [vmem:[%s3729 + $0x60] sm:$0xf]
      %v3755 = vld [vmem:[%s3729 + $0x64] sm:$0xf]
      %v3756 = vld [vmem:[%s3729 + $0x68] sm:$0xf]
      %v3757 = vld [vmem:[%s3729 + $0x6c] sm:$0xf]
      %v3758 = vld [vmem:[%s3729 + $0x70] sm:$0xf]
      %v3759 = vld [vmem:[%s3729 + $0x74] sm:$0xf]
      %v3760 = vld [vmem:[%s3729 + $0x78] sm:$0xf]
      %v3761 = vld [vmem:[%s3729 + $0x7c] sm:$0xf]
      %v3794 = vunpack.c.l.b16 %v3730
      %v3795 = vunpack.c.l.b16 %v3731
      %v3796 = vunpack.c.l.b16 %v3732
      %v3797 = vunpack.c.l.b16 %v3733
      %v3798 = vunpack.c.l.b16 %v3734
      %v3799 = vunpack.c.l.b16 %v3735
      %v3800 = vunpack.c.l.b16 %v3736
      %v3801 = vunpack.c.l.b16 %v3737
      %v3802 = vunpack.c.l.b16 %v3738
      %v3803 = vunpack.c.l.b16 %v3739
      %v3804 = vunpack.c.l.b16 %v3740
      %v3805 = vunpack.c.l.b16 %v3741
      %v3806 = vunpack.c.l.b16 %v3742
      %v3807 = vunpack.c.l.b16 %v3743
      %v3808 = vunpack.c.l.b16 %v3744
      %v3809 = vunpack.c.l.b16 %v3745
      %v3810 = vunpack.c.l.b16 %v3746
      %v3811 = vunpack.c.l.b16 %v3747
      %v3812 = vunpack.c.l.b16 %v3748
      %v3813 = vunpack.c.l.b16 %v3749
      %v3814 = vunpack.c.l.b16 %v3750
      %v3815 = vunpack.c.l.b16 %v3751
      %v3816 = vunpack.c.l.b16 %v3752
      %v3817 = vunpack.c.l.b16 %v3753
      %v3818 = vunpack.c.l.b16 %v3754
      %v3819 = vunpack.c.l.b16 %v3755
      %v3820 = vunpack.c.l.b16 %v3756
      %v3821 = vunpack.c.l.b16 %v3757
      %v3822 = vunpack.c.l.b16 %v3758
      %v3823 = vunpack.c.l.b16 %v3759
      %v3824 = vunpack.c.l.b16 %v3760
      %v3825 = vunpack.c.l.b16 %v3761
      %v3826 = vpack.c.b16 %v3795, %v3794
      %v3827 = vpack.c.b16 %v3797, %v3796
      %v3828 = vpack.c.b16 %v3799, %v3798
      %v3829 = vpack.c.b16 %v3801, %v3800
      %v3830 = vpack.c.b16 %v3803, %v3802
      %v3831 = vpack.c.b16 %v3805, %v3804
      %v3832 = vpack.c.b16 %v3807, %v3806
      %v3833 = vpack.c.b16 %v3809, %v3808
      %v3834 = vpack.c.b16 %v3811, %v3810
      %v3835 = vpack.c.b16 %v3813, %v3812
      %v3836 = vpack.c.b16 %v3815, %v3814
      %v3837 = vpack.c.b16 %v3817, %v3816
      %v3838 = vpack.c.b16 %v3819, %v3818
      %v3839 = vpack.c.b16 %v3821, %v3820
      %v3840 = vpack.c.b16 %v3823, %v3822
      %v3841 = vpack.c.b16 %v3825, %v3824
      %3858 = vmatpush.bf16.msra.mxu0 %v3833
      %3859 = vmatpush.bf16.msra.mxu0 %v3832
      %3860 = vmatpush.bf16.msra.mxu0 %v3831
      %3861 = vmatpush.bf16.msra.mxu0 %v3830
      %3862 = vmatpush.bf16.msra.mxu0 %v3829
      %3863 = vmatpush.bf16.msra.mxu0 %v3828
      %3864 = vmatpush.bf16.msra.mxu0 %v3827
      %3865 = vmatpush.bf16.msra.mxu0 %v3826
      %3866 = vmatmul.bf16.gmra.mxu0 %v3697
      %v3867 = vpop.f32.mrf.mxu0
      %v3868 = vadd.f32 0.0, %v3867
      %v3869 = vpop.f32.mrf.mxu0
      %v3870 = vadd.f32 0.0, %v3869
      %3871 = vmatmul.bf16.gmra.mxu0 %v3699
      %v3872 = vpop.f32.mrf.mxu0
      %v3873 = vadd.f32 0.0, %v3872
      %v3874 = vpop.f32.mrf.mxu0
      %v3875 = vadd.f32 0.0, %v3874
      %3876 = vmatmul.bf16.gmra.mxu0 %v3701
      %v3877 = vpop.f32.mrf.mxu0
      %v3878 = vadd.f32 0.0, %v3877
      %v3879 = vpop.f32.mrf.mxu0
      %v3880 = vadd.f32 0.0, %v3879
      %3881 = vmatmul.bf16.gmra.mxu0 %v3703
      %v3882 = vpop.f32.mrf.mxu0
      %v3883 = vadd.f32 0.0, %v3882
      %v3884 = vpop.f32.mrf.mxu0
      %v3885 = vadd.f32 0.0, %v3884
      %3886 = vmatmul.bf16.gmra.mxu0 %v3705
      %v3887 = vpop.f32.mrf.mxu0
      %v3888 = vadd.f32 0.0, %v3887
      %v3889 = vpop.f32.mrf.mxu0
      %v3890 = vadd.f32 0.0, %v3889
      %3891 = vmatmul.bf16.gmra.mxu0 %v3707
      %v3892 = vpop.f32.mrf.mxu0
      %v3893 = vadd.f32 0.0, %v3892
      %v3894 = vpop.f32.mrf.mxu0
      %v3895 = vadd.f32 0.0, %v3894
      %3896 = vmatmul.bf16.gmra.mxu0 %v3709
      %v3897 = vpop.f32.mrf.mxu0
      %v3898 = vadd.f32 0.0, %v3897
      %v3899 = vpop.f32.mrf.mxu0
      %v3900 = vadd.f32 0.0, %v3899
      %3901 = vmatmul.bf16.gmra.mxu0 %v3711
      %v3902 = vpop.f32.mrf.mxu0
      %v3903 = vadd.f32 0.0, %v3902
      %v3904 = vpop.f32.mrf.mxu0
      %v3905 = vadd.f32 0.0, %v3904
      %3906 = vmatmul.bf16.gmra.mxu0 %v3713
      %v3907 = vpop.f32.mrf.mxu0
      %v3908 = vadd.f32 0.0, %v3907
      %v3909 = vpop.f32.mrf.mxu0
      %v3910 = vadd.f32 0.0, %v3909
      %3911 = vmatmul.bf16.gmra.mxu0 %v3715
      %v3912 = vpop.f32.mrf.mxu0
      %v3913 = vadd.f32 0.0, %v3912
      %v3914 = vpop.f32.mrf.mxu0
      %v3915 = vadd.f32 0.0, %v3914
      %3916 = vmatmul.bf16.gmra.mxu0 %v3717
      %v3917 = vpop.f32.mrf.mxu0
      %v3918 = vadd.f32 0.0, %v3917
      %v3919 = vpop.f32.mrf.mxu0
      %v3920 = vadd.f32 0.0, %v3919
      %3921 = vmatmul.bf16.gmra.mxu0 %v3719
      %v3922 = vpop.f32.mrf.mxu0
      %v3923 = vadd.f32 0.0, %v3922
      %v3924 = vpop.f32.mrf.mxu0
      %v3925 = vadd.f32 0.0, %v3924
      %3926 = vmatmul.bf16.gmra.mxu0 %v3721
      %v3927 = vpop.f32.mrf.mxu0
      %v3928 = vadd.f32 0.0, %v3927
      %v3929 = vpop.f32.mrf.mxu0
      %v3930 = vadd.f32 0.0, %v3929
      %3931 = vmatmul.bf16.gmra.mxu0 %v3723
      %v3932 = vpop.f32.mrf.mxu0
      %v3933 = vadd.f32 0.0, %v3932
      %v3934 = vpop.f32.mrf.mxu0
      %v3935 = vadd.f32 0.0, %v3934
      %3936 = vmatmul.bf16.gmra.mxu0 %v3725
      %v3937 = vpop.f32.mrf.mxu0
      %v3938 = vadd.f32 0.0, %v3937
      %v3939 = vpop.f32.mrf.mxu0
      %v3940 = vadd.f32 0.0, %v3939
      %3941 = vmatmul.bf16.gmra.mxu0 %v3727
      %v3942 = vpop.f32.mrf.mxu0
      %v3943 = vadd.f32 0.0, %v3942
      %v3944 = vpop.f32.mrf.mxu0
      %v3945 = vadd.f32 0.0, %v3944
      %3946 = vdwg.mxu0
      %3947 = vmatpush.bf16.msra.mxu0 %v3841
      %3948 = vmatpush.bf16.msra.mxu0 %v3840
      %3949 = vmatpush.bf16.msra.mxu0 %v3839
      %3950 = vmatpush.bf16.msra.mxu0 %v3838
      %3951 = vmatpush.bf16.msra.mxu0 %v3837
      %3952 = vmatpush.bf16.msra.mxu0 %v3836
      %3953 = vmatpush.bf16.msra.mxu0 %v3835
      %3954 = vmatpush.bf16.msra.mxu0 %v3834
      %3955 = vmatmul.bf16.gmra.mxu0 %v3698
      %v3956 = vpop.f32.mrf.mxu0
      %v3957 = vadd.f32 %v3868, %v3956
      %v3958 = vpop.f32.mrf.mxu0
      %v3959 = vadd.f32 %v3870, %v3958
      %3960 = vmatmul.bf16.gmra.mxu0 %v3700
      %v3961 = vpop.f32.mrf.mxu0
      %v3962 = vadd.f32 %v3873, %v3961
      %v3963 = vpop.f32.mrf.mxu0
      %v3964 = vadd.f32 %v3875, %v3963
      %3965 = vmatmul.bf16.gmra.mxu0 %v3702
      %v3966 = vpop.f32.mrf.mxu0
      %v3967 = vadd.f32 %v3878, %v3966
      %v3968 = vpop.f32.mrf.mxu0
      %v3969 = vadd.f32 %v3880, %v3968
      %3970 = vmatmul.bf16.gmra.mxu0 %v3704
      %v3971 = vpop.f32.mrf.mxu0
      %v3972 = vadd.f32 %v3883, %v3971
      %v3973 = vpop.f32.mrf.mxu0
      %v3974 = vadd.f32 %v3885, %v3973
      %3975 = vmatmul.bf16.gmra.mxu0 %v3706
      %v3976 = vpop.f32.mrf.mxu0
      %v3977 = vadd.f32 %v3888, %v3976
      %v3978 = vpop.f32.mrf.mxu0
      %v3979 = vadd.f32 %v3890, %v3978
      %3980 = vmatmul.bf16.gmra.mxu0 %v3708
      %v3981 = vpop.f32.mrf.mxu0
      %v3982 = vadd.f32 %v3893, %v3981
      %v3983 = vpop.f32.mrf.mxu0
      %v3984 = vadd.f32 %v3895, %v3983
      %3985 = vmatmul.bf16.gmra.mxu0 %v3710
      %v3986 = vpop.f32.mrf.mxu0
      %v3987 = vadd.f32 %v3898, %v3986
      %v3988 = vpop.f32.mrf.mxu0
      %v3989 = vadd.f32 %v3900, %v3988
      %3990 = vmatmul.bf16.gmra.mxu0 %v3712
      %v3991 = vpop.f32.mrf.mxu0
      %v3992 = vadd.f32 %v3903, %v3991
      %v3993 = vpop.f32.mrf.mxu0
      %v3994 = vadd.f32 %v3905, %v3993
      %3995 = vmatmul.bf16.gmra.mxu0 %v3714
      %v3996 = vpop.f32.mrf.mxu0
      %v3997 = vadd.f32 %v3908, %v3996
      %v3998 = vpop.f32.mrf.mxu0
      %v3999 = vadd.f32 %v3910, %v3998
      %4000 = vmatmul.bf16.gmra.mxu0 %v3716
      %v4001 = vpop.f32.mrf.mxu0
      %v4002 = vadd.f32 %v3913, %v4001
      %v4003 = vpop.f32.mrf.mxu0
      %v4004 = vadd.f32 %v3915, %v4003
      %4005 = vmatmul.bf16.gmra.mxu0 %v3718
      %v4006 = vpop.f32.mrf.mxu0
      %v4007 = vadd.f32 %v3918, %v4006
      %v4008 = vpop.f32.mrf.mxu0
      %v4009 = vadd.f32 %v3920, %v4008
      %4010 = vmatmul.bf16.gmra.mxu0 %v3720
      %v4011 = vpop.f32.mrf.mxu0
      %v4012 = vadd.f32 %v3923, %v4011
      %v4013 = vpop.f32.mrf.mxu0
      %v4014 = vadd.f32 %v3925, %v4013
      %4015 = vmatmul.bf16.gmra.mxu0 %v3722
      %v4016 = vpop.f32.mrf.mxu0
      %v4017 = vadd.f32 %v3928, %v4016
      %v4018 = vpop.f32.mrf.mxu0
      %v4019 = vadd.f32 %v3930, %v4018
      %4020 = vmatmul.bf16.gmra.mxu0 %v3724
      %v4021 = vpop.f32.mrf.mxu0
      %v4022 = vadd.f32 %v3933, %v4021
      %v4023 = vpop.f32.mrf.mxu0
      %v4024 = vadd.f32 %v3935, %v4023
      %4025 = vmatmul.bf16.gmra.mxu0 %v3726
      %v4026 = vpop.f32.mrf.mxu0
      %v4027 = vadd.f32 %v3938, %v4026
      %v4028 = vpop.f32.mrf.mxu0
      %v4029 = vadd.f32 %v3940, %v4028
      %4030 = vmatmul.bf16.gmra.mxu0 %v3728
      %v4031 = vpop.f32.mrf.mxu0
      %v4032 = vadd.f32 %v3943, %v4031
      %v4033 = vpop.f32.mrf.mxu0
      %v4034 = vadd.f32 %v3945, %v4033
      %4035 = vdwg.mxu0
      %4036 = vrot.lane.b32.xlu0 %v1649, 127
      %v4037 = vpop.permute.xlu0 %4036
      %4038 = vrot.lane.b32.xlu0 %v1650, 127
      %v4039 = vpop.permute.xlu0 %4038
      %4040 = vrot.lane.b32.xlu0 %v1651, 127
      %v4041 = vpop.permute.xlu0 %4040
      %4042 = vrot.lane.b32.xlu0 %v1652, 127
      %v4043 = vpop.permute.xlu0 %4042
      %4044 = vrot.lane.b32.xlu0 %v1653, 127
      %v4045 = vpop.permute.xlu0 %4044
      %4046 = vrot.lane.b32.xlu0 %v1654, 127
      %v4047 = vpop.permute.xlu0 %4046
      %4048 = vrot.lane.b32.xlu0 %v1655, 127
      %v4049 = vpop.permute.xlu0 %4048
      %4050 = vrot.lane.b32.xlu0 %v1656, 127
      %v4051 = vpop.permute.xlu0 %4050
      %4052 = vrot.lane.b32.xlu0 %v1657, 127
      %v4053 = vpop.permute.xlu0 %4052
      %4054 = vrot.lane.b32.xlu0 %v1658, 127
      %v4055 = vpop.permute.xlu0 %4054
      %4056 = vrot.lane.b32.xlu0 %v1659, 127
      %v4057 = vpop.permute.xlu0 %4056
      %4058 = vrot.lane.b32.xlu0 %v1660, 127
      %v4059 = vpop.permute.xlu0 %4058
      %4060 = vrot.lane.b32.xlu0 %v1661, 127
      %v4061 = vpop.permute.xlu0 %4060
      %4062 = vrot.lane.b32.xlu0 %v1662, 127
      %v4063 = vpop.permute.xlu0 %4062
      %4064 = vrot.lane.b32.xlu0 %v1663, 127
      %v4065 = vpop.permute.xlu0 %4064
      %4066 = vrot.lane.b32.xlu0 %v1664, 127
      %v4067 = vpop.permute.xlu0 %4066
      %4068 = vrot.lane.b32.xlu0 %v1665, 127
      %v4069 = vpop.permute.xlu0 %4068
      %4070 = vrot.lane.b32.xlu0 %v1666, 127
      %v4071 = vpop.permute.xlu0 %4070
      %4072 = vrot.lane.b32.xlu0 %v1667, 127
      %v4073 = vpop.permute.xlu0 %4072
      %4074 = vrot.lane.b32.xlu0 %v1668, 127
      %v4075 = vpop.permute.xlu0 %4074
      %4076 = vrot.lane.b32.xlu0 %v1669, 127
      %v4077 = vpop.permute.xlu0 %4076
      %4078 = vrot.lane.b32.xlu0 %v1670, 127
      %v4079 = vpop.permute.xlu0 %4078
      %4080 = vrot.lane.b32.xlu0 %v1671, 127
      %v4081 = vpop.permute.xlu0 %4080
      %4082 = vrot.lane.b32.xlu0 %v1672, 127
      %v4083 = vpop.permute.xlu0 %4082
      %4084 = vrot.lane.b32.xlu0 %v1673, 127
      %v4085 = vpop.permute.xlu0 %4084
      %4086 = vrot.lane.b32.xlu0 %v1674, 127
      %v4087 = vpop.permute.xlu0 %4086
      %4088 = vrot.lane.b32.xlu0 %v1675, 127
      %v4089 = vpop.permute.xlu0 %4088
      %4090 = vrot.lane.b32.xlu0 %v1676, 127
      %v4091 = vpop.permute.xlu0 %4090
      %4092 = vrot.lane.b32.xlu0 %v1677, 127
      %v4093 = vpop.permute.xlu0 %4092
      %4094 = vrot.lane.b32.xlu0 %v1678, 127
      %v4095 = vpop.permute.xlu0 %4094
      %4096 = vrot.lane.b32.xlu0 %v1679, 127
      %v4097 = vpop.permute.xlu0 %4096
      %4098 = vrot.lane.b32.xlu0 %v1680, 127
      %v4099 = vpop.permute.xlu0 %4098
      %v4132 = vmul.f32 %v1649, %v4037
      %v4133 = vmul.f32 %v1650, %v4039
      %v4134 = vmul.f32 %v1651, %v4041
      %v4135 = vmul.f32 %v1652, %v4043
      %v4136 = vmul.f32 %v1653, %v4045
      %v4137 = vmul.f32 %v1654, %v4047
      %v4138 = vmul.f32 %v1655, %v4049
      %v4139 = vmul.f32 %v1656, %v4051
      %v4140 = vmul.f32 %v1657, %v4053
      %v4141 = vmul.f32 %v1658, %v4055
      %v4142 = vmul.f32 %v1659, %v4057
      %v4143 = vmul.f32 %v1660, %v4059
      %v4144 = vmul.f32 %v1661, %v4061
      %v4145 = vmul.f32 %v1662, %v4063
      %v4146 = vmul.f32 %v1663, %v4065
      %v4147 = vmul.f32 %v1664, %v4067
      %v4148 = vmul.f32 %v1665, %v4069
      %v4149 = vmul.f32 %v1666, %v4071
      %v4150 = vmul.f32 %v1667, %v4073
      %v4151 = vmul.f32 %v1668, %v4075
      %v4152 = vmul.f32 %v1669, %v4077
      %v4153 = vmul.f32 %v1670, %v4079
      %v4154 = vmul.f32 %v1671, %v4081
      %v4155 = vmul.f32 %v1672, %v4083
      %v4156 = vmul.f32 %v1673, %v4085
      %v4157 = vmul.f32 %v1674, %v4087
      %v4158 = vmul.f32 %v1675, %v4089
      %v4159 = vmul.f32 %v1676, %v4091
      %v4160 = vmul.f32 %v1677, %v4093
      %v4161 = vmul.f32 %v1678, %v4095
      %v4162 = vmul.f32 %v1679, %v4097
      %v4163 = vmul.f32 %v1680, %v4099
      %4165 = vset.pattern.permute.xlu0 0
      %4166 = vperm.xlu0 %4165, %v4132
      %v4167 = vpop.permute.xlu0 %4166
      %4170 = vset.pattern.permute.xlu0 0
      %4171 = vperm.xlu0 %4170, %v4133
      %v4172 = vpop.permute.xlu0 %4171
      %4175 = vset.pattern.permute.xlu0 0
      %4176 = vperm.xlu0 %4175, %v4134
      %v4177 = vpop.permute.xlu0 %4176
      %4180 = vset.pattern.permute.xlu0 0
      %4181 = vperm.xlu0 %4180, %v4135
      %v4182 = vpop.permute.xlu0 %4181
      %4185 = vset.pattern.permute.xlu0 0
      %4186 = vperm.xlu0 %4185, %v4136
      %v4187 = vpop.permute.xlu0 %4186
      %4190 = vset.pattern.permute.xlu0 0
      %4191 = vperm.xlu0 %4190, %v4137
      %v4192 = vpop.permute.xlu0 %4191
      %4195 = vset.pattern.permute.xlu0 0
      %4196 = vperm.xlu0 %4195, %v4138
      %v4197 = vpop.permute.xlu0 %4196
      %4200 = vset.pattern.permute.xlu0 0
      %4201 = vperm.xlu0 %4200, %v4139
      %v4202 = vpop.permute.xlu0 %4201
      %4205 = vset.pattern.permute.xlu0 0
      %4206 = vperm.xlu0 %4205, %v4140
      %v4207 = vpop.permute.xlu0 %4206
      %4210 = vset.pattern.permute.xlu0 0
      %4211 = vperm.xlu0 %4210, %v4141
      %v4212 = vpop.permute.xlu0 %4211
      %4215 = vset.pattern.permute.xlu0 0
      %4216 = vperm.xlu0 %4215, %v4142
      %v4217 = vpop.permute.xlu0 %4216
      %4220 = vset.pattern.permute.xlu0 0
      %4221 = vperm.xlu0 %4220, %v4143
      %v4222 = vpop.permute.xlu0 %4221
      %4225 = vset.pattern.permute.xlu0 0
      %4226 = vperm.xlu0 %4225, %v4144
      %v4227 = vpop.permute.xlu0 %4226
      %4230 = vset.pattern.permute.xlu0 0
      %4231 = vperm.xlu0 %4230, %v4145
      %v4232 = vpop.permute.xlu0 %4231
      %4235 = vset.pattern.permute.xlu0 0
      %4236 = vperm.xlu0 %4235, %v4146
      %v4237 = vpop.permute.xlu0 %4236
      %4240 = vset.pattern.permute.xlu0 0
      %4241 = vperm.xlu0 %4240, %v4147
      %v4242 = vpop.permute.xlu0 %4241
      %4245 = vset.pattern.permute.xlu0 0
      %4246 = vperm.xlu0 %4245, %v4148
      %v4247 = vpop.permute.xlu0 %4246
      %4250 = vset.pattern.permute.xlu0 0
      %4251 = vperm.xlu0 %4250, %v4149
      %v4252 = vpop.permute.xlu0 %4251
      %4255 = vset.pattern.permute.xlu0 0
      %4256 = vperm.xlu0 %4255, %v4150
      %v4257 = vpop.permute.xlu0 %4256
      %4260 = vset.pattern.permute.xlu0 0
      %4261 = vperm.xlu0 %4260, %v4151
      %v4262 = vpop.permute.xlu0 %4261
      %4265 = vset.pattern.permute.xlu0 0
      %4266 = vperm.xlu0 %4265, %v4152
      %v4267 = vpop.permute.xlu0 %4266
      %4270 = vset.pattern.permute.xlu0 0
      %4271 = vperm.xlu0 %4270, %v4153
      %v4272 = vpop.permute.xlu0 %4271
      %4275 = vset.pattern.permute.xlu0 0
      %4276 = vperm.xlu0 %4275, %v4154
      %v4277 = vpop.permute.xlu0 %4276
      %4280 = vset.pattern.permute.xlu0 0
      %4281 = vperm.xlu0 %4280, %v4155
      %v4282 = vpop.permute.xlu0 %4281
      %4285 = vset.pattern.permute.xlu0 0
      %4286 = vperm.xlu0 %4285, %v4156
      %v4287 = vpop.permute.xlu0 %4286
      %4290 = vset.pattern.permute.xlu0 0
      %4291 = vperm.xlu0 %4290, %v4157
      %v4292 = vpop.permute.xlu0 %4291
      %4295 = vset.pattern.permute.xlu0 0
      %4296 = vperm.xlu0 %4295, %v4158
      %v4297 = vpop.permute.xlu0 %4296
      %4300 = vset.pattern.permute.xlu0 0
      %4301 = vperm.xlu0 %4300, %v4159
      %v4302 = vpop.permute.xlu0 %4301
      %4305 = vset.pattern.permute.xlu0 0
      %4306 = vperm.xlu0 %4305, %v4160
      %v4307 = vpop.permute.xlu0 %4306
      %4310 = vset.pattern.permute.xlu0 0
      %4311 = vperm.xlu0 %4310, %v4161
      %v4312 = vpop.permute.xlu0 %4311
      %4315 = vset.pattern.permute.xlu0 0
      %4316 = vperm.xlu0 %4315, %v4162
      %v4317 = vpop.permute.xlu0 %4316
      %4320 = vset.pattern.permute.xlu0 0
      %4321 = vperm.xlu0 %4320, %v4163
      %v4322 = vpop.permute.xlu0 %4321
      %v4324 = vmul.f32 %v3957, %v4167
      %v4325 = vmul.f32 %v3959, %v4172
      %v4326 = vmul.f32 %v3962, %v4177
      %v4327 = vmul.f32 %v3964, %v4182
      %v4328 = vmul.f32 %v3967, %v4187
      %v4329 = vmul.f32 %v3969, %v4192
      %v4330 = vmul.f32 %v3972, %v4197
      %v4331 = vmul.f32 %v3974, %v4202
      %v4332 = vmul.f32 %v3977, %v4207
      %v4333 = vmul.f32 %v3979, %v4212
      %v4334 = vmul.f32 %v3982, %v4217
      %v4335 = vmul.f32 %v3984, %v4222
      %v4336 = vmul.f32 %v3987, %v4227
      %v4337 = vmul.f32 %v3989, %v4232
      %v4338 = vmul.f32 %v3992, %v4237
      %v4339 = vmul.f32 %v3994, %v4242
      %v4340 = vmul.f32 %v3997, %v4247
      %v4341 = vmul.f32 %v3999, %v4252
      %v4342 = vmul.f32 %v4002, %v4257
      %v4343 = vmul.f32 %v4004, %v4262
      %v4344 = vmul.f32 %v4007, %v4267
      %v4345 = vmul.f32 %v4009, %v4272
      %v4346 = vmul.f32 %v4012, %v4277
      %v4347 = vmul.f32 %v4014, %v4282
      %v4348 = vmul.f32 %v4017, %v4287
      %v4349 = vmul.f32 %v4019, %v4292
      %v4350 = vmul.f32 %v4022, %v4297
      %v4351 = vmul.f32 %v4024, %v4302
      %v4352 = vmul.f32 %v4027, %v4307
      %v4353 = vmul.f32 %v4029, %v4312
      %v4354 = vmul.f32 %v4032, %v4317
      %v4355 = vmul.f32 %v4034, %v4322
      %v4356 = vmul.f32 %v767, %v4037
      %v4357 = vmul.f32 %v768, %v4039
      %v4358 = vmul.f32 %v769, %v4041
      %v4359 = vmul.f32 %v770, %v4043
      %v4360 = vmul.f32 %v771, %v4045
      %v4361 = vmul.f32 %v772, %v4047
      %v4362 = vmul.f32 %v773, %v4049
      %v4363 = vmul.f32 %v774, %v4051
      %v4364 = vmul.f32 %v775, %v4053
      %v4365 = vmul.f32 %v776, %v4055
      %v4366 = vmul.f32 %v777, %v4057
      %v4367 = vmul.f32 %v778, %v4059
      %v4368 = vmul.f32 %v779, %v4061
      %v4369 = vmul.f32 %v780, %v4063
      %v4370 = vmul.f32 %v781, %v4065
      %v4371 = vmul.f32 %v782, %v4067
      %v4372 = vmul.f32 %v783, %v4069
      %v4373 = vmul.f32 %v784, %v4071
      %v4374 = vmul.f32 %v785, %v4073
      %v4375 = vmul.f32 %v786, %v4075
      %v4376 = vmul.f32 %v787, %v4077
      %v4377 = vmul.f32 %v788, %v4079
      %v4378 = vmul.f32 %v789, %v4081
      %v4379 = vmul.f32 %v790, %v4083
      %v4380 = vmul.f32 %v791, %v4085
      %v4381 = vmul.f32 %v792, %v4087
      %v4382 = vmul.f32 %v793, %v4089
      %v4383 = vmul.f32 %v794, %v4091
      %v4384 = vmul.f32 %v795, %v4093
      %v4385 = vmul.f32 %v796, %v4095
      %v4386 = vmul.f32 %v797, %v4097
      %v4387 = vmul.f32 %v798, %v4099
      %4389 = vset.pattern.permute.xlu0 0
      %4390 = vperm.xlu0 %4389, %v4356
      %v4391 = vpop.permute.xlu0 %4390
      %4394 = vset.pattern.permute.xlu0 0
      %4395 = vperm.xlu0 %4394, %v4357
      %v4396 = vpop.permute.xlu0 %4395
      %4399 = vset.pattern.permute.xlu0 0
      %4400 = vperm.xlu0 %4399, %v4358
      %v4401 = vpop.permute.xlu0 %4400
      %4404 = vset.pattern.permute.xlu0 0
      %4405 = vperm.xlu0 %4404, %v4359
      %v4406 = vpop.permute.xlu0 %4405
      %4409 = vset.pattern.permute.xlu0 0
      %4410 = vperm.xlu0 %4409, %v4360
      %v4411 = vpop.permute.xlu0 %4410
      %4414 = vset.pattern.permute.xlu0 0
      %4415 = vperm.xlu0 %4414, %v4361
      %v4416 = vpop.permute.xlu0 %4415
      %4419 = vset.pattern.permute.xlu0 0
      %4420 = vperm.xlu0 %4419, %v4362
      %v4421 = vpop.permute.xlu0 %4420
      %4424 = vset.pattern.permute.xlu0 0
      %4425 = vperm.xlu0 %4424, %v4363
      %v4426 = vpop.permute.xlu0 %4425
      %4429 = vset.pattern.permute.xlu0 0
      %4430 = vperm.xlu0 %4429, %v4364
      %v4431 = vpop.permute.xlu0 %4430
      %4434 = vset.pattern.permute.xlu0 0
      %4435 = vperm.xlu0 %4434, %v4365
      %v4436 = vpop.permute.xlu0 %4435
      %4439 = vset.pattern.permute.xlu0 0
      %4440 = vperm.xlu0 %4439, %v4366
      %v4441 = vpop.permute.xlu0 %4440
      %4444 = vset.pattern.permute.xlu0 0
      %4445 = vperm.xlu0 %4444, %v4367
      %v4446 = vpop.permute.xlu0 %4445
      %4449 = vset.pattern.permute.xlu0 0
      %4450 = vperm.xlu0 %4449, %v4368
      %v4451 = vpop.permute.xlu0 %4450
      %4454 = vset.pattern.permute.xlu0 0
      %4455 = vperm.xlu0 %4454, %v4369
      %v4456 = vpop.permute.xlu0 %4455
      %4459 = vset.pattern.permute.xlu0 0
      %4460 = vperm.xlu0 %4459, %v4370
      %v4461 = vpop.permute.xlu0 %4460
      %4464 = vset.pattern.permute.xlu0 0
      %4465 = vperm.xlu0 %4464, %v4371
      %v4466 = vpop.permute.xlu0 %4465
      %4469 = vset.pattern.permute.xlu0 0
      %4470 = vperm.xlu0 %4469, %v4372
      %v4471 = vpop.permute.xlu0 %4470
      %4474 = vset.pattern.permute.xlu0 0
      %4475 = vperm.xlu0 %4474, %v4373
      %v4476 = vpop.permute.xlu0 %4475
      %4479 = vset.pattern.permute.xlu0 0
      %4480 = vperm.xlu0 %4479, %v4374
      %v4481 = vpop.permute.xlu0 %4480
      %4484 = vset.pattern.permute.xlu0 0
      %4485 = vperm.xlu0 %4484, %v4375
      %v4486 = vpop.permute.xlu0 %4485
      %4489 = vset.pattern.permute.xlu0 0
      %4490 = vperm.xlu0 %4489, %v4376
      %v4491 = vpop.permute.xlu0 %4490
      %4494 = vset.pattern.permute.xlu0 0
      %4495 = vperm.xlu0 %4494, %v4377
      %v4496 = vpop.permute.xlu0 %4495
      %4499 = vset.pattern.permute.xlu0 0
      %4500 = vperm.xlu0 %4499, %v4378
      %v4501 = vpop.permute.xlu0 %4500
      %4504 = vset.pattern.permute.xlu0 0
      %4505 = vperm.xlu0 %4504, %v4379
      %v4506 = vpop.permute.xlu0 %4505
      %4509 = vset.pattern.permute.xlu0 0
      %4510 = vperm.xlu0 %4509, %v4380
      %v4511 = vpop.permute.xlu0 %4510
      %4514 = vset.pattern.permute.xlu0 0
      %4515 = vperm.xlu0 %4514, %v4381
      %v4516 = vpop.permute.xlu0 %4515
      %4519 = vset.pattern.permute.xlu0 0
      %4520 = vperm.xlu0 %4519, %v4382
      %v4521 = vpop.permute.xlu0 %4520
      %4524 = vset.pattern.permute.xlu0 0
      %4525 = vperm.xlu0 %4524, %v4383
      %v4526 = vpop.permute.xlu0 %4525
      %4529 = vset.pattern.permute.xlu0 0
      %4530 = vperm.xlu0 %4529, %v4384
      %v4531 = vpop.permute.xlu0 %4530
      %4534 = vset.pattern.permute.xlu0 0
      %4535 = vperm.xlu0 %4534, %v4385
      %v4536 = vpop.permute.xlu0 %4535
      %4539 = vset.pattern.permute.xlu0 0
      %4540 = vperm.xlu0 %4539, %v4386
      %v4541 = vpop.permute.xlu0 %4540
      %4544 = vset.pattern.permute.xlu0 0
      %4545 = vperm.xlu0 %4544, %v4387
      %v4546 = vpop.permute.xlu0 %4545
      %v4548 = vmul.f32 %v3957, %v4391
      %v4549 = vmul.f32 %v3959, %v4396
      %v4550 = vmul.f32 %v3962, %v4401
      %v4551 = vmul.f32 %v3964, %v4406
      %v4552 = vmul.f32 %v3967, %v4411
      %v4553 = vmul.f32 %v3969, %v4416
      %v4554 = vmul.f32 %v3972, %v4421
      %v4555 = vmul.f32 %v3974, %v4426
      %v4556 = vmul.f32 %v3977, %v4431
      %v4557 = vmul.f32 %v3979, %v4436
      %v4558 = vmul.f32 %v3982, %v4441
      %v4559 = vmul.f32 %v3984, %v4446
      %v4560 = vmul.f32 %v3987, %v4451
      %v4561 = vmul.f32 %v3989, %v4456
      %v4562 = vmul.f32 %v3992, %v4461
      %v4563 = vmul.f32 %v3994, %v4466
      %v4564 = vmul.f32 %v3997, %v4471
      %v4565 = vmul.f32 %v3999, %v4476
      %v4566 = vmul.f32 %v4002, %v4481
      %v4567 = vmul.f32 %v4004, %v4486
      %v4568 = vmul.f32 %v4007, %v4491
      %v4569 = vmul.f32 %v4009, %v4496
      %v4570 = vmul.f32 %v4012, %v4501
      %v4571 = vmul.f32 %v4014, %v4506
      %v4572 = vmul.f32 %v4017, %v4511
      %v4573 = vmul.f32 %v4019, %v4516
      %v4574 = vmul.f32 %v4022, %v4521
      %v4575 = vmul.f32 %v4024, %v4526
      %v4576 = vmul.f32 %v4027, %v4531
      %v4577 = vmul.f32 %v4029, %v4536
      %v4578 = vmul.f32 %v4032, %v4541
      %v4579 = vmul.f32 %v4034, %v4546
      %4612 = vrot.lane.b32.xlu0 %v4548, 96
      %v4613 = vpop.permute.xlu0 %4612
      %4614 = vrot.lane.b32.xlu0 %v4549, 96
      %v4615 = vpop.permute.xlu0 %4614
      %4616 = vrot.lane.b32.xlu0 %v4550, 96
      %v4617 = vpop.permute.xlu0 %4616
      %4618 = vrot.lane.b32.xlu0 %v4551, 96
      %v4619 = vpop.permute.xlu0 %4618
      %4620 = vrot.lane.b32.xlu0 %v4552, 96
      %v4621 = vpop.permute.xlu0 %4620
      %4622 = vrot.lane.b32.xlu0 %v4553, 96
      %v4623 = vpop.permute.xlu0 %4622
      %4624 = vrot.lane.b32.xlu0 %v4554, 96
      %v4625 = vpop.permute.xlu0 %4624
      %4626 = vrot.lane.b32.xlu0 %v4555, 96
      %v4627 = vpop.permute.xlu0 %4626
      %4628 = vrot.lane.b32.xlu0 %v4556, 96
      %v4629 = vpop.permute.xlu0 %4628
      %4630 = vrot.lane.b32.xlu0 %v4557, 96
      %v4631 = vpop.permute.xlu0 %4630
      %4632 = vrot.lane.b32.xlu0 %v4558, 96
      %v4633 = vpop.permute.xlu0 %4632
      %4634 = vrot.lane.b32.xlu0 %v4559, 96
      %v4635 = vpop.permute.xlu0 %4634
      %4636 = vrot.lane.b32.xlu0 %v4560, 96
      %v4637 = vpop.permute.xlu0 %4636
      %4638 = vrot.lane.b32.xlu0 %v4561, 96
      %v4639 = vpop.permute.xlu0 %4638
      %4640 = vrot.lane.b32.xlu0 %v4562, 96
      %v4641 = vpop.permute.xlu0 %4640
      %4642 = vrot.lane.b32.xlu0 %v4563, 96
      %v4643 = vpop.permute.xlu0 %4642
      %4644 = vrot.lane.b32.xlu0 %v4564, 96
      %v4645 = vpop.permute.xlu0 %4644
      %4646 = vrot.lane.b32.xlu0 %v4565, 96
      %v4647 = vpop.permute.xlu0 %4646
      %4648 = vrot.lane.b32.xlu0 %v4566, 96
      %v4649 = vpop.permute.xlu0 %4648
      %4650 = vrot.lane.b32.xlu0 %v4567, 96
      %v4651 = vpop.permute.xlu0 %4650
      %4652 = vrot.lane.b32.xlu0 %v4568, 96
      %v4653 = vpop.permute.xlu0 %4652
      %4654 = vrot.lane.b32.xlu0 %v4569, 96
      %v4655 = vpop.permute.xlu0 %4654
      %4656 = vrot.lane.b32.xlu0 %v4570, 96
      %v4657 = vpop.permute.xlu0 %4656
      %4658 = vrot.lane.b32.xlu0 %v4571, 96
      %v4659 = vpop.permute.xlu0 %4658
      %4660 = vrot.lane.b32.xlu0 %v4572, 96
      %v4661 = vpop.permute.xlu0 %4660
      %4662 = vrot.lane.b32.xlu0 %v4573, 96
      %v4663 = vpop.permute.xlu0 %4662
      %4664 = vrot.lane.b32.xlu0 %v4574, 96
      %v4665 = vpop.permute.xlu0 %4664
      %4666 = vrot.lane.b32.xlu0 %v4575, 96
      %v4667 = vpop.permute.xlu0 %4666
      %4668 = vrot.lane.b32.xlu0 %v4576, 96
      %v4669 = vpop.permute.xlu0 %4668
      %4670 = vrot.lane.b32.xlu0 %v4577, 96
      %v4671 = vpop.permute.xlu0 %4670
      %4672 = vrot.lane.b32.xlu0 %v4578, 96
      %v4673 = vpop.permute.xlu0 %4672
      %4674 = vrot.lane.b32.xlu0 %v4579, 96
      %v4675 = vpop.permute.xlu0 %4674
      %v4708 = vadd.f32 %v4324, %v4613
      %v4709 = vadd.f32 %v4325, %v4615
      %v4710 = vadd.f32 %v4326, %v4617
      %v4711 = vadd.f32 %v4327, %v4619
      %v4712 = vadd.f32 %v4328, %v4621
      %v4713 = vadd.f32 %v4329, %v4623
      %v4714 = vadd.f32 %v4330, %v4625
      %v4715 = vadd.f32 %v4331, %v4627
      %v4716 = vadd.f32 %v4332, %v4629
      %v4717 = vadd.f32 %v4333, %v4631
      %v4718 = vadd.f32 %v4334, %v4633
      %v4719 = vadd.f32 %v4335, %v4635
      %v4720 = vadd.f32 %v4336, %v4637
      %v4721 = vadd.f32 %v4337, %v4639
      %v4722 = vadd.f32 %v4338, %v4641
      %v4723 = vadd.f32 %v4339, %v4643
      %v4724 = vadd.f32 %v4340, %v4645
      %v4725 = vadd.f32 %v4341, %v4647
      %v4726 = vadd.f32 %v4342, %v4649
      %v4727 = vadd.f32 %v4343, %v4651
      %v4728 = vadd.f32 %v4344, %v4653
      %v4729 = vadd.f32 %v4345, %v4655
      %v4730 = vadd.f32 %v4346, %v4657
      %v4731 = vadd.f32 %v4347, %v4659
      %v4732 = vadd.f32 %v4348, %v4661
      %v4733 = vadd.f32 %v4349, %v4663
      %v4734 = vadd.f32 %v4350, %v4665
      %v4735 = vadd.f32 %v4351, %v4667
      %v4736 = vadd.f32 %v4352, %v4669
      %v4737 = vadd.f32 %v4353, %v4671
      %v4738 = vadd.f32 %v4354, %v4673
      %v4739 = vadd.f32 %v4355, %v4675
      %4740 = vrot.lane.b32.xlu0 %v767, 127
      %v4741 = vpop.permute.xlu0 %4740
      %4742 = vrot.lane.b32.xlu0 %v768, 127
      %v4743 = vpop.permute.xlu0 %4742
      %4744 = vrot.lane.b32.xlu0 %v769, 127
      %v4745 = vpop.permute.xlu0 %4744
      %4746 = vrot.lane.b32.xlu0 %v770, 127
      %v4747 = vpop.permute.xlu0 %4746
      %4748 = vrot.lane.b32.xlu0 %v771, 127
      %v4749 = vpop.permute.xlu0 %4748
      %4750 = vrot.lane.b32.xlu0 %v772, 127
      %v4751 = vpop.permute.xlu0 %4750
      %4752 = vrot.lane.b32.xlu0 %v773, 127
      %v4753 = vpop.permute.xlu0 %4752
      %4754 = vrot.lane.b32.xlu0 %v774, 127
      %v4755 = vpop.permute.xlu0 %4754
      %4756 = vrot.lane.b32.xlu0 %v775, 127
      %v4757 = vpop.permute.xlu0 %4756
      %4758 = vrot.lane.b32.xlu0 %v776, 127
      %v4759 = vpop.permute.xlu0 %4758
      %4760 = vrot.lane.b32.xlu0 %v777, 127
      %v4761 = vpop.permute.xlu0 %4760
      %4762 = vrot.lane.b32.xlu0 %v778, 127
      %v4763 = vpop.permute.xlu0 %4762
      %4764 = vrot.lane.b32.xlu0 %v779, 127
      %v4765 = vpop.permute.xlu0 %4764
      %4766 = vrot.lane.b32.xlu0 %v780, 127
      %v4767 = vpop.permute.xlu0 %4766
      %4768 = vrot.lane.b32.xlu0 %v781, 127
      %v4769 = vpop.permute.xlu0 %4768
      %4770 = vrot.lane.b32.xlu0 %v782, 127
      %v4771 = vpop.permute.xlu0 %4770
      %4772 = vrot.lane.b32.xlu0 %v783, 127
      %v4773 = vpop.permute.xlu0 %4772
      %4774 = vrot.lane.b32.xlu0 %v784, 127
      %v4775 = vpop.permute.xlu0 %4774
      %4776 = vrot.lane.b32.xlu0 %v785, 127
      %v4777 = vpop.permute.xlu0 %4776
      %4778 = vrot.lane.b32.xlu0 %v786, 127
      %v4779 = vpop.permute.xlu0 %4778
      %4780 = vrot.lane.b32.xlu0 %v787, 127
      %v4781 = vpop.permute.xlu0 %4780
      %4782 = vrot.lane.b32.xlu0 %v788, 127
      %v4783 = vpop.permute.xlu0 %4782
      %4784 = vrot.lane.b32.xlu0 %v789, 127
      %v4785 = vpop.permute.xlu0 %4784
      %4786 = vrot.lane.b32.xlu0 %v790, 127
      %v4787 = vpop.permute.xlu0 %4786
      %4788 = vrot.lane.b32.xlu0 %v791, 127
      %v4789 = vpop.permute.xlu0 %4788
      %4790 = vrot.lane.b32.xlu0 %v792, 127
      %v4791 = vpop.permute.xlu0 %4790
      %4792 = vrot.lane.b32.xlu0 %v793, 127
      %v4793 = vpop.permute.xlu0 %4792
      %4794 = vrot.lane.b32.xlu0 %v794, 127
      %v4795 = vpop.permute.xlu0 %4794
      %4796 = vrot.lane.b32.xlu0 %v795, 127
      %v4797 = vpop.permute.xlu0 %4796
      %4798 = vrot.lane.b32.xlu0 %v796, 127
      %v4799 = vpop.permute.xlu0 %4798
      %4800 = vrot.lane.b32.xlu0 %v797, 127
      %v4801 = vpop.permute.xlu0 %4800
      %4802 = vrot.lane.b32.xlu0 %v798, 127
      %v4803 = vpop.permute.xlu0 %4802
      %v4836 = vmul.f32 %v1649, %v4741
      %v4837 = vmul.f32 %v1650, %v4743
      %v4838 = vmul.f32 %v1651, %v4745
      %v4839 = vmul.f32 %v1652, %v4747
      %v4840 = vmul.f32 %v1653, %v4749
      %v4841 = vmul.f32 %v1654, %v4751
      %v4842 = vmul.f32 %v1655, %v4753
      %v4843 = vmul.f32 %v1656, %v4755
      %v4844 = vmul.f32 %v1657, %v4757
      %v4845 = vmul.f32 %v1658, %v4759
      %v4846 = vmul.f32 %v1659, %v4761
      %v4847 = vmul.f32 %v1660, %v4763
      %v4848 = vmul.f32 %v1661, %v4765
      %v4849 = vmul.f32 %v1662, %v4767
      %v4850 = vmul.f32 %v1663, %v4769
      %v4851 = vmul.f32 %v1664, %v4771
      %v4852 = vmul.f32 %v1665, %v4773
      %v4853 = vmul.f32 %v1666, %v4775
      %v4854 = vmul.f32 %v1667, %v4777
      %v4855 = vmul.f32 %v1668, %v4779
      %v4856 = vmul.f32 %v1669, %v4781
      %v4857 = vmul.f32 %v1670, %v4783
      %v4858 = vmul.f32 %v1671, %v4785
      %v4859 = vmul.f32 %v1672, %v4787
      %v4860 = vmul.f32 %v1673, %v4789
      %v4861 = vmul.f32 %v1674, %v4791
      %v4862 = vmul.f32 %v1675, %v4793
      %v4863 = vmul.f32 %v1676, %v4795
      %v4864 = vmul.f32 %v1677, %v4797
      %v4865 = vmul.f32 %v1678, %v4799
      %v4866 = vmul.f32 %v1679, %v4801
      %v4867 = vmul.f32 %v1680, %v4803
      %4869 = vset.pattern.permute.xlu0 0
      %4870 = vperm.xlu0 %4869, %v4836
      %v4871 = vpop.permute.xlu0 %4870
      %4874 = vset.pattern.permute.xlu0 0
      %4875 = vperm.xlu0 %4874, %v4837
      %v4876 = vpop.permute.xlu0 %4875
      %4879 = vset.pattern.permute.xlu0 0
      %4880 = vperm.xlu0 %4879, %v4838
      %v4881 = vpop.permute.xlu0 %4880
      %4884 = vset.pattern.permute.xlu0 0
      %4885 = vperm.xlu0 %4884, %v4839
      %v4886 = vpop.permute.xlu0 %4885
      %4889 = vset.pattern.permute.xlu0 0
      %4890 = vperm.xlu0 %4889, %v4840
      %v4891 = vpop.permute.xlu0 %4890
      %4894 = vset.pattern.permute.xlu0 0
      %4895 = vperm.xlu0 %4894, %v4841
      %v4896 = vpop.permute.xlu0 %4895
      %4899 = vset.pattern.permute.xlu0 0
      %4900 = vperm.xlu0 %4899, %v4842
      %v4901 = vpop.permute.xlu0 %4900
      %4904 = vset.pattern.permute.xlu0 0
      %4905 = vperm.xlu0 %4904, %v4843
      %v4906 = vpop.permute.xlu0 %4905
      %4909 = vset.pattern.permute.xlu0 0
      %4910 = vperm.xlu0 %4909, %v4844
      %v4911 = vpop.permute.xlu0 %4910
      %4914 = vset.pattern.permute.xlu0 0
      %4915 = vperm.xlu0 %4914, %v4845
      %v4916 = vpop.permute.xlu0 %4915
      %4919 = vset.pattern.permute.xlu0 0
      %4920 = vperm.xlu0 %4919, %v4846
      %v4921 = vpop.permute.xlu0 %4920
      %4924 = vset.pattern.permute.xlu0 0
      %4925 = vperm.xlu0 %4924, %v4847
      %v4926 = vpop.permute.xlu0 %4925
      %4929 = vset.pattern.permute.xlu0 0
      %4930 = vperm.xlu0 %4929, %v4848
      %v4931 = vpop.permute.xlu0 %4930
      %4934 = vset.pattern.permute.xlu0 0
      %4935 = vperm.xlu0 %4934, %v4849
      %v4936 = vpop.permute.xlu0 %4935
      %4939 = vset.pattern.permute.xlu0 0
      %4940 = vperm.xlu0 %4939, %v4850
      %v4941 = vpop.permute.xlu0 %4940
      %4944 = vset.pattern.permute.xlu0 0
      %4945 = vperm.xlu0 %4944, %v4851
      %v4946 = vpop.permute.xlu0 %4945
      %4949 = vset.pattern.permute.xlu0 0
      %4950 = vperm.xlu0 %4949, %v4852
      %v4951 = vpop.permute.xlu0 %4950
      %4954 = vset.pattern.permute.xlu0 0
      %4955 = vperm.xlu0 %4954, %v4853
      %v4956 = vpop.permute.xlu0 %4955
      %4959 = vset.pattern.permute.xlu0 0
      %4960 = vperm.xlu0 %4959, %v4854
      %v4961 = vpop.permute.xlu0 %4960
      %4964 = vset.pattern.permute.xlu0 0
      %4965 = vperm.xlu0 %4964, %v4855
      %v4966 = vpop.permute.xlu0 %4965
      %4969 = vset.pattern.permute.xlu0 0
      %4970 = vperm.xlu0 %4969, %v4856
      %v4971 = vpop.permute.xlu0 %4970
      %4974 = vset.pattern.permute.xlu0 0
      %4975 = vperm.xlu0 %4974, %v4857
      %v4976 = vpop.permute.xlu0 %4975
      %4979 = vset.pattern.permute.xlu0 0
      %4980 = vperm.xlu0 %4979, %v4858
      %v4981 = vpop.permute.xlu0 %4980
      %4984 = vset.pattern.permute.xlu0 0
      %4985 = vperm.xlu0 %4984, %v4859
      %v4986 = vpop.permute.xlu0 %4985
      %4989 = vset.pattern.permute.xlu0 0
      %4990 = vperm.xlu0 %4989, %v4860
      %v4991 = vpop.permute.xlu0 %4990
      %4994 = vset.pattern.permute.xlu0 0
      %4995 = vperm.xlu0 %4994, %v4861
      %v4996 = vpop.permute.xlu0 %4995
      %4999 = vset.pattern.permute.xlu0 0
      %5000 = vperm.xlu0 %4999, %v4862
      %v5001 = vpop.permute.xlu0 %5000
      %5004 = vset.pattern.permute.xlu0 0
      %5005 = vperm.xlu0 %5004, %v4863
      %v5006 = vpop.permute.xlu0 %5005
      %5009 = vset.pattern.permute.xlu0 0
      %5010 = vperm.xlu0 %5009, %v4864
      %v5011 = vpop.permute.xlu0 %5010
      %5014 = vset.pattern.permute.xlu0 0
      %5015 = vperm.xlu0 %5014, %v4865
      %v5016 = vpop.permute.xlu0 %5015
      %5019 = vset.pattern.permute.xlu0 0
      %5020 = vperm.xlu0 %5019, %v4866
      %v5021 = vpop.permute.xlu0 %5020
      %5024 = vset.pattern.permute.xlu0 0
      %5025 = vperm.xlu0 %5024, %v4867
      %v5026 = vpop.permute.xlu0 %5025
      %v5028 = vmul.f32 %v3957, %v4871
      %v5029 = vmul.f32 %v3959, %v4876
      %v5030 = vmul.f32 %v3962, %v4881
      %v5031 = vmul.f32 %v3964, %v4886
      %v5032 = vmul.f32 %v3967, %v4891
      %v5033 = vmul.f32 %v3969, %v4896
      %v5034 = vmul.f32 %v3972, %v4901
      %v5035 = vmul.f32 %v3974, %v4906
      %v5036 = vmul.f32 %v3977, %v4911
      %v5037 = vmul.f32 %v3979, %v4916
      %v5038 = vmul.f32 %v3982, %v4921
      %v5039 = vmul.f32 %v3984, %v4926
      %v5040 = vmul.f32 %v3987, %v4931
      %v5041 = vmul.f32 %v3989, %v4936
      %v5042 = vmul.f32 %v3992, %v4941
      %v5043 = vmul.f32 %v3994, %v4946
      %v5044 = vmul.f32 %v3997, %v4951
      %v5045 = vmul.f32 %v3999, %v4956
      %v5046 = vmul.f32 %v4002, %v4961
      %v5047 = vmul.f32 %v4004, %v4966
      %v5048 = vmul.f32 %v4007, %v4971
      %v5049 = vmul.f32 %v4009, %v4976
      %v5050 = vmul.f32 %v4012, %v4981
      %v5051 = vmul.f32 %v4014, %v4986
      %v5052 = vmul.f32 %v4017, %v4991
      %v5053 = vmul.f32 %v4019, %v4996
      %v5054 = vmul.f32 %v4022, %v5001
      %v5055 = vmul.f32 %v4024, %v5006
      %v5056 = vmul.f32 %v4027, %v5011
      %v5057 = vmul.f32 %v4029, %v5016
      %v5058 = vmul.f32 %v4032, %v5021
      %v5059 = vmul.f32 %v4034, %v5026
      %5092 = vrot.lane.b32.xlu0 %v5028, 64
      %v5093 = vpop.permute.xlu0 %5092
      %5094 = vrot.lane.b32.xlu0 %v5029, 64
      %v5095 = vpop.permute.xlu0 %5094
      %5096 = vrot.lane.b32.xlu0 %v5030, 64
      %v5097 = vpop.permute.xlu0 %5096
      %5098 = vrot.lane.b32.xlu0 %v5031, 64
      %v5099 = vpop.permute.xlu0 %5098
      %5100 = vrot.lane.b32.xlu0 %v5032, 64
      %v5101 = vpop.permute.xlu0 %5100
      %5102 = vrot.lane.b32.xlu0 %v5033, 64
      %v5103 = vpop.permute.xlu0 %5102
      %5104 = vrot.lane.b32.xlu0 %v5034, 64
      %v5105 = vpop.permute.xlu0 %5104
      %5106 = vrot.lane.b32.xlu0 %v5035, 64
      %v5107 = vpop.permute.xlu0 %5106
      %5108 = vrot.lane.b32.xlu0 %v5036, 64
      %v5109 = vpop.permute.xlu0 %5108
      %5110 = vrot.lane.b32.xlu0 %v5037, 64
      %v5111 = vpop.permute.xlu0 %5110
      %5112 = vrot.lane.b32.xlu0 %v5038, 64
      %v5113 = vpop.permute.xlu0 %5112
      %5114 = vrot.lane.b32.xlu0 %v5039, 64
      %v5115 = vpop.permute.xlu0 %5114
      %5116 = vrot.lane.b32.xlu0 %v5040, 64
      %v5117 = vpop.permute.xlu0 %5116
      %5118 = vrot.lane.b32.xlu0 %v5041, 64
      %v5119 = vpop.permute.xlu0 %5118
      %5120 = vrot.lane.b32.xlu0 %v5042, 64
      %v5121 = vpop.permute.xlu0 %5120
      %5122 = vrot.lane.b32.xlu0 %v5043, 64
      %v5123 = vpop.permute.xlu0 %5122
      %5124 = vrot.lane.b32.xlu0 %v5044, 64
      %v5125 = vpop.permute.xlu0 %5124
      %5126 = vrot.lane.b32.xlu0 %v5045, 64
      %v5127 = vpop.permute.xlu0 %5126
      %5128 = vrot.lane.b32.xlu0 %v5046, 64
      %v5129 = vpop.permute.xlu0 %5128
      %5130 = vrot.lane.b32.xlu0 %v5047, 64
      %v5131 = vpop.permute.xlu0 %5130
      %5132 = vrot.lane.b32.xlu0 %v5048, 64
      %v5133 = vpop.permute.xlu0 %5132
      %5134 = vrot.lane.b32.xlu0 %v5049, 64
      %v5135 = vpop.permute.xlu0 %5134
      %5136 = vrot.lane.b32.xlu0 %v5050, 64
      %v5137 = vpop.permute.xlu0 %5136
      %5138 = vrot.lane.b32.xlu0 %v5051, 64
      %v5139 = vpop.permute.xlu0 %5138
      %5140 = vrot.lane.b32.xlu0 %v5052, 64
      %v5141 = vpop.permute.xlu0 %5140
      %5142 = vrot.lane.b32.xlu0 %v5053, 64
      %v5143 = vpop.permute.xlu0 %5142
      %5144 = vrot.lane.b32.xlu0 %v5054, 64
      %v5145 = vpop.permute.xlu0 %5144
      %5146 = vrot.lane.b32.xlu0 %v5055, 64
      %v5147 = vpop.permute.xlu0 %5146
      %5148 = vrot.lane.b32.xlu0 %v5056, 64
      %v5149 = vpop.permute.xlu0 %5148
      %5150 = vrot.lane.b32.xlu0 %v5057, 64
      %v5151 = vpop.permute.xlu0 %5150
      %5152 = vrot.lane.b32.xlu0 %v5058, 64
      %v5153 = vpop.permute.xlu0 %5152
      %5154 = vrot.lane.b32.xlu0 %v5059, 64
      %v5155 = vpop.permute.xlu0 %5154
      %v5188 = vadd.f32 %v4708, %v5093
      %v5189 = vadd.f32 %v4709, %v5095
      %v5190 = vadd.f32 %v4710, %v5097
      %v5191 = vadd.f32 %v4711, %v5099
      %v5192 = vadd.f32 %v4712, %v5101
      %v5193 = vadd.f32 %v4713, %v5103
      %v5194 = vadd.f32 %v4714, %v5105
      %v5195 = vadd.f32 %v4715, %v5107
      %v5196 = vadd.f32 %v4716, %v5109
      %v5197 = vadd.f32 %v4717, %v5111
      %v5198 = vadd.f32 %v4718, %v5113
      %v5199 = vadd.f32 %v4719, %v5115
      %v5200 = vadd.f32 %v4720, %v5117
      %v5201 = vadd.f32 %v4721, %v5119
      %v5202 = vadd.f32 %v4722, %v5121
      %v5203 = vadd.f32 %v4723, %v5123
      %v5204 = vadd.f32 %v4724, %v5125
      %v5205 = vadd.f32 %v4725, %v5127
      %v5206 = vadd.f32 %v4726, %v5129
      %v5207 = vadd.f32 %v4727, %v5131
      %v5208 = vadd.f32 %v4728, %v5133
      %v5209 = vadd.f32 %v4729, %v5135
      %v5210 = vadd.f32 %v4730, %v5137
      %v5211 = vadd.f32 %v4731, %v5139
      %v5212 = vadd.f32 %v4732, %v5141
      %v5213 = vadd.f32 %v4733, %v5143
      %v5214 = vadd.f32 %v4734, %v5145
      %v5215 = vadd.f32 %v4735, %v5147
      %v5216 = vadd.f32 %v4736, %v5149
      %v5217 = vadd.f32 %v4737, %v5151
      %v5218 = vadd.f32 %v4738, %v5153
      %v5219 = vadd.f32 %v4739, %v5155
      %v5220 = vmul.f32 %v767, %v4741
      %v5221 = vmul.f32 %v768, %v4743
      %v5222 = vmul.f32 %v769, %v4745
      %v5223 = vmul.f32 %v770, %v4747
      %v5224 = vmul.f32 %v771, %v4749
      %v5225 = vmul.f32 %v772, %v4751
      %v5226 = vmul.f32 %v773, %v4753
      %v5227 = vmul.f32 %v774, %v4755
      %v5228 = vmul.f32 %v775, %v4757
      %v5229 = vmul.f32 %v776, %v4759
      %v5230 = vmul.f32 %v777, %v4761
      %v5231 = vmul.f32 %v778, %v4763
      %v5232 = vmul.f32 %v779, %v4765
      %v5233 = vmul.f32 %v780, %v4767
      %v5234 = vmul.f32 %v781, %v4769
      %v5235 = vmul.f32 %v782, %v4771
      %v5236 = vmul.f32 %v783, %v4773
      %v5237 = vmul.f32 %v784, %v4775
      %v5238 = vmul.f32 %v785, %v4777
      %v5239 = vmul.f32 %v786, %v4779
      %v5240 = vmul.f32 %v787, %v4781
      %v5241 = vmul.f32 %v788, %v4783
      %v5242 = vmul.f32 %v789, %v4785
      %v5243 = vmul.f32 %v790, %v4787
      %v5244 = vmul.f32 %v791, %v4789
      %v5245 = vmul.f32 %v792, %v4791
      %v5246 = vmul.f32 %v793, %v4793
      %v5247 = vmul.f32 %v794, %v4795
      %v5248 = vmul.f32 %v795, %v4797
      %v5249 = vmul.f32 %v796, %v4799
      %v5250 = vmul.f32 %v797, %v4801
      %v5251 = vmul.f32 %v798, %v4803
      %5253 = vset.pattern.permute.xlu0 0
      %5254 = vperm.xlu0 %5253, %v5220
      %v5255 = vpop.permute.xlu0 %5254
      %5258 = vset.pattern.permute.xlu0 0
      %5259 = vperm.xlu0 %5258, %v5221
      %v5260 = vpop.permute.xlu0 %5259
      %5263 = vset.pattern.permute.xlu0 0
      %5264 = vperm.xlu0 %5263, %v5222
      %v5265 = vpop.permute.xlu0 %5264
      %5268 = vset.pattern.permute.xlu0 0
      %5269 = vperm.xlu0 %5268, %v5223
      %v5270 = vpop.permute.xlu0 %5269
      %5273 = vset.pattern.permute.xlu0 0
      %5274 = vperm.xlu0 %5273, %v5224
      %v5275 = vpop.permute.xlu0 %5274
      %5278 = vset.pattern.permute.xlu0 0
      %5279 = vperm.xlu0 %5278, %v5225
      %v5280 = vpop.permute.xlu0 %5279
      %5283 = vset.pattern.permute.xlu0 0
      %5284 = vperm.xlu0 %5283, %v5226
      %v5285 = vpop.permute.xlu0 %5284
      %5288 = vset.pattern.permute.xlu0 0
      %5289 = vperm.xlu0 %5288, %v5227
      %v5290 = vpop.permute.xlu0 %5289
      %5293 = vset.pattern.permute.xlu0 0
      %5294 = vperm.xlu0 %5293, %v5228
      %v5295 = vpop.permute.xlu0 %5294
      %5298 = vset.pattern.permute.xlu0 0
      %5299 = vperm.xlu0 %5298, %v5229
      %v5300 = vpop.permute.xlu0 %5299
      %5303 = vset.pattern.permute.xlu0 0
      %5304 = vperm.xlu0 %5303, %v5230
      %v5305 = vpop.permute.xlu0 %5304
      %5308 = vset.pattern.permute.xlu0 0
      %5309 = vperm.xlu0 %5308, %v5231
      %v5310 = vpop.permute.xlu0 %5309
      %5313 = vset.pattern.permute.xlu0 0
      %5314 = vperm.xlu0 %5313, %v5232
      %v5315 = vpop.permute.xlu0 %5314
      %5318 = vset.pattern.permute.xlu0 0
      %5319 = vperm.xlu0 %5318, %v5233
      %v5320 = vpop.permute.xlu0 %5319
      %5323 = vset.pattern.permute.xlu0 0
      %5324 = vperm.xlu0 %5323, %v5234
      %v5325 = vpop.permute.xlu0 %5324
      %5328 = vset.pattern.permute.xlu0 0
      %5329 = vperm.xlu0 %5328, %v5235
      %v5330 = vpop.permute.xlu0 %5329
      %5333 = vset.pattern.permute.xlu0 0
      %5334 = vperm.xlu0 %5333, %v5236
      %v5335 = vpop.permute.xlu0 %5334
      %5338 = vset.pattern.permute.xlu0 0
      %5339 = vperm.xlu0 %5338, %v5237
      %v5340 = vpop.permute.xlu0 %5339
      %5343 = vset.pattern.permute.xlu0 0
      %5344 = vperm.xlu0 %5343, %v5238
      %v5345 = vpop.permute.xlu0 %5344
      %5348 = vset.pattern.permute.xlu0 0
      %5349 = vperm.xlu0 %5348, %v5239
      %v5350 = vpop.permute.xlu0 %5349
      %5353 = vset.pattern.permute.xlu0 0
      %5354 = vperm.xlu0 %5353, %v5240
      %v5355 = vpop.permute.xlu0 %5354
      %5358 = vset.pattern.permute.xlu0 0
      %5359 = vperm.xlu0 %5358, %v5241
      %v5360 = vpop.permute.xlu0 %5359
      %5363 = vset.pattern.permute.xlu0 0
      %5364 = vperm.xlu0 %5363, %v5242
      %v5365 = vpop.permute.xlu0 %5364
      %5368 = vset.pattern.permute.xlu0 0
      %5369 = vperm.xlu0 %5368, %v5243
      %v5370 = vpop.permute.xlu0 %5369
      %5373 = vset.pattern.permute.xlu0 0
      %5374 = vperm.xlu0 %5373, %v5244
      %v5375 = vpop.permute.xlu0 %5374
      %5378 = vset.pattern.permute.xlu0 0
      %5379 = vperm.xlu0 %5378, %v5245
      %v5380 = vpop.permute.xlu0 %5379
      %5383 = vset.pattern.permute.xlu0 0
      %5384 = vperm.xlu0 %5383, %v5246
      %v5385 = vpop.permute.xlu0 %5384
      %5388 = vset.pattern.permute.xlu0 0
      %5389 = vperm.xlu0 %5388, %v5247
      %v5390 = vpop.permute.xlu0 %5389
      %5393 = vset.pattern.permute.xlu0 0
      %5394 = vperm.xlu0 %5393, %v5248
      %v5395 = vpop.permute.xlu0 %5394
      %5398 = vset.pattern.permute.xlu0 0
      %5399 = vperm.xlu0 %5398, %v5249
      %v5400 = vpop.permute.xlu0 %5399
      %5403 = vset.pattern.permute.xlu0 0
      %5404 = vperm.xlu0 %5403, %v5250
      %v5405 = vpop.permute.xlu0 %5404
      %5408 = vset.pattern.permute.xlu0 0
      %5409 = vperm.xlu0 %5408, %v5251
      %v5410 = vpop.permute.xlu0 %5409
      %v5412 = vmul.f32 %v3957, %v5255
      %v5413 = vmul.f32 %v3959, %v5260
      %v5414 = vmul.f32 %v3962, %v5265
      %v5415 = vmul.f32 %v3964, %v5270
      %v5416 = vmul.f32 %v3967, %v5275
      %v5417 = vmul.f32 %v3969, %v5280
      %v5418 = vmul.f32 %v3972, %v5285
      %v5419 = vmul.f32 %v3974, %v5290
      %v5420 = vmul.f32 %v3977, %v5295
      %v5421 = vmul.f32 %v3979, %v5300
      %v5422 = vmul.f32 %v3982, %v5305
      %v5423 = vmul.f32 %v3984, %v5310
      %v5424 = vmul.f32 %v3987, %v5315
      %v5425 = vmul.f32 %v3989, %v5320
      %v5426 = vmul.f32 %v3992, %v5325
      %v5427 = vmul.f32 %v3994, %v5330
      %v5428 = vmul.f32 %v3997, %v5335
      %v5429 = vmul.f32 %v3999, %v5340
      %v5430 = vmul.f32 %v4002, %v5345
      %v5431 = vmul.f32 %v4004, %v5350
      %v5432 = vmul.f32 %v4007, %v5355
      %v5433 = vmul.f32 %v4009, %v5360
      %v5434 = vmul.f32 %v4012, %v5365
      %v5435 = vmul.f32 %v4014, %v5370
      %v5436 = vmul.f32 %v4017, %v5375
      %v5437 = vmul.f32 %v4019, %v5380
      %v5438 = vmul.f32 %v4022, %v5385
      %v5439 = vmul.f32 %v4024, %v5390
      %v5440 = vmul.f32 %v4027, %v5395
      %v5441 = vmul.f32 %v4029, %v5400
      %v5442 = vmul.f32 %v4032, %v5405
      %v5443 = vmul.f32 %v4034, %v5410
      %5476 = vrot.lane.b32.xlu0 %v5412, 32
      %v5477 = vpop.permute.xlu0 %5476
      %5478 = vrot.lane.b32.xlu0 %v5413, 32
      %v5479 = vpop.permute.xlu0 %5478
      %5480 = vrot.lane.b32.xlu0 %v5414, 32
      %v5481 = vpop.permute.xlu0 %5480
      %5482 = vrot.lane.b32.xlu0 %v5415, 32
      %v5483 = vpop.permute.xlu0 %5482
      %5484 = vrot.lane.b32.xlu0 %v5416, 32
      %v5485 = vpop.permute.xlu0 %5484
      %5486 = vrot.lane.b32.xlu0 %v5417, 32
      %v5487 = vpop.permute.xlu0 %5486
      %5488 = vrot.lane.b32.xlu0 %v5418, 32
      %v5489 = vpop.permute.xlu0 %5488
      %5490 = vrot.lane.b32.xlu0 %v5419, 32
      %v5491 = vpop.permute.xlu0 %5490
      %5492 = vrot.lane.b32.xlu0 %v5420, 32
      %v5493 = vpop.permute.xlu0 %5492
      %5494 = vrot.lane.b32.xlu0 %v5421, 32
      %v5495 = vpop.permute.xlu0 %5494
      %5496 = vrot.lane.b32.xlu0 %v5422, 32
      %v5497 = vpop.permute.xlu0 %5496
      %5498 = vrot.lane.b32.xlu0 %v5423, 32
      %v5499 = vpop.permute.xlu0 %5498
      %5500 = vrot.lane.b32.xlu0 %v5424, 32
      %v5501 = vpop.permute.xlu0 %5500
      %5502 = vrot.lane.b32.xlu0 %v5425, 32
      %v5503 = vpop.permute.xlu0 %5502
      %5504 = vrot.lane.b32.xlu0 %v5426, 32
      %v5505 = vpop.permute.xlu0 %5504
      %5506 = vrot.lane.b32.xlu0 %v5427, 32
      %v5507 = vpop.permute.xlu0 %5506
      %5508 = vrot.lane.b32.xlu0 %v5428, 32
      %v5509 = vpop.permute.xlu0 %5508
      %5510 = vrot.lane.b32.xlu0 %v5429, 32
      %v5511 = vpop.permute.xlu0 %5510
      %5512 = vrot.lane.b32.xlu0 %v5430, 32
      %v5513 = vpop.permute.xlu0 %5512
      %5514 = vrot.lane.b32.xlu0 %v5431, 32
      %v5515 = vpop.permute.xlu0 %5514
      %5516 = vrot.lane.b32.xlu0 %v5432, 32
      %v5517 = vpop.permute.xlu0 %5516
      %5518 = vrot.lane.b32.xlu0 %v5433, 32
      %v5519 = vpop.permute.xlu0 %5518
      %5520 = vrot.lane.b32.xlu0 %v5434, 32
      %v5521 = vpop.permute.xlu0 %5520
      %5522 = vrot.lane.b32.xlu0 %v5435, 32
      %v5523 = vpop.permute.xlu0 %5522
      %5524 = vrot.lane.b32.xlu0 %v5436, 32
      %v5525 = vpop.permute.xlu0 %5524
      %5526 = vrot.lane.b32.xlu0 %v5437, 32
      %v5527 = vpop.permute.xlu0 %5526
      %5528 = vrot.lane.b32.xlu0 %v5438, 32
      %v5529 = vpop.permute.xlu0 %5528
      %5530 = vrot.lane.b32.xlu0 %v5439, 32
      %v5531 = vpop.permute.xlu0 %5530
      %5532 = vrot.lane.b32.xlu0 %v5440, 32
      %v5533 = vpop.permute.xlu0 %5532
      %5534 = vrot.lane.b32.xlu0 %v5441, 32
      %v5535 = vpop.permute.xlu0 %5534
      %5536 = vrot.lane.b32.xlu0 %v5442, 32
      %v5537 = vpop.permute.xlu0 %5536
      %5538 = vrot.lane.b32.xlu0 %v5443, 32
      %v5539 = vpop.permute.xlu0 %5538
      %v5572 = vadd.f32 %v5188, %v5477
      %v5573 = vadd.f32 %v5189, %v5479
      %v5574 = vadd.f32 %v5190, %v5481
      %v5575 = vadd.f32 %v5191, %v5483
      %v5576 = vadd.f32 %v5192, %v5485
      %v5577 = vadd.f32 %v5193, %v5487
      %v5578 = vadd.f32 %v5194, %v5489
      %v5579 = vadd.f32 %v5195, %v5491
      %v5580 = vadd.f32 %v5196, %v5493
      %v5581 = vadd.f32 %v5197, %v5495
      %v5582 = vadd.f32 %v5198, %v5497
      %v5583 = vadd.f32 %v5199, %v5499
      %v5584 = vadd.f32 %v5200, %v5501
      %v5585 = vadd.f32 %v5201, %v5503
      %v5586 = vadd.f32 %v5202, %v5505
      %v5587 = vadd.f32 %v5203, %v5507
      %v5588 = vadd.f32 %v5204, %v5509
      %v5589 = vadd.f32 %v5205, %v5511
      %v5590 = vadd.f32 %v5206, %v5513
      %v5591 = vadd.f32 %v5207, %v5515
      %v5592 = vadd.f32 %v5208, %v5517
      %v5593 = vadd.f32 %v5209, %v5519
      %v5594 = vadd.f32 %v5210, %v5521
      %v5595 = vadd.f32 %v5211, %v5523
      %v5596 = vadd.f32 %v5212, %v5525
      %v5597 = vadd.f32 %v5213, %v5527
      %v5598 = vadd.f32 %v5214, %v5529
      %v5599 = vadd.f32 %v5215, %v5531
      %v5600 = vadd.f32 %v5216, %v5533
      %v5601 = vadd.f32 %v5217, %v5535
      %v5602 = vadd.f32 %v5218, %v5537
      %v5603 = vadd.f32 %v5219, %v5539
      %5604 = vset.pattern.permute.xlu0 2
      %5605 = vperm.xlu0 %5604, %v3377
      %v5606 = vpop.permute.xlu0 %5605
      %5607 = vset.pattern.permute.xlu0 2
      %5608 = vperm.xlu0 %5607, %v3378
      %v5609 = vpop.permute.xlu0 %5608
      %5610 = vset.pattern.permute.xlu0 2
      %5611 = vperm.xlu0 %5610, %v3379
      %v5612 = vpop.permute.xlu0 %5611
      %5613 = vset.pattern.permute.xlu0 2
      %5614 = vperm.xlu0 %5613, %v3380
      %v5615 = vpop.permute.xlu0 %5614
      %5616 = vset.pattern.permute.xlu0 2
      %5617 = vperm.xlu0 %5616, %v3381
      %v5618 = vpop.permute.xlu0 %5617
      %5619 = vset.pattern.permute.xlu0 2
      %5620 = vperm.xlu0 %5619, %v3382
      %v5621 = vpop.permute.xlu0 %5620
      %5622 = vset.pattern.permute.xlu0 2
      %5623 = vperm.xlu0 %5622, %v3383
      %v5624 = vpop.permute.xlu0 %5623
      %5625 = vset.pattern.permute.xlu0 2
      %5626 = vperm.xlu0 %5625, %v3384
      %v5627 = vpop.permute.xlu0 %5626
      %5628 = vset.pattern.permute.xlu0 2
      %5629 = vperm.xlu0 %5628, %v3385
      %v5630 = vpop.permute.xlu0 %5629
      %5631 = vset.pattern.permute.xlu0 2
      %5632 = vperm.xlu0 %5631, %v3386
      %v5633 = vpop.permute.xlu0 %5632
      %5634 = vset.pattern.permute.xlu0 2
      %5635 = vperm.xlu0 %5634, %v3387
      %v5636 = vpop.permute.xlu0 %5635
      %5637 = vset.pattern.permute.xlu0 2
      %5638 = vperm.xlu0 %5637, %v3388
      %v5639 = vpop.permute.xlu0 %5638
      %5640 = vset.pattern.permute.xlu0 2
      %5641 = vperm.xlu0 %5640, %v3389
      %v5642 = vpop.permute.xlu0 %5641
      %5643 = vset.pattern.permute.xlu0 2
      %5644 = vperm.xlu0 %5643, %v3390
      %v5645 = vpop.permute.xlu0 %5644
      %5646 = vset.pattern.permute.xlu0 2
      %5647 = vperm.xlu0 %5646, %v3391
      %v5648 = vpop.permute.xlu0 %5647
      %5649 = vset.pattern.permute.xlu0 2
      %5650 = vperm.xlu0 %5649, %v3392
      %v5651 = vpop.permute.xlu0 %5650
      %5652 = vset.pattern.permute.xlu0 2
      %5653 = vperm.xlu0 %5652, %v3393
      %v5654 = vpop.permute.xlu0 %5653
      %5655 = vset.pattern.permute.xlu0 2
      %5656 = vperm.xlu0 %5655, %v3394
      %v5657 = vpop.permute.xlu0 %5656
      %5658 = vset.pattern.permute.xlu0 2
      %5659 = vperm.xlu0 %5658, %v3395
      %v5660 = vpop.permute.xlu0 %5659
      %5661 = vset.pattern.permute.xlu0 2
      %5662 = vperm.xlu0 %5661, %v3396
      %v5663 = vpop.permute.xlu0 %5662
      %5664 = vset.pattern.permute.xlu0 2
      %5665 = vperm.xlu0 %5664, %v3397
      %v5666 = vpop.permute.xlu0 %5665
      %5667 = vset.pattern.permute.xlu0 2
      %5668 = vperm.xlu0 %5667, %v3398
      %v5669 = vpop.permute.xlu0 %5668
      %5670 = vset.pattern.permute.xlu0 2
      %5671 = vperm.xlu0 %5670, %v3399
      %v5672 = vpop.permute.xlu0 %5671
      %5673 = vset.pattern.permute.xlu0 2
      %5674 = vperm.xlu0 %5673, %v3400
      %v5675 = vpop.permute.xlu0 %5674
      %5676 = vset.pattern.permute.xlu0 2
      %5677 = vperm.xlu0 %5676, %v3401
      %v5678 = vpop.permute.xlu0 %5677
      %5679 = vset.pattern.permute.xlu0 2
      %5680 = vperm.xlu0 %5679, %v3402
      %v5681 = vpop.permute.xlu0 %5680
      %5682 = vset.pattern.permute.xlu0 2
      %5683 = vperm.xlu0 %5682, %v3403
      %v5684 = vpop.permute.xlu0 %5683
      %5685 = vset.pattern.permute.xlu0 2
      %5686 = vperm.xlu0 %5685, %v3404
      %v5687 = vpop.permute.xlu0 %5686
      %5688 = vset.pattern.permute.xlu0 2
      %5689 = vperm.xlu0 %5688, %v3405
      %v5690 = vpop.permute.xlu0 %5689
      %5691 = vset.pattern.permute.xlu0 2
      %5692 = vperm.xlu0 %5691, %v3406
      %v5693 = vpop.permute.xlu0 %5692
      %5694 = vset.pattern.permute.xlu0 2
      %5695 = vperm.xlu0 %5694, %v3407
      %v5696 = vpop.permute.xlu0 %5695
      %5697 = vset.pattern.permute.xlu0 2
      %5698 = vperm.xlu0 %5697, %v3408
      %v5699 = vpop.permute.xlu0 %5698
      %vm5700 = vcmp.eq.s32.totalorder %v509, %v5606
      %vm5701 = vcmp.eq.s32.totalorder %v510, %v5606
      %vm5702 = vcmp.eq.s32.totalorder %v509, %v5609
      %vm5703 = vcmp.eq.s32.totalorder %v510, %v5609
      %vm5704 = vcmp.eq.s32.totalorder %v509, %v5612
      %vm5705 = vcmp.eq.s32.totalorder %v510, %v5612
      %vm5706 = vcmp.eq.s32.totalorder %v509, %v5615
      %vm5707 = vcmp.eq.s32.totalorder %v510, %v5615
      %vm5708 = vcmp.eq.s32.totalorder %v509, %v5618
      %vm5709 = vcmp.eq.s32.totalorder %v510, %v5618
      %vm5710 = vcmp.eq.s32.totalorder %v509, %v5621
      %vm5711 = vcmp.eq.s32.totalorder %v510, %v5621
      %vm5712 = vcmp.eq.s32.totalorder %v509, %v5624
      %vm5713 = vcmp.eq.s32.totalorder %v510, %v5624
      %vm5714 = vcmp.eq.s32.totalorder %v509, %v5627
      %vm5715 = vcmp.eq.s32.totalorder %v510, %v5627
      %vm5716 = vcmp.eq.s32.totalorder %v509, %v5630
      %vm5717 = vcmp.eq.s32.totalorder %v510, %v5630
      %vm5718 = vcmp.eq.s32.totalorder %v509, %v5633
      %vm5719 = vcmp.eq.s32.totalorder %v510, %v5633
      %vm5720 = vcmp.eq.s32.totalorder %v509, %v5636
      %vm5721 = vcmp.eq.s32.totalorder %v510, %v5636
      %vm5722 = vcmp.eq.s32.totalorder %v509, %v5639
      %vm5723 = vcmp.eq.s32.totalorder %v510, %v5639
      %vm5724 = vcmp.eq.s32.totalorder %v509, %v5642
      %vm5725 = vcmp.eq.s32.totalorder %v510, %v5642
      %vm5726 = vcmp.eq.s32.totalorder %v509, %v5645
      %vm5727 = vcmp.eq.s32.totalorder %v510, %v5645
      %vm5728 = vcmp.eq.s32.totalorder %v509, %v5648
      %vm5729 = vcmp.eq.s32.totalorder %v510, %v5648
      %vm5730 = vcmp.eq.s32.totalorder %v509, %v5651
      %vm5731 = vcmp.eq.s32.totalorder %v510, %v5651
      %vm5732 = vcmp.eq.s32.totalorder %v509, %v5654
      %vm5733 = vcmp.eq.s32.totalorder %v510, %v5654
      %vm5734 = vcmp.eq.s32.totalorder %v509, %v5657
      %vm5735 = vcmp.eq.s32.totalorder %v510, %v5657
      %vm5736 = vcmp.eq.s32.totalorder %v509, %v5660
      %vm5737 = vcmp.eq.s32.totalorder %v510, %v5660
      %vm5738 = vcmp.eq.s32.totalorder %v509, %v5663
      %vm5739 = vcmp.eq.s32.totalorder %v510, %v5663
      %vm5740 = vcmp.eq.s32.totalorder %v509, %v5666
      %vm5741 = vcmp.eq.s32.totalorder %v510, %v5666
      %vm5742 = vcmp.eq.s32.totalorder %v509, %v5669
      %vm5743 = vcmp.eq.s32.totalorder %v510, %v5669
      %vm5744 = vcmp.eq.s32.totalorder %v509, %v5672
      %vm5745 = vcmp.eq.s32.totalorder %v510, %v5672
      %vm5746 = vcmp.eq.s32.totalorder %v509, %v5675
      %vm5747 = vcmp.eq.s32.totalorder %v510, %v5675
      %vm5748 = vcmp.eq.s32.totalorder %v509, %v5678
      %vm5749 = vcmp.eq.s32.totalorder %v510, %v5678
      %vm5750 = vcmp.eq.s32.totalorder %v509, %v5681
      %vm5751 = vcmp.eq.s32.totalorder %v510, %v5681
      %vm5752 = vcmp.eq.s32.totalorder %v509, %v5684
      %vm5753 = vcmp.eq.s32.totalorder %v510, %v5684
      %vm5754 = vcmp.eq.s32.totalorder %v509, %v5687
      %vm5755 = vcmp.eq.s32.totalorder %v510, %v5687
      %vm5756 = vcmp.eq.s32.totalorder %v509, %v5690
      %vm5757 = vcmp.eq.s32.totalorder %v510, %v5690
      %vm5758 = vcmp.eq.s32.totalorder %v509, %v5693
      %vm5759 = vcmp.eq.s32.totalorder %v510, %v5693
      %vm5760 = vcmp.eq.s32.totalorder %v509, %v5696
      %vm5761 = vcmp.eq.s32.totalorder %v510, %v5696
      %vm5762 = vcmp.eq.s32.totalorder %v509, %v5699
      %vm5763 = vcmp.eq.s32.totalorder %v510, %v5699
      %v5764 = vsel %vm5700, 1, 0
      %v5765 = vsel %vm5701, 1, 0
      %v5766 = vsel %vm5702, 1, 0
      %v5767 = vsel %vm5703, 1, 0
      %v5768 = vsel %vm5704, 1, 0
      %v5769 = vsel %vm5705, 1, 0
      %v5770 = vsel %vm5706, 1, 0
      %v5771 = vsel %vm5707, 1, 0
      %v5772 = vsel %vm5708, 1, 0
      %v5773 = vsel %vm5709, 1, 0
      %v5774 = vsel %vm5710, 1, 0
      %v5775 = vsel %vm5711, 1, 0
      %v5776 = vsel %vm5712, 1, 0
      %v5777 = vsel %vm5713, 1, 0
      %v5778 = vsel %vm5714, 1, 0
      %v5779 = vsel %vm5715, 1, 0
      %v5780 = vsel %vm5716, 1, 0
      %v5781 = vsel %vm5717, 1, 0
      %v5782 = vsel %vm5718, 1, 0
      %v5783 = vsel %vm5719, 1, 0
      %v5784 = vsel %vm5720, 1, 0
      %v5785 = vsel %vm5721, 1, 0
      %v5786 = vsel %vm5722, 1, 0
      %v5787 = vsel %vm5723, 1, 0
      %v5788 = vsel %vm5724, 1, 0
      %v5789 = vsel %vm5725, 1, 0
      %v5790 = vsel %vm5726, 1, 0
      %v5791 = vsel %vm5727, 1, 0
      %v5792 = vsel %vm5728, 1, 0
      %v5793 = vsel %vm5729, 1, 0
      %v5794 = vsel %vm5730, 1, 0
      %v5795 = vsel %vm5731, 1, 0
      %v5796 = vsel %vm5732, 1, 0
      %v5797 = vsel %vm5733, 1, 0
      %v5798 = vsel %vm5734, 1, 0
      %v5799 = vsel %vm5735, 1, 0
      %v5800 = vsel %vm5736, 1, 0
      %v5801 = vsel %vm5737, 1, 0
      %v5802 = vsel %vm5738, 1, 0
      %v5803 = vsel %vm5739, 1, 0
      %v5804 = vsel %vm5740, 1, 0
      %v5805 = vsel %vm5741, 1, 0
      %v5806 = vsel %vm5742, 1, 0
      %v5807 = vsel %vm5743, 1, 0
      %v5808 = vsel %vm5744, 1, 0
      %v5809 = vsel %vm5745, 1, 0
      %v5810 = vsel %vm5746, 1, 0
      %v5811 = vsel %vm5747, 1, 0
      %v5812 = vsel %vm5748, 1, 0
      %v5813 = vsel %vm5749, 1, 0
      %v5814 = vsel %vm5750, 1, 0
      %v5815 = vsel %vm5751, 1, 0
      %v5816 = vsel %vm5752, 1, 0
      %v5817 = vsel %vm5753, 1, 0
      %v5818 = vsel %vm5754, 1, 0
      %v5819 = vsel %vm5755, 1, 0
      %v5820 = vsel %vm5756, 1, 0
      %v5821 = vsel %vm5757, 1, 0
      %v5822 = vsel %vm5758, 1, 0
      %v5823 = vsel %vm5759, 1, 0
      %v5824 = vsel %vm5760, 1, 0
      %v5825 = vsel %vm5761, 1, 0
      %v5826 = vsel %vm5762, 1, 0
      %v5827 = vsel %vm5763, 1, 0
      %v5828 = vcvt.s32.f32 %v5764
      %v5829 = vcvt.s32.f32 %v5765
      %v5830 = vcvt.s32.f32 %v5766
      %v5831 = vcvt.s32.f32 %v5767
      %v5832 = vcvt.s32.f32 %v5768
      %v5833 = vcvt.s32.f32 %v5769
      %v5834 = vcvt.s32.f32 %v5770
      %v5835 = vcvt.s32.f32 %v5771
      %v5836 = vcvt.s32.f32 %v5772
      %v5837 = vcvt.s32.f32 %v5773
      %v5838 = vcvt.s32.f32 %v5774
      %v5839 = vcvt.s32.f32 %v5775
      %v5840 = vcvt.s32.f32 %v5776
      %v5841 = vcvt.s32.f32 %v5777
      %v5842 = vcvt.s32.f32 %v5778
      %v5843 = vcvt.s32.f32 %v5779
      %v5844 = vcvt.s32.f32 %v5780
      %v5845 = vcvt.s32.f32 %v5781
      %v5846 = vcvt.s32.f32 %v5782
      %v5847 = vcvt.s32.f32 %v5783
      %v5848 = vcvt.s32.f32 %v5784
      %v5849 = vcvt.s32.f32 %v5785
      %v5850 = vcvt.s32.f32 %v5786
      %v5851 = vcvt.s32.f32 %v5787
      %v5852 = vcvt.s32.f32 %v5788
      %v5853 = vcvt.s32.f32 %v5789
      %v5854 = vcvt.s32.f32 %v5790
      %v5855 = vcvt.s32.f32 %v5791
      %v5856 = vcvt.s32.f32 %v5792
      %v5857 = vcvt.s32.f32 %v5793
      %v5858 = vcvt.s32.f32 %v5794
      %v5859 = vcvt.s32.f32 %v5795
      %v5860 = vcvt.s32.f32 %v5796
      %v5861 = vcvt.s32.f32 %v5797
      %v5862 = vcvt.s32.f32 %v5798
      %v5863 = vcvt.s32.f32 %v5799
      %v5864 = vcvt.s32.f32 %v5800
      %v5865 = vcvt.s32.f32 %v5801
      %v5866 = vcvt.s32.f32 %v5802
      %v5867 = vcvt.s32.f32 %v5803
      %v5868 = vcvt.s32.f32 %v5804
      %v5869 = vcvt.s32.f32 %v5805
      %v5870 = vcvt.s32.f32 %v5806
      %v5871 = vcvt.s32.f32 %v5807
      %v5872 = vcvt.s32.f32 %v5808
      %v5873 = vcvt.s32.f32 %v5809
      %v5874 = vcvt.s32.f32 %v5810
      %v5875 = vcvt.s32.f32 %v5811
      %v5876 = vcvt.s32.f32 %v5812
      %v5877 = vcvt.s32.f32 %v5813
      %v5878 = vcvt.s32.f32 %v5814
      %v5879 = vcvt.s32.f32 %v5815
      %v5880 = vcvt.s32.f32 %v5816
      %v5881 = vcvt.s32.f32 %v5817
      %v5882 = vcvt.s32.f32 %v5818
      %v5883 = vcvt.s32.f32 %v5819
      %v5884 = vcvt.s32.f32 %v5820
      %v5885 = vcvt.s32.f32 %v5821
      %v5886 = vcvt.s32.f32 %v5822
      %v5887 = vcvt.s32.f32 %v5823
      %v5888 = vcvt.s32.f32 %v5824
      %v5889 = vcvt.s32.f32 %v5825
      %v5890 = vcvt.s32.f32 %v5826
      %v5891 = vcvt.s32.f32 %v5827
      %v5892 = vpack.c.bf16 %v5830, %v5828
      %v5893 = vpack.c.bf16 %v5831, %v5829
      %v5894 = vpack.c.bf16 %v5834, %v5832
      %v5895 = vpack.c.bf16 %v5835, %v5833
      %v5896 = vpack.c.bf16 %v5838, %v5836
      %v5897 = vpack.c.bf16 %v5839, %v5837
      %v5898 = vpack.c.bf16 %v5842, %v5840
      %v5899 = vpack.c.bf16 %v5843, %v5841
      %v5900 = vpack.c.bf16 %v5846, %v5844
      %v5901 = vpack.c.bf16 %v5847, %v5845
      %v5902 = vpack.c.bf16 %v5850, %v5848
      %v5903 = vpack.c.bf16 %v5851, %v5849
      %v5904 = vpack.c.bf16 %v5854, %v5852
      %v5905 = vpack.c.bf16 %v5855, %v5853
      %v5906 = vpack.c.bf16 %v5858, %v5856
      %v5907 = vpack.c.bf16 %v5859, %v5857
      %v5908 = vpack.c.bf16 %v5862, %v5860
      %v5909 = vpack.c.bf16 %v5863, %v5861
      %v5910 = vpack.c.bf16 %v5866, %v5864
      %v5911 = vpack.c.bf16 %v5867, %v5865
      %v5912 = vpack.c.bf16 %v5870, %v5868
      %v5913 = vpack.c.bf16 %v5871, %v5869
      %v5914 = vpack.c.bf16 %v5874, %v5872
      %v5915 = vpack.c.bf16 %v5875, %v5873
      %v5916 = vpack.c.bf16 %v5878, %v5876
      %v5917 = vpack.c.bf16 %v5879, %v5877
      %v5918 = vpack.c.bf16 %v5882, %v5880
      %v5919 = vpack.c.bf16 %v5883, %v5881
      %v5920 = vpack.c.bf16 %v5886, %v5884
      %v5921 = vpack.c.bf16 %v5887, %v5885
      %v5922 = vpack.c.bf16 %v5890, %v5888
      %v5923 = vpack.c.bf16 %v5891, %v5889
      %s5924 = scalar_lea.vmem %s464, 256
      %v5925 = vld [vmem:[%s5924] sm:$0xf]
      %v5926 = vld [vmem:[%s5924 + $0x4] sm:$0xf]
      %v5927 = vld [vmem:[%s5924 + $0x8] sm:$0xf]
      %v5928 = vld [vmem:[%s5924 + $0xc] sm:$0xf]
      %v5929 = vld [vmem:[%s5924 + $0x10] sm:$0xf]
      %v5930 = vld [vmem:[%s5924 + $0x14] sm:$0xf]
      %v5931 = vld [vmem:[%s5924 + $0x18] sm:$0xf]
      %v5932 = vld [vmem:[%s5924 + $0x1c] sm:$0xf]
      %v5933 = vld [vmem:[%s5924 + $0x20] sm:$0xf]
      %v5934 = vld [vmem:[%s5924 + $0x24] sm:$0xf]
      %v5935 = vld [vmem:[%s5924 + $0x28] sm:$0xf]
      %v5936 = vld [vmem:[%s5924 + $0x2c] sm:$0xf]
      %v5937 = vld [vmem:[%s5924 + $0x30] sm:$0xf]
      %v5938 = vld [vmem:[%s5924 + $0x34] sm:$0xf]
      %v5939 = vld [vmem:[%s5924 + $0x38] sm:$0xf]
      %v5940 = vld [vmem:[%s5924 + $0x3c] sm:$0xf]
      %v5941 = vld [vmem:[%s5924 + $0x40] sm:$0xf]
      %v5942 = vld [vmem:[%s5924 + $0x44] sm:$0xf]
      %v5943 = vld [vmem:[%s5924 + $0x48] sm:$0xf]
      %v5944 = vld [vmem:[%s5924 + $0x4c] sm:$0xf]
      %v5945 = vld [vmem:[%s5924 + $0x50] sm:$0xf]
      %v5946 = vld [vmem:[%s5924 + $0x54] sm:$0xf]
      %v5947 = vld [vmem:[%s5924 + $0x58] sm:$0xf]
      %v5948 = vld [vmem:[%s5924 + $0x5c] sm:$0xf]
      %v5949 = vld [vmem:[%s5924 + $0x60] sm:$0xf]
      %v5950 = vld [vmem:[%s5924 + $0x64] sm:$0xf]
      %v5951 = vld [vmem:[%s5924 + $0x68] sm:$0xf]
      %v5952 = vld [vmem:[%s5924 + $0x6c] sm:$0xf]
      %v5953 = vld [vmem:[%s5924 + $0x70] sm:$0xf]
      %v5954 = vld [vmem:[%s5924 + $0x74] sm:$0xf]
      %v5955 = vld [vmem:[%s5924 + $0x78] sm:$0xf]
      %v5956 = vld [vmem:[%s5924 + $0x7c] sm:$0xf]
      %v5989 = vunpack.c.l.b16 %v5925
      %v5990 = vunpack.c.l.b16 %v5926
      %v5991 = vunpack.c.l.b16 %v5927
      %v5992 = vunpack.c.l.b16 %v5928
      %v5993 = vunpack.c.l.b16 %v5929
      %v5994 = vunpack.c.l.b16 %v5930
      %v5995 = vunpack.c.l.b16 %v5931
      %v5996 = vunpack.c.l.b16 %v5932
      %v5997 = vunpack.c.l.b16 %v5933
      %v5998 = vunpack.c.l.b16 %v5934
      %v5999 = vunpack.c.l.b16 %v5935
      %v6000 = vunpack.c.l.b16 %v5936
      %v6001 = vunpack.c.l.b16 %v5937
      %v6002 = vunpack.c.l.b16 %v5938
      %v6003 = vunpack.c.l.b16 %v5939
      %v6004 = vunpack.c.l.b16 %v5940
      %v6005 = vunpack.c.l.b16 %v5941
      %v6006 = vunpack.c.l.b16 %v5942
      %v6007 = vunpack.c.l.b16 %v5943
      %v6008 = vunpack.c.l.b16 %v5944
      %v6009 = vunpack.c.l.b16 %v5945
      %v6010 = vunpack.c.l.b16 %v5946
      %v6011 = vunpack.c.l.b16 %v5947
      %v6012 = vunpack.c.l.b16 %v5948
      %v6013 = vunpack.c.l.b16 %v5949
      %v6014 = vunpack.c.l.b16 %v5950
      %v6015 = vunpack.c.l.b16 %v5951
      %v6016 = vunpack.c.l.b16 %v5952
      %v6017 = vunpack.c.l.b16 %v5953
      %v6018 = vunpack.c.l.b16 %v5954
      %v6019 = vunpack.c.l.b16 %v5955
      %v6020 = vunpack.c.l.b16 %v5956
      %v6021 = vpack.c.b16 %v5990, %v5989
      %v6022 = vpack.c.b16 %v5992, %v5991
      %v6023 = vpack.c.b16 %v5994, %v5993
      %v6024 = vpack.c.b16 %v5996, %v5995
      %v6025 = vpack.c.b16 %v5998, %v5997
      %v6026 = vpack.c.b16 %v6000, %v5999
      %v6027 = vpack.c.b16 %v6002, %v6001
      %v6028 = vpack.c.b16 %v6004, %v6003
      %v6029 = vpack.c.b16 %v6006, %v6005
      %v6030 = vpack.c.b16 %v6008, %v6007
      %v6031 = vpack.c.b16 %v6010, %v6009
      %v6032 = vpack.c.b16 %v6012, %v6011
      %v6033 = vpack.c.b16 %v6014, %v6013
      %v6034 = vpack.c.b16 %v6016, %v6015
      %v6035 = vpack.c.b16 %v6018, %v6017
      %v6036 = vpack.c.b16 %v6020, %v6019
      %6053 = vmatpush.bf16.msra.mxu0 %v6028
      %6054 = vmatpush.bf16.msra.mxu0 %v6027
      %6055 = vmatpush.bf16.msra.mxu0 %v6026
      %6056 = vmatpush.bf16.msra.mxu0 %v6025
      %6057 = vmatpush.bf16.msra.mxu0 %v6024
      %6058 = vmatpush.bf16.msra.mxu0 %v6023
      %6059 = vmatpush.bf16.msra.mxu0 %v6022
      %6060 = vmatpush.bf16.msra.mxu0 %v6021
      %6061 = vmatmul.bf16.gmra.mxu0 %v5892
      %v6062 = vpop.f32.mrf.mxu0
      %v6063 = vadd.f32 0.0, %v6062
      %v6064 = vpop.f32.mrf.mxu0
      %v6065 = vadd.f32 0.0, %v6064
      %6066 = vmatmul.bf16.gmra.mxu0 %v5894
      %v6067 = vpop.f32.mrf.mxu0
      %v6068 = vadd.f32 0.0, %v6067
      %v6069 = vpop.f32.mrf.mxu0
      %v6070 = vadd.f32 0.0, %v6069
      %6071 = vmatmul.bf16.gmra.mxu0 %v5896
      %v6072 = vpop.f32.mrf.mxu0
      %v6073 = vadd.f32 0.0, %v6072
      %v6074 = vpop.f32.mrf.mxu0
      %v6075 = vadd.f32 0.0, %v6074
      %6076 = vmatmul.bf16.gmra.mxu0 %v5898
      %v6077 = vpop.f32.mrf.mxu0
      %v6078 = vadd.f32 0.0, %v6077
      %v6079 = vpop.f32.mrf.mxu0
      %v6080 = vadd.f32 0.0, %v6079
      %6081 = vmatmul.bf16.gmra.mxu0 %v5900
      %v6082 = vpop.f32.mrf.mxu0
      %v6083 = vadd.f32 0.0, %v6082
      %v6084 = vpop.f32.mrf.mxu0
      %v6085 = vadd.f32 0.0, %v6084
      %6086 = vmatmul.bf16.gmra.mxu0 %v5902
      %v6087 = vpop.f32.mrf.mxu0
      %v6088 = vadd.f32 0.0, %v6087
      %v6089 = vpop.f32.mrf.mxu0
      %v6090 = vadd.f32 0.0, %v6089
      %6091 = vmatmul.bf16.gmra.mxu0 %v5904
      %v6092 = vpop.f32.mrf.mxu0
      %v6093 = vadd.f32 0.0, %v6092
      %v6094 = vpop.f32.mrf.mxu0
      %v6095 = vadd.f32 0.0, %v6094
      %6096 = vmatmul.bf16.gmra.mxu0 %v5906
      %v6097 = vpop.f32.mrf.mxu0
      %v6098 = vadd.f32 0.0, %v6097
      %v6099 = vpop.f32.mrf.mxu0
      %v6100 = vadd.f32 0.0, %v6099
      %6101 = vmatmul.bf16.gmra.mxu0 %v5908
      %v6102 = vpop.f32.mrf.mxu0
      %v6103 = vadd.f32 0.0, %v6102
      %v6104 = vpop.f32.mrf.mxu0
      %v6105 = vadd.f32 0.0, %v6104
      %6106 = vmatmul.bf16.gmra.mxu0 %v5910
      %v6107 = vpop.f32.mrf.mxu0
      %v6108 = vadd.f32 0.0, %v6107
      %v6109 = vpop.f32.mrf.mxu0
      %v6110 = vadd.f32 0.0, %v6109
      %6111 = vmatmul.bf16.gmra.mxu0 %v5912
      %v6112 = vpop.f32.mrf.mxu0
      %v6113 = vadd.f32 0.0, %v6112
      %v6114 = vpop.f32.mrf.mxu0
      %v6115 = vadd.f32 0.0, %v6114
      %6116 = vmatmul.bf16.gmra.mxu0 %v5914
      %v6117 = vpop.f32.mrf.mxu0
      %v6118 = vadd.f32 0.0, %v6117
      %v6119 = vpop.f32.mrf.mxu0
      %v6120 = vadd.f32 0.0, %v6119
      %6121 = vmatmul.bf16.gmra.mxu0 %v5916
      %v6122 = vpop.f32.mrf.mxu0
      %v6123 = vadd.f32 0.0, %v6122
      %v6124 = vpop.f32.mrf.mxu0
      %v6125 = vadd.f32 0.0, %v6124
      %6126 = vmatmul.bf16.gmra.mxu0 %v5918
      %v6127 = vpop.f32.mrf.mxu0
      %v6128 = vadd.f32 0.0, %v6127
      %v6129 = vpop.f32.mrf.mxu0
      %v6130 = vadd.f32 0.0, %v6129
      %6131 = vmatmul.bf16.gmra.mxu0 %v5920
      %v6132 = vpop.f32.mrf.mxu0
      %v6133 = vadd.f32 0.0, %v6132
      %v6134 = vpop.f32.mrf.mxu0
      %v6135 = vadd.f32 0.0, %v6134
      %6136 = vmatmul.bf16.gmra.mxu0 %v5922
      %v6137 = vpop.f32.mrf.mxu0
      %v6138 = vadd.f32 0.0, %v6137
      %v6139 = vpop.f32.mrf.mxu0
      %v6140 = vadd.f32 0.0, %v6139
      %6141 = vdwg.mxu0
      %6142 = vmatpush.bf16.msra.mxu0 %v6036
      %6143 = vmatpush.bf16.msra.mxu0 %v6035
      %6144 = vmatpush.bf16.msra.mxu0 %v6034
      %6145 = vmatpush.bf16.msra.mxu0 %v6033
      %6146 = vmatpush.bf16.msra.mxu0 %v6032
      %6147 = vmatpush.bf16.msra.mxu0 %v6031
      %6148 = vmatpush.bf16.msra.mxu0 %v6030
      %6149 = vmatpush.bf16.msra.mxu0 %v6029
      %6150 = vmatmul.bf16.gmra.mxu0 %v5893
      %v6151 = vpop.f32.mrf.mxu0
      %v6152 = vadd.f32 %v6063, %v6151
      %v6153 = vpop.f32.mrf.mxu0
      %v6154 = vadd.f32 %v6065, %v6153
      %6155 = vmatmul.bf16.gmra.mxu0 %v5895
      %v6156 = vpop.f32.mrf.mxu0
      %v6157 = vadd.f32 %v6068, %v6156
      %v6158 = vpop.f32.mrf.mxu0
      %v6159 = vadd.f32 %v6070, %v6158
      %6160 = vmatmul.bf16.gmra.mxu0 %v5897
      %v6161 = vpop.f32.mrf.mxu0
      %v6162 = vadd.f32 %v6073, %v6161
      %v6163 = vpop.f32.mrf.mxu0
      %v6164 = vadd.f32 %v6075, %v6163
      %6165 = vmatmul.bf16.gmra.mxu0 %v5899
      %v6166 = vpop.f32.mrf.mxu0
      %v6167 = vadd.f32 %v6078, %v6166
      %v6168 = vpop.f32.mrf.mxu0
      %v6169 = vadd.f32 %v6080, %v6168
      %6170 = vmatmul.bf16.gmra.mxu0 %v5901
      %v6171 = vpop.f32.mrf.mxu0
      %v6172 = vadd.f32 %v6083, %v6171
      %v6173 = vpop.f32.mrf.mxu0
      %v6174 = vadd.f32 %v6085, %v6173
      %6175 = vmatmul.bf16.gmra.mxu0 %v5903
      %v6176 = vpop.f32.mrf.mxu0
      %v6177 = vadd.f32 %v6088, %v6176
      %v6178 = vpop.f32.mrf.mxu0
      %v6179 = vadd.f32 %v6090, %v6178
      %6180 = vmatmul.bf16.gmra.mxu0 %v5905
      %v6181 = vpop.f32.mrf.mxu0
      %v6182 = vadd.f32 %v6093, %v6181
      %v6183 = vpop.f32.mrf.mxu0
      %v6184 = vadd.f32 %v6095, %v6183
      %6185 = vmatmul.bf16.gmra.mxu0 %v5907
      %v6186 = vpop.f32.mrf.mxu0
      %v6187 = vadd.f32 %v6098, %v6186
      %v6188 = vpop.f32.mrf.mxu0
      %v6189 = vadd.f32 %v6100, %v6188
      %6190 = vmatmul.bf16.gmra.mxu0 %v5909
      %v6191 = vpop.f32.mrf.mxu0
      %v6192 = vadd.f32 %v6103, %v6191
      %v6193 = vpop.f32.mrf.mxu0
      %v6194 = vadd.f32 %v6105, %v6193
      %6195 = vmatmul.bf16.gmra.mxu0 %v5911
      %v6196 = vpop.f32.mrf.mxu0
      %v6197 = vadd.f32 %v6108, %v6196
      %v6198 = vpop.f32.mrf.mxu0
      %v6199 = vadd.f32 %v6110, %v6198
      %6200 = vmatmul.bf16.gmra.mxu0 %v5913
      %v6201 = vpop.f32.mrf.mxu0
      %v6202 = vadd.f32 %v6113, %v6201
      %v6203 = vpop.f32.mrf.mxu0
      %v6204 = vadd.f32 %v6115, %v6203
      %6205 = vmatmul.bf16.gmra.mxu0 %v5915
      %v6206 = vpop.f32.mrf.mxu0
      %v6207 = vadd.f32 %v6118, %v6206
      %v6208 = vpop.f32.mrf.mxu0
      %v6209 = vadd.f32 %v6120, %v6208
      %6210 = vmatmul.bf16.gmra.mxu0 %v5917
      %v6211 = vpop.f32.mrf.mxu0
      %v6212 = vadd.f32 %v6123, %v6211
      %v6213 = vpop.f32.mrf.mxu0
      %v6214 = vadd.f32 %v6125, %v6213
      %6215 = vmatmul.bf16.gmra.mxu0 %v5919
      %v6216 = vpop.f32.mrf.mxu0
      %v6217 = vadd.f32 %v6128, %v6216
      %v6218 = vpop.f32.mrf.mxu0
      %v6219 = vadd.f32 %v6130, %v6218
      %6220 = vmatmul.bf16.gmra.mxu0 %v5921
      %v6221 = vpop.f32.mrf.mxu0
      %v6222 = vadd.f32 %v6133, %v6221
      %v6223 = vpop.f32.mrf.mxu0
      %v6224 = vadd.f32 %v6135, %v6223
      %6225 = vmatmul.bf16.gmra.mxu0 %v5923
      %v6226 = vpop.f32.mrf.mxu0
      %v6227 = vadd.f32 %v6138, %v6226
      %v6228 = vpop.f32.mrf.mxu0
      %v6229 = vadd.f32 %v6140, %v6228
      %6230 = vdwg.mxu0
      %6231 = vset.pattern.permute.xlu0 1
      %6232 = vperm.xlu0 %6231, %v4132
      %v6233 = vpop.permute.xlu0 %6232
      %6235 = vset.pattern.permute.xlu0 1
      %6236 = vperm.xlu0 %6235, %v4133
      %v6237 = vpop.permute.xlu0 %6236
      %6239 = vset.pattern.permute.xlu0 1
      %6240 = vperm.xlu0 %6239, %v4134
      %v6241 = vpop.permute.xlu0 %6240
      %6243 = vset.pattern.permute.xlu0 1
      %6244 = vperm.xlu0 %6243, %v4135
      %v6245 = vpop.permute.xlu0 %6244
      %6247 = vset.pattern.permute.xlu0 1
      %6248 = vperm.xlu0 %6247, %v4136
      %v6249 = vpop.permute.xlu0 %6248
      %6251 = vset.pattern.permute.xlu0 1
      %6252 = vperm.xlu0 %6251, %v4137
      %v6253 = vpop.permute.xlu0 %6252
      %6255 = vset.pattern.permute.xlu0 1
      %6256 = vperm.xlu0 %6255, %v4138
      %v6257 = vpop.permute.xlu0 %6256
      %6259 = vset.pattern.permute.xlu0 1
      %6260 = vperm.xlu0 %6259, %v4139
      %v6261 = vpop.permute.xlu0 %6260
      %6263 = vset.pattern.permute.xlu0 1
      %6264 = vperm.xlu0 %6263, %v4140
      %v6265 = vpop.permute.xlu0 %6264
      %6267 = vset.pattern.permute.xlu0 1
      %6268 = vperm.xlu0 %6267, %v4141
      %v6269 = vpop.permute.xlu0 %6268
      %6271 = vset.pattern.permute.xlu0 1
      %6272 = vperm.xlu0 %6271, %v4142
      %v6273 = vpop.permute.xlu0 %6272
      %6275 = vset.pattern.permute.xlu0 1
      %6276 = vperm.xlu0 %6275, %v4143
      %v6277 = vpop.permute.xlu0 %6276
      %6279 = vset.pattern.permute.xlu0 1
      %6280 = vperm.xlu0 %6279, %v4144
      %v6281 = vpop.permute.xlu0 %6280
      %6283 = vset.pattern.permute.xlu0 1
      %6284 = vperm.xlu0 %6283, %v4145
      %v6285 = vpop.permute.xlu0 %6284
      %6287 = vset.pattern.permute.xlu0 1
      %6288 = vperm.xlu0 %6287, %v4146
      %v6289 = vpop.permute.xlu0 %6288
      %6291 = vset.pattern.permute.xlu0 1
      %6292 = vperm.xlu0 %6291, %v4147
      %v6293 = vpop.permute.xlu0 %6292
      %6295 = vset.pattern.permute.xlu0 1
      %6296 = vperm.xlu0 %6295, %v4148
      %v6297 = vpop.permute.xlu0 %6296
      %6299 = vset.pattern.permute.xlu0 1
      %6300 = vperm.xlu0 %6299, %v4149
      %v6301 = vpop.permute.xlu0 %6300
      %6303 = vset.pattern.permute.xlu0 1
      %6304 = vperm.xlu0 %6303, %v4150
      %v6305 = vpop.permute.xlu0 %6304
      %6307 = vset.pattern.permute.xlu0 1
      %6308 = vperm.xlu0 %6307, %v4151
      %v6309 = vpop.permute.xlu0 %6308
      %6311 = vset.pattern.permute.xlu0 1
      %6312 = vperm.xlu0 %6311, %v4152
      %v6313 = vpop.permute.xlu0 %6312
      %6315 = vset.pattern.permute.xlu0 1
      %6316 = vperm.xlu0 %6315, %v4153
      %v6317 = vpop.permute.xlu0 %6316
      %6319 = vset.pattern.permute.xlu0 1
      %6320 = vperm.xlu0 %6319, %v4154
      %v6321 = vpop.permute.xlu0 %6320
      %6323 = vset.pattern.permute.xlu0 1
      %6324 = vperm.xlu0 %6323, %v4155
      %v6325 = vpop.permute.xlu0 %6324
      %6327 = vset.pattern.permute.xlu0 1
      %6328 = vperm.xlu0 %6327, %v4156
      %v6329 = vpop.permute.xlu0 %6328
      %6331 = vset.pattern.permute.xlu0 1
      %6332 = vperm.xlu0 %6331, %v4157
      %v6333 = vpop.permute.xlu0 %6332
      %6335 = vset.pattern.permute.xlu0 1
      %6336 = vperm.xlu0 %6335, %v4158
      %v6337 = vpop.permute.xlu0 %6336
      %6339 = vset.pattern.permute.xlu0 1
      %6340 = vperm.xlu0 %6339, %v4159
      %v6341 = vpop.permute.xlu0 %6340
      %6343 = vset.pattern.permute.xlu0 1
      %6344 = vperm.xlu0 %6343, %v4160
      %v6345 = vpop.permute.xlu0 %6344
      %6347 = vset.pattern.permute.xlu0 1
      %6348 = vperm.xlu0 %6347, %v4161
      %v6349 = vpop.permute.xlu0 %6348
      %6351 = vset.pattern.permute.xlu0 1
      %6352 = vperm.xlu0 %6351, %v4162
      %v6353 = vpop.permute.xlu0 %6352
      %6355 = vset.pattern.permute.xlu0 1
      %6356 = vperm.xlu0 %6355, %v4163
      %v6357 = vpop.permute.xlu0 %6356
      %v6359 = vmul.f32 %v6152, %v6233
      %v6360 = vmul.f32 %v6154, %v6237
      %v6361 = vmul.f32 %v6157, %v6241
      %v6362 = vmul.f32 %v6159, %v6245
      %v6363 = vmul.f32 %v6162, %v6249
      %v6364 = vmul.f32 %v6164, %v6253
      %v6365 = vmul.f32 %v6167, %v6257
      %v6366 = vmul.f32 %v6169, %v6261
      %v6367 = vmul.f32 %v6172, %v6265
      %v6368 = vmul.f32 %v6174, %v6269
      %v6369 = vmul.f32 %v6177, %v6273
      %v6370 = vmul.f32 %v6179, %v6277
      %v6371 = vmul.f32 %v6182, %v6281
      %v6372 = vmul.f32 %v6184, %v6285
      %v6373 = vmul.f32 %v6187, %v6289
      %v6374 = vmul.f32 %v6189, %v6293
      %v6375 = vmul.f32 %v6192, %v6297
      %v6376 = vmul.f32 %v6194, %v6301
      %v6377 = vmul.f32 %v6197, %v6305
      %v6378 = vmul.f32 %v6199, %v6309
      %v6379 = vmul.f32 %v6202, %v6313
      %v6380 = vmul.f32 %v6204, %v6317
      %v6381 = vmul.f32 %v6207, %v6321
      %v6382 = vmul.f32 %v6209, %v6325
      %v6383 = vmul.f32 %v6212, %v6329
      %v6384 = vmul.f32 %v6214, %v6333
      %v6385 = vmul.f32 %v6217, %v6337
      %v6386 = vmul.f32 %v6219, %v6341
      %v6387 = vmul.f32 %v6222, %v6345
      %v6388 = vmul.f32 %v6224, %v6349
      %v6389 = vmul.f32 %v6227, %v6353
      %v6390 = vmul.f32 %v6229, %v6357
      %6391 = vset.pattern.permute.xlu0 1
      %6392 = vperm.xlu0 %6391, %v4356
      %v6393 = vpop.permute.xlu0 %6392
      %6395 = vset.pattern.permute.xlu0 1
      %6396 = vperm.xlu0 %6395, %v4357
      %v6397 = vpop.permute.xlu0 %6396
      %6399 = vset.pattern.permute.xlu0 1
      %6400 = vperm.xlu0 %6399, %v4358
      %v6401 = vpop.permute.xlu0 %6400
      %6403 = vset.pattern.permute.xlu0 1
      %6404 = vperm.xlu0 %6403, %v4359
      %v6405 = vpop.permute.xlu0 %6404
      %6407 = vset.pattern.permute.xlu0 1
      %6408 = vperm.xlu0 %6407, %v4360
      %v6409 = vpop.permute.xlu0 %6408
      %6411 = vset.pattern.permute.xlu0 1
      %6412 = vperm.xlu0 %6411, %v4361
      %v6413 = vpop.permute.xlu0 %6412
      %6415 = vset.pattern.permute.xlu0 1
      %6416 = vperm.xlu0 %6415, %v4362
      %v6417 = vpop.permute.xlu0 %6416
      %6419 = vset.pattern.permute.xlu0 1
      %6420 = vperm.xlu0 %6419, %v4363
      %v6421 = vpop.permute.xlu0 %6420
      %6423 = vset.pattern.permute.xlu0 1
      %6424 = vperm.xlu0 %6423, %v4364
      %v6425 = vpop.permute.xlu0 %6424
      %6427 = vset.pattern.permute.xlu0 1
      %6428 = vperm.xlu0 %6427, %v4365
      %v6429 = vpop.permute.xlu0 %6428
      %6431 = vset.pattern.permute.xlu0 1
      %6432 = vperm.xlu0 %6431, %v4366
      %v6433 = vpop.permute.xlu0 %6432
      %6435 = vset.pattern.permute.xlu0 1
      %6436 = vperm.xlu0 %6435, %v4367
      %v6437 = vpop.permute.xlu0 %6436
      %6439 = vset.pattern.permute.xlu0 1
      %6440 = vperm.xlu0 %6439, %v4368
      %v6441 = vpop.permute.xlu0 %6440
      %6443 = vset.pattern.permute.xlu0 1
      %6444 = vperm.xlu0 %6443, %v4369
      %v6445 = vpop.permute.xlu0 %6444
      %6447 = vset.pattern.permute.xlu0 1
      %6448 = vperm.xlu0 %6447, %v4370
      %v6449 = vpop.permute.xlu0 %6448
      %6451 = vset.pattern.permute.xlu0 1
      %6452 = vperm.xlu0 %6451, %v4371
      %v6453 = vpop.permute.xlu0 %6452
      %6455 = vset.pattern.permute.xlu0 1
      %6456 = vperm.xlu0 %6455, %v4372
      %v6457 = vpop.permute.xlu0 %6456
      %6459 = vset.pattern.permute.xlu0 1
      %6460 = vperm.xlu0 %6459, %v4373
      %v6461 = vpop.permute.xlu0 %6460
      %6463 = vset.pattern.permute.xlu0 1
      %6464 = vperm.xlu0 %6463, %v4374
      %v6465 = vpop.permute.xlu0 %6464
      %6467 = vset.pattern.permute.xlu0 1
      %6468 = vperm.xlu0 %6467, %v4375
      %v6469 = vpop.permute.xlu0 %6468
      %6471 = vset.pattern.permute.xlu0 1
      %6472 = vperm.xlu0 %6471, %v4376
      %v6473 = vpop.permute.xlu0 %6472
      %6475 = vset.pattern.permute.xlu0 1
      %6476 = vperm.xlu0 %6475, %v4377
      %v6477 = vpop.permute.xlu0 %6476
      %6479 = vset.pattern.permute.xlu0 1
      %6480 = vperm.xlu0 %6479, %v4378
      %v6481 = vpop.permute.xlu0 %6480
      %6483 = vset.pattern.permute.xlu0 1
      %6484 = vperm.xlu0 %6483, %v4379
      %v6485 = vpop.permute.xlu0 %6484
      %6487 = vset.pattern.permute.xlu0 1
      %6488 = vperm.xlu0 %6487, %v4380
      %v6489 = vpop.permute.xlu0 %6488
      %6491 = vset.pattern.permute.xlu0 1
      %6492 = vperm.xlu0 %6491, %v4381
      %v6493 = vpop.permute.xlu0 %6492
      %6495 = vset.pattern.permute.xlu0 1
      %6496 = vperm.xlu0 %6495, %v4382
      %v6497 = vpop.permute.xlu0 %6496
      %6499 = vset.pattern.permute.xlu0 1
      %6500 = vperm.xlu0 %6499, %v4383
      %v6501 = vpop.permute.xlu0 %6500
      %6503 = vset.pattern.permute.xlu0 1
      %6504 = vperm.xlu0 %6503, %v4384
      %v6505 = vpop.permute.xlu0 %6504
      %6507 = vset.pattern.permute.xlu0 1
      %6508 = vperm.xlu0 %6507, %v4385
      %v6509 = vpop.permute.xlu0 %6508
      %6511 = vset.pattern.permute.xlu0 1
      %6512 = vperm.xlu0 %6511, %v4386
      %v6513 = vpop.permute.xlu0 %6512
      %6515 = vset.pattern.permute.xlu0 1
      %6516 = vperm.xlu0 %6515, %v4387
      %v6517 = vpop.permute.xlu0 %6516
      %v6519 = vmul.f32 %v6152, %v6393
      %v6520 = vmul.f32 %v6154, %v6397
      %v6521 = vmul.f32 %v6157, %v6401
      %v6522 = vmul.f32 %v6159, %v6405
      %v6523 = vmul.f32 %v6162, %v6409
      %v6524 = vmul.f32 %v6164, %v6413
      %v6525 = vmul.f32 %v6167, %v6417
      %v6526 = vmul.f32 %v6169, %v6421
      %v6527 = vmul.f32 %v6172, %v6425
      %v6528 = vmul.f32 %v6174, %v6429
      %v6529 = vmul.f32 %v6177, %v6433
      %v6530 = vmul.f32 %v6179, %v6437
      %v6531 = vmul.f32 %v6182, %v6441
      %v6532 = vmul.f32 %v6184, %v6445
      %v6533 = vmul.f32 %v6187, %v6449
      %v6534 = vmul.f32 %v6189, %v6453
      %v6535 = vmul.f32 %v6192, %v6457
      %v6536 = vmul.f32 %v6194, %v6461
      %v6537 = vmul.f32 %v6197, %v6465
      %v6538 = vmul.f32 %v6199, %v6469
      %v6539 = vmul.f32 %v6202, %v6473
      %v6540 = vmul.f32 %v6204, %v6477
      %v6541 = vmul.f32 %v6207, %v6481
      %v6542 = vmul.f32 %v6209, %v6485
      %v6543 = vmul.f32 %v6212, %v6489
      %v6544 = vmul.f32 %v6214, %v6493
      %v6545 = vmul.f32 %v6217, %v6497
      %v6546 = vmul.f32 %v6219, %v6501
      %v6547 = vmul.f32 %v6222, %v6505
      %v6548 = vmul.f32 %v6224, %v6509
      %v6549 = vmul.f32 %v6227, %v6513
      %v6550 = vmul.f32 %v6229, %v6517
      %6583 = vrot.lane.b32.xlu0 %v6519, 96
      %v6584 = vpop.permute.xlu0 %6583
      %6585 = vrot.lane.b32.xlu0 %v6520, 96
      %v6586 = vpop.permute.xlu0 %6585
      %6587 = vrot.lane.b32.xlu0 %v6521, 96
      %v6588 = vpop.permute.xlu0 %6587
      %6589 = vrot.lane.b32.xlu0 %v6522, 96
      %v6590 = vpop.permute.xlu0 %6589
      %6591 = vrot.lane.b32.xlu0 %v6523, 96
      %v6592 = vpop.permute.xlu0 %6591
      %6593 = vrot.lane.b32.xlu0 %v6524, 96
      %v6594 = vpop.permute.xlu0 %6593
      %6595 = vrot.lane.b32.xlu0 %v6525, 96
      %v6596 = vpop.permute.xlu0 %6595
      %6597 = vrot.lane.b32.xlu0 %v6526, 96
      %v6598 = vpop.permute.xlu0 %6597
      %6599 = vrot.lane.b32.xlu0 %v6527, 96
      %v6600 = vpop.permute.xlu0 %6599
      %6601 = vrot.lane.b32.xlu0 %v6528, 96
      %v6602 = vpop.permute.xlu0 %6601
      %6603 = vrot.lane.b32.xlu0 %v6529, 96
      %v6604 = vpop.permute.xlu0 %6603
      %6605 = vrot.lane.b32.xlu0 %v6530, 96
      %v6606 = vpop.permute.xlu0 %6605
      %6607 = vrot.lane.b32.xlu0 %v6531, 96
      %v6608 = vpop.permute.xlu0 %6607
      %6609 = vrot.lane.b32.xlu0 %v6532, 96
      %v6610 = vpop.permute.xlu0 %6609
      %6611 = vrot.lane.b32.xlu0 %v6533, 96
      %v6612 = vpop.permute.xlu0 %6611
      %6613 = vrot.lane.b32.xlu0 %v6534, 96
      %v6614 = vpop.permute.xlu0 %6613
      %6615 = vrot.lane.b32.xlu0 %v6535, 96
      %v6616 = vpop.permute.xlu0 %6615
      %6617 = vrot.lane.b32.xlu0 %v6536, 96
      %v6618 = vpop.permute.xlu0 %6617
      %6619 = vrot.lane.b32.xlu0 %v6537, 96
      %v6620 = vpop.permute.xlu0 %6619
      %6621 = vrot.lane.b32.xlu0 %v6538, 96
      %v6622 = vpop.permute.xlu0 %6621
      %6623 = vrot.lane.b32.xlu0 %v6539, 96
      %v6624 = vpop.permute.xlu0 %6623
      %6625 = vrot.lane.b32.xlu0 %v6540, 96
      %v6626 = vpop.permute.xlu0 %6625
      %6627 = vrot.lane.b32.xlu0 %v6541, 96
      %v6628 = vpop.permute.xlu0 %6627
      %6629 = vrot.lane.b32.xlu0 %v6542, 96
      %v6630 = vpop.permute.xlu0 %6629
      %6631 = vrot.lane.b32.xlu0 %v6543, 96
      %v6632 = vpop.permute.xlu0 %6631
      %6633 = vrot.lane.b32.xlu0 %v6544, 96
      %v6634 = vpop.permute.xlu0 %6633
      %6635 = vrot.lane.b32.xlu0 %v6545, 96
      %v6636 = vpop.permute.xlu0 %6635
      %6637 = vrot.lane.b32.xlu0 %v6546, 96
      %v6638 = vpop.permute.xlu0 %6637
      %6639 = vrot.lane.b32.xlu0 %v6547, 96
      %v6640 = vpop.permute.xlu0 %6639
      %6641 = vrot.lane.b32.xlu0 %v6548, 96
      %v6642 = vpop.permute.xlu0 %6641
      %6643 = vrot.lane.b32.xlu0 %v6549, 96
      %v6644 = vpop.permute.xlu0 %6643
      %6645 = vrot.lane.b32.xlu0 %v6550, 96
      %v6646 = vpop.permute.xlu0 %6645
      %v6679 = vadd.f32 %v6359, %v6584
      %v6680 = vadd.f32 %v6360, %v6586
      %v6681 = vadd.f32 %v6361, %v6588
      %v6682 = vadd.f32 %v6362, %v6590
      %v6683 = vadd.f32 %v6363, %v6592
      %v6684 = vadd.f32 %v6364, %v6594
      %v6685 = vadd.f32 %v6365, %v6596
      %v6686 = vadd.f32 %v6366, %v6598
      %v6687 = vadd.f32 %v6367, %v6600
      %v6688 = vadd.f32 %v6368, %v6602
      %v6689 = vadd.f32 %v6369, %v6604
      %v6690 = vadd.f32 %v6370, %v6606
      %v6691 = vadd.f32 %v6371, %v6608
      %v6692 = vadd.f32 %v6372, %v6610
      %v6693 = vadd.f32 %v6373, %v6612
      %v6694 = vadd.f32 %v6374, %v6614
      %v6695 = vadd.f32 %v6375, %v6616
      %v6696 = vadd.f32 %v6376, %v6618
      %v6697 = vadd.f32 %v6377, %v6620
      %v6698 = vadd.f32 %v6378, %v6622
      %v6699 = vadd.f32 %v6379, %v6624
      %v6700 = vadd.f32 %v6380, %v6626
      %v6701 = vadd.f32 %v6381, %v6628
      %v6702 = vadd.f32 %v6382, %v6630
      %v6703 = vadd.f32 %v6383, %v6632
      %v6704 = vadd.f32 %v6384, %v6634
      %v6705 = vadd.f32 %v6385, %v6636
      %v6706 = vadd.f32 %v6386, %v6638
      %v6707 = vadd.f32 %v6387, %v6640
      %v6708 = vadd.f32 %v6388, %v6642
      %v6709 = vadd.f32 %v6389, %v6644
      %v6710 = vadd.f32 %v6390, %v6646
      %6711 = vset.pattern.permute.xlu0 1
      %6712 = vperm.xlu0 %6711, %v4836
      %v6713 = vpop.permute.xlu0 %6712
      %6715 = vset.pattern.permute.xlu0 1
      %6716 = vperm.xlu0 %6715, %v4837
      %v6717 = vpop.permute.xlu0 %6716
      %6719 = vset.pattern.permute.xlu0 1
      %6720 = vperm.xlu0 %6719, %v4838
      %v6721 = vpop.permute.xlu0 %6720
      %6723 = vset.pattern.permute.xlu0 1
      %6724 = vperm.xlu0 %6723, %v4839
      %v6725 = vpop.permute.xlu0 %6724
      %6727 = vset.pattern.permute.xlu0 1
      %6728 = vperm.xlu0 %6727, %v4840
      %v6729 = vpop.permute.xlu0 %6728
      %6731 = vset.pattern.permute.xlu0 1
      %6732 = vperm.xlu0 %6731, %v4841
      %v6733 = vpop.permute.xlu0 %6732
      %6735 = vset.pattern.permute.xlu0 1
      %6736 = vperm.xlu0 %6735, %v4842
      %v6737 = vpop.permute.xlu0 %6736
      %6739 = vset.pattern.permute.xlu0 1
      %6740 = vperm.xlu0 %6739, %v4843
      %v6741 = vpop.permute.xlu0 %6740
      %6743 = vset.pattern.permute.xlu0 1
      %6744 = vperm.xlu0 %6743, %v4844
      %v6745 = vpop.permute.xlu0 %6744
      %6747 = vset.pattern.permute.xlu0 1
      %6748 = vperm.xlu0 %6747, %v4845
      %v6749 = vpop.permute.xlu0 %6748
      %6751 = vset.pattern.permute.xlu0 1
      %6752 = vperm.xlu0 %6751, %v4846
      %v6753 = vpop.permute.xlu0 %6752
      %6755 = vset.pattern.permute.xlu0 1
      %6756 = vperm.xlu0 %6755, %v4847
      %v6757 = vpop.permute.xlu0 %6756
      %6759 = vset.pattern.permute.xlu0 1
      %6760 = vperm.xlu0 %6759, %v4848
      %v6761 = vpop.permute.xlu0 %6760
      %6763 = vset.pattern.permute.xlu0 1
      %6764 = vperm.xlu0 %6763, %v4849
      %v6765 = vpop.permute.xlu0 %6764
      %6767 = vset.pattern.permute.xlu0 1
      %6768 = vperm.xlu0 %6767, %v4850
      %v6769 = vpop.permute.xlu0 %6768
      %6771 = vset.pattern.permute.xlu0 1
      %6772 = vperm.xlu0 %6771, %v4851
      %v6773 = vpop.permute.xlu0 %6772
      %6775 = vset.pattern.permute.xlu0 1
      %6776 = vperm.xlu0 %6775, %v4852
      %v6777 = vpop.permute.xlu0 %6776
      %6779 = vset.pattern.permute.xlu0 1
      %6780 = vperm.xlu0 %6779, %v4853
      %v6781 = vpop.permute.xlu0 %6780
      %6783 = vset.pattern.permute.xlu0 1
      %6784 = vperm.xlu0 %6783, %v4854
      %v6785 = vpop.permute.xlu0 %6784
      %6787 = vset.pattern.permute.xlu0 1
      %6788 = vperm.xlu0 %6787, %v4855
      %v6789 = vpop.permute.xlu0 %6788
      %6791 = vset.pattern.permute.xlu0 1
      %6792 = vperm.xlu0 %6791, %v4856
      %v6793 = vpop.permute.xlu0 %6792
      %6795 = vset.pattern.permute.xlu0 1
      %6796 = vperm.xlu0 %6795, %v4857
      %v6797 = vpop.permute.xlu0 %6796
      %6799 = vset.pattern.permute.xlu0 1
      %6800 = vperm.xlu0 %6799, %v4858
      %v6801 = vpop.permute.xlu0 %6800
      %6803 = vset.pattern.permute.xlu0 1
      %6804 = vperm.xlu0 %6803, %v4859
      %v6805 = vpop.permute.xlu0 %6804
      %6807 = vset.pattern.permute.xlu0 1
      %6808 = vperm.xlu0 %6807, %v4860
      %v6809 = vpop.permute.xlu0 %6808
      %6811 = vset.pattern.permute.xlu0 1
      %6812 = vperm.xlu0 %6811, %v4861
      %v6813 = vpop.permute.xlu0 %6812
      %6815 = vset.pattern.permute.xlu0 1
      %6816 = vperm.xlu0 %6815, %v4862
      %v6817 = vpop.permute.xlu0 %6816
      %6819 = vset.pattern.permute.xlu0 1
      %6820 = vperm.xlu0 %6819, %v4863
      %v6821 = vpop.permute.xlu0 %6820
      %6823 = vset.pattern.permute.xlu0 1
      %6824 = vperm.xlu0 %6823, %v4864
      %v6825 = vpop.permute.xlu0 %6824
      %6827 = vset.pattern.permute.xlu0 1
      %6828 = vperm.xlu0 %6827, %v4865
      %v6829 = vpop.permute.xlu0 %6828
      %6831 = vset.pattern.permute.xlu0 1
      %6832 = vperm.xlu0 %6831, %v4866
      %v6833 = vpop.permute.xlu0 %6832
      %6835 = vset.pattern.permute.xlu0 1
      %6836 = vperm.xlu0 %6835, %v4867
      %v6837 = vpop.permute.xlu0 %6836
      %v6839 = vmul.f32 %v6152, %v6713
      %v6840 = vmul.f32 %v6154, %v6717
      %v6841 = vmul.f32 %v6157, %v6721
      %v6842 = vmul.f32 %v6159, %v6725
      %v6843 = vmul.f32 %v6162, %v6729
      %v6844 = vmul.f32 %v6164, %v6733
      %v6845 = vmul.f32 %v6167, %v6737
      %v6846 = vmul.f32 %v6169, %v6741
      %v6847 = vmul.f32 %v6172, %v6745
      %v6848 = vmul.f32 %v6174, %v6749
      %v6849 = vmul.f32 %v6177, %v6753
      %v6850 = vmul.f32 %v6179, %v6757
      %v6851 = vmul.f32 %v6182, %v6761
      %v6852 = vmul.f32 %v6184, %v6765
      %v6853 = vmul.f32 %v6187, %v6769
      %v6854 = vmul.f32 %v6189, %v6773
      %v6855 = vmul.f32 %v6192, %v6777
      %v6856 = vmul.f32 %v6194, %v6781
      %v6857 = vmul.f32 %v6197, %v6785
      %v6858 = vmul.f32 %v6199, %v6789
      %v6859 = vmul.f32 %v6202, %v6793
      %v6860 = vmul.f32 %v6204, %v6797
      %v6861 = vmul.f32 %v6207, %v6801
      %v6862 = vmul.f32 %v6209, %v6805
      %v6863 = vmul.f32 %v6212, %v6809
      %v6864 = vmul.f32 %v6214, %v6813
      %v6865 = vmul.f32 %v6217, %v6817
      %v6866 = vmul.f32 %v6219, %v6821
      %v6867 = vmul.f32 %v6222, %v6825
      %v6868 = vmul.f32 %v6224, %v6829
      %v6869 = vmul.f32 %v6227, %v6833
      %v6870 = vmul.f32 %v6229, %v6837
      %6903 = vrot.lane.b32.xlu0 %v6839, 64
      %v6904 = vpop.permute.xlu0 %6903
      %6905 = vrot.lane.b32.xlu0 %v6840, 64
      %v6906 = vpop.permute.xlu0 %6905
      %6907 = vrot.lane.b32.xlu0 %v6841, 64
      %v6908 = vpop.permute.xlu0 %6907
      %6909 = vrot.lane.b32.xlu0 %v6842, 64
      %v6910 = vpop.permute.xlu0 %6909
      %6911 = vrot.lane.b32.xlu0 %v6843, 64
      %v6912 = vpop.permute.xlu0 %6911
      %6913 = vrot.lane.b32.xlu0 %v6844, 64
      %v6914 = vpop.permute.xlu0 %6913
      %6915 = vrot.lane.b32.xlu0 %v6845, 64
      %v6916 = vpop.permute.xlu0 %6915
      %6917 = vrot.lane.b32.xlu0 %v6846, 64
      %v6918 = vpop.permute.xlu0 %6917
      %6919 = vrot.lane.b32.xlu0 %v6847, 64
      %v6920 = vpop.permute.xlu0 %6919
      %6921 = vrot.lane.b32.xlu0 %v6848, 64
      %v6922 = vpop.permute.xlu0 %6921
      %6923 = vrot.lane.b32.xlu0 %v6849, 64
      %v6924 = vpop.permute.xlu0 %6923
      %6925 = vrot.lane.b32.xlu0 %v6850, 64
      %v6926 = vpop.permute.xlu0 %6925
      %6927 = vrot.lane.b32.xlu0 %v6851, 64
      %v6928 = vpop.permute.xlu0 %6927
      %6929 = vrot.lane.b32.xlu0 %v6852, 64
      %v6930 = vpop.permute.xlu0 %6929
      %6931 = vrot.lane.b32.xlu0 %v6853, 64
      %v6932 = vpop.permute.xlu0 %6931
      %6933 = vrot.lane.b32.xlu0 %v6854, 64
      %v6934 = vpop.permute.xlu0 %6933
      %6935 = vrot.lane.b32.xlu0 %v6855, 64
      %v6936 = vpop.permute.xlu0 %6935
      %6937 = vrot.lane.b32.xlu0 %v6856, 64
      %v6938 = vpop.permute.xlu0 %6937
      %6939 = vrot.lane.b32.xlu0 %v6857, 64
      %v6940 = vpop.permute.xlu0 %6939
      %6941 = vrot.lane.b32.xlu0 %v6858, 64
      %v6942 = vpop.permute.xlu0 %6941
      %6943 = vrot.lane.b32.xlu0 %v6859, 64
      %v6944 = vpop.permute.xlu0 %6943
      %6945 = vrot.lane.b32.xlu0 %v6860, 64
      %v6946 = vpop.permute.xlu0 %6945
      %6947 = vrot.lane.b32.xlu0 %v6861, 64
      %v6948 = vpop.permute.xlu0 %6947
      %6949 = vrot.lane.b32.xlu0 %v6862, 64
      %v6950 = vpop.permute.xlu0 %6949
      %6951 = vrot.lane.b32.xlu0 %v6863, 64
      %v6952 = vpop.permute.xlu0 %6951
      %6953 = vrot.lane.b32.xlu0 %v6864, 64
      %v6954 = vpop.permute.xlu0 %6953
      %6955 = vrot.lane.b32.xlu0 %v6865, 64
      %v6956 = vpop.permute.xlu0 %6955
      %6957 = vrot.lane.b32.xlu0 %v6866, 64
      %v6958 = vpop.permute.xlu0 %6957
      %6959 = vrot.lane.b32.xlu0 %v6867, 64
      %v6960 = vpop.permute.xlu0 %6959
      %6961 = vrot.lane.b32.xlu0 %v6868, 64
      %v6962 = vpop.permute.xlu0 %6961
      %6963 = vrot.lane.b32.xlu0 %v6869, 64
      %v6964 = vpop.permute.xlu0 %6963
      %6965 = vrot.lane.b32.xlu0 %v6870, 64
      %v6966 = vpop.permute.xlu0 %6965
      %v6999 = vadd.f32 %v6679, %v6904
      %v7000 = vadd.f32 %v6680, %v6906
      %v7001 = vadd.f32 %v6681, %v6908
      %v7002 = vadd.f32 %v6682, %v6910
      %v7003 = vadd.f32 %v6683, %v6912
      %v7004 = vadd.f32 %v6684, %v6914
      %v7005 = vadd.f32 %v6685, %v6916
      %v7006 = vadd.f32 %v6686, %v6918
      %v7007 = vadd.f32 %v6687, %v6920
      %v7008 = vadd.f32 %v6688, %v6922
      %v7009 = vadd.f32 %v6689, %v6924
      %v7010 = vadd.f32 %v6690, %v6926
      %v7011 = vadd.f32 %v6691, %v6928
      %v7012 = vadd.f32 %v6692, %v6930
      %v7013 = vadd.f32 %v6693, %v6932
      %v7014 = vadd.f32 %v6694, %v6934
      %v7015 = vadd.f32 %v6695, %v6936
      %v7016 = vadd.f32 %v6696, %v6938
      %v7017 = vadd.f32 %v6697, %v6940
      %v7018 = vadd.f32 %v6698, %v6942
      %v7019 = vadd.f32 %v6699, %v6944
      %v7020 = vadd.f32 %v6700, %v6946
      %v7021 = vadd.f32 %v6701, %v6948
      %v7022 = vadd.f32 %v6702, %v6950
      %v7023 = vadd.f32 %v6703, %v6952
      %v7024 = vadd.f32 %v6704, %v6954
      %v7025 = vadd.f32 %v6705, %v6956
      %v7026 = vadd.f32 %v6706, %v6958
      %v7027 = vadd.f32 %v6707, %v6960
      %v7028 = vadd.f32 %v6708, %v6962
      %v7029 = vadd.f32 %v6709, %v6964
      %v7030 = vadd.f32 %v6710, %v6966
      %7031 = vset.pattern.permute.xlu0 1
      %7032 = vperm.xlu0 %7031, %v5220
      %v7033 = vpop.permute.xlu0 %7032
      %7035 = vset.pattern.permute.xlu0 1
      %7036 = vperm.xlu0 %7035, %v5221
      %v7037 = vpop.permute.xlu0 %7036
      %7039 = vset.pattern.permute.xlu0 1
      %7040 = vperm.xlu0 %7039, %v5222
      %v7041 = vpop.permute.xlu0 %7040
      %7043 = vset.pattern.permute.xlu0 1
      %7044 = vperm.xlu0 %7043, %v5223
      %v7045 = vpop.permute.xlu0 %7044
      %7047 = vset.pattern.permute.xlu0 1
      %7048 = vperm.xlu0 %7047, %v5224
      %v7049 = vpop.permute.xlu0 %7048
      %7051 = vset.pattern.permute.xlu0 1
      %7052 = vperm.xlu0 %7051, %v5225
      %v7053 = vpop.permute.xlu0 %7052
      %7055 = vset.pattern.permute.xlu0 1
      %7056 = vperm.xlu0 %7055, %v5226
      %v7057 = vpop.permute.xlu0 %7056
      %7059 = vset.pattern.permute.xlu0 1
      %7060 = vperm.xlu0 %7059, %v5227
      %v7061 = vpop.permute.xlu0 %7060
      %7063 = vset.pattern.permute.xlu0 1
      %7064 = vperm.xlu0 %7063, %v5228
      %v7065 = vpop.permute.xlu0 %7064
      %7067 = vset.pattern.permute.xlu0 1
      %7068 = vperm.xlu0 %7067, %v5229
      %v7069 = vpop.permute.xlu0 %7068
      %7071 = vset.pattern.permute.xlu0 1
      %7072 = vperm.xlu0 %7071, %v5230
      %v7073 = vpop.permute.xlu0 %7072
      %7075 = vset.pattern.permute.xlu0 1
      %7076 = vperm.xlu0 %7075, %v5231
      %v7077 = vpop.permute.xlu0 %7076
      %7079 = vset.pattern.permute.xlu0 1
      %7080 = vperm.xlu0 %7079, %v5232
      %v7081 = vpop.permute.xlu0 %7080
      %7083 = vset.pattern.permute.xlu0 1
      %7084 = vperm.xlu0 %7083, %v5233
      %v7085 = vpop.permute.xlu0 %7084
      %7087 = vset.pattern.permute.xlu0 1
      %7088 = vperm.xlu0 %7087, %v5234
      %v7089 = vpop.permute.xlu0 %7088
      %7091 = vset.pattern.permute.xlu0 1
      %7092 = vperm.xlu0 %7091, %v5235
      %v7093 = vpop.permute.xlu0 %7092
      %7095 = vset.pattern.permute.xlu0 1
      %7096 = vperm.xlu0 %7095, %v5236
      %v7097 = vpop.permute.xlu0 %7096
      %7099 = vset.pattern.permute.xlu0 1
      %7100 = vperm.xlu0 %7099, %v5237
      %v7101 = vpop.permute.xlu0 %7100
      %7103 = vset.pattern.permute.xlu0 1
      %7104 = vperm.xlu0 %7103, %v5238
      %v7105 = vpop.permute.xlu0 %7104
      %7107 = vset.pattern.permute.xlu0 1
      %7108 = vperm.xlu0 %7107, %v5239
      %v7109 = vpop.permute.xlu0 %7108
      %7111 = vset.pattern.permute.xlu0 1
      %7112 = vperm.xlu0 %7111, %v5240
      %v7113 = vpop.permute.xlu0 %7112
      %7115 = vset.pattern.permute.xlu0 1
      %7116 = vperm.xlu0 %7115, %v5241
      %v7117 = vpop.permute.xlu0 %7116
      %7119 = vset.pattern.permute.xlu0 1
      %7120 = vperm.xlu0 %7119, %v5242
      %v7121 = vpop.permute.xlu0 %7120
      %7123 = vset.pattern.permute.xlu0 1
      %7124 = vperm.xlu0 %7123, %v5243
      %v7125 = vpop.permute.xlu0 %7124
      %7127 = vset.pattern.permute.xlu0 1
      %7128 = vperm.xlu0 %7127, %v5244
      %v7129 = vpop.permute.xlu0 %7128
      %7131 = vset.pattern.permute.xlu0 1
      %7132 = vperm.xlu0 %7131, %v5245
      %v7133 = vpop.permute.xlu0 %7132
      %7135 = vset.pattern.permute.xlu0 1
      %7136 = vperm.xlu0 %7135, %v5246
      %v7137 = vpop.permute.xlu0 %7136
      %7139 = vset.pattern.permute.xlu0 1
      %7140 = vperm.xlu0 %7139, %v5247
      %v7141 = vpop.permute.xlu0 %7140
      %7143 = vset.pattern.permute.xlu0 1
      %7144 = vperm.xlu0 %7143, %v5248
      %v7145 = vpop.permute.xlu0 %7144
      %7147 = vset.pattern.permute.xlu0 1
      %7148 = vperm.xlu0 %7147, %v5249
      %v7149 = vpop.permute.xlu0 %7148
      %7151 = vset.pattern.permute.xlu0 1
      %7152 = vperm.xlu0 %7151, %v5250
      %v7153 = vpop.permute.xlu0 %7152
      %7155 = vset.pattern.permute.xlu0 1
      %7156 = vperm.xlu0 %7155, %v5251
      %v7157 = vpop.permute.xlu0 %7156
      %v7159 = vmul.f32 %v6152, %v7033
      %v7160 = vmul.f32 %v6154, %v7037
      %v7161 = vmul.f32 %v6157, %v7041
      %v7162 = vmul.f32 %v6159, %v7045
      %v7163 = vmul.f32 %v6162, %v7049
      %v7164 = vmul.f32 %v6164, %v7053
      %v7165 = vmul.f32 %v6167, %v7057
      %v7166 = vmul.f32 %v6169, %v7061
      %v7167 = vmul.f32 %v6172, %v7065
      %v7168 = vmul.f32 %v6174, %v7069
      %v7169 = vmul.f32 %v6177, %v7073
      %v7170 = vmul.f32 %v6179, %v7077
      %v7171 = vmul.f32 %v6182, %v7081
      %v7172 = vmul.f32 %v6184, %v7085
      %v7173 = vmul.f32 %v6187, %v7089
      %v7174 = vmul.f32 %v6189, %v7093
      %v7175 = vmul.f32 %v6192, %v7097
      %v7176 = vmul.f32 %v6194, %v7101
      %v7177 = vmul.f32 %v6197, %v7105
      %v7178 = vmul.f32 %v6199, %v7109
      %v7179 = vmul.f32 %v6202, %v7113
      %v7180 = vmul.f32 %v6204, %v7117
      %v7181 = vmul.f32 %v6207, %v7121
      %v7182 = vmul.f32 %v6209, %v7125
      %v7183 = vmul.f32 %v6212, %v7129
      %v7184 = vmul.f32 %v6214, %v7133
      %v7185 = vmul.f32 %v6217, %v7137
      %v7186 = vmul.f32 %v6219, %v7141
      %v7187 = vmul.f32 %v6222, %v7145
      %v7188 = vmul.f32 %v6224, %v7149
      %v7189 = vmul.f32 %v6227, %v7153
      %v7190 = vmul.f32 %v6229, %v7157
      %7223 = vrot.lane.b32.xlu0 %v7159, 32
      %v7224 = vpop.permute.xlu0 %7223
      %7225 = vrot.lane.b32.xlu0 %v7160, 32
      %v7226 = vpop.permute.xlu0 %7225
      %7227 = vrot.lane.b32.xlu0 %v7161, 32
      %v7228 = vpop.permute.xlu0 %7227
      %7229 = vrot.lane.b32.xlu0 %v7162, 32
      %v7230 = vpop.permute.xlu0 %7229
      %7231 = vrot.lane.b32.xlu0 %v7163, 32
      %v7232 = vpop.permute.xlu0 %7231
      %7233 = vrot.lane.b32.xlu0 %v7164, 32
      %v7234 = vpop.permute.xlu0 %7233
      %7235 = vrot.lane.b32.xlu0 %v7165, 32
      %v7236 = vpop.permute.xlu0 %7235
      %7237 = vrot.lane.b32.xlu0 %v7166, 32
      %v7238 = vpop.permute.xlu0 %7237
      %7239 = vrot.lane.b32.xlu0 %v7167, 32
      %v7240 = vpop.permute.xlu0 %7239
      %7241 = vrot.lane.b32.xlu0 %v7168, 32
      %v7242 = vpop.permute.xlu0 %7241
      %7243 = vrot.lane.b32.xlu0 %v7169, 32
      %v7244 = vpop.permute.xlu0 %7243
      %7245 = vrot.lane.b32.xlu0 %v7170, 32
      %v7246 = vpop.permute.xlu0 %7245
      %7247 = vrot.lane.b32.xlu0 %v7171, 32
      %v7248 = vpop.permute.xlu0 %7247
      %7249 = vrot.lane.b32.xlu0 %v7172, 32
      %v7250 = vpop.permute.xlu0 %7249
      %7251 = vrot.lane.b32.xlu0 %v7173, 32
      %v7252 = vpop.permute.xlu0 %7251
      %7253 = vrot.lane.b32.xlu0 %v7174, 32
      %v7254 = vpop.permute.xlu0 %7253
      %7255 = vrot.lane.b32.xlu0 %v7175, 32
      %v7256 = vpop.permute.xlu0 %7255
      %7257 = vrot.lane.b32.xlu0 %v7176, 32
      %v7258 = vpop.permute.xlu0 %7257
      %7259 = vrot.lane.b32.xlu0 %v7177, 32
      %v7260 = vpop.permute.xlu0 %7259
      %7261 = vrot.lane.b32.xlu0 %v7178, 32
      %v7262 = vpop.permute.xlu0 %7261
      %7263 = vrot.lane.b32.xlu0 %v7179, 32
      %v7264 = vpop.permute.xlu0 %7263
      %7265 = vrot.lane.b32.xlu0 %v7180, 32
      %v7266 = vpop.permute.xlu0 %7265
      %7267 = vrot.lane.b32.xlu0 %v7181, 32
      %v7268 = vpop.permute.xlu0 %7267
      %7269 = vrot.lane.b32.xlu0 %v7182, 32
      %v7270 = vpop.permute.xlu0 %7269
      %7271 = vrot.lane.b32.xlu0 %v7183, 32
      %v7272 = vpop.permute.xlu0 %7271
      %7273 = vrot.lane.b32.xlu0 %v7184, 32
      %v7274 = vpop.permute.xlu0 %7273
      %7275 = vrot.lane.b32.xlu0 %v7185, 32
      %v7276 = vpop.permute.xlu0 %7275
      %7277 = vrot.lane.b32.xlu0 %v7186, 32
      %v7278 = vpop.permute.xlu0 %7277
      %7279 = vrot.lane.b32.xlu0 %v7187, 32
      %v7280 = vpop.permute.xlu0 %7279
      %7281 = vrot.lane.b32.xlu0 %v7188, 32
      %v7282 = vpop.permute.xlu0 %7281
      %7283 = vrot.lane.b32.xlu0 %v7189, 32
      %v7284 = vpop.permute.xlu0 %7283
      %7285 = vrot.lane.b32.xlu0 %v7190, 32
      %v7286 = vpop.permute.xlu0 %7285
      %v7319 = vadd.f32 %v6999, %v7224
      %v7320 = vadd.f32 %v7000, %v7226
      %v7321 = vadd.f32 %v7001, %v7228
      %v7322 = vadd.f32 %v7002, %v7230
      %v7323 = vadd.f32 %v7003, %v7232
      %v7324 = vadd.f32 %v7004, %v7234
      %v7325 = vadd.f32 %v7005, %v7236
      %v7326 = vadd.f32 %v7006, %v7238
      %v7327 = vadd.f32 %v7007, %v7240
      %v7328 = vadd.f32 %v7008, %v7242
      %v7329 = vadd.f32 %v7009, %v7244
      %v7330 = vadd.f32 %v7010, %v7246
      %v7331 = vadd.f32 %v7011, %v7248
      %v7332 = vadd.f32 %v7012, %v7250
      %v7333 = vadd.f32 %v7013, %v7252
      %v7334 = vadd.f32 %v7014, %v7254
      %v7335 = vadd.f32 %v7015, %v7256
      %v7336 = vadd.f32 %v7016, %v7258
      %v7337 = vadd.f32 %v7017, %v7260
      %v7338 = vadd.f32 %v7018, %v7262
      %v7339 = vadd.f32 %v7019, %v7264
      %v7340 = vadd.f32 %v7020, %v7266
      %v7341 = vadd.f32 %v7021, %v7268
      %v7342 = vadd.f32 %v7022, %v7270
      %v7343 = vadd.f32 %v7023, %v7272
      %v7344 = vadd.f32 %v7024, %v7274
      %v7345 = vadd.f32 %v7025, %v7276
      %v7346 = vadd.f32 %v7026, %v7278
      %v7347 = vadd.f32 %v7027, %v7280
      %v7348 = vadd.f32 %v7028, %v7282
      %v7349 = vadd.f32 %v7029, %v7284
      %v7350 = vadd.f32 %v7030, %v7286
      %7383 = vrot.lane.b32.xlu0 %v5572, 32
      %v7384 = vpop.permute.xlu0 %7383
      %7385 = vrot.lane.b32.xlu0 %v5573, 32
      %v7386 = vpop.permute.xlu0 %7385
      %7387 = vrot.lane.b32.xlu0 %v5574, 32
      %v7388 = vpop.permute.xlu0 %7387
      %7389 = vrot.lane.b32.xlu0 %v5575, 32
      %v7390 = vpop.permute.xlu0 %7389
      %7391 = vrot.lane.b32.xlu0 %v5576, 32
      %v7392 = vpop.permute.xlu0 %7391
      %7393 = vrot.lane.b32.xlu0 %v5577, 32
      %v7394 = vpop.permute.xlu0 %7393
      %7395 = vrot.lane.b32.xlu0 %v5578, 32
      %v7396 = vpop.permute.xlu0 %7395
      %7397 = vrot.lane.b32.xlu0 %v5579, 32
      %v7398 = vpop.permute.xlu0 %7397
      %7399 = vrot.lane.b32.xlu0 %v5580, 32
      %v7400 = vpop.permute.xlu0 %7399
      %7401 = vrot.lane.b32.xlu0 %v5581, 32
      %v7402 = vpop.permute.xlu0 %7401
      %7403 = vrot.lane.b32.xlu0 %v5582, 32
      %v7404 = vpop.permute.xlu0 %7403
      %7405 = vrot.lane.b32.xlu0 %v5583, 32
      %v7406 = vpop.permute.xlu0 %7405
      %7407 = vrot.lane.b32.xlu0 %v5584, 32
      %v7408 = vpop.permute.xlu0 %7407
      %7409 = vrot.lane.b32.xlu0 %v5585, 32
      %v7410 = vpop.permute.xlu0 %7409
      %7411 = vrot.lane.b32.xlu0 %v5586, 32
      %v7412 = vpop.permute.xlu0 %7411
      %7413 = vrot.lane.b32.xlu0 %v5587, 32
      %v7414 = vpop.permute.xlu0 %7413
      %7415 = vrot.lane.b32.xlu0 %v5588, 32
      %v7416 = vpop.permute.xlu0 %7415
      %7417 = vrot.lane.b32.xlu0 %v5589, 32
      %v7418 = vpop.permute.xlu0 %7417
      %7419 = vrot.lane.b32.xlu0 %v5590, 32
      %v7420 = vpop.permute.xlu0 %7419
      %7421 = vrot.lane.b32.xlu0 %v5591, 32
      %v7422 = vpop.permute.xlu0 %7421
      %7423 = vrot.lane.b32.xlu0 %v5592, 32
      %v7424 = vpop.permute.xlu0 %7423
      %7425 = vrot.lane.b32.xlu0 %v5593, 32
      %v7426 = vpop.permute.xlu0 %7425
      %7427 = vrot.lane.b32.xlu0 %v5594, 32
      %v7428 = vpop.permute.xlu0 %7427
      %7429 = vrot.lane.b32.xlu0 %v5595, 32
      %v7430 = vpop.permute.xlu0 %7429
      %7431 = vrot.lane.b32.xlu0 %v5596, 32
      %v7432 = vpop.permute.xlu0 %7431
      %7433 = vrot.lane.b32.xlu0 %v5597, 32
      %v7434 = vpop.permute.xlu0 %7433
      %7435 = vrot.lane.b32.xlu0 %v5598, 32
      %v7436 = vpop.permute.xlu0 %7435
      %7437 = vrot.lane.b32.xlu0 %v5599, 32
      %v7438 = vpop.permute.xlu0 %7437
      %7439 = vrot.lane.b32.xlu0 %v5600, 32
      %v7440 = vpop.permute.xlu0 %7439
      %7441 = vrot.lane.b32.xlu0 %v5601, 32
      %v7442 = vpop.permute.xlu0 %7441
      %7443 = vrot.lane.b32.xlu0 %v5602, 32
      %v7444 = vpop.permute.xlu0 %7443
      %7445 = vrot.lane.b32.xlu0 %v5603, 32
      %v7446 = vpop.permute.xlu0 %7445
      %7511 = vrot.lane.b32.xlu0 %v7319, 64
      %v7512 = vpop.permute.xlu0 %7511
      %7513 = vrot.lane.b32.xlu0 %v7320, 64
      %v7514 = vpop.permute.xlu0 %7513
      %7515 = vrot.lane.b32.xlu0 %v7321, 64
      %v7516 = vpop.permute.xlu0 %7515
      %7517 = vrot.lane.b32.xlu0 %v7322, 64
      %v7518 = vpop.permute.xlu0 %7517
      %7519 = vrot.lane.b32.xlu0 %v7323, 64
      %v7520 = vpop.permute.xlu0 %7519
      %7521 = vrot.lane.b32.xlu0 %v7324, 64
      %v7522 = vpop.permute.xlu0 %7521
      %7523 = vrot.lane.b32.xlu0 %v7325, 64
      %v7524 = vpop.permute.xlu0 %7523
      %7525 = vrot.lane.b32.xlu0 %v7326, 64
      %v7526 = vpop.permute.xlu0 %7525
      %7527 = vrot.lane.b32.xlu0 %v7327, 64
      %v7528 = vpop.permute.xlu0 %7527
      %7529 = vrot.lane.b32.xlu0 %v7328, 64
      %v7530 = vpop.permute.xlu0 %7529
      %7531 = vrot.lane.b32.xlu0 %v7329, 64
      %v7532 = vpop.permute.xlu0 %7531
      %7533 = vrot.lane.b32.xlu0 %v7330, 64
      %v7534 = vpop.permute.xlu0 %7533
      %7535 = vrot.lane.b32.xlu0 %v7331, 64
      %v7536 = vpop.permute.xlu0 %7535
      %7537 = vrot.lane.b32.xlu0 %v7332, 64
      %v7538 = vpop.permute.xlu0 %7537
      %7539 = vrot.lane.b32.xlu0 %v7333, 64
      %v7540 = vpop.permute.xlu0 %7539
      %7541 = vrot.lane.b32.xlu0 %v7334, 64
      %v7542 = vpop.permute.xlu0 %7541
      %7543 = vrot.lane.b32.xlu0 %v7335, 64
      %v7544 = vpop.permute.xlu0 %7543
      %7545 = vrot.lane.b32.xlu0 %v7336, 64
      %v7546 = vpop.permute.xlu0 %7545
      %7547 = vrot.lane.b32.xlu0 %v7337, 64
      %v7548 = vpop.permute.xlu0 %7547
      %7549 = vrot.lane.b32.xlu0 %v7338, 64
      %v7550 = vpop.permute.xlu0 %7549
      %7551 = vrot.lane.b32.xlu0 %v7339, 64
      %v7552 = vpop.permute.xlu0 %7551
      %7553 = vrot.lane.b32.xlu0 %v7340, 64
      %v7554 = vpop.permute.xlu0 %7553
      %7555 = vrot.lane.b32.xlu0 %v7341, 64
      %v7556 = vpop.permute.xlu0 %7555
      %7557 = vrot.lane.b32.xlu0 %v7342, 64
      %v7558 = vpop.permute.xlu0 %7557
      %7559 = vrot.lane.b32.xlu0 %v7343, 64
      %v7560 = vpop.permute.xlu0 %7559
      %7561 = vrot.lane.b32.xlu0 %v7344, 64
      %v7562 = vpop.permute.xlu0 %7561
      %7563 = vrot.lane.b32.xlu0 %v7345, 64
      %v7564 = vpop.permute.xlu0 %7563
      %7565 = vrot.lane.b32.xlu0 %v7346, 64
      %v7566 = vpop.permute.xlu0 %7565
      %7567 = vrot.lane.b32.xlu0 %v7347, 64
      %v7568 = vpop.permute.xlu0 %7567
      %7569 = vrot.lane.b32.xlu0 %v7348, 64
      %v7570 = vpop.permute.xlu0 %7569
      %7571 = vrot.lane.b32.xlu0 %v7349, 64
      %v7572 = vpop.permute.xlu0 %7571
      %7573 = vrot.lane.b32.xlu0 %v7350, 64
      %v7574 = vpop.permute.xlu0 %7573
      %vm7607 = vcmask 261120
      %v7608 = vsel %vm7607, %v3281, %v7384
      %v7609 = vsel %vm7607, %v3282, %v7386
      %v7610 = vsel %vm7607, %v3283, %v7388
      %v7611 = vsel %vm7607, %v3284, %v7390
      %v7612 = vsel %vm7607, %v3285, %v7392
      %v7613 = vsel %vm7607, %v3286, %v7394
      %v7614 = vsel %vm7607, %v3287, %v7396
      %v7615 = vsel %vm7607, %v3288, %v7398
      %v7616 = vsel %vm7607, %v3289, %v7400
      %v7617 = vsel %vm7607, %v3290, %v7402
      %v7618 = vsel %vm7607, %v3291, %v7404
      %v7619 = vsel %vm7607, %v3292, %v7406
      %v7620 = vsel %vm7607, %v3293, %v7408
      %v7621 = vsel %vm7607, %v3294, %v7410
      %v7622 = vsel %vm7607, %v3295, %v7412
      %v7623 = vsel %vm7607, %v3296, %v7414
      %v7624 = vsel %vm7607, %v3297, %v7416
      %v7625 = vsel %vm7607, %v3298, %v7418
      %v7626 = vsel %vm7607, %v3299, %v7420
      %v7627 = vsel %vm7607, %v3300, %v7422
      %v7628 = vsel %vm7607, %v3301, %v7424
      %v7629 = vsel %vm7607, %v3302, %v7426
      %v7630 = vsel %vm7607, %v3303, %v7428
      %v7631 = vsel %vm7607, %v3304, %v7430
      %v7632 = vsel %vm7607, %v3305, %v7432
      %v7633 = vsel %vm7607, %v3306, %v7434
      %v7634 = vsel %vm7607, %v3307, %v7436
      %v7635 = vsel %vm7607, %v3308, %v7438
      %v7636 = vsel %vm7607, %v3309, %v7440
      %v7637 = vsel %vm7607, %v3310, %v7442
      %v7638 = vsel %vm7607, %v3311, %v7444
      %v7639 = vsel %vm7607, %v3312, %v7446
      %vm7640 = vcmask 523264
      %v7641 = vsel %vm7640, %v7608, %v7512
      %v7642 = vsel %vm7640, %v7609, %v7514
      %v7643 = vsel %vm7640, %v7610, %v7516
      %v7644 = vsel %vm7640, %v7611, %v7518
      %v7645 = vsel %vm7640, %v7612, %v7520
      %v7646 = vsel %vm7640, %v7613, %v7522
      %v7647 = vsel %vm7640, %v7614, %v7524
      %v7648 = vsel %vm7640, %v7615, %v7526
      %v7649 = vsel %vm7640, %v7616, %v7528
      %v7650 = vsel %vm7640, %v7617, %v7530
      %v7651 = vsel %vm7640, %v7618, %v7532
      %v7652 = vsel %vm7640, %v7619, %v7534
      %v7653 = vsel %vm7640, %v7620, %v7536
      %v7654 = vsel %vm7640, %v7621, %v7538
      %v7655 = vsel %vm7640, %v7622, %v7540
      %v7656 = vsel %vm7640, %v7623, %v7542
      %v7657 = vsel %vm7640, %v7624, %v7544
      %v7658 = vsel %vm7640, %v7625, %v7546
      %v7659 = vsel %vm7640, %v7626, %v7548
      %v7660 = vsel %vm7640, %v7627, %v7550
      %v7661 = vsel %vm7640, %v7628, %v7552
      %v7662 = vsel %vm7640, %v7629, %v7554
      %v7663 = vsel %vm7640, %v7630, %v7556
      %v7664 = vsel %vm7640, %v7631, %v7558
      %v7665 = vsel %vm7640, %v7632, %v7560
      %v7666 = vsel %vm7640, %v7633, %v7562
      %v7667 = vsel %vm7640, %v7634, %v7564
      %v7668 = vsel %vm7640, %v7635, %v7566
      %v7669 = vsel %vm7640, %v7636, %v7568
      %v7670 = vsel %vm7640, %v7637, %v7570
      %v7671 = vsel %vm7640, %v7638, %v7572
      %v7672 = vsel %vm7640, %v7639, %v7574
      %v7673 = vpack.c.bf16 %v7642, %v7641
      %v7674 = vpack.c.bf16 %v7644, %v7643
      %v7675 = vpack.c.bf16 %v7646, %v7645
      %v7676 = vpack.c.bf16 %v7648, %v7647
      %v7677 = vpack.c.bf16 %v7650, %v7649
      %v7678 = vpack.c.bf16 %v7652, %v7651
      %v7679 = vpack.c.bf16 %v7654, %v7653
      %v7680 = vpack.c.bf16 %v7656, %v7655
      %v7681 = vpack.c.bf16 %v7658, %v7657
      %v7682 = vpack.c.bf16 %v7660, %v7659
      %v7683 = vpack.c.bf16 %v7662, %v7661
      %v7684 = vpack.c.bf16 %v7664, %v7663
      %v7685 = vpack.c.bf16 %v7666, %v7665
      %v7686 = vpack.c.bf16 %v7668, %v7667
      %v7687 = vpack.c.bf16 %v7670, %v7669
      %v7688 = vpack.c.bf16 %v7672, %v7671
      %v7689 = vld [vmem:[%s2] sm:$0x7]
      %7691 = vset.pattern.permute.xlu0 0
      %7692 = vperm.xlu0 %7691, %v476
      %v7693 = vpop.permute.xlu0 %7692
      %7696 = vset.pattern.permute.xlu0 0
      %7697 = vperm.xlu0 %7696, %v477
      %v7698 = vpop.permute.xlu0 %7697
      %7701 = vset.pattern.permute.xlu0 0
      %7702 = vperm.xlu0 %7701, %v478
      %v7703 = vpop.permute.xlu0 %7702
      %7706 = vset.pattern.permute.xlu0 0
      %7707 = vperm.xlu0 %7706, %v479
      %v7708 = vpop.permute.xlu0 %7707
      %7711 = vset.pattern.permute.xlu0 0
      %7712 = vperm.xlu0 %7711, %v480
      %v7713 = vpop.permute.xlu0 %7712
      %7716 = vset.pattern.permute.xlu0 0
      %7717 = vperm.xlu0 %7716, %v481
      %v7718 = vpop.permute.xlu0 %7717
      %7721 = vset.pattern.permute.xlu0 0
      %7722 = vperm.xlu0 %7721, %v482
      %v7723 = vpop.permute.xlu0 %7722
      %7726 = vset.pattern.permute.xlu0 0
      %7727 = vperm.xlu0 %7726, %v483
      %v7728 = vpop.permute.xlu0 %7727
      %7731 = vset.pattern.permute.xlu0 0
      %7732 = vperm.xlu0 %7731, %v484
      %v7733 = vpop.permute.xlu0 %7732
      %7736 = vset.pattern.permute.xlu0 0
      %7737 = vperm.xlu0 %7736, %v485
      %v7738 = vpop.permute.xlu0 %7737
      %7741 = vset.pattern.permute.xlu0 0
      %7742 = vperm.xlu0 %7741, %v486
      %v7743 = vpop.permute.xlu0 %7742
      %7746 = vset.pattern.permute.xlu0 0
      %7747 = vperm.xlu0 %7746, %v487
      %v7748 = vpop.permute.xlu0 %7747
      %7751 = vset.pattern.permute.xlu0 0
      %7752 = vperm.xlu0 %7751, %v488
      %v7753 = vpop.permute.xlu0 %7752
      %7756 = vset.pattern.permute.xlu0 0
      %7757 = vperm.xlu0 %7756, %v489
      %v7758 = vpop.permute.xlu0 %7757
      %7761 = vset.pattern.permute.xlu0 0
      %7762 = vperm.xlu0 %7761, %v490
      %v7763 = vpop.permute.xlu0 %7762
      %7766 = vset.pattern.permute.xlu0 0
      %7767 = vperm.xlu0 %7766, %v491
      %v7768 = vpop.permute.xlu0 %7767
      %7771 = vset.pattern.permute.xlu0 0
      %7772 = vperm.xlu0 %7771, %v492
      %v7773 = vpop.permute.xlu0 %7772
      %7776 = vset.pattern.permute.xlu0 0
      %7777 = vperm.xlu0 %7776, %v493
      %v7778 = vpop.permute.xlu0 %7777
      %7781 = vset.pattern.permute.xlu0 0
      %7782 = vperm.xlu0 %7781, %v494
      %v7783 = vpop.permute.xlu0 %7782
      %7786 = vset.pattern.permute.xlu0 0
      %7787 = vperm.xlu0 %7786, %v495
      %v7788 = vpop.permute.xlu0 %7787
      %7791 = vset.pattern.permute.xlu0 0
      %7792 = vperm.xlu0 %7791, %v496
      %v7793 = vpop.permute.xlu0 %7792
      %7796 = vset.pattern.permute.xlu0 0
      %7797 = vperm.xlu0 %7796, %v497
      %v7798 = vpop.permute.xlu0 %7797
      %7801 = vset.pattern.permute.xlu0 0
      %7802 = vperm.xlu0 %7801, %v498
      %v7803 = vpop.permute.xlu0 %7802
      %7806 = vset.pattern.permute.xlu0 0
      %7807 = vperm.xlu0 %7806, %v499
      %v7808 = vpop.permute.xlu0 %7807
      %7811 = vset.pattern.permute.xlu0 0
      %7812 = vperm.xlu0 %7811, %v500
      %v7813 = vpop.permute.xlu0 %7812
      %7816 = vset.pattern.permute.xlu0 0
      %7817 = vperm.xlu0 %7816, %v501
      %v7818 = vpop.permute.xlu0 %7817
      %7821 = vset.pattern.permute.xlu0 0
      %7822 = vperm.xlu0 %7821, %v502
      %v7823 = vpop.permute.xlu0 %7822
      %7826 = vset.pattern.permute.xlu0 0
      %7827 = vperm.xlu0 %7826, %v503
      %v7828 = vpop.permute.xlu0 %7827
      %7831 = vset.pattern.permute.xlu0 0
      %7832 = vperm.xlu0 %7831, %v504
      %v7833 = vpop.permute.xlu0 %7832
      %7836 = vset.pattern.permute.xlu0 0
      %7837 = vperm.xlu0 %7836, %v505
      %v7838 = vpop.permute.xlu0 %7837
      %7841 = vset.pattern.permute.xlu0 0
      %7842 = vperm.xlu0 %7841, %v506
      %v7843 = vpop.permute.xlu0 %7842
      %7846 = vset.pattern.permute.xlu0 0
      %7847 = vperm.xlu0 %7846, %v507
      %v7848 = vpop.permute.xlu0 %7847
      %v7850 = vperm.slane %v7689, 0
      %v7851 = vmul.f32 %v7693, %v7850
      %v7852 = vmul.f32 %v7698, %v7850
      %v7853 = vmul.f32 %v7703, %v7850
      %v7854 = vmul.f32 %v7708, %v7850
      %v7855 = vmul.f32 %v7713, %v7850
      %v7856 = vmul.f32 %v7718, %v7850
      %v7857 = vmul.f32 %v7723, %v7850
      %v7858 = vmul.f32 %v7728, %v7850
      %v7859 = vmul.f32 %v7733, %v7850
      %v7860 = vmul.f32 %v7738, %v7850
      %v7861 = vmul.f32 %v7743, %v7850
      %v7862 = vmul.f32 %v7748, %v7850
      %v7863 = vmul.f32 %v7753, %v7850
      %v7864 = vmul.f32 %v7758, %v7850
      %v7865 = vmul.f32 %v7763, %v7850
      %v7866 = vmul.f32 %v7768, %v7850
      %v7867 = vmul.f32 %v7773, %v7850
      %v7868 = vmul.f32 %v7778, %v7850
      %v7869 = vmul.f32 %v7783, %v7850
      %v7870 = vmul.f32 %v7788, %v7850
      %v7871 = vmul.f32 %v7793, %v7850
      %v7872 = vmul.f32 %v7798, %v7850
      %v7873 = vmul.f32 %v7803, %v7850
      %v7874 = vmul.f32 %v7808, %v7850
      %v7875 = vmul.f32 %v7813, %v7850
      %v7876 = vmul.f32 %v7818, %v7850
      %v7877 = vmul.f32 %v7823, %v7850
      %v7878 = vmul.f32 %v7828, %v7850
      %v7879 = vmul.f32 %v7833, %v7850
      %v7880 = vmul.f32 %v7838, %v7850
      %v7881 = vmul.f32 %v7843, %v7850
      %v7882 = vmul.f32 %v7848, %v7850
      %7883 = vset.pattern.permute.xlu0 1
      %7884 = vperm.xlu0 %7883, %v476
      %v7885 = vpop.permute.xlu0 %7884
      %7887 = vset.pattern.permute.xlu0 1
      %7888 = vperm.xlu0 %7887, %v477
      %v7889 = vpop.permute.xlu0 %7888
      %7891 = vset.pattern.permute.xlu0 1
      %7892 = vperm.xlu0 %7891, %v478
      %v7893 = vpop.permute.xlu0 %7892
      %7895 = vset.pattern.permute.xlu0 1
      %7896 = vperm.xlu0 %7895, %v479
      %v7897 = vpop.permute.xlu0 %7896
      %7899 = vset.pattern.permute.xlu0 1
      %7900 = vperm.xlu0 %7899, %v480
      %v7901 = vpop.permute.xlu0 %7900
      %7903 = vset.pattern.permute.xlu0 1
      %7904 = vperm.xlu0 %7903, %v481
      %v7905 = vpop.permute.xlu0 %7904
      %7907 = vset.pattern.permute.xlu0 1
      %7908 = vperm.xlu0 %7907, %v482
      %v7909 = vpop.permute.xlu0 %7908
      %7911 = vset.pattern.permute.xlu0 1
      %7912 = vperm.xlu0 %7911, %v483
      %v7913 = vpop.permute.xlu0 %7912
      %7915 = vset.pattern.permute.xlu0 1
      %7916 = vperm.xlu0 %7915, %v484
      %v7917 = vpop.permute.xlu0 %7916
      %7919 = vset.pattern.permute.xlu0 1
      %7920 = vperm.xlu0 %7919, %v485
      %v7921 = vpop.permute.xlu0 %7920
      %7923 = vset.pattern.permute.xlu0 1
      %7924 = vperm.xlu0 %7923, %v486
      %v7925 = vpop.permute.xlu0 %7924
      %7927 = vset.pattern.permute.xlu0 1
      %7928 = vperm.xlu0 %7927, %v487
      %v7929 = vpop.permute.xlu0 %7928
      %7931 = vset.pattern.permute.xlu0 1
      %7932 = vperm.xlu0 %7931, %v488
      %v7933 = vpop.permute.xlu0 %7932
      %7935 = vset.pattern.permute.xlu0 1
      %7936 = vperm.xlu0 %7935, %v489
      %v7937 = vpop.permute.xlu0 %7936
      %7939 = vset.pattern.permute.xlu0 1
      %7940 = vperm.xlu0 %7939, %v490
      %v7941 = vpop.permute.xlu0 %7940
      %7943 = vset.pattern.permute.xlu0 1
      %7944 = vperm.xlu0 %7943, %v491
      %v7945 = vpop.permute.xlu0 %7944
      %7947 = vset.pattern.permute.xlu0 1
      %7948 = vperm.xlu0 %7947, %v492
      %v7949 = vpop.permute.xlu0 %7948
      %7951 = vset.pattern.permute.xlu0 1
      %7952 = vperm.xlu0 %7951, %v493
      %v7953 = vpop.permute.xlu0 %7952
      %7955 = vset.pattern.permute.xlu0 1
      %7956 = vperm.xlu0 %7955, %v494
      %v7957 = vpop.permute.xlu0 %7956
      %7959 = vset.pattern.permute.xlu0 1
      %7960 = vperm.xlu0 %7959, %v495
      %v7961 = vpop.permute.xlu0 %7960
      %7963 = vset.pattern.permute.xlu0 1
      %7964 = vperm.xlu0 %7963, %v496
      %v7965 = vpop.permute.xlu0 %7964
      %7967 = vset.pattern.permute.xlu0 1
      %7968 = vperm.xlu0 %7967, %v497
      %v7969 = vpop.permute.xlu0 %7968
      %7971 = vset.pattern.permute.xlu0 1
      %7972 = vperm.xlu0 %7971, %v498
      %v7973 = vpop.permute.xlu0 %7972
      %7975 = vset.pattern.permute.xlu0 1
      %7976 = vperm.xlu0 %7975, %v499
      %v7977 = vpop.permute.xlu0 %7976
      %7979 = vset.pattern.permute.xlu0 1
      %7980 = vperm.xlu0 %7979, %v500
      %v7981 = vpop.permute.xlu0 %7980
      %7983 = vset.pattern.permute.xlu0 1
      %7984 = vperm.xlu0 %7983, %v501
      %v7985 = vpop.permute.xlu0 %7984
      %7987 = vset.pattern.permute.xlu0 1
      %7988 = vperm.xlu0 %7987, %v502
      %v7989 = vpop.permute.xlu0 %7988
      %7991 = vset.pattern.permute.xlu0 1
      %7992 = vperm.xlu0 %7991, %v503
      %v7993 = vpop.permute.xlu0 %7992
      %7995 = vset.pattern.permute.xlu0 1
      %7996 = vperm.xlu0 %7995, %v504
      %v7997 = vpop.permute.xlu0 %7996
      %7999 = vset.pattern.permute.xlu0 1
      %8000 = vperm.xlu0 %7999, %v505
      %v8001 = vpop.permute.xlu0 %8000
      %8003 = vset.pattern.permute.xlu0 1
      %8004 = vperm.xlu0 %8003, %v506
      %v8005 = vpop.permute.xlu0 %8004
      %8007 = vset.pattern.permute.xlu0 1
      %8008 = vperm.xlu0 %8007, %v507
      %v8009 = vpop.permute.xlu0 %8008
      %v8011 = vperm.slane %v7689, 1
      %v8012 = vmul.f32 %v7885, %v8011
      %v8013 = vmul.f32 %v7889, %v8011
      %v8014 = vmul.f32 %v7893, %v8011
      %v8015 = vmul.f32 %v7897, %v8011
      %v8016 = vmul.f32 %v7901, %v8011
      %v8017 = vmul.f32 %v7905, %v8011
      %v8018 = vmul.f32 %v7909, %v8011
      %v8019 = vmul.f32 %v7913, %v8011
      %v8020 = vmul.f32 %v7917, %v8011
      %v8021 = vmul.f32 %v7921, %v8011
      %v8022 = vmul.f32 %v7925, %v8011
      %v8023 = vmul.f32 %v7929, %v8011
      %v8024 = vmul.f32 %v7933, %v8011
      %v8025 = vmul.f32 %v7937, %v8011
      %v8026 = vmul.f32 %v7941, %v8011
      %v8027 = vmul.f32 %v7945, %v8011
      %v8028 = vmul.f32 %v7949, %v8011
      %v8029 = vmul.f32 %v7953, %v8011
      %v8030 = vmul.f32 %v7957, %v8011
      %v8031 = vmul.f32 %v7961, %v8011
      %v8032 = vmul.f32 %v7965, %v8011
      %v8033 = vmul.f32 %v7969, %v8011
      %v8034 = vmul.f32 %v7973, %v8011
      %v8035 = vmul.f32 %v7977, %v8011
      %v8036 = vmul.f32 %v7981, %v8011
      %v8037 = vmul.f32 %v7985, %v8011
      %v8038 = vmul.f32 %v7989, %v8011
      %v8039 = vmul.f32 %v7993, %v8011
      %v8040 = vmul.f32 %v7997, %v8011
      %v8041 = vmul.f32 %v8001, %v8011
      %v8042 = vmul.f32 %v8005, %v8011
      %v8043 = vmul.f32 %v8009, %v8011
      %v8044 = vadd.f32 %v7851, %v8012
      %v8045 = vadd.f32 %v7852, %v8013
      %v8046 = vadd.f32 %v7853, %v8014
      %v8047 = vadd.f32 %v7854, %v8015
      %v8048 = vadd.f32 %v7855, %v8016
      %v8049 = vadd.f32 %v7856, %v8017
      %v8050 = vadd.f32 %v7857, %v8018
      %v8051 = vadd.f32 %v7858, %v8019
      %v8052 = vadd.f32 %v7859, %v8020
      %v8053 = vadd.f32 %v7860, %v8021
      %v8054 = vadd.f32 %v7861, %v8022
      %v8055 = vadd.f32 %v7862, %v8023
      %v8056 = vadd.f32 %v7863, %v8024
      %v8057 = vadd.f32 %v7864, %v8025
      %v8058 = vadd.f32 %v7865, %v8026
      %v8059 = vadd.f32 %v7866, %v8027
      %v8060 = vadd.f32 %v7867, %v8028
      %v8061 = vadd.f32 %v7868, %v8029
      %v8062 = vadd.f32 %v7869, %v8030
      %v8063 = vadd.f32 %v7870, %v8031
      %v8064 = vadd.f32 %v7871, %v8032
      %v8065 = vadd.f32 %v7872, %v8033
      %v8066 = vadd.f32 %v7873, %v8034
      %v8067 = vadd.f32 %v7874, %v8035
      %v8068 = vadd.f32 %v7875, %v8036
      %v8069 = vadd.f32 %v7876, %v8037
      %v8070 = vadd.f32 %v7877, %v8038
      %v8071 = vadd.f32 %v7878, %v8039
      %v8072 = vadd.f32 %v7879, %v8040
      %v8073 = vadd.f32 %v7880, %v8041
      %v8074 = vadd.f32 %v7881, %v8042
      %v8075 = vadd.f32 %v7882, %v8043
      %8076 = vset.pattern.permute.xlu0 2
      %8077 = vperm.xlu0 %8076, %v476
      %v8078 = vpop.permute.xlu0 %8077
      %8080 = vset.pattern.permute.xlu0 2
      %8081 = vperm.xlu0 %8080, %v477
      %v8082 = vpop.permute.xlu0 %8081
      %8084 = vset.pattern.permute.xlu0 2
      %8085 = vperm.xlu0 %8084, %v478
      %v8086 = vpop.permute.xlu0 %8085
      %8088 = vset.pattern.permute.xlu0 2
      %8089 = vperm.xlu0 %8088, %v479
      %v8090 = vpop.permute.xlu0 %8089
      %8092 = vset.pattern.permute.xlu0 2
      %8093 = vperm.xlu0 %8092, %v480
      %v8094 = vpop.permute.xlu0 %8093
      %8096 = vset.pattern.permute.xlu0 2
      %8097 = vperm.xlu0 %8096, %v481
      %v8098 = vpop.permute.xlu0 %8097
      %8100 = vset.pattern.permute.xlu0 2
      %8101 = vperm.xlu0 %8100, %v482
      %v8102 = vpop.permute.xlu0 %8101
      %8104 = vset.pattern.permute.xlu0 2
      %8105 = vperm.xlu0 %8104, %v483
      %v8106 = vpop.permute.xlu0 %8105
      %8108 = vset.pattern.permute.xlu0 2
      %8109 = vperm.xlu0 %8108, %v484
      %v8110 = vpop.permute.xlu0 %8109
      %8112 = vset.pattern.permute.xlu0 2
      %8113 = vperm.xlu0 %8112, %v485
      %v8114 = vpop.permute.xlu0 %8113
      %8116 = vset.pattern.permute.xlu0 2
      %8117 = vperm.xlu0 %8116, %v486
      %v8118 = vpop.permute.xlu0 %8117
      %8120 = vset.pattern.permute.xlu0 2
      %8121 = vperm.xlu0 %8120, %v487
      %v8122 = vpop.permute.xlu0 %8121
      %8124 = vset.pattern.permute.xlu0 2
      %8125 = vperm.xlu0 %8124, %v488
      %v8126 = vpop.permute.xlu0 %8125
      %8128 = vset.pattern.permute.xlu0 2
      %8129 = vperm.xlu0 %8128, %v489
      %v8130 = vpop.permute.xlu0 %8129
      %8132 = vset.pattern.permute.xlu0 2
      %8133 = vperm.xlu0 %8132, %v490
      %v8134 = vpop.permute.xlu0 %8133
      %8136 = vset.pattern.permute.xlu0 2
      %8137 = vperm.xlu0 %8136, %v491
      %v8138 = vpop.permute.xlu0 %8137
      %8140 = vset.pattern.permute.xlu0 2
      %8141 = vperm.xlu0 %8140, %v492
      %v8142 = vpop.permute.xlu0 %8141
      %8144 = vset.pattern.permute.xlu0 2
      %8145 = vperm.xlu0 %8144, %v493
      %v8146 = vpop.permute.xlu0 %8145
      %8148 = vset.pattern.permute.xlu0 2
      %8149 = vperm.xlu0 %8148, %v494
      %v8150 = vpop.permute.xlu0 %8149
      %8152 = vset.pattern.permute.xlu0 2
      %8153 = vperm.xlu0 %8152, %v495
      %v8154 = vpop.permute.xlu0 %8153
      %8156 = vset.pattern.permute.xlu0 2
      %8157 = vperm.xlu0 %8156, %v496
      %v8158 = vpop.permute.xlu0 %8157
      %8160 = vset.pattern.permute.xlu0 2
      %8161 = vperm.xlu0 %8160, %v497
      %v8162 = vpop.permute.xlu0 %8161
      %8164 = vset.pattern.permute.xlu0 2
      %8165 = vperm.xlu0 %8164, %v498
      %v8166 = vpop.permute.xlu0 %8165
      %8168 = vset.pattern.permute.xlu0 2
      %8169 = vperm.xlu0 %8168, %v499
      %v8170 = vpop.permute.xlu0 %8169
      %8172 = vset.pattern.permute.xlu0 2
      %8173 = vperm.xlu0 %8172, %v500
      %v8174 = vpop.permute.xlu0 %8173
      %8176 = vset.pattern.permute.xlu0 2
      %8177 = vperm.xlu0 %8176, %v501
      %v8178 = vpop.permute.xlu0 %8177
      %8180 = vset.pattern.permute.xlu0 2
      %8181 = vperm.xlu0 %8180, %v502
      %v8182 = vpop.permute.xlu0 %8181
      %8184 = vset.pattern.permute.xlu0 2
      %8185 = vperm.xlu0 %8184, %v503
      %v8186 = vpop.permute.xlu0 %8185
      %8188 = vset.pattern.permute.xlu0 2
      %8189 = vperm.xlu0 %8188, %v504
      %v8190 = vpop.permute.xlu0 %8189
      %8192 = vset.pattern.permute.xlu0 2
      %8193 = vperm.xlu0 %8192, %v505
      %v8194 = vpop.permute.xlu0 %8193
      %8196 = vset.pattern.permute.xlu0 2
      %8197 = vperm.xlu0 %8196, %v506
      %v8198 = vpop.permute.xlu0 %8197
      %8200 = vset.pattern.permute.xlu0 2
      %8201 = vperm.xlu0 %8200, %v507
      %v8202 = vpop.permute.xlu0 %8201
      %v8204 = vperm.slane %v7689, 2
      %v8205 = vmul.f32 %v8078, %v8204
      %v8206 = vmul.f32 %v8082, %v8204
      %v8207 = vmul.f32 %v8086, %v8204
      %v8208 = vmul.f32 %v8090, %v8204
      %v8209 = vmul.f32 %v8094, %v8204
      %v8210 = vmul.f32 %v8098, %v8204
      %v8211 = vmul.f32 %v8102, %v8204
      %v8212 = vmul.f32 %v8106, %v8204
      %v8213 = vmul.f32 %v8110, %v8204
      %v8214 = vmul.f32 %v8114, %v8204
      %v8215 = vmul.f32 %v8118, %v8204
      %v8216 = vmul.f32 %v8122, %v8204
      %v8217 = vmul.f32 %v8126, %v8204
      %v8218 = vmul.f32 %v8130, %v8204
      %v8219 = vmul.f32 %v8134, %v8204
      %v8220 = vmul.f32 %v8138, %v8204
      %v8221 = vmul.f32 %v8142, %v8204
      %v8222 = vmul.f32 %v8146, %v8204
      %v8223 = vmul.f32 %v8150, %v8204
      %v8224 = vmul.f32 %v8154, %v8204
      %v8225 = vmul.f32 %v8158, %v8204
      %v8226 = vmul.f32 %v8162, %v8204
      %v8227 = vmul.f32 %v8166, %v8204
      %v8228 = vmul.f32 %v8170, %v8204
      %v8229 = vmul.f32 %v8174, %v8204
      %v8230 = vmul.f32 %v8178, %v8204
      %v8231 = vmul.f32 %v8182, %v8204
      %v8232 = vmul.f32 %v8186, %v8204
      %v8233 = vmul.f32 %v8190, %v8204
      %v8234 = vmul.f32 %v8194, %v8204
      %v8235 = vmul.f32 %v8198, %v8204
      %v8236 = vmul.f32 %v8202, %v8204
      %v8237 = vadd.f32 %v8044, %v8205
      %v8238 = vadd.f32 %v8045, %v8206
      %v8239 = vadd.f32 %v8046, %v8207
      %v8240 = vadd.f32 %v8047, %v8208
      %v8241 = vadd.f32 %v8048, %v8209
      %v8242 = vadd.f32 %v8049, %v8210
      %v8243 = vadd.f32 %v8050, %v8211
      %v8244 = vadd.f32 %v8051, %v8212
      %v8245 = vadd.f32 %v8052, %v8213
      %v8246 = vadd.f32 %v8053, %v8214
      %v8247 = vadd.f32 %v8054, %v8215
      %v8248 = vadd.f32 %v8055, %v8216
      %v8249 = vadd.f32 %v8056, %v8217
      %v8250 = vadd.f32 %v8057, %v8218
      %v8251 = vadd.f32 %v8058, %v8219
      %v8252 = vadd.f32 %v8059, %v8220
      %v8253 = vadd.f32 %v8060, %v8221
      %v8254 = vadd.f32 %v8061, %v8222
      %v8255 = vadd.f32 %v8062, %v8223
      %v8256 = vadd.f32 %v8063, %v8224
      %v8257 = vadd.f32 %v8064, %v8225
      %v8258 = vadd.f32 %v8065, %v8226
      %v8259 = vadd.f32 %v8066, %v8227
      %v8260 = vadd.f32 %v8067, %v8228
      %v8261 = vadd.f32 %v8068, %v8229
      %v8262 = vadd.f32 %v8069, %v8230
      %v8263 = vadd.f32 %v8070, %v8231
      %v8264 = vadd.f32 %v8071, %v8232
      %v8265 = vadd.f32 %v8072, %v8233
      %v8266 = vadd.f32 %v8073, %v8234
      %v8267 = vadd.f32 %v8074, %v8235
      %v8268 = vadd.f32 %v8075, %v8236
      %v8269 = vld [vmem:[%s3] sm:$0x1]
      %v8271 = vperm.slane %v8269, 0
      %v8273 = vadd.f32 %v8237, %v8271
      %v8274 = vadd.f32 %v8238, %v8271
      %v8275 = vadd.f32 %v8239, %v8271
      %v8276 = vadd.f32 %v8240, %v8271
      %v8277 = vadd.f32 %v8241, %v8271
      %v8278 = vadd.f32 %v8242, %v8271
      %v8279 = vadd.f32 %v8243, %v8271
      %v8280 = vadd.f32 %v8244, %v8271
      %v8281 = vadd.f32 %v8245, %v8271
      %v8282 = vadd.f32 %v8246, %v8271
      %v8283 = vadd.f32 %v8247, %v8271
      %v8284 = vadd.f32 %v8248, %v8271
      %v8285 = vadd.f32 %v8249, %v8271
      %v8286 = vadd.f32 %v8250, %v8271
      %v8287 = vadd.f32 %v8251, %v8271
      %v8288 = vadd.f32 %v8252, %v8271
      %v8289 = vadd.f32 %v8253, %v8271
      %v8290 = vadd.f32 %v8254, %v8271
      %v8291 = vadd.f32 %v8255, %v8271
      %v8292 = vadd.f32 %v8256, %v8271
      %v8293 = vadd.f32 %v8257, %v8271
      %v8294 = vadd.f32 %v8258, %v8271
      %v8295 = vadd.f32 %v8259, %v8271
      %v8296 = vadd.f32 %v8260, %v8271
      %v8297 = vadd.f32 %v8261, %v8271
      %v8298 = vadd.f32 %v8262, %v8271
      %v8299 = vadd.f32 %v8263, %v8271
      %v8300 = vadd.f32 %v8264, %v8271
      %v8301 = vadd.f32 %v8265, %v8271
      %v8302 = vadd.f32 %v8266, %v8271
      %v8303 = vadd.f32 %v8267, %v8271
      %v8304 = vadd.f32 %v8268, %v8271
      %v8305 = vld [vmem:[%s4] sm:$0xf]
      %v8306 = vld [vmem:[%s4 + $0x4] sm:$0xf]
      %v8307 = vld [vmem:[%s4 + $0x8] sm:$0xf]
      %v8308 = vld [vmem:[%s4 + $0xc] sm:$0xf]
      %v8309 = vld [vmem:[%s4 + $0x10] sm:$0xf]
      %v8310 = vld [vmem:[%s4 + $0x14] sm:$0xf]
      %v8311 = vld [vmem:[%s4 + $0x18] sm:$0xf]
      %v8312 = vld [vmem:[%s4 + $0x1c] sm:$0xf]
      %v8313 = vld [vmem:[%s4 + $0x20] sm:$0xf]
      %v8314 = vld [vmem:[%s4 + $0x24] sm:$0xf]
      %v8315 = vld [vmem:[%s4 + $0x28] sm:$0xf]
      %v8316 = vld [vmem:[%s4 + $0x2c] sm:$0xf]
      %v8329 = vunpack.c.l.b16 %v8305
      %v8330 = vunpack.c.l.b16 %v8306
      %v8331 = vunpack.c.l.b16 %v8307
      %v8332 = vunpack.c.l.b16 %v8308
      %v8333 = vunpack.c.l.b16 %v8309
      %v8334 = vunpack.c.l.b16 %v8310
      %v8335 = vunpack.c.l.b16 %v8311
      %v8336 = vunpack.c.l.b16 %v8312
      %v8337 = vunpack.c.l.b16 %v8313
      %v8338 = vunpack.c.l.b16 %v8314
      %v8339 = vunpack.c.l.b16 %v8315
      %v8340 = vunpack.c.l.b16 %v8316
      %v8341 = vpack.c.b16 %v8330, %v8329
      %v8342 = vpack.c.b16 %v8332, %v8331
      %v8343 = vpack.c.b16 %v8334, %v8333
      %v8344 = vpack.c.b16 %v8336, %v8335
      %v8345 = vpack.c.b16 %v8338, %v8337
      %v8346 = vpack.c.b16 %v8340, %v8339
      %vm8353 = vcmask 785408
      %v8355 = vsel %vm8353, %v7673, 0
      %v8358 = vsel %vm8353, %v7674, 0
      %v8361 = vsel %vm8353, %v7675, 0
      %v8364 = vsel %vm8353, %v7676, 0
      %v8367 = vsel %vm8353, %v7677, 0
      %v8370 = vsel %vm8353, %v7678, 0
      %v8373 = vsel %vm8353, %v7679, 0
      %v8376 = vsel %vm8353, %v7680, 0
      %v8379 = vsel %vm8353, %v7681, 0
      %v8382 = vsel %vm8353, %v7682, 0
      %v8385 = vsel %vm8353, %v7683, 0
      %v8388 = vsel %vm8353, %v7684, 0
      %v8391 = vsel %vm8353, %v7685, 0
      %v8394 = vsel %vm8353, %v7686, 0
      %v8397 = vsel %vm8353, %v7687, 0
      %v8400 = vsel %vm8353, %v7688, 0
      %8402 = vmatpush.bf16.msra.mxu0 0
      %8403 = vmatpush.bf16.msra.mxu0 0
      %8404 = vmatpush.bf16.msra.mxu0 %v8346
      %8405 = vmatpush.bf16.msra.mxu0 %v8345
      %8406 = vmatpush.bf16.msra.mxu0 %v8344
      %8407 = vmatpush.bf16.msra.mxu0 %v8343
      %8408 = vmatpush.bf16.msra.mxu0 %v8342
      %8409 = vmatpush.bf16.msra.mxu0 %v8341
      %8410 = vmatmul.bf16.gmra.mxu0 %v8355
      %v8411 = vpop.f32.mrf.mxu0
      %v8412 = vadd.f32 0.0, %v8411
      %v8413 = vpop.f32.mrf.mxu0
      %v8414 = vadd.f32 0.0, %v8413
      %8415 = vmatmul.bf16.gmra.mxu0 %v8358
      %v8416 = vpop.f32.mrf.mxu0
      %v8417 = vadd.f32 0.0, %v8416
      %v8418 = vpop.f32.mrf.mxu0
      %v8419 = vadd.f32 0.0, %v8418
      %8420 = vmatmul.bf16.gmra.mxu0 %v8361
      %v8421 = vpop.f32.mrf.mxu0
      %v8422 = vadd.f32 0.0, %v8421
      %v8423 = vpop.f32.mrf.mxu0
      %v8424 = vadd.f32 0.0, %v8423
      %8425 = vmatmul.bf16.gmra.mxu0 %v8364
      %v8426 = vpop.f32.mrf.mxu0
      %v8427 = vadd.f32 0.0, %v8426
      %v8428 = vpop.f32.mrf.mxu0
      %v8429 = vadd.f32 0.0, %v8428
      %8430 = vmatmul.bf16.gmra.mxu0 %v8367
      %v8431 = vpop.f32.mrf.mxu0
      %v8432 = vadd.f32 0.0, %v8431
      %v8433 = vpop.f32.mrf.mxu0
      %v8434 = vadd.f32 0.0, %v8433
      %8435 = vmatmul.bf16.gmra.mxu0 %v8370
      %v8436 = vpop.f32.mrf.mxu0
      %v8437 = vadd.f32 0.0, %v8436
      %v8438 = vpop.f32.mrf.mxu0
      %v8439 = vadd.f32 0.0, %v8438
      %8440 = vmatmul.bf16.gmra.mxu0 %v8373
      %v8441 = vpop.f32.mrf.mxu0
      %v8442 = vadd.f32 0.0, %v8441
      %v8443 = vpop.f32.mrf.mxu0
      %v8444 = vadd.f32 0.0, %v8443
      %8445 = vmatmul.bf16.gmra.mxu0 %v8376
      %v8446 = vpop.f32.mrf.mxu0
      %v8447 = vadd.f32 0.0, %v8446
      %v8448 = vpop.f32.mrf.mxu0
      %v8449 = vadd.f32 0.0, %v8448
      %8450 = vmatmul.bf16.gmra.mxu0 %v8379
      %v8451 = vpop.f32.mrf.mxu0
      %v8452 = vadd.f32 0.0, %v8451
      %v8453 = vpop.f32.mrf.mxu0
      %v8454 = vadd.f32 0.0, %v8453
      %8455 = vmatmul.bf16.gmra.mxu0 %v8382
      %v8456 = vpop.f32.mrf.mxu0
      %v8457 = vadd.f32 0.0, %v8456
      %v8458 = vpop.f32.mrf.mxu0
      %v8459 = vadd.f32 0.0, %v8458
      %8460 = vmatmul.bf16.gmra.mxu0 %v8385
      %v8461 = vpop.f32.mrf.mxu0
      %v8462 = vadd.f32 0.0, %v8461
      %v8463 = vpop.f32.mrf.mxu0
      %v8464 = vadd.f32 0.0, %v8463
      %8465 = vmatmul.bf16.gmra.mxu0 %v8388
      %v8466 = vpop.f32.mrf.mxu0
      %v8467 = vadd.f32 0.0, %v8466
      %v8468 = vpop.f32.mrf.mxu0
      %v8469 = vadd.f32 0.0, %v8468
      %8470 = vmatmul.bf16.gmra.mxu0 %v8391
      %v8471 = vpop.f32.mrf.mxu0
      %v8472 = vadd.f32 0.0, %v8471
      %v8473 = vpop.f32.mrf.mxu0
      %v8474 = vadd.f32 0.0, %v8473
      %8475 = vmatmul.bf16.gmra.mxu0 %v8394
      %v8476 = vpop.f32.mrf.mxu0
      %v8477 = vadd.f32 0.0, %v8476
      %v8478 = vpop.f32.mrf.mxu0
      %v8479 = vadd.f32 0.0, %v8478
      %8480 = vmatmul.bf16.gmra.mxu0 %v8397
      %v8481 = vpop.f32.mrf.mxu0
      %v8482 = vadd.f32 0.0, %v8481
      %v8483 = vpop.f32.mrf.mxu0
      %v8484 = vadd.f32 0.0, %v8483
      %8485 = vmatmul.bf16.gmra.mxu0 %v8400
      %v8486 = vpop.f32.mrf.mxu0
      %v8487 = vadd.f32 0.0, %v8486
      %v8488 = vpop.f32.mrf.mxu0
      %v8489 = vadd.f32 0.0, %v8488
      %8490 = vdwg.mxu0
      %v8491 = vadd.f32 %v8273, %v8412
      %v8492 = vadd.f32 %v8274, %v8414
      %v8493 = vadd.f32 %v8275, %v8417
      %v8494 = vadd.f32 %v8276, %v8419
      %v8495 = vadd.f32 %v8277, %v8422
      %v8496 = vadd.f32 %v8278, %v8424
      %v8497 = vadd.f32 %v8279, %v8427
      %v8498 = vadd.f32 %v8280, %v8429
      %v8499 = vadd.f32 %v8281, %v8432
      %v8500 = vadd.f32 %v8282, %v8434
      %v8501 = vadd.f32 %v8283, %v8437
      %v8502 = vadd.f32 %v8284, %v8439
      %v8503 = vadd.f32 %v8285, %v8442
      %v8504 = vadd.f32 %v8286, %v8444
      %v8505 = vadd.f32 %v8287, %v8447
      %v8506 = vadd.f32 %v8288, %v8449
      %v8507 = vadd.f32 %v8289, %v8452
      %v8508 = vadd.f32 %v8290, %v8454
      %v8509 = vadd.f32 %v8291, %v8457
      %v8510 = vadd.f32 %v8292, %v8459
      %v8511 = vadd.f32 %v8293, %v8462
      %v8512 = vadd.f32 %v8294, %v8464
      %v8513 = vadd.f32 %v8295, %v8467
      %v8514 = vadd.f32 %v8296, %v8469
      %v8515 = vadd.f32 %v8297, %v8472
      %v8516 = vadd.f32 %v8298, %v8474
      %v8517 = vadd.f32 %v8299, %v8477
      %v8518 = vadd.f32 %v8300, %v8479
      %v8519 = vadd.f32 %v8301, %v8482
      %v8520 = vadd.f32 %v8302, %v8484
      %v8521 = vadd.f32 %v8303, %v8487
      %v8522 = vadd.f32 %v8304, %v8489
      %v8523 = vld [vmem:[%s5] sm:$0x1]
      %v8525 = vperm.slane %v8523, 0
      %v8527 = vadd.f32 %v8491, %v8525
      %v8528 = vadd.f32 %v8492, %v8525
      %v8529 = vadd.f32 %v8493, %v8525
      %v8530 = vadd.f32 %v8494, %v8525
      %v8531 = vadd.f32 %v8495, %v8525
      %v8532 = vadd.f32 %v8496, %v8525
      %v8533 = vadd.f32 %v8497, %v8525
      %v8534 = vadd.f32 %v8498, %v8525
      %v8535 = vadd.f32 %v8499, %v8525
      %v8536 = vadd.f32 %v8500, %v8525
      %v8537 = vadd.f32 %v8501, %v8525
      %v8538 = vadd.f32 %v8502, %v8525
      %v8539 = vadd.f32 %v8503, %v8525
      %v8540 = vadd.f32 %v8504, %v8525
      %v8541 = vadd.f32 %v8505, %v8525
      %v8542 = vadd.f32 %v8506, %v8525
      %v8543 = vadd.f32 %v8507, %v8525
      %v8544 = vadd.f32 %v8508, %v8525
      %v8545 = vadd.f32 %v8509, %v8525
      %v8546 = vadd.f32 %v8510, %v8525
      %v8547 = vadd.f32 %v8511, %v8525
      %v8548 = vadd.f32 %v8512, %v8525
      %v8549 = vadd.f32 %v8513, %v8525
      %v8550 = vadd.f32 %v8514, %v8525
      %v8551 = vadd.f32 %v8515, %v8525
      %v8552 = vadd.f32 %v8516, %v8525
      %v8553 = vadd.f32 %v8517, %v8525
      %v8554 = vadd.f32 %v8518, %v8525
      %v8555 = vadd.f32 %v8519, %v8525
      %v8556 = vadd.f32 %v8520, %v8525
      %v8557 = vadd.f32 %v8521, %v8525
      %v8558 = vadd.f32 %v8522, %v8525
      %v8559 = vmax.f32 %v8527, 0.0
      %v8560 = vmax.f32 %v8528, 0.0
      %v8561 = vmax.f32 %v8529, 0.0
      %v8562 = vmax.f32 %v8530, 0.0
      %v8563 = vmax.f32 %v8531, 0.0
      %v8564 = vmax.f32 %v8532, 0.0
      %v8565 = vmax.f32 %v8533, 0.0
      %v8566 = vmax.f32 %v8534, 0.0
      %v8567 = vmax.f32 %v8535, 0.0
      %v8568 = vmax.f32 %v8536, 0.0
      %v8569 = vmax.f32 %v8537, 0.0
      %v8570 = vmax.f32 %v8538, 0.0
      %v8571 = vmax.f32 %v8539, 0.0
      %v8572 = vmax.f32 %v8540, 0.0
      %v8573 = vmax.f32 %v8541, 0.0
      %v8574 = vmax.f32 %v8542, 0.0
      %v8575 = vmax.f32 %v8543, 0.0
      %v8576 = vmax.f32 %v8544, 0.0
      %v8577 = vmax.f32 %v8545, 0.0
      %v8578 = vmax.f32 %v8546, 0.0
      %v8579 = vmax.f32 %v8547, 0.0
      %v8580 = vmax.f32 %v8548, 0.0
      %v8581 = vmax.f32 %v8549, 0.0
      %v8582 = vmax.f32 %v8550, 0.0
      %v8583 = vmax.f32 %v8551, 0.0
      %v8584 = vmax.f32 %v8552, 0.0
      %v8585 = vmax.f32 %v8553, 0.0
      %v8586 = vmax.f32 %v8554, 0.0
      %v8587 = vmax.f32 %v8555, 0.0
      %v8588 = vmax.f32 %v8556, 0.0
      %v8589 = vmax.f32 %v8557, 0.0
      %v8590 = vmax.f32 %v8558, 0.0
      %v8591 = vpack.c.bf16 %v8560, %v8559
      %v8592 = vpack.c.bf16 %v8562, %v8561
      %v8593 = vpack.c.bf16 %v8564, %v8563
      %v8594 = vpack.c.bf16 %v8566, %v8565
      %v8595 = vpack.c.bf16 %v8568, %v8567
      %v8596 = vpack.c.bf16 %v8570, %v8569
      %v8597 = vpack.c.bf16 %v8572, %v8571
      %v8598 = vpack.c.bf16 %v8574, %v8573
      %v8599 = vpack.c.bf16 %v8576, %v8575
      %v8600 = vpack.c.bf16 %v8578, %v8577
      %v8601 = vpack.c.bf16 %v8580, %v8579
      %v8602 = vpack.c.bf16 %v8582, %v8581
      %v8603 = vpack.c.bf16 %v8584, %v8583
      %v8604 = vpack.c.bf16 %v8586, %v8585
      %v8605 = vpack.c.bf16 %v8588, %v8587
      %v8606 = vpack.c.bf16 %v8590, %v8589
      %v8607 = vld [vmem:[%s6] sm:$0xf]
      %v8608 = vld [vmem:[%s6 + $0x4] sm:$0xf]
      %v8609 = vld [vmem:[%s6 + $0x8] sm:$0xf]
      %v8610 = vld [vmem:[%s6 + $0xc] sm:$0xf]
      %v8611 = vld [vmem:[%s7] sm:$0x1]
      %v8613 = vperm.slane %v8611, 0
      %v8619 = vunpack.c.l.b16 %v8607
      %v8620 = vunpack.c.l.b16 %v8608
      %v8621 = vunpack.c.l.b16 %v8609
      %v8622 = vunpack.c.l.b16 %v8610
      %v8623 = vpack.c.b16 %v8620, %v8619
      %v8624 = vpack.c.b16 %v8622, %v8621
      %v8628 = vsel %vm7607, %v8591, 0
      %v8631 = vsel %vm7607, %v8592, 0
      %v8634 = vsel %vm7607, %v8593, 0
      %v8637 = vsel %vm7607, %v8594, 0
      %v8640 = vsel %vm7607, %v8595, 0
      %v8643 = vsel %vm7607, %v8596, 0
      %v8646 = vsel %vm7607, %v8597, 0
      %v8649 = vsel %vm7607, %v8598, 0
      %v8652 = vsel %vm7607, %v8599, 0
      %v8655 = vsel %vm7607, %v8600, 0
      %v8658 = vsel %vm7607, %v8601, 0
      %v8661 = vsel %vm7607, %v8602, 0
      %v8664 = vsel %vm7607, %v8603, 0
      %v8667 = vsel %vm7607, %v8604, 0
      %v8670 = vsel %vm7607, %v8605, 0
      %v8673 = vsel %vm7607, %v8606, 0
      %8675 = vmatpush.bf16.msra.mxu0 0
      %8676 = vmatpush.bf16.msra.mxu0 0
      %8677 = vmatpush.bf16.msra.mxu0 0
      %8678 = vmatpush.bf16.msra.mxu0 0
      %8679 = vmatpush.bf16.msra.mxu0 0
      %8680 = vmatpush.bf16.msra.mxu0 0
      %8681 = vmatpush.bf16.msra.mxu0 %v8624
      %8682 = vmatpush.bf16.msra.mxu0 %v8623
      %8683 = vmatmul.bf16.gmra.mxu0 %v8628
      %v8684 = vpop.f32.mrf.mxu0
      %v8685 = vadd.f32 %v8613, %v8684
      %v8686 = vpop.f32.mrf.mxu0
      %v8687 = vadd.f32 %v8613, %v8686
      %8688 = vmatmul.bf16.gmra.mxu0 %v8631
      %v8689 = vpop.f32.mrf.mxu0
      %v8690 = vadd.f32 %v8613, %v8689
      %v8691 = vpop.f32.mrf.mxu0
      %v8692 = vadd.f32 %v8613, %v8691
      %8693 = vmatmul.bf16.gmra.mxu0 %v8634
      %v8694 = vpop.f32.mrf.mxu0
      %v8695 = vadd.f32 %v8613, %v8694
      %v8696 = vpop.f32.mrf.mxu0
      %v8697 = vadd.f32 %v8613, %v8696
      %8698 = vmatmul.bf16.gmra.mxu0 %v8637
      %v8699 = vpop.f32.mrf.mxu0
      %v8700 = vadd.f32 %v8613, %v8699
      %v8701 = vpop.f32.mrf.mxu0
      %v8702 = vadd.f32 %v8613, %v8701
      %8703 = vmatmul.bf16.gmra.mxu0 %v8640
      %v8704 = vpop.f32.mrf.mxu0
      %v8705 = vadd.f32 %v8613, %v8704
      %v8706 = vpop.f32.mrf.mxu0
      %v8707 = vadd.f32 %v8613, %v8706
      %8708 = vmatmul.bf16.gmra.mxu0 %v8643
      %v8709 = vpop.f32.mrf.mxu0
      %v8710 = vadd.f32 %v8613, %v8709
      %v8711 = vpop.f32.mrf.mxu0
      %v8712 = vadd.f32 %v8613, %v8711
      %8713 = vmatmul.bf16.gmra.mxu0 %v8646
      %v8714 = vpop.f32.mrf.mxu0
      %v8715 = vadd.f32 %v8613, %v8714
      %v8716 = vpop.f32.mrf.mxu0
      %v8717 = vadd.f32 %v8613, %v8716
      %8718 = vmatmul.bf16.gmra.mxu0 %v8649
      %v8719 = vpop.f32.mrf.mxu0
      %v8720 = vadd.f32 %v8613, %v8719
      %v8721 = vpop.f32.mrf.mxu0
      %v8722 = vadd.f32 %v8613, %v8721
      %8723 = vmatmul.bf16.gmra.mxu0 %v8652
      %v8724 = vpop.f32.mrf.mxu0
      %v8725 = vadd.f32 %v8613, %v8724
      %v8726 = vpop.f32.mrf.mxu0
      %v8727 = vadd.f32 %v8613, %v8726
      %8728 = vmatmul.bf16.gmra.mxu0 %v8655
      %v8729 = vpop.f32.mrf.mxu0
      %v8730 = vadd.f32 %v8613, %v8729
      %v8731 = vpop.f32.mrf.mxu0
      %v8732 = vadd.f32 %v8613, %v8731
      %8733 = vmatmul.bf16.gmra.mxu0 %v8658
      %v8734 = vpop.f32.mrf.mxu0
      %v8735 = vadd.f32 %v8613, %v8734
      %v8736 = vpop.f32.mrf.mxu0
      %v8737 = vadd.f32 %v8613, %v8736
      %8738 = vmatmul.bf16.gmra.mxu0 %v8661
      %v8739 = vpop.f32.mrf.mxu0
      %v8740 = vadd.f32 %v8613, %v8739
      %v8741 = vpop.f32.mrf.mxu0
      %v8742 = vadd.f32 %v8613, %v8741
      %8743 = vmatmul.bf16.gmra.mxu0 %v8664
      %v8744 = vpop.f32.mrf.mxu0
      %v8745 = vadd.f32 %v8613, %v8744
      %v8746 = vpop.f32.mrf.mxu0
      %v8747 = vadd.f32 %v8613, %v8746
      %8748 = vmatmul.bf16.gmra.mxu0 %v8667
      %v8749 = vpop.f32.mrf.mxu0
      %v8750 = vadd.f32 %v8613, %v8749
      %v8751 = vpop.f32.mrf.mxu0
      %v8752 = vadd.f32 %v8613, %v8751
      %8753 = vmatmul.bf16.gmra.mxu0 %v8670
      %v8754 = vpop.f32.mrf.mxu0
      %v8755 = vadd.f32 %v8613, %v8754
      %v8756 = vpop.f32.mrf.mxu0
      %v8757 = vadd.f32 %v8613, %v8756
      %8758 = vmatmul.bf16.gmra.mxu0 %v8673
      %v8759 = vpop.f32.mrf.mxu0
      %v8760 = vadd.f32 %v8613, %v8759
      %v8761 = vpop.f32.mrf.mxu0
      %v8762 = vadd.f32 %v8613, %v8761
      %8763 = vdwg.mxu0
      %v8764 = vmax.f32 %v8685, 0.0
      %v8765 = vmax.f32 %v8687, 0.0
      %v8766 = vmax.f32 %v8690, 0.0
      %v8767 = vmax.f32 %v8692, 0.0
      %v8768 = vmax.f32 %v8695, 0.0
      %v8769 = vmax.f32 %v8697, 0.0
      %v8770 = vmax.f32 %v8700, 0.0
      %v8771 = vmax.f32 %v8702, 0.0
      %v8772 = vmax.f32 %v8705, 0.0
      %v8773 = vmax.f32 %v8707, 0.0
      %v8774 = vmax.f32 %v8710, 0.0
      %v8775 = vmax.f32 %v8712, 0.0
      %v8776 = vmax.f32 %v8715, 0.0
      %v8777 = vmax.f32 %v8717, 0.0
      %v8778 = vmax.f32 %v8720, 0.0
      %v8779 = vmax.f32 %v8722, 0.0
      %v8780 = vmax.f32 %v8725, 0.0
      %v8781 = vmax.f32 %v8727, 0.0
      %v8782 = vmax.f32 %v8730, 0.0
      %v8783 = vmax.f32 %v8732, 0.0
      %v8784 = vmax.f32 %v8735, 0.0
      %v8785 = vmax.f32 %v8737, 0.0
      %v8786 = vmax.f32 %v8740, 0.0
      %v8787 = vmax.f32 %v8742, 0.0
      %v8788 = vmax.f32 %v8745, 0.0
      %v8789 = vmax.f32 %v8747, 0.0
      %v8790 = vmax.f32 %v8750, 0.0
      %v8791 = vmax.f32 %v8752, 0.0
      %v8792 = vmax.f32 %v8755, 0.0
      %v8793 = vmax.f32 %v8757, 0.0
      %v8794 = vmax.f32 %v8760, 0.0
      %v8795 = vmax.f32 %v8762, 0.0
      %v8796 = vpack.c.bf16 %v8765, %v8764
      %v8797 = vpack.c.bf16 %v8767, %v8766
      %v8798 = vpack.c.bf16 %v8769, %v8768
      %v8799 = vpack.c.bf16 %v8771, %v8770
      %v8800 = vpack.c.bf16 %v8773, %v8772
      %v8801 = vpack.c.bf16 %v8775, %v8774
      %v8802 = vpack.c.bf16 %v8777, %v8776
      %v8803 = vpack.c.bf16 %v8779, %v8778
      %v8804 = vpack.c.bf16 %v8781, %v8780
      %v8805 = vpack.c.bf16 %v8783, %v8782
      %v8806 = vpack.c.bf16 %v8785, %v8784
      %v8807 = vpack.c.bf16 %v8787, %v8786
      %v8808 = vpack.c.bf16 %v8789, %v8788
      %v8809 = vpack.c.bf16 %v8791, %v8790
      %v8810 = vpack.c.bf16 %v8793, %v8792
      %v8811 = vpack.c.bf16 %v8795, %v8794
      %v8812 = vld [vmem:[%s8] sm:$0xf]
      %v8813 = vld [vmem:[%s8 + $0x4] sm:$0xf]
      %v8814 = vld [vmem:[%s8 + $0x8] sm:$0xf]
      %v8815 = vld [vmem:[%s8 + $0xc] sm:$0xf]
      %v8816 = vld [vmem:[%s9] sm:$0x1]
      %v8818 = vperm.slane %v8816, 0
      %v8824 = vunpack.c.l.b16 %v8812
      %v8825 = vunpack.c.l.b16 %v8813
      %v8826 = vunpack.c.l.b16 %v8814
      %v8827 = vunpack.c.l.b16 %v8815
      %v8828 = vpack.c.b16 %v8825, %v8824
      %v8829 = vpack.c.b16 %v8827, %v8826
      %v8833 = vsel %vm7607, %v8796, 0
      %v8836 = vsel %vm7607, %v8797, 0
      %v8839 = vsel %vm7607, %v8798, 0
      %v8842 = vsel %vm7607, %v8799, 0
      %v8845 = vsel %vm7607, %v8800, 0
      %v8848 = vsel %vm7607, %v8801, 0
      %v8851 = vsel %vm7607, %v8802, 0
      %v8854 = vsel %vm7607, %v8803, 0
      %v8857 = vsel %vm7607, %v8804, 0
      %v8860 = vsel %vm7607, %v8805, 0
      %v8863 = vsel %vm7607, %v8806, 0
      %v8866 = vsel %vm7607, %v8807, 0
      %v8869 = vsel %vm7607, %v8808, 0
      %v8872 = vsel %vm7607, %v8809, 0
      %v8875 = vsel %vm7607, %v8810, 0
      %v8878 = vsel %vm7607, %v8811, 0
      %8880 = vmatpush.bf16.msra.mxu0 0
      %8881 = vmatpush.bf16.msra.mxu0 0
      %8882 = vmatpush.bf16.msra.mxu0 0
      %8883 = vmatpush.bf16.msra.mxu0 0
      %8884 = vmatpush.bf16.msra.mxu0 0
      %8885 = vmatpush.bf16.msra.mxu0 0
      %8886 = vmatpush.bf16.msra.mxu0 %v8829
      %8887 = vmatpush.bf16.msra.mxu0 %v8828
      %8888 = vmatmul.bf16.gmra.mxu0 %v8833
      %v8889 = vpop.f32.mrf.mxu0
      %v8890 = vadd.f32 %v8818, %v8889
      %v8891 = vpop.f32.mrf.mxu0
      %v8892 = vadd.f32 %v8818, %v8891
      %8893 = vmatmul.bf16.gmra.mxu0 %v8836
      %v8894 = vpop.f32.mrf.mxu0
      %v8895 = vadd.f32 %v8818, %v8894
      %v8896 = vpop.f32.mrf.mxu0
      %v8897 = vadd.f32 %v8818, %v8896
      %8898 = vmatmul.bf16.gmra.mxu0 %v8839
      %v8899 = vpop.f32.mrf.mxu0
      %v8900 = vadd.f32 %v8818, %v8899
      %v8901 = vpop.f32.mrf.mxu0
      %v8902 = vadd.f32 %v8818, %v8901
      %8903 = vmatmul.bf16.gmra.mxu0 %v8842
      %v8904 = vpop.f32.mrf.mxu0
      %v8905 = vadd.f32 %v8818, %v8904
      %v8906 = vpop.f32.mrf.mxu0
      %v8907 = vadd.f32 %v8818, %v8906
      %8908 = vmatmul.bf16.gmra.mxu0 %v8845
      %v8909 = vpop.f32.mrf.mxu0
      %v8910 = vadd.f32 %v8818, %v8909
      %v8911 = vpop.f32.mrf.mxu0
      %v8912 = vadd.f32 %v8818, %v8911
      %8913 = vmatmul.bf16.gmra.mxu0 %v8848
      %v8914 = vpop.f32.mrf.mxu0
      %v8915 = vadd.f32 %v8818, %v8914
      %v8916 = vpop.f32.mrf.mxu0
      %v8917 = vadd.f32 %v8818, %v8916
      %8918 = vmatmul.bf16.gmra.mxu0 %v8851
      %v8919 = vpop.f32.mrf.mxu0
      %v8920 = vadd.f32 %v8818, %v8919
      %v8921 = vpop.f32.mrf.mxu0
      %v8922 = vadd.f32 %v8818, %v8921
      %8923 = vmatmul.bf16.gmra.mxu0 %v8854
      %v8924 = vpop.f32.mrf.mxu0
      %v8925 = vadd.f32 %v8818, %v8924
      %v8926 = vpop.f32.mrf.mxu0
      %v8927 = vadd.f32 %v8818, %v8926
      %8928 = vmatmul.bf16.gmra.mxu0 %v8857
      %v8929 = vpop.f32.mrf.mxu0
      %v8930 = vadd.f32 %v8818, %v8929
      %v8931 = vpop.f32.mrf.mxu0
      %v8932 = vadd.f32 %v8818, %v8931
      %8933 = vmatmul.bf16.gmra.mxu0 %v8860
      %v8934 = vpop.f32.mrf.mxu0
      %v8935 = vadd.f32 %v8818, %v8934
      %v8936 = vpop.f32.mrf.mxu0
      %v8937 = vadd.f32 %v8818, %v8936
      %8938 = vmatmul.bf16.gmra.mxu0 %v8863
      %v8939 = vpop.f32.mrf.mxu0
      %v8940 = vadd.f32 %v8818, %v8939
      %v8941 = vpop.f32.mrf.mxu0
      %v8942 = vadd.f32 %v8818, %v8941
      %8943 = vmatmul.bf16.gmra.mxu0 %v8866
      %v8944 = vpop.f32.mrf.mxu0
      %v8945 = vadd.f32 %v8818, %v8944
      %v8946 = vpop.f32.mrf.mxu0
      %v8947 = vadd.f32 %v8818, %v8946
      %8948 = vmatmul.bf16.gmra.mxu0 %v8869
      %v8949 = vpop.f32.mrf.mxu0
      %v8950 = vadd.f32 %v8818, %v8949
      %v8951 = vpop.f32.mrf.mxu0
      %v8952 = vadd.f32 %v8818, %v8951
      %8953 = vmatmul.bf16.gmra.mxu0 %v8872
      %v8954 = vpop.f32.mrf.mxu0
      %v8955 = vadd.f32 %v8818, %v8954
      %v8956 = vpop.f32.mrf.mxu0
      %v8957 = vadd.f32 %v8818, %v8956
      %8958 = vmatmul.bf16.gmra.mxu0 %v8875
      %v8959 = vpop.f32.mrf.mxu0
      %v8960 = vadd.f32 %v8818, %v8959
      %v8961 = vpop.f32.mrf.mxu0
      %v8962 = vadd.f32 %v8818, %v8961
      %8963 = vmatmul.bf16.gmra.mxu0 %v8878
      %v8964 = vpop.f32.mrf.mxu0
      %v8965 = vadd.f32 %v8818, %v8964
      %v8966 = vpop.f32.mrf.mxu0
      %v8967 = vadd.f32 %v8818, %v8966
      %8968 = vdwg.mxu0
      %v8969 = vadd.f32 %v8527, %v8890
      %v8970 = vadd.f32 %v8528, %v8892
      %v8971 = vadd.f32 %v8529, %v8895
      %v8972 = vadd.f32 %v8530, %v8897
      %v8973 = vadd.f32 %v8531, %v8900
      %v8974 = vadd.f32 %v8532, %v8902
      %v8975 = vadd.f32 %v8533, %v8905
      %v8976 = vadd.f32 %v8534, %v8907
      %v8977 = vadd.f32 %v8535, %v8910
      %v8978 = vadd.f32 %v8536, %v8912
      %v8979 = vadd.f32 %v8537, %v8915
      %v8980 = vadd.f32 %v8538, %v8917
      %v8981 = vadd.f32 %v8539, %v8920
      %v8982 = vadd.f32 %v8540, %v8922
      %v8983 = vadd.f32 %v8541, %v8925
      %v8984 = vadd.f32 %v8542, %v8927
      %v8985 = vadd.f32 %v8543, %v8930
      %v8986 = vadd.f32 %v8544, %v8932
      %v8987 = vadd.f32 %v8545, %v8935
      %v8988 = vadd.f32 %v8546, %v8937
      %v8989 = vadd.f32 %v8547, %v8940
      %v8990 = vadd.f32 %v8548, %v8942
      %v8991 = vadd.f32 %v8549, %v8945
      %v8992 = vadd.f32 %v8550, %v8947
      %v8993 = vadd.f32 %v8551, %v8950
      %v8994 = vadd.f32 %v8552, %v8952
      %v8995 = vadd.f32 %v8553, %v8955
      %v8996 = vadd.f32 %v8554, %v8957
      %v8997 = vadd.f32 %v8555, %v8960
      %v8998 = vadd.f32 %v8556, %v8962
      %v8999 = vadd.f32 %v8557, %v8965
      %v9000 = vadd.f32 %v8558, %v8967
      %s9001 = scalar_lea.vmem %s4, 48
      %v9002 = vld [vmem:[%s9001] sm:$0xf]
      %v9003 = vld [vmem:[%s9001 + $0x4] sm:$0xf]
      %v9004 = vld [vmem:[%s9001 + $0x8] sm:$0xf]
      %v9005 = vld [vmem:[%s9001 + $0xc] sm:$0xf]
      %v9006 = vld [vmem:[%s9001 + $0x10] sm:$0xf]
      %v9007 = vld [vmem:[%s9001 + $0x14] sm:$0xf]
      %v9008 = vld [vmem:[%s9001 + $0x18] sm:$0xf]
      %v9009 = vld [vmem:[%s9001 + $0x1c] sm:$0xf]
      %v9010 = vld [vmem:[%s9001 + $0x20] sm:$0xf]
      %v9011 = vld [vmem:[%s9001 + $0x24] sm:$0xf]
      %v9012 = vld [vmem:[%s9001 + $0x28] sm:$0xf]
      %v9013 = vld [vmem:[%s9001 + $0x2c] sm:$0xf]
      %v9026 = vunpack.c.l.b16 %v9002
      %v9027 = vunpack.c.l.b16 %v9003
      %v9028 = vunpack.c.l.b16 %v9004
      %v9029 = vunpack.c.l.b16 %v9005
      %v9030 = vunpack.c.l.b16 %v9006
      %v9031 = vunpack.c.l.b16 %v9007
      %v9032 = vunpack.c.l.b16 %v9008
      %v9033 = vunpack.c.l.b16 %v9009
      %v9034 = vunpack.c.l.b16 %v9010
      %v9035 = vunpack.c.l.b16 %v9011
      %v9036 = vunpack.c.l.b16 %v9012
      %v9037 = vunpack.c.l.b16 %v9013
      %v9038 = vpack.c.b16 %v9027, %v9026
      %v9039 = vpack.c.b16 %v9029, %v9028
      %v9040 = vpack.c.b16 %v9031, %v9030
      %v9041 = vpack.c.b16 %v9033, %v9032
      %v9042 = vpack.c.b16 %v9035, %v9034
      %v9043 = vpack.c.b16 %v9037, %v9036
      %9050 = vmatpush.bf16.msra.mxu0 0
      %9051 = vmatpush.bf16.msra.mxu0 0
      %9052 = vmatpush.bf16.msra.mxu0 %v9043
      %9053 = vmatpush.bf16.msra.mxu0 %v9042
      %9054 = vmatpush.bf16.msra.mxu0 %v9041
      %9055 = vmatpush.bf16.msra.mxu0 %v9040
      %9056 = vmatpush.bf16.msra.mxu0 %v9039
      %9057 = vmatpush.bf16.msra.mxu0 %v9038
      %9058 = vmatmul.bf16.gmra.mxu0 %v8355
      %v9059 = vpop.f32.mrf.mxu0
      %v9060 = vadd.f32 0.0, %v9059
      %v9061 = vpop.f32.mrf.mxu0
      %v9062 = vadd.f32 0.0, %v9061
      %9063 = vmatmul.bf16.gmra.mxu0 %v8358
      %v9064 = vpop.f32.mrf.mxu0
      %v9065 = vadd.f32 0.0, %v9064
      %v9066 = vpop.f32.mrf.mxu0
      %v9067 = vadd.f32 0.0, %v9066
      %9068 = vmatmul.bf16.gmra.mxu0 %v8361
      %v9069 = vpop.f32.mrf.mxu0
      %v9070 = vadd.f32 0.0, %v9069
      %v9071 = vpop.f32.mrf.mxu0
      %v9072 = vadd.f32 0.0, %v9071
      %9073 = vmatmul.bf16.gmra.mxu0 %v8364
      %v9074 = vpop.f32.mrf.mxu0
      %v9075 = vadd.f32 0.0, %v9074
      %v9076 = vpop.f32.mrf.mxu0
      %v9077 = vadd.f32 0.0, %v9076
      %9078 = vmatmul.bf16.gmra.mxu0 %v8367
      %v9079 = vpop.f32.mrf.mxu0
      %v9080 = vadd.f32 0.0, %v9079
      %v9081 = vpop.f32.mrf.mxu0
      %v9082 = vadd.f32 0.0, %v9081
      %9083 = vmatmul.bf16.gmra.mxu0 %v8370
      %v9084 = vpop.f32.mrf.mxu0
      %v9085 = vadd.f32 0.0, %v9084
      %v9086 = vpop.f32.mrf.mxu0
      %v9087 = vadd.f32 0.0, %v9086
      %9088 = vmatmul.bf16.gmra.mxu0 %v8373
      %v9089 = vpop.f32.mrf.mxu0
      %v9090 = vadd.f32 0.0, %v9089
      %v9091 = vpop.f32.mrf.mxu0
      %v9092 = vadd.f32 0.0, %v9091
      %9093 = vmatmul.bf16.gmra.mxu0 %v8376
      %v9094 = vpop.f32.mrf.mxu0
      %v9095 = vadd.f32 0.0, %v9094
      %v9096 = vpop.f32.mrf.mxu0
      %v9097 = vadd.f32 0.0, %v9096
      %9098 = vmatmul.bf16.gmra.mxu0 %v8379
      %v9099 = vpop.f32.mrf.mxu0
      %v9100 = vadd.f32 0.0, %v9099
      %v9101 = vpop.f32.mrf.mxu0
      %v9102 = vadd.f32 0.0, %v9101
      %9103 = vmatmul.bf16.gmra.mxu0 %v8382
      %v9104 = vpop.f32.mrf.mxu0
      %v9105 = vadd.f32 0.0, %v9104
      %v9106 = vpop.f32.mrf.mxu0
      %v9107 = vadd.f32 0.0, %v9106
      %9108 = vmatmul.bf16.gmra.mxu0 %v8385
      %v9109 = vpop.f32.mrf.mxu0
      %v9110 = vadd.f32 0.0, %v9109
      %v9111 = vpop.f32.mrf.mxu0
      %v9112 = vadd.f32 0.0, %v9111
      %9113 = vmatmul.bf16.gmra.mxu0 %v8388
      %v9114 = vpop.f32.mrf.mxu0
      %v9115 = vadd.f32 0.0, %v9114
      %v9116 = vpop.f32.mrf.mxu0
      %v9117 = vadd.f32 0.0, %v9116
      %9118 = vmatmul.bf16.gmra.mxu0 %v8391
      %v9119 = vpop.f32.mrf.mxu0
      %v9120 = vadd.f32 0.0, %v9119
      %v9121 = vpop.f32.mrf.mxu0
      %v9122 = vadd.f32 0.0, %v9121
      %9123 = vmatmul.bf16.gmra.mxu0 %v8394
      %v9124 = vpop.f32.mrf.mxu0
      %v9125 = vadd.f32 0.0, %v9124
      %v9126 = vpop.f32.mrf.mxu0
      %v9127 = vadd.f32 0.0, %v9126
      %9128 = vmatmul.bf16.gmra.mxu0 %v8397
      %v9129 = vpop.f32.mrf.mxu0
      %v9130 = vadd.f32 0.0, %v9129
      %v9131 = vpop.f32.mrf.mxu0
      %v9132 = vadd.f32 0.0, %v9131
      %9133 = vmatmul.bf16.gmra.mxu0 %v8400
      %v9134 = vpop.f32.mrf.mxu0
      %v9135 = vadd.f32 0.0, %v9134
      %v9136 = vpop.f32.mrf.mxu0
      %v9137 = vadd.f32 0.0, %v9136
      %9138 = vdwg.mxu0
      %v9139 = vadd.f32 %v8969, %v9060
      %v9140 = vadd.f32 %v8970, %v9062
      %v9141 = vadd.f32 %v8971, %v9065
      %v9142 = vadd.f32 %v8972, %v9067
      %v9143 = vadd.f32 %v8973, %v9070
      %v9144 = vadd.f32 %v8974, %v9072
      %v9145 = vadd.f32 %v8975, %v9075
      %v9146 = vadd.f32 %v8976, %v9077
      %v9147 = vadd.f32 %v8977, %v9080
      %v9148 = vadd.f32 %v8978, %v9082
      %v9149 = vadd.f32 %v8979, %v9085
      %v9150 = vadd.f32 %v8980, %v9087
      %v9151 = vadd.f32 %v8981, %v9090
      %v9152 = vadd.f32 %v8982, %v9092
      %v9153 = vadd.f32 %v8983, %v9095
      %v9154 = vadd.f32 %v8984, %v9097
      %v9155 = vadd.f32 %v8985, %v9100
      %v9156 = vadd.f32 %v8986, %v9102
      %v9157 = vadd.f32 %v8987, %v9105
      %v9158 = vadd.f32 %v8988, %v9107
      %v9159 = vadd.f32 %v8989, %v9110
      %v9160 = vadd.f32 %v8990, %v9112
      %v9161 = vadd.f32 %v8991, %v9115
      %v9162 = vadd.f32 %v8992, %v9117
      %v9163 = vadd.f32 %v8993, %v9120
      %v9164 = vadd.f32 %v8994, %v9122
      %v9165 = vadd.f32 %v8995, %v9125
      %v9166 = vadd.f32 %v8996, %v9127
      %v9167 = vadd.f32 %v8997, %v9130
      %v9168 = vadd.f32 %v8998, %v9132
      %v9169 = vadd.f32 %v8999, %v9135
      %v9170 = vadd.f32 %v9000, %v9137
      %s9171 = scalar_lea.vmem %s5, 1
      %v9172 = vld [vmem:[%s9171] sm:$0x1]
      %v9174 = vperm.slane %v9172, 0
      %v9176 = vadd.f32 %v9139, %v9174
      %v9177 = vadd.f32 %v9140, %v9174
      %v9178 = vadd.f32 %v9141, %v9174
      %v9179 = vadd.f32 %v9142, %v9174
      %v9180 = vadd.f32 %v9143, %v9174
      %v9181 = vadd.f32 %v9144, %v9174
      %v9182 = vadd.f32 %v9145, %v9174
      %v9183 = vadd.f32 %v9146, %v9174
      %v9184 = vadd.f32 %v9147, %v9174
      %v9185 = vadd.f32 %v9148, %v9174
      %v9186 = vadd.f32 %v9149, %v9174
      %v9187 = vadd.f32 %v9150, %v9174
      %v9188 = vadd.f32 %v9151, %v9174
      %v9189 = vadd.f32 %v9152, %v9174
      %v9190 = vadd.f32 %v9153, %v9174
      %v9191 = vadd.f32 %v9154, %v9174
      %v9192 = vadd.f32 %v9155, %v9174
      %v9193 = vadd.f32 %v9156, %v9174
      %v9194 = vadd.f32 %v9157, %v9174
      %v9195 = vadd.f32 %v9158, %v9174
      %v9196 = vadd.f32 %v9159, %v9174
      %v9197 = vadd.f32 %v9160, %v9174
      %v9198 = vadd.f32 %v9161, %v9174
      %v9199 = vadd.f32 %v9162, %v9174
      %v9200 = vadd.f32 %v9163, %v9174
      %v9201 = vadd.f32 %v9164, %v9174
      %v9202 = vadd.f32 %v9165, %v9174
      %v9203 = vadd.f32 %v9166, %v9174
      %v9204 = vadd.f32 %v9167, %v9174
      %v9205 = vadd.f32 %v9168, %v9174
      %v9206 = vadd.f32 %v9169, %v9174
      %v9207 = vadd.f32 %v9170, %v9174
      %v9208 = vmax.f32 %v9176, 0.0
      %v9209 = vmax.f32 %v9177, 0.0
      %v9210 = vmax.f32 %v9178, 0.0
      %v9211 = vmax.f32 %v9179, 0.0
      %v9212 = vmax.f32 %v9180, 0.0
      %v9213 = vmax.f32 %v9181, 0.0
      %v9214 = vmax.f32 %v9182, 0.0
      %v9215 = vmax.f32 %v9183, 0.0
      %v9216 = vmax.f32 %v9184, 0.0
      %v9217 = vmax.f32 %v9185, 0.0
      %v9218 = vmax.f32 %v9186, 0.0
      %v9219 = vmax.f32 %v9187, 0.0
      %v9220 = vmax.f32 %v9188, 0.0
      %v9221 = vmax.f32 %v9189, 0.0
      %v9222 = vmax.f32 %v9190, 0.0
      %v9223 = vmax.f32 %v9191, 0.0
      %v9224 = vmax.f32 %v9192, 0.0
      %v9225 = vmax.f32 %v9193, 0.0
      %v9226 = vmax.f32 %v9194, 0.0
      %v9227 = vmax.f32 %v9195, 0.0
      %v9228 = vmax.f32 %v9196, 0.0
      %v9229 = vmax.f32 %v9197, 0.0
      %v9230 = vmax.f32 %v9198, 0.0
      %v9231 = vmax.f32 %v9199, 0.0
      %v9232 = vmax.f32 %v9200, 0.0
      %v9233 = vmax.f32 %v9201, 0.0
      %v9234 = vmax.f32 %v9202, 0.0
      %v9235 = vmax.f32 %v9203, 0.0
      %v9236 = vmax.f32 %v9204, 0.0
      %v9237 = vmax.f32 %v9205, 0.0
      %v9238 = vmax.f32 %v9206, 0.0
      %v9239 = vmax.f32 %v9207, 0.0
      %v9240 = vpack.c.bf16 %v9209, %v9208
      %v9241 = vpack.c.bf16 %v9211, %v9210
      %v9242 = vpack.c.bf16 %v9213, %v9212
      %v9243 = vpack.c.bf16 %v9215, %v9214
      %v9244 = vpack.c.bf16 %v9217, %v9216
      %v9245 = vpack.c.bf16 %v9219, %v9218
      %v9246 = vpack.c.bf16 %v9221, %v9220
      %v9247 = vpack.c.bf16 %v9223, %v9222
      %v9248 = vpack.c.bf16 %v9225, %v9224
      %v9249 = vpack.c.bf16 %v9227, %v9226
      %v9250 = vpack.c.bf16 %v9229, %v9228
      %v9251 = vpack.c.bf16 %v9231, %v9230
      %v9252 = vpack.c.bf16 %v9233, %v9232
      %v9253 = vpack.c.bf16 %v9235, %v9234
      %v9254 = vpack.c.bf16 %v9237, %v9236
      %v9255 = vpack.c.bf16 %v9239, %v9238
      %s9256 = scalar_lea.vmem %s6, 16
      %v9257 = vld [vmem:[%s9256] sm:$0xf]
      %v9258 = vld [vmem:[%s9256 + $0x4] sm:$0xf]
      %v9259 = vld [vmem:[%s9256 + $0x8] sm:$0xf]
      %v9260 = vld [vmem:[%s9256 + $0xc] sm:$0xf]
      %s9261 = scalar_lea.vmem %s7, 1
      %v9262 = vld [vmem:[%s9261] sm:$0x1]
      %v9264 = vperm.slane %v9262, 0
      %v9270 = vunpack.c.l.b16 %v9257
      %v9271 = vunpack.c.l.b16 %v9258
      %v9272 = vunpack.c.l.b16 %v9259
      %v9273 = vunpack.c.l.b16 %v9260
      %v9274 = vpack.c.b16 %v9271, %v9270
      %v9275 = vpack.c.b16 %v9273, %v9272
      %v9279 = vsel %vm7607, %v9240, 0
      %v9282 = vsel %vm7607, %v9241, 0
      %v9285 = vsel %vm7607, %v9242, 0
      %v9288 = vsel %vm7607, %v9243, 0
      %v9291 = vsel %vm7607, %v9244, 0
      %v9294 = vsel %vm7607, %v9245, 0
      %v9297 = vsel %vm7607, %v9246, 0
      %v9300 = vsel %vm7607, %v9247, 0
      %v9303 = vsel %vm7607, %v9248, 0
      %v9306 = vsel %vm7607, %v9249, 0
      %v9309 = vsel %vm7607, %v9250, 0
      %v9312 = vsel %vm7607, %v9251, 0
      %v9315 = vsel %vm7607, %v9252, 0
      %v9318 = vsel %vm7607, %v9253, 0
      %v9321 = vsel %vm7607, %v9254, 0
      %v9324 = vsel %vm7607, %v9255, 0
      %9326 = vmatpush.bf16.msra.mxu0 0
      %9327 = vmatpush.bf16.msra.mxu0 0
      %9328 = vmatpush.bf16.msra.mxu0 0
      %9329 = vmatpush.bf16.msra.mxu0 0
      %9330 = vmatpush.bf16.msra.mxu0 0
      %9331 = vmatpush.bf16.msra.mxu0 0
      %9332 = vmatpush.bf16.msra.mxu0 %v9275
      %9333 = vmatpush.bf16.msra.mxu0 %v9274
      %9334 = vmatmul.bf16.gmra.mxu0 %v9279
      %v9335 = vpop.f32.mrf.mxu0
      %v9336 = vadd.f32 %v9264, %v9335
      %v9337 = vpop.f32.mrf.mxu0
      %v9338 = vadd.f32 %v9264, %v9337
      %9339 = vmatmul.bf16.gmra.mxu0 %v9282
      %v9340 = vpop.f32.mrf.mxu0
      %v9341 = vadd.f32 %v9264, %v9340
      %v9342 = vpop.f32.mrf.mxu0
      %v9343 = vadd.f32 %v9264, %v9342
      %9344 = vmatmul.bf16.gmra.mxu0 %v9285
      %v9345 = vpop.f32.mrf.mxu0
      %v9346 = vadd.f32 %v9264, %v9345
      %v9347 = vpop.f32.mrf.mxu0
      %v9348 = vadd.f32 %v9264, %v9347
      %9349 = vmatmul.bf16.gmra.mxu0 %v9288
      %v9350 = vpop.f32.mrf.mxu0
      %v9351 = vadd.f32 %v9264, %v9350
      %v9352 = vpop.f32.mrf.mxu0
      %v9353 = vadd.f32 %v9264, %v9352
      %9354 = vmatmul.bf16.gmra.mxu0 %v9291
      %v9355 = vpop.f32.mrf.mxu0
      %v9356 = vadd.f32 %v9264, %v9355
      %v9357 = vpop.f32.mrf.mxu0
      %v9358 = vadd.f32 %v9264, %v9357
      %9359 = vmatmul.bf16.gmra.mxu0 %v9294
      %v9360 = vpop.f32.mrf.mxu0
      %v9361 = vadd.f32 %v9264, %v9360
      %v9362 = vpop.f32.mrf.mxu0
      %v9363 = vadd.f32 %v9264, %v9362
      %9364 = vmatmul.bf16.gmra.mxu0 %v9297
      %v9365 = vpop.f32.mrf.mxu0
      %v9366 = vadd.f32 %v9264, %v9365
      %v9367 = vpop.f32.mrf.mxu0
      %v9368 = vadd.f32 %v9264, %v9367
      %9369 = vmatmul.bf16.gmra.mxu0 %v9300
      %v9370 = vpop.f32.mrf.mxu0
      %v9371 = vadd.f32 %v9264, %v9370
      %v9372 = vpop.f32.mrf.mxu0
      %v9373 = vadd.f32 %v9264, %v9372
      %9374 = vmatmul.bf16.gmra.mxu0 %v9303
      %v9375 = vpop.f32.mrf.mxu0
      %v9376 = vadd.f32 %v9264, %v9375
      %v9377 = vpop.f32.mrf.mxu0
      %v9378 = vadd.f32 %v9264, %v9377
      %9379 = vmatmul.bf16.gmra.mxu0 %v9306
      %v9380 = vpop.f32.mrf.mxu0
      %v9381 = vadd.f32 %v9264, %v9380
      %v9382 = vpop.f32.mrf.mxu0
      %v9383 = vadd.f32 %v9264, %v9382
      %9384 = vmatmul.bf16.gmra.mxu0 %v9309
      %v9385 = vpop.f32.mrf.mxu0
      %v9386 = vadd.f32 %v9264, %v9385
      %v9387 = vpop.f32.mrf.mxu0
      %v9388 = vadd.f32 %v9264, %v9387
      %9389 = vmatmul.bf16.gmra.mxu0 %v9312
      %v9390 = vpop.f32.mrf.mxu0
      %v9391 = vadd.f32 %v9264, %v9390
      %v9392 = vpop.f32.mrf.mxu0
      %v9393 = vadd.f32 %v9264, %v9392
      %9394 = vmatmul.bf16.gmra.mxu0 %v9315
      %v9395 = vpop.f32.mrf.mxu0
      %v9396 = vadd.f32 %v9264, %v9395
      %v9397 = vpop.f32.mrf.mxu0
      %v9398 = vadd.f32 %v9264, %v9397
      %9399 = vmatmul.bf16.gmra.mxu0 %v9318
      %v9400 = vpop.f32.mrf.mxu0
      %v9401 = vadd.f32 %v9264, %v9400
      %v9402 = vpop.f32.mrf.mxu0
      %v9403 = vadd.f32 %v9264, %v9402
      %9404 = vmatmul.bf16.gmra.mxu0 %v9321
      %v9405 = vpop.f32.mrf.mxu0
      %v9406 = vadd.f32 %v9264, %v9405
      %v9407 = vpop.f32.mrf.mxu0
      %v9408 = vadd.f32 %v9264, %v9407
      %9409 = vmatmul.bf16.gmra.mxu0 %v9324
      %v9410 = vpop.f32.mrf.mxu0
      %v9411 = vadd.f32 %v9264, %v9410
      %v9412 = vpop.f32.mrf.mxu0
      %v9413 = vadd.f32 %v9264, %v9412
      %9414 = vdwg.mxu0
      %v9415 = vmax.f32 %v9336, 0.0
      %v9416 = vmax.f32 %v9338, 0.0
      %v9417 = vmax.f32 %v9341, 0.0
      %v9418 = vmax.f32 %v9343, 0.0
      %v9419 = vmax.f32 %v9346, 0.0
      %v9420 = vmax.f32 %v9348, 0.0
      %v9421 = vmax.f32 %v9351, 0.0
      %v9422 = vmax.f32 %v9353, 0.0
      %v9423 = vmax.f32 %v9356, 0.0
      %v9424 = vmax.f32 %v9358, 0.0
      %v9425 = vmax.f32 %v9361, 0.0
      %v9426 = vmax.f32 %v9363, 0.0
      %v9427 = vmax.f32 %v9366, 0.0
      %v9428 = vmax.f32 %v9368, 0.0
      %v9429 = vmax.f32 %v9371, 0.0
      %v9430 = vmax.f32 %v9373, 0.0
      %v9431 = vmax.f32 %v9376, 0.0
      %v9432 = vmax.f32 %v9378, 0.0
      %v9433 = vmax.f32 %v9381, 0.0
      %v9434 = vmax.f32 %v9383, 0.0
      %v9435 = vmax.f32 %v9386, 0.0
      %v9436 = vmax.f32 %v9388, 0.0
      %v9437 = vmax.f32 %v9391, 0.0
      %v9438 = vmax.f32 %v9393, 0.0
      %v9439 = vmax.f32 %v9396, 0.0
      %v9440 = vmax.f32 %v9398, 0.0
      %v9441 = vmax.f32 %v9401, 0.0
      %v9442 = vmax.f32 %v9403, 0.0
      %v9443 = vmax.f32 %v9406, 0.0
      %v9444 = vmax.f32 %v9408, 0.0
      %v9445 = vmax.f32 %v9411, 0.0
      %v9446 = vmax.f32 %v9413, 0.0
      %v9447 = vpack.c.bf16 %v9416, %v9415
      %v9448 = vpack.c.bf16 %v9418, %v9417
      %v9449 = vpack.c.bf16 %v9420, %v9419
      %v9450 = vpack.c.bf16 %v9422, %v9421
      %v9451 = vpack.c.bf16 %v9424, %v9423
      %v9452 = vpack.c.bf16 %v9426, %v9425
      %v9453 = vpack.c.bf16 %v9428, %v9427
      %v9454 = vpack.c.bf16 %v9430, %v9429
      %v9455 = vpack.c.bf16 %v9432, %v9431
      %v9456 = vpack.c.bf16 %v9434, %v9433
      %v9457 = vpack.c.bf16 %v9436, %v9435
      %v9458 = vpack.c.bf16 %v9438, %v9437
      %v9459 = vpack.c.bf16 %v9440, %v9439
      %v9460 = vpack.c.bf16 %v9442, %v9441
      %v9461 = vpack.c.bf16 %v9444, %v9443
      %v9462 = vpack.c.bf16 %v9446, %v9445
      %s9463 = scalar_lea.vmem %s8, 16
      %v9464 = vld [vmem:[%s9463] sm:$0xf]
      %v9465 = vld [vmem:[%s9463 + $0x4] sm:$0xf]
      %v9466 = vld [vmem:[%s9463 + $0x8] sm:$0xf]
      %v9467 = vld [vmem:[%s9463 + $0xc] sm:$0xf]
      %s9468 = scalar_lea.vmem %s9, 1
      %v9469 = vld [vmem:[%s9468] sm:$0x1]
      %v9471 = vperm.slane %v9469, 0
      %v9477 = vunpack.c.l.b16 %v9464
      %v9478 = vunpack.c.l.b16 %v9465
      %v9479 = vunpack.c.l.b16 %v9466
      %v9480 = vunpack.c.l.b16 %v9467
      %v9481 = vpack.c.b16 %v9478, %v9477
      %v9482 = vpack.c.b16 %v9480, %v9479
      %v9486 = vsel %vm7607, %v9447, 0
      %v9489 = vsel %vm7607, %v9448, 0
      %v9492 = vsel %vm7607, %v9449, 0
      %v9495 = vsel %vm7607, %v9450, 0
      %v9498 = vsel %vm7607, %v9451, 0
      %v9501 = vsel %vm7607, %v9452, 0
      %v9504 = vsel %vm7607, %v9453, 0
      %v9507 = vsel %vm7607, %v9454, 0
      %v9510 = vsel %vm7607, %v9455, 0
      %v9513 = vsel %vm7607, %v9456, 0
      %v9516 = vsel %vm7607, %v9457, 0
      %v9519 = vsel %vm7607, %v9458, 0
      %v9522 = vsel %vm7607, %v9459, 0
      %v9525 = vsel %vm7607, %v9460, 0
      %v9528 = vsel %vm7607, %v9461, 0
      %v9531 = vsel %vm7607, %v9462, 0
      %9533 = vmatpush.bf16.msra.mxu0 0
      %9534 = vmatpush.bf16.msra.mxu0 0
      %9535 = vmatpush.bf16.msra.mxu0 0
      %9536 = vmatpush.bf16.msra.mxu0 0
      %9537 = vmatpush.bf16.msra.mxu0 0
      %9538 = vmatpush.bf16.msra.mxu0 0
      %9539 = vmatpush.bf16.msra.mxu0 %v9482
      %9540 = vmatpush.bf16.msra.mxu0 %v9481
      %9541 = vmatmul.bf16.gmra.mxu0 %v9486
      %v9542 = vpop.f32.mrf.mxu0
      %v9543 = vadd.f32 %v9471, %v9542
      %v9544 = vpop.f32.mrf.mxu0
      %v9545 = vadd.f32 %v9471, %v9544
      %9546 = vmatmul.bf16.gmra.mxu0 %v9489
      %v9547 = vpop.f32.mrf.mxu0
      %v9548 = vadd.f32 %v9471, %v9547
      %v9549 = vpop.f32.mrf.mxu0
      %v9550 = vadd.f32 %v9471, %v9549
      %9551 = vmatmul.bf16.gmra.mxu0 %v9492
      %v9552 = vpop.f32.mrf.mxu0
      %v9553 = vadd.f32 %v9471, %v9552
      %v9554 = vpop.f32.mrf.mxu0
      %v9555 = vadd.f32 %v9471, %v9554
      %9556 = vmatmul.bf16.gmra.mxu0 %v9495
      %v9557 = vpop.f32.mrf.mxu0
      %v9558 = vadd.f32 %v9471, %v9557
      %v9559 = vpop.f32.mrf.mxu0
      %v9560 = vadd.f32 %v9471, %v9559
      %9561 = vmatmul.bf16.gmra.mxu0 %v9498
      %v9562 = vpop.f32.mrf.mxu0
      %v9563 = vadd.f32 %v9471, %v9562
      %v9564 = vpop.f32.mrf.mxu0
      %v9565 = vadd.f32 %v9471, %v9564
      %9566 = vmatmul.bf16.gmra.mxu0 %v9501
      %v9567 = vpop.f32.mrf.mxu0
      %v9568 = vadd.f32 %v9471, %v9567
      %v9569 = vpop.f32.mrf.mxu0
      %v9570 = vadd.f32 %v9471, %v9569
      %9571 = vmatmul.bf16.gmra.mxu0 %v9504
      %v9572 = vpop.f32.mrf.mxu0
      %v9573 = vadd.f32 %v9471, %v9572
      %v9574 = vpop.f32.mrf.mxu0
      %v9575 = vadd.f32 %v9471, %v9574
      %9576 = vmatmul.bf16.gmra.mxu0 %v9507
      %v9577 = vpop.f32.mrf.mxu0
      %v9578 = vadd.f32 %v9471, %v9577
      %v9579 = vpop.f32.mrf.mxu0
      %v9580 = vadd.f32 %v9471, %v9579
      %9581 = vmatmul.bf16.gmra.mxu0 %v9510
      %v9582 = vpop.f32.mrf.mxu0
      %v9583 = vadd.f32 %v9471, %v9582
      %v9584 = vpop.f32.mrf.mxu0
      %v9585 = vadd.f32 %v9471, %v9584
      %9586 = vmatmul.bf16.gmra.mxu0 %v9513
      %v9587 = vpop.f32.mrf.mxu0
      %v9588 = vadd.f32 %v9471, %v9587
      %v9589 = vpop.f32.mrf.mxu0
      %v9590 = vadd.f32 %v9471, %v9589
      %9591 = vmatmul.bf16.gmra.mxu0 %v9516
      %v9592 = vpop.f32.mrf.mxu0
      %v9593 = vadd.f32 %v9471, %v9592
      %v9594 = vpop.f32.mrf.mxu0
      %v9595 = vadd.f32 %v9471, %v9594
      %9596 = vmatmul.bf16.gmra.mxu0 %v9519
      %v9597 = vpop.f32.mrf.mxu0
      %v9598 = vadd.f32 %v9471, %v9597
      %v9599 = vpop.f32.mrf.mxu0
      %v9600 = vadd.f32 %v9471, %v9599
      %9601 = vmatmul.bf16.gmra.mxu0 %v9522
      %v9602 = vpop.f32.mrf.mxu0
      %v9603 = vadd.f32 %v9471, %v9602
      %v9604 = vpop.f32.mrf.mxu0
      %v9605 = vadd.f32 %v9471, %v9604
      %9606 = vmatmul.bf16.gmra.mxu0 %v9525
      %v9607 = vpop.f32.mrf.mxu0
      %v9608 = vadd.f32 %v9471, %v9607
      %v9609 = vpop.f32.mrf.mxu0
      %v9610 = vadd.f32 %v9471, %v9609
      %9611 = vmatmul.bf16.gmra.mxu0 %v9528
      %v9612 = vpop.f32.mrf.mxu0
      %v9613 = vadd.f32 %v9471, %v9612
      %v9614 = vpop.f32.mrf.mxu0
      %v9615 = vadd.f32 %v9471, %v9614
      %9616 = vmatmul.bf16.gmra.mxu0 %v9531
      %v9617 = vpop.f32.mrf.mxu0
      %v9618 = vadd.f32 %v9471, %v9617
      %v9619 = vpop.f32.mrf.mxu0
      %v9620 = vadd.f32 %v9471, %v9619
      %9621 = vdwg.mxu0
      %v9622 = vadd.f32 %v9176, %v9543
      %v9623 = vadd.f32 %v9177, %v9545
      %v9624 = vadd.f32 %v9178, %v9548
      %v9625 = vadd.f32 %v9179, %v9550
      %v9626 = vadd.f32 %v9180, %v9553
      %v9627 = vadd.f32 %v9181, %v9555
      %v9628 = vadd.f32 %v9182, %v9558
      %v9629 = vadd.f32 %v9183, %v9560
      %v9630 = vadd.f32 %v9184, %v9563
      %v9631 = vadd.f32 %v9185, %v9565
      %v9632 = vadd.f32 %v9186, %v9568
      %v9633 = vadd.f32 %v9187, %v9570
      %v9634 = vadd.f32 %v9188, %v9573
      %v9635 = vadd.f32 %v9189, %v9575
      %v9636 = vadd.f32 %v9190, %v9578
      %v9637 = vadd.f32 %v9191, %v9580
      %v9638 = vadd.f32 %v9192, %v9583
      %v9639 = vadd.f32 %v9193, %v9585
      %v9640 = vadd.f32 %v9194, %v9588
      %v9641 = vadd.f32 %v9195, %v9590
      %v9642 = vadd.f32 %v9196, %v9593
      %v9643 = vadd.f32 %v9197, %v9595
      %v9644 = vadd.f32 %v9198, %v9598
      %v9645 = vadd.f32 %v9199, %v9600
      %v9646 = vadd.f32 %v9200, %v9603
      %v9647 = vadd.f32 %v9201, %v9605
      %v9648 = vadd.f32 %v9202, %v9608
      %v9649 = vadd.f32 %v9203, %v9610
      %v9650 = vadd.f32 %v9204, %v9613
      %v9651 = vadd.f32 %v9205, %v9615
      %v9652 = vadd.f32 %v9206, %v9618
      %v9653 = vadd.f32 %v9207, %v9620
      %s9654 = scalar_lea.vmem %s4, 96
      %v9655 = vld [vmem:[%s9654] sm:$0xf]
      %v9656 = vld [vmem:[%s9654 + $0x4] sm:$0xf]
      %v9657 = vld [vmem:[%s9654 + $0x8] sm:$0xf]
      %v9658 = vld [vmem:[%s9654 + $0xc] sm:$0xf]
      %v9659 = vld [vmem:[%s9654 + $0x10] sm:$0xf]
      %v9660 = vld [vmem:[%s9654 + $0x14] sm:$0xf]
      %v9661 = vld [vmem:[%s9654 + $0x18] sm:$0xf]
      %v9662 = vld [vmem:[%s9654 + $0x1c] sm:$0xf]
      %v9663 = vld [vmem:[%s9654 + $0x20] sm:$0xf]
      %v9664 = vld [vmem:[%s9654 + $0x24] sm:$0xf]
      %v9665 = vld [vmem:[%s9654 + $0x28] sm:$0xf]
      %v9666 = vld [vmem:[%s9654 + $0x2c] sm:$0xf]
      %v9679 = vunpack.c.l.b16 %v9655
      %v9680 = vunpack.c.l.b16 %v9656
      %v9681 = vunpack.c.l.b16 %v9657
      %v9682 = vunpack.c.l.b16 %v9658
      %v9683 = vunpack.c.l.b16 %v9659
      %v9684 = vunpack.c.l.b16 %v9660
      %v9685 = vunpack.c.l.b16 %v9661
      %v9686 = vunpack.c.l.b16 %v9662
      %v9687 = vunpack.c.l.b16 %v9663
      %v9688 = vunpack.c.l.b16 %v9664
      %v9689 = vunpack.c.l.b16 %v9665
      %v9690 = vunpack.c.l.b16 %v9666
      %v9691 = vpack.c.b16 %v9680, %v9679
      %v9692 = vpack.c.b16 %v9682, %v9681
      %v9693 = vpack.c.b16 %v9684, %v9683
      %v9694 = vpack.c.b16 %v9686, %v9685
      %v9695 = vpack.c.b16 %v9688, %v9687
      %v9696 = vpack.c.b16 %v9690, %v9689
      %9703 = vmatpush.bf16.msra.mxu0 0
      %9704 = vmatpush.bf16.msra.mxu0 0
      %9705 = vmatpush.bf16.msra.mxu0 %v9696
      %9706 = vmatpush.bf16.msra.mxu0 %v9695
      %9707 = vmatpush.bf16.msra.mxu0 %v9694
      %9708 = vmatpush.bf16.msra.mxu0 %v9693
      %9709 = vmatpush.bf16.msra.mxu0 %v9692
      %9710 = vmatpush.bf16.msra.mxu0 %v9691
      %9711 = vmatmul.bf16.gmra.mxu0 %v8355
      %v9712 = vpop.f32.mrf.mxu0
      %v9713 = vadd.f32 0.0, %v9712
      %v9714 = vpop.f32.mrf.mxu0
      %v9715 = vadd.f32 0.0, %v9714
      %9716 = vmatmul.bf16.gmra.mxu0 %v8358
      %v9717 = vpop.f32.mrf.mxu0
      %v9718 = vadd.f32 0.0, %v9717
      %v9719 = vpop.f32.mrf.mxu0
      %v9720 = vadd.f32 0.0, %v9719
      %9721 = vmatmul.bf16.gmra.mxu0 %v8361
      %v9722 = vpop.f32.mrf.mxu0
      %v9723 = vadd.f32 0.0, %v9722
      %v9724 = vpop.f32.mrf.mxu0
      %v9725 = vadd.f32 0.0, %v9724
      %9726 = vmatmul.bf16.gmra.mxu0 %v8364
      %v9727 = vpop.f32.mrf.mxu0
      %v9728 = vadd.f32 0.0, %v9727
      %v9729 = vpop.f32.mrf.mxu0
      %v9730 = vadd.f32 0.0, %v9729
      %9731 = vmatmul.bf16.gmra.mxu0 %v8367
      %v9732 = vpop.f32.mrf.mxu0
      %v9733 = vadd.f32 0.0, %v9732
      %v9734 = vpop.f32.mrf.mxu0
      %v9735 = vadd.f32 0.0, %v9734
      %9736 = vmatmul.bf16.gmra.mxu0 %v8370
      %v9737 = vpop.f32.mrf.mxu0
      %v9738 = vadd.f32 0.0, %v9737
      %v9739 = vpop.f32.mrf.mxu0
      %v9740 = vadd.f32 0.0, %v9739
      %9741 = vmatmul.bf16.gmra.mxu0 %v8373
      %v9742 = vpop.f32.mrf.mxu0
      %v9743 = vadd.f32 0.0, %v9742
      %v9744 = vpop.f32.mrf.mxu0
      %v9745 = vadd.f32 0.0, %v9744
      %9746 = vmatmul.bf16.gmra.mxu0 %v8376
      %v9747 = vpop.f32.mrf.mxu0
      %v9748 = vadd.f32 0.0, %v9747
      %v9749 = vpop.f32.mrf.mxu0
      %v9750 = vadd.f32 0.0, %v9749
      %9751 = vmatmul.bf16.gmra.mxu0 %v8379
      %v9752 = vpop.f32.mrf.mxu0
      %v9753 = vadd.f32 0.0, %v9752
      %v9754 = vpop.f32.mrf.mxu0
      %v9755 = vadd.f32 0.0, %v9754
      %9756 = vmatmul.bf16.gmra.mxu0 %v8382
      %v9757 = vpop.f32.mrf.mxu0
      %v9758 = vadd.f32 0.0, %v9757
      %v9759 = vpop.f32.mrf.mxu0
      %v9760 = vadd.f32 0.0, %v9759
      %9761 = vmatmul.bf16.gmra.mxu0 %v8385
      %v9762 = vpop.f32.mrf.mxu0
      %v9763 = vadd.f32 0.0, %v9762
      %v9764 = vpop.f32.mrf.mxu0
      %v9765 = vadd.f32 0.0, %v9764
      %9766 = vmatmul.bf16.gmra.mxu0 %v8388
      %v9767 = vpop.f32.mrf.mxu0
      %v9768 = vadd.f32 0.0, %v9767
      %v9769 = vpop.f32.mrf.mxu0
      %v9770 = vadd.f32 0.0, %v9769
      %9771 = vmatmul.bf16.gmra.mxu0 %v8391
      %v9772 = vpop.f32.mrf.mxu0
      %v9773 = vadd.f32 0.0, %v9772
      %v9774 = vpop.f32.mrf.mxu0
      %v9775 = vadd.f32 0.0, %v9774
      %9776 = vmatmul.bf16.gmra.mxu0 %v8394
      %v9777 = vpop.f32.mrf.mxu0
      %v9778 = vadd.f32 0.0, %v9777
      %v9779 = vpop.f32.mrf.mxu0
      %v9780 = vadd.f32 0.0, %v9779
      %9781 = vmatmul.bf16.gmra.mxu0 %v8397
      %v9782 = vpop.f32.mrf.mxu0
      %v9783 = vadd.f32 0.0, %v9782
      %v9784 = vpop.f32.mrf.mxu0
      %v9785 = vadd.f32 0.0, %v9784
      %9786 = vmatmul.bf16.gmra.mxu0 %v8400
      %v9787 = vpop.f32.mrf.mxu0
      %v9788 = vadd.f32 0.0, %v9787
      %v9789 = vpop.f32.mrf.mxu0
      %v9790 = vadd.f32 0.0, %v9789
      %9791 = vdwg.mxu0
      %v9792 = vadd.f32 %v9622, %v9713
      %v9793 = vadd.f32 %v9623, %v9715
      %v9794 = vadd.f32 %v9624, %v9718
      %v9795 = vadd.f32 %v9625, %v9720
      %v9796 = vadd.f32 %v9626, %v9723
      %v9797 = vadd.f32 %v9627, %v9725
      %v9798 = vadd.f32 %v9628, %v9728
      %v9799 = vadd.f32 %v9629, %v9730
      %v9800 = vadd.f32 %v9630, %v9733
      %v9801 = vadd.f32 %v9631, %v9735
      %v9802 = vadd.f32 %v9632, %v9738
      %v9803 = vadd.f32 %v9633, %v9740
      %v9804 = vadd.f32 %v9634, %v9743
      %v9805 = vadd.f32 %v9635, %v9745
      %v9806 = vadd.f32 %v9636, %v9748
      %v9807 = vadd.f32 %v9637, %v9750
      %v9808 = vadd.f32 %v9638, %v9753
      %v9809 = vadd.f32 %v9639, %v9755
      %v9810 = vadd.f32 %v9640, %v9758
      %v9811 = vadd.f32 %v9641, %v9760
      %v9812 = vadd.f32 %v9642, %v9763
      %v9813 = vadd.f32 %v9643, %v9765
      %v9814 = vadd.f32 %v9644, %v9768
      %v9815 = vadd.f32 %v9645, %v9770
      %v9816 = vadd.f32 %v9646, %v9773
      %v9817 = vadd.f32 %v9647, %v9775
      %v9818 = vadd.f32 %v9648, %v9778
      %v9819 = vadd.f32 %v9649, %v9780
      %v9820 = vadd.f32 %v9650, %v9783
      %v9821 = vadd.f32 %v9651, %v9785
      %v9822 = vadd.f32 %v9652, %v9788
      %v9823 = vadd.f32 %v9653, %v9790
      %s9824 = scalar_lea.vmem %s5, 2
      %v9825 = vld [vmem:[%s9824] sm:$0x1]
      %v9827 = vperm.slane %v9825, 0
      %v9829 = vadd.f32 %v9792, %v9827
      %v9830 = vadd.f32 %v9793, %v9827
      %v9831 = vadd.f32 %v9794, %v9827
      %v9832 = vadd.f32 %v9795, %v9827
      %v9833 = vadd.f32 %v9796, %v9827
      %v9834 = vadd.f32 %v9797, %v9827
      %v9835 = vadd.f32 %v9798, %v9827
      %v9836 = vadd.f32 %v9799, %v9827
      %v9837 = vadd.f32 %v9800, %v9827
      %v9838 = vadd.f32 %v9801, %v9827
      %v9839 = vadd.f32 %v9802, %v9827
      %v9840 = vadd.f32 %v9803, %v9827
      %v9841 = vadd.f32 %v9804, %v9827
      %v9842 = vadd.f32 %v9805, %v9827
      %v9843 = vadd.f32 %v9806, %v9827
      %v9844 = vadd.f32 %v9807, %v9827
      %v9845 = vadd.f32 %v9808, %v9827
      %v9846 = vadd.f32 %v9809, %v9827
      %v9847 = vadd.f32 %v9810, %v9827
      %v9848 = vadd.f32 %v9811, %v9827
      %v9849 = vadd.f32 %v9812, %v9827
      %v9850 = vadd.f32 %v9813, %v9827
      %v9851 = vadd.f32 %v9814, %v9827
      %v9852 = vadd.f32 %v9815, %v9827
      %v9853 = vadd.f32 %v9816, %v9827
      %v9854 = vadd.f32 %v9817, %v9827
      %v9855 = vadd.f32 %v9818, %v9827
      %v9856 = vadd.f32 %v9819, %v9827
      %v9857 = vadd.f32 %v9820, %v9827
      %v9858 = vadd.f32 %v9821, %v9827
      %v9859 = vadd.f32 %v9822, %v9827
      %v9860 = vadd.f32 %v9823, %v9827
      %v9861 = vmax.f32 %v9829, 0.0
      %v9862 = vmax.f32 %v9830, 0.0
      %v9863 = vmax.f32 %v9831, 0.0
      %v9864 = vmax.f32 %v9832, 0.0
      %v9865 = vmax.f32 %v9833, 0.0
      %v9866 = vmax.f32 %v9834, 0.0
      %v9867 = vmax.f32 %v9835, 0.0
      %v9868 = vmax.f32 %v9836, 0.0
      %v9869 = vmax.f32 %v9837, 0.0
      %v9870 = vmax.f32 %v9838, 0.0
      %v9871 = vmax.f32 %v9839, 0.0
      %v9872 = vmax.f32 %v9840, 0.0
      %v9873 = vmax.f32 %v9841, 0.0
      %v9874 = vmax.f32 %v9842, 0.0
      %v9875 = vmax.f32 %v9843, 0.0
      %v9876 = vmax.f32 %v9844, 0.0
      %v9877 = vmax.f32 %v9845, 0.0
      %v9878 = vmax.f32 %v9846, 0.0
      %v9879 = vmax.f32 %v9847, 0.0
      %v9880 = vmax.f32 %v9848, 0.0
      %v9881 = vmax.f32 %v9849, 0.0
      %v9882 = vmax.f32 %v9850, 0.0
      %v9883 = vmax.f32 %v9851, 0.0
      %v9884 = vmax.f32 %v9852, 0.0
      %v9885 = vmax.f32 %v9853, 0.0
      %v9886 = vmax.f32 %v9854, 0.0
      %v9887 = vmax.f32 %v9855, 0.0
      %v9888 = vmax.f32 %v9856, 0.0
      %v9889 = vmax.f32 %v9857, 0.0
      %v9890 = vmax.f32 %v9858, 0.0
      %v9891 = vmax.f32 %v9859, 0.0
      %v9892 = vmax.f32 %v9860, 0.0
      %v9893 = vpack.c.bf16 %v9862, %v9861
      %v9894 = vpack.c.bf16 %v9864, %v9863
      %v9895 = vpack.c.bf16 %v9866, %v9865
      %v9896 = vpack.c.bf16 %v9868, %v9867
      %v9897 = vpack.c.bf16 %v9870, %v9869
      %v9898 = vpack.c.bf16 %v9872, %v9871
      %v9899 = vpack.c.bf16 %v9874, %v9873
      %v9900 = vpack.c.bf16 %v9876, %v9875
      %v9901 = vpack.c.bf16 %v9878, %v9877
      %v9902 = vpack.c.bf16 %v9880, %v9879
      %v9903 = vpack.c.bf16 %v9882, %v9881
      %v9904 = vpack.c.bf16 %v9884, %v9883
      %v9905 = vpack.c.bf16 %v9886, %v9885
      %v9906 = vpack.c.bf16 %v9888, %v9887
      %v9907 = vpack.c.bf16 %v9890, %v9889
      %v9908 = vpack.c.bf16 %v9892, %v9891
      %s9909 = scalar_lea.vmem %s6, 32
      %v9910 = vld [vmem:[%s9909] sm:$0xf]
      %v9911 = vld [vmem:[%s9909 + $0x4] sm:$0xf]
      %v9912 = vld [vmem:[%s9909 + $0x8] sm:$0xf]
      %v9913 = vld [vmem:[%s9909 + $0xc] sm:$0xf]
      %s9914 = scalar_lea.vmem %s7, 2
      %v9915 = vld [vmem:[%s9914] sm:$0x1]
      %v9917 = vperm.slane %v9915, 0
      %v9923 = vunpack.c.l.b16 %v9910
      %v9924 = vunpack.c.l.b16 %v9911
      %v9925 = vunpack.c.l.b16 %v9912
      %v9926 = vunpack.c.l.b16 %v9913
      %v9927 = vpack.c.b16 %v9924, %v9923
      %v9928 = vpack.c.b16 %v9926, %v9925
      %v9932 = vsel %vm7607, %v9893, 0
      %v9935 = vsel %vm7607, %v9894, 0
      %v9938 = vsel %vm7607, %v9895, 0
      %v9941 = vsel %vm7607, %v9896, 0
      %v9944 = vsel %vm7607, %v9897, 0
      %v9947 = vsel %vm7607, %v9898, 0
      %v9950 = vsel %vm7607, %v9899, 0
      %v9953 = vsel %vm7607, %v9900, 0
      %v9956 = vsel %vm7607, %v9901, 0
      %v9959 = vsel %vm7607, %v9902, 0
      %v9962 = vsel %vm7607, %v9903, 0
      %v9965 = vsel %vm7607, %v9904, 0
      %v9968 = vsel %vm7607, %v9905, 0
      %v9971 = vsel %vm7607, %v9906, 0
      %v9974 = vsel %vm7607, %v9907, 0
      %v9977 = vsel %vm7607, %v9908, 0
      %9979 = vmatpush.bf16.msra.mxu0 0
      %9980 = vmatpush.bf16.msra.mxu0 0
      %9981 = vmatpush.bf16.msra.mxu0 0
      %9982 = vmatpush.bf16.msra.mxu0 0
      %9983 = vmatpush.bf16.msra.mxu0 0
      %9984 = vmatpush.bf16.msra.mxu0 0
      %9985 = vmatpush.bf16.msra.mxu0 %v9928
      %9986 = vmatpush.bf16.msra.mxu0 %v9927
      %9987 = vmatmul.bf16.gmra.mxu0 %v9932
      %v9988 = vpop.f32.mrf.mxu0
      %v9989 = vadd.f32 %v9917, %v9988
      %v9990 = vpop.f32.mrf.mxu0
      %v9991 = vadd.f32 %v9917, %v9990
      %9992 = vmatmul.bf16.gmra.mxu0 %v9935
      %v9993 = vpop.f32.mrf.mxu0
      %v9994 = vadd.f32 %v9917, %v9993
      %v9995 = vpop.f32.mrf.mxu0
      %v9996 = vadd.f32 %v9917, %v9995
      %9997 = vmatmul.bf16.gmra.mxu0 %v9938
      %v9998 = vpop.f32.mrf.mxu0
      %v9999 = vadd.f32 %v9917, %v9998
      %v10000 = vpop.f32.mrf.mxu0
      %v10001 = vadd.f32 %v9917, %v10000
      %10002 = vmatmul.bf16.gmra.mxu0 %v9941
      %v10003 = vpop.f32.mrf.mxu0
      %v10004 = vadd.f32 %v9917, %v10003
      %v10005 = vpop.f32.mrf.mxu0
      %v10006 = vadd.f32 %v9917, %v10005
      %10007 = vmatmul.bf16.gmra.mxu0 %v9944
      %v10008 = vpop.f32.mrf.mxu0
      %v10009 = vadd.f32 %v9917, %v10008
      %v10010 = vpop.f32.mrf.mxu0
      %v10011 = vadd.f32 %v9917, %v10010
      %10012 = vmatmul.bf16.gmra.mxu0 %v9947
      %v10013 = vpop.f32.mrf.mxu0
      %v10014 = vadd.f32 %v9917, %v10013
      %v10015 = vpop.f32.mrf.mxu0
      %v10016 = vadd.f32 %v9917, %v10015
      %10017 = vmatmul.bf16.gmra.mxu0 %v9950
      %v10018 = vpop.f32.mrf.mxu0
      %v10019 = vadd.f32 %v9917, %v10018
      %v10020 = vpop.f32.mrf.mxu0
      %v10021 = vadd.f32 %v9917, %v10020
      %10022 = vmatmul.bf16.gmra.mxu0 %v9953
      %v10023 = vpop.f32.mrf.mxu0
      %v10024 = vadd.f32 %v9917, %v10023
      %v10025 = vpop.f32.mrf.mxu0
      %v10026 = vadd.f32 %v9917, %v10025
      %10027 = vmatmul.bf16.gmra.mxu0 %v9956
      %v10028 = vpop.f32.mrf.mxu0
      %v10029 = vadd.f32 %v9917, %v10028
      %v10030 = vpop.f32.mrf.mxu0
      %v10031 = vadd.f32 %v9917, %v10030
      %10032 = vmatmul.bf16.gmra.mxu0 %v9959
      %v10033 = vpop.f32.mrf.mxu0
      %v10034 = vadd.f32 %v9917, %v10033
      %v10035 = vpop.f32.mrf.mxu0
      %v10036 = vadd.f32 %v9917, %v10035
      %10037 = vmatmul.bf16.gmra.mxu0 %v9962
      %v10038 = vpop.f32.mrf.mxu0
      %v10039 = vadd.f32 %v9917, %v10038
      %v10040 = vpop.f32.mrf.mxu0
      %v10041 = vadd.f32 %v9917, %v10040
      %10042 = vmatmul.bf16.gmra.mxu0 %v9965
      %v10043 = vpop.f32.mrf.mxu0
      %v10044 = vadd.f32 %v9917, %v10043
      %v10045 = vpop.f32.mrf.mxu0
      %v10046 = vadd.f32 %v9917, %v10045
      %10047 = vmatmul.bf16.gmra.mxu0 %v9968
      %v10048 = vpop.f32.mrf.mxu0
      %v10049 = vadd.f32 %v9917, %v10048
      %v10050 = vpop.f32.mrf.mxu0
      %v10051 = vadd.f32 %v9917, %v10050
      %10052 = vmatmul.bf16.gmra.mxu0 %v9971
      %v10053 = vpop.f32.mrf.mxu0
      %v10054 = vadd.f32 %v9917, %v10053
      %v10055 = vpop.f32.mrf.mxu0
      %v10056 = vadd.f32 %v9917, %v10055
      %10057 = vmatmul.bf16.gmra.mxu0 %v9974
      %v10058 = vpop.f32.mrf.mxu0
      %v10059 = vadd.f32 %v9917, %v10058
      %v10060 = vpop.f32.mrf.mxu0
      %v10061 = vadd.f32 %v9917, %v10060
      %10062 = vmatmul.bf16.gmra.mxu0 %v9977
      %v10063 = vpop.f32.mrf.mxu0
      %v10064 = vadd.f32 %v9917, %v10063
      %v10065 = vpop.f32.mrf.mxu0
      %v10066 = vadd.f32 %v9917, %v10065
      %10067 = vdwg.mxu0
      %v10068 = vmax.f32 %v9989, 0.0
      %v10069 = vmax.f32 %v9991, 0.0
      %v10070 = vmax.f32 %v9994, 0.0
      %v10071 = vmax.f32 %v9996, 0.0
      %v10072 = vmax.f32 %v9999, 0.0
      %v10073 = vmax.f32 %v10001, 0.0
      %v10074 = vmax.f32 %v10004, 0.0
      %v10075 = vmax.f32 %v10006, 0.0
      %v10076 = vmax.f32 %v10009, 0.0
      %v10077 = vmax.f32 %v10011, 0.0
      %v10078 = vmax.f32 %v10014, 0.0
      %v10079 = vmax.f32 %v10016, 0.0
      %v10080 = vmax.f32 %v10019, 0.0
      %v10081 = vmax.f32 %v10021, 0.0
      %v10082 = vmax.f32 %v10024, 0.0
      %v10083 = vmax.f32 %v10026, 0.0
      %v10084 = vmax.f32 %v10029, 0.0
      %v10085 = vmax.f32 %v10031, 0.0
      %v10086 = vmax.f32 %v10034, 0.0
      %v10087 = vmax.f32 %v10036, 0.0
      %v10088 = vmax.f32 %v10039, 0.0
      %v10089 = vmax.f32 %v10041, 0.0
      %v10090 = vmax.f32 %v10044, 0.0
      %v10091 = vmax.f32 %v10046, 0.0
      %v10092 = vmax.f32 %v10049, 0.0
      %v10093 = vmax.f32 %v10051, 0.0
      %v10094 = vmax.f32 %v10054, 0.0
      %v10095 = vmax.f32 %v10056, 0.0
      %v10096 = vmax.f32 %v10059, 0.0
      %v10097 = vmax.f32 %v10061, 0.0
      %v10098 = vmax.f32 %v10064, 0.0
      %v10099 = vmax.f32 %v10066, 0.0
      %v10100 = vpack.c.bf16 %v10069, %v10068
      %v10101 = vpack.c.bf16 %v10071, %v10070
      %v10102 = vpack.c.bf16 %v10073, %v10072
      %v10103 = vpack.c.bf16 %v10075, %v10074
      %v10104 = vpack.c.bf16 %v10077, %v10076
      %v10105 = vpack.c.bf16 %v10079, %v10078
      %v10106 = vpack.c.bf16 %v10081, %v10080
      %v10107 = vpack.c.bf16 %v10083, %v10082
      %v10108 = vpack.c.bf16 %v10085, %v10084
      %v10109 = vpack.c.bf16 %v10087, %v10086
      %v10110 = vpack.c.bf16 %v10089, %v10088
      %v10111 = vpack.c.bf16 %v10091, %v10090
      %v10112 = vpack.c.bf16 %v10093, %v10092
      %v10113 = vpack.c.bf16 %v10095, %v10094
      %v10114 = vpack.c.bf16 %v10097, %v10096
      %v10115 = vpack.c.bf16 %v10099, %v10098
      %s10116 = scalar_lea.vmem %s8, 32
      %v10117 = vld [vmem:[%s10116] sm:$0xf]
      %v10118 = vld [vmem:[%s10116 + $0x4] sm:$0xf]
      %v10119 = vld [vmem:[%s10116 + $0x8] sm:$0xf]
      %v10120 = vld [vmem:[%s10116 + $0xc] sm:$0xf]
      %s10121 = scalar_lea.vmem %s9, 2
      %v10122 = vld [vmem:[%s10121] sm:$0x1]
      %v10124 = vperm.slane %v10122, 0
      %v10130 = vunpack.c.l.b16 %v10117
      %v10131 = vunpack.c.l.b16 %v10118
      %v10132 = vunpack.c.l.b16 %v10119
      %v10133 = vunpack.c.l.b16 %v10120
      %v10134 = vpack.c.b16 %v10131, %v10130
      %v10135 = vpack.c.b16 %v10133, %v10132
      %v10139 = vsel %vm7607, %v10100, 0
      %v10142 = vsel %vm7607, %v10101, 0
      %v10145 = vsel %vm7607, %v10102, 0
      %v10148 = vsel %vm7607, %v10103, 0
      %v10151 = vsel %vm7607, %v10104, 0
      %v10154 = vsel %vm7607, %v10105, 0
      %v10157 = vsel %vm7607, %v10106, 0
      %v10160 = vsel %vm7607, %v10107, 0
      %v10163 = vsel %vm7607, %v10108, 0
      %v10166 = vsel %vm7607, %v10109, 0
      %v10169 = vsel %vm7607, %v10110, 0
      %v10172 = vsel %vm7607, %v10111, 0
      %v10175 = vsel %vm7607, %v10112, 0
      %v10178 = vsel %vm7607, %v10113, 0
      %v10181 = vsel %vm7607, %v10114, 0
      %v10184 = vsel %vm7607, %v10115, 0
      %10186 = vmatpush.bf16.msra.mxu0 0
      %10187 = vmatpush.bf16.msra.mxu0 0
      %10188 = vmatpush.bf16.msra.mxu0 0
      %10189 = vmatpush.bf16.msra.mxu0 0
      %10190 = vmatpush.bf16.msra.mxu0 0
      %10191 = vmatpush.bf16.msra.mxu0 0
      %10192 = vmatpush.bf16.msra.mxu0 %v10135
      %10193 = vmatpush.bf16.msra.mxu0 %v10134
      %10194 = vmatmul.bf16.gmra.mxu0 %v10139
      %v10195 = vpop.f32.mrf.mxu0
      %v10196 = vadd.f32 %v10124, %v10195
      %v10197 = vpop.f32.mrf.mxu0
      %v10198 = vadd.f32 %v10124, %v10197
      %10199 = vmatmul.bf16.gmra.mxu0 %v10142
      %v10200 = vpop.f32.mrf.mxu0
      %v10201 = vadd.f32 %v10124, %v10200
      %v10202 = vpop.f32.mrf.mxu0
      %v10203 = vadd.f32 %v10124, %v10202
      %10204 = vmatmul.bf16.gmra.mxu0 %v10145
      %v10205 = vpop.f32.mrf.mxu0
      %v10206 = vadd.f32 %v10124, %v10205
      %v10207 = vpop.f32.mrf.mxu0
      %v10208 = vadd.f32 %v10124, %v10207
      %10209 = vmatmul.bf16.gmra.mxu0 %v10148
      %v10210 = vpop.f32.mrf.mxu0
      %v10211 = vadd.f32 %v10124, %v10210
      %v10212 = vpop.f32.mrf.mxu0
      %v10213 = vadd.f32 %v10124, %v10212
      %10214 = vmatmul.bf16.gmra.mxu0 %v10151
      %v10215 = vpop.f32.mrf.mxu0
      %v10216 = vadd.f32 %v10124, %v10215
      %v10217 = vpop.f32.mrf.mxu0
      %v10218 = vadd.f32 %v10124, %v10217
      %10219 = vmatmul.bf16.gmra.mxu0 %v10154
      %v10220 = vpop.f32.mrf.mxu0
      %v10221 = vadd.f32 %v10124, %v10220
      %v10222 = vpop.f32.mrf.mxu0
      %v10223 = vadd.f32 %v10124, %v10222
      %10224 = vmatmul.bf16.gmra.mxu0 %v10157
      %v10225 = vpop.f32.mrf.mxu0
      %v10226 = vadd.f32 %v10124, %v10225
      %v10227 = vpop.f32.mrf.mxu0
      %v10228 = vadd.f32 %v10124, %v10227
      %10229 = vmatmul.bf16.gmra.mxu0 %v10160
      %v10230 = vpop.f32.mrf.mxu0
      %v10231 = vadd.f32 %v10124, %v10230
      %v10232 = vpop.f32.mrf.mxu0
      %v10233 = vadd.f32 %v10124, %v10232
      %10234 = vmatmul.bf16.gmra.mxu0 %v10163
      %v10235 = vpop.f32.mrf.mxu0
      %v10236 = vadd.f32 %v10124, %v10235
      %v10237 = vpop.f32.mrf.mxu0
      %v10238 = vadd.f32 %v10124, %v10237
      %10239 = vmatmul.bf16.gmra.mxu0 %v10166
      %v10240 = vpop.f32.mrf.mxu0
      %v10241 = vadd.f32 %v10124, %v10240
      %v10242 = vpop.f32.mrf.mxu0
      %v10243 = vadd.f32 %v10124, %v10242
      %10244 = vmatmul.bf16.gmra.mxu0 %v10169
      %v10245 = vpop.f32.mrf.mxu0
      %v10246 = vadd.f32 %v10124, %v10245
      %v10247 = vpop.f32.mrf.mxu0
      %v10248 = vadd.f32 %v10124, %v10247
      %10249 = vmatmul.bf16.gmra.mxu0 %v10172
      %v10250 = vpop.f32.mrf.mxu0
      %v10251 = vadd.f32 %v10124, %v10250
      %v10252 = vpop.f32.mrf.mxu0
      %v10253 = vadd.f32 %v10124, %v10252
      %10254 = vmatmul.bf16.gmra.mxu0 %v10175
      %v10255 = vpop.f32.mrf.mxu0
      %v10256 = vadd.f32 %v10124, %v10255
      %v10257 = vpop.f32.mrf.mxu0
      %v10258 = vadd.f32 %v10124, %v10257
      %10259 = vmatmul.bf16.gmra.mxu0 %v10178
      %v10260 = vpop.f32.mrf.mxu0
      %v10261 = vadd.f32 %v10124, %v10260
      %v10262 = vpop.f32.mrf.mxu0
      %v10263 = vadd.f32 %v10124, %v10262
      %10264 = vmatmul.bf16.gmra.mxu0 %v10181
      %v10265 = vpop.f32.mrf.mxu0
      %v10266 = vadd.f32 %v10124, %v10265
      %v10267 = vpop.f32.mrf.mxu0
      %v10268 = vadd.f32 %v10124, %v10267
      %10269 = vmatmul.bf16.gmra.mxu0 %v10184
      %v10270 = vpop.f32.mrf.mxu0
      %v10271 = vadd.f32 %v10124, %v10270
      %v10272 = vpop.f32.mrf.mxu0
      %v10273 = vadd.f32 %v10124, %v10272
      %10274 = vdwg.mxu0
      %v10275 = vadd.f32 %v9829, %v10196
      %v10276 = vadd.f32 %v9830, %v10198
      %v10277 = vadd.f32 %v9831, %v10201
      %v10278 = vadd.f32 %v9832, %v10203
      %v10279 = vadd.f32 %v9833, %v10206
      %v10280 = vadd.f32 %v9834, %v10208
      %v10281 = vadd.f32 %v9835, %v10211
      %v10282 = vadd.f32 %v9836, %v10213
      %v10283 = vadd.f32 %v9837, %v10216
      %v10284 = vadd.f32 %v9838, %v10218
      %v10285 = vadd.f32 %v9839, %v10221
      %v10286 = vadd.f32 %v9840, %v10223
      %v10287 = vadd.f32 %v9841, %v10226
      %v10288 = vadd.f32 %v9842, %v10228
      %v10289 = vadd.f32 %v9843, %v10231
      %v10290 = vadd.f32 %v9844, %v10233
      %v10291 = vadd.f32 %v9845, %v10236
      %v10292 = vadd.f32 %v9846, %v10238
      %v10293 = vadd.f32 %v9847, %v10241
      %v10294 = vadd.f32 %v9848, %v10243
      %v10295 = vadd.f32 %v9849, %v10246
      %v10296 = vadd.f32 %v9850, %v10248
      %v10297 = vadd.f32 %v9851, %v10251
      %v10298 = vadd.f32 %v9852, %v10253
      %v10299 = vadd.f32 %v9853, %v10256
      %v10300 = vadd.f32 %v9854, %v10258
      %v10301 = vadd.f32 %v9855, %v10261
      %v10302 = vadd.f32 %v9856, %v10263
      %v10303 = vadd.f32 %v9857, %v10266
      %v10304 = vadd.f32 %v9858, %v10268
      %v10305 = vadd.f32 %v9859, %v10271
      %v10306 = vadd.f32 %v9860, %v10273
      %s10307 = scalar_lea.vmem %s4, 144
      %v10308 = vld [vmem:[%s10307] sm:$0xf]
      %v10309 = vld [vmem:[%s10307 + $0x4] sm:$0xf]
      %v10310 = vld [vmem:[%s10307 + $0x8] sm:$0xf]
      %v10311 = vld [vmem:[%s10307 + $0xc] sm:$0xf]
      %v10312 = vld [vmem:[%s10307 + $0x10] sm:$0xf]
      %v10313 = vld [vmem:[%s10307 + $0x14] sm:$0xf]
      %v10314 = vld [vmem:[%s10307 + $0x18] sm:$0xf]
      %v10315 = vld [vmem:[%s10307 + $0x1c] sm:$0xf]
      %v10316 = vld [vmem:[%s10307 + $0x20] sm:$0xf]
      %v10317 = vld [vmem:[%s10307 + $0x24] sm:$0xf]
      %v10318 = vld [vmem:[%s10307 + $0x28] sm:$0xf]
      %v10319 = vld [vmem:[%s10307 + $0x2c] sm:$0xf]
      %v10332 = vunpack.c.l.b16 %v10308
      %v10333 = vunpack.c.l.b16 %v10309
      %v10334 = vunpack.c.l.b16 %v10310
      %v10335 = vunpack.c.l.b16 %v10311
      %v10336 = vunpack.c.l.b16 %v10312
      %v10337 = vunpack.c.l.b16 %v10313
      %v10338 = vunpack.c.l.b16 %v10314
      %v10339 = vunpack.c.l.b16 %v10315
      %v10340 = vunpack.c.l.b16 %v10316
      %v10341 = vunpack.c.l.b16 %v10317
      %v10342 = vunpack.c.l.b16 %v10318
      %v10343 = vunpack.c.l.b16 %v10319
      %v10344 = vpack.c.b16 %v10333, %v10332
      %v10345 = vpack.c.b16 %v10335, %v10334
      %v10346 = vpack.c.b16 %v10337, %v10336
      %v10347 = vpack.c.b16 %v10339, %v10338
      %v10348 = vpack.c.b16 %v10341, %v10340
      %v10349 = vpack.c.b16 %v10343, %v10342
      %10356 = vmatpush.bf16.msra.mxu0 0
      %10357 = vmatpush.bf16.msra.mxu0 0
      %10358 = vmatpush.bf16.msra.mxu0 %v10349
      %10359 = vmatpush.bf16.msra.mxu0 %v10348
      %10360 = vmatpush.bf16.msra.mxu0 %v10347
      %10361 = vmatpush.bf16.msra.mxu0 %v10346
      %10362 = vmatpush.bf16.msra.mxu0 %v10345
      %10363 = vmatpush.bf16.msra.mxu0 %v10344
      %10364 = vmatmul.bf16.gmra.mxu0 %v8355
      %v10365 = vpop.f32.mrf.mxu0
      %v10366 = vadd.f32 0.0, %v10365
      %v10367 = vpop.f32.mrf.mxu0
      %v10368 = vadd.f32 0.0, %v10367
      %10369 = vmatmul.bf16.gmra.mxu0 %v8358
      %v10370 = vpop.f32.mrf.mxu0
      %v10371 = vadd.f32 0.0, %v10370
      %v10372 = vpop.f32.mrf.mxu0
      %v10373 = vadd.f32 0.0, %v10372
      %10374 = vmatmul.bf16.gmra.mxu0 %v8361
      %v10375 = vpop.f32.mrf.mxu0
      %v10376 = vadd.f32 0.0, %v10375
      %v10377 = vpop.f32.mrf.mxu0
      %v10378 = vadd.f32 0.0, %v10377
      %10379 = vmatmul.bf16.gmra.mxu0 %v8364
      %v10380 = vpop.f32.mrf.mxu0
      %v10381 = vadd.f32 0.0, %v10380
      %v10382 = vpop.f32.mrf.mxu0
      %v10383 = vadd.f32 0.0, %v10382
      %10384 = vmatmul.bf16.gmra.mxu0 %v8367
      %v10385 = vpop.f32.mrf.mxu0
      %v10386 = vadd.f32 0.0, %v10385
      %v10387 = vpop.f32.mrf.mxu0
      %v10388 = vadd.f32 0.0, %v10387
      %10389 = vmatmul.bf16.gmra.mxu0 %v8370
      %v10390 = vpop.f32.mrf.mxu0
      %v10391 = vadd.f32 0.0, %v10390
      %v10392 = vpop.f32.mrf.mxu0
      %v10393 = vadd.f32 0.0, %v10392
      %10394 = vmatmul.bf16.gmra.mxu0 %v8373
      %v10395 = vpop.f32.mrf.mxu0
      %v10396 = vadd.f32 0.0, %v10395
      %v10397 = vpop.f32.mrf.mxu0
      %v10398 = vadd.f32 0.0, %v10397
      %10399 = vmatmul.bf16.gmra.mxu0 %v8376
      %v10400 = vpop.f32.mrf.mxu0
      %v10401 = vadd.f32 0.0, %v10400
      %v10402 = vpop.f32.mrf.mxu0
      %v10403 = vadd.f32 0.0, %v10402
      %10404 = vmatmul.bf16.gmra.mxu0 %v8379
      %v10405 = vpop.f32.mrf.mxu0
      %v10406 = vadd.f32 0.0, %v10405
      %v10407 = vpop.f32.mrf.mxu0
      %v10408 = vadd.f32 0.0, %v10407
      %10409 = vmatmul.bf16.gmra.mxu0 %v8382
      %v10410 = vpop.f32.mrf.mxu0
      %v10411 = vadd.f32 0.0, %v10410
      %v10412 = vpop.f32.mrf.mxu0
      %v10413 = vadd.f32 0.0, %v10412
      %10414 = vmatmul.bf16.gmra.mxu0 %v8385
      %v10415 = vpop.f32.mrf.mxu0
      %v10416 = vadd.f32 0.0, %v10415
      %v10417 = vpop.f32.mrf.mxu0
      %v10418 = vadd.f32 0.0, %v10417
      %10419 = vmatmul.bf16.gmra.mxu0 %v8388
      %v10420 = vpop.f32.mrf.mxu0
      %v10421 = vadd.f32 0.0, %v10420
      %v10422 = vpop.f32.mrf.mxu0
      %v10423 = vadd.f32 0.0, %v10422
      %10424 = vmatmul.bf16.gmra.mxu0 %v8391
      %v10425 = vpop.f32.mrf.mxu0
      %v10426 = vadd.f32 0.0, %v10425
      %v10427 = vpop.f32.mrf.mxu0
      %v10428 = vadd.f32 0.0, %v10427
      %10429 = vmatmul.bf16.gmra.mxu0 %v8394
      %v10430 = vpop.f32.mrf.mxu0
      %v10431 = vadd.f32 0.0, %v10430
      %v10432 = vpop.f32.mrf.mxu0
      %v10433 = vadd.f32 0.0, %v10432
      %10434 = vmatmul.bf16.gmra.mxu0 %v8397
      %v10435 = vpop.f32.mrf.mxu0
      %v10436 = vadd.f32 0.0, %v10435
      %v10437 = vpop.f32.mrf.mxu0
      %v10438 = vadd.f32 0.0, %v10437
      %10439 = vmatmul.bf16.gmra.mxu0 %v8400
      %v10440 = vpop.f32.mrf.mxu0
      %v10441 = vadd.f32 0.0, %v10440
      %v10442 = vpop.f32.mrf.mxu0
      %v10443 = vadd.f32 0.0, %v10442
      %10444 = vdwg.mxu0
      %v10445 = vadd.f32 %v10275, %v10366
      %v10446 = vadd.f32 %v10276, %v10368
      %v10447 = vadd.f32 %v10277, %v10371
      %v10448 = vadd.f32 %v10278, %v10373
      %v10449 = vadd.f32 %v10279, %v10376
      %v10450 = vadd.f32 %v10280, %v10378
      %v10451 = vadd.f32 %v10281, %v10381
      %v10452 = vadd.f32 %v10282, %v10383
      %v10453 = vadd.f32 %v10283, %v10386
      %v10454 = vadd.f32 %v10284, %v10388
      %v10455 = vadd.f32 %v10285, %v10391
      %v10456 = vadd.f32 %v10286, %v10393
      %v10457 = vadd.f32 %v10287, %v10396
      %v10458 = vadd.f32 %v10288, %v10398
      %v10459 = vadd.f32 %v10289, %v10401
      %v10460 = vadd.f32 %v10290, %v10403
      %v10461 = vadd.f32 %v10291, %v10406
      %v10462 = vadd.f32 %v10292, %v10408
      %v10463 = vadd.f32 %v10293, %v10411
      %v10464 = vadd.f32 %v10294, %v10413
      %v10465 = vadd.f32 %v10295, %v10416
      %v10466 = vadd.f32 %v10296, %v10418
      %v10467 = vadd.f32 %v10297, %v10421
      %v10468 = vadd.f32 %v10298, %v10423
      %v10469 = vadd.f32 %v10299, %v10426
      %v10470 = vadd.f32 %v10300, %v10428
      %v10471 = vadd.f32 %v10301, %v10431
      %v10472 = vadd.f32 %v10302, %v10433
      %v10473 = vadd.f32 %v10303, %v10436
      %v10474 = vadd.f32 %v10304, %v10438
      %v10475 = vadd.f32 %v10305, %v10441
      %v10476 = vadd.f32 %v10306, %v10443
      %s10477 = scalar_lea.vmem %s5, 3
      %v10478 = vld [vmem:[%s10477] sm:$0x1]
      %v10480 = vperm.slane %v10478, 0
      %v10482 = vadd.f32 %v10445, %v10480
      %v10483 = vadd.f32 %v10446, %v10480
      %v10484 = vadd.f32 %v10447, %v10480
      %v10485 = vadd.f32 %v10448, %v10480
      %v10486 = vadd.f32 %v10449, %v10480
      %v10487 = vadd.f32 %v10450, %v10480
      %v10488 = vadd.f32 %v10451, %v10480
      %v10489 = vadd.f32 %v10452, %v10480
      %v10490 = vadd.f32 %v10453, %v10480
      %v10491 = vadd.f32 %v10454, %v10480
      %v10492 = vadd.f32 %v10455, %v10480
      %v10493 = vadd.f32 %v10456, %v10480
      %v10494 = vadd.f32 %v10457, %v10480
      %v10495 = vadd.f32 %v10458, %v10480
      %v10496 = vadd.f32 %v10459, %v10480
      %v10497 = vadd.f32 %v10460, %v10480
      %v10498 = vadd.f32 %v10461, %v10480
      %v10499 = vadd.f32 %v10462, %v10480
      %v10500 = vadd.f32 %v10463, %v10480
      %v10501 = vadd.f32 %v10464, %v10480
      %v10502 = vadd.f32 %v10465, %v10480
      %v10503 = vadd.f32 %v10466, %v10480
      %v10504 = vadd.f32 %v10467, %v10480
      %v10505 = vadd.f32 %v10468, %v10480
      %v10506 = vadd.f32 %v10469, %v10480
      %v10507 = vadd.f32 %v10470, %v10480
      %v10508 = vadd.f32 %v10471, %v10480
      %v10509 = vadd.f32 %v10472, %v10480
      %v10510 = vadd.f32 %v10473, %v10480
      %v10511 = vadd.f32 %v10474, %v10480
      %v10512 = vadd.f32 %v10475, %v10480
      %v10513 = vadd.f32 %v10476, %v10480
      %v10514 = vmax.f32 %v10482, 0.0
      %v10515 = vmax.f32 %v10483, 0.0
      %v10516 = vmax.f32 %v10484, 0.0
      %v10517 = vmax.f32 %v10485, 0.0
      %v10518 = vmax.f32 %v10486, 0.0
      %v10519 = vmax.f32 %v10487, 0.0
      %v10520 = vmax.f32 %v10488, 0.0
      %v10521 = vmax.f32 %v10489, 0.0
      %v10522 = vmax.f32 %v10490, 0.0
      %v10523 = vmax.f32 %v10491, 0.0
      %v10524 = vmax.f32 %v10492, 0.0
      %v10525 = vmax.f32 %v10493, 0.0
      %v10526 = vmax.f32 %v10494, 0.0
      %v10527 = vmax.f32 %v10495, 0.0
      %v10528 = vmax.f32 %v10496, 0.0
      %v10529 = vmax.f32 %v10497, 0.0
      %v10530 = vmax.f32 %v10498, 0.0
      %v10531 = vmax.f32 %v10499, 0.0
      %v10532 = vmax.f32 %v10500, 0.0
      %v10533 = vmax.f32 %v10501, 0.0
      %v10534 = vmax.f32 %v10502, 0.0
      %v10535 = vmax.f32 %v10503, 0.0
      %v10536 = vmax.f32 %v10504, 0.0
      %v10537 = vmax.f32 %v10505, 0.0
      %v10538 = vmax.f32 %v10506, 0.0
      %v10539 = vmax.f32 %v10507, 0.0
      %v10540 = vmax.f32 %v10508, 0.0
      %v10541 = vmax.f32 %v10509, 0.0
      %v10542 = vmax.f32 %v10510, 0.0
      %v10543 = vmax.f32 %v10511, 0.0
      %v10544 = vmax.f32 %v10512, 0.0
      %v10545 = vmax.f32 %v10513, 0.0
      %v10546 = vpack.c.bf16 %v10515, %v10514
      %v10547 = vpack.c.bf16 %v10517, %v10516
      %v10548 = vpack.c.bf16 %v10519, %v10518
      %v10549 = vpack.c.bf16 %v10521, %v10520
      %v10550 = vpack.c.bf16 %v10523, %v10522
      %v10551 = vpack.c.bf16 %v10525, %v10524
      %v10552 = vpack.c.bf16 %v10527, %v10526
      %v10553 = vpack.c.bf16 %v10529, %v10528
      %v10554 = vpack.c.bf16 %v10531, %v10530
      %v10555 = vpack.c.bf16 %v10533, %v10532
      %v10556 = vpack.c.bf16 %v10535, %v10534
      %v10557 = vpack.c.bf16 %v10537, %v10536
      %v10558 = vpack.c.bf16 %v10539, %v10538
      %v10559 = vpack.c.bf16 %v10541, %v10540
      %v10560 = vpack.c.bf16 %v10543, %v10542
      %v10561 = vpack.c.bf16 %v10545, %v10544
      %s10562 = scalar_lea.vmem %s6, 48
      %v10563 = vld [vmem:[%s10562] sm:$0xf]
      %v10564 = vld [vmem:[%s10562 + $0x4] sm:$0xf]
      %v10565 = vld [vmem:[%s10562 + $0x8] sm:$0xf]
      %v10566 = vld [vmem:[%s10562 + $0xc] sm:$0xf]
      %s10567 = scalar_lea.vmem %s7, 3
      %v10568 = vld [vmem:[%s10567] sm:$0x1]
      %v10570 = vperm.slane %v10568, 0
      %v10576 = vunpack.c.l.b16 %v10563
      %v10577 = vunpack.c.l.b16 %v10564
      %v10578 = vunpack.c.l.b16 %v10565
      %v10579 = vunpack.c.l.b16 %v10566
      %v10580 = vpack.c.b16 %v10577, %v10576
      %v10581 = vpack.c.b16 %v10579, %v10578
      %v10585 = vsel %vm7607, %v10546, 0
      %v10588 = vsel %vm7607, %v10547, 0
      %v10591 = vsel %vm7607, %v10548, 0
      %v10594 = vsel %vm7607, %v10549, 0
      %v10597 = vsel %vm7607, %v10550, 0
      %v10600 = vsel %vm7607, %v10551, 0
      %v10603 = vsel %vm7607, %v10552, 0
      %v10606 = vsel %vm7607, %v10553, 0
      %v10609 = vsel %vm7607, %v10554, 0
      %v10612 = vsel %vm7607, %v10555, 0
      %v10615 = vsel %vm7607, %v10556, 0
      %v10618 = vsel %vm7607, %v10557, 0
      %v10621 = vsel %vm7607, %v10558, 0
      %v10624 = vsel %vm7607, %v10559, 0
      %v10627 = vsel %vm7607, %v10560, 0
      %v10630 = vsel %vm7607, %v10561, 0
      %10632 = vmatpush.bf16.msra.mxu0 0
      %10633 = vmatpush.bf16.msra.mxu0 0
      %10634 = vmatpush.bf16.msra.mxu0 0
      %10635 = vmatpush.bf16.msra.mxu0 0
      %10636 = vmatpush.bf16.msra.mxu0 0
      %10637 = vmatpush.bf16.msra.mxu0 0
      %10638 = vmatpush.bf16.msra.mxu0 %v10581
      %10639 = vmatpush.bf16.msra.mxu0 %v10580
      %10640 = vmatmul.bf16.gmra.mxu0 %v10585
      %v10641 = vpop.f32.mrf.mxu0
      %v10642 = vadd.f32 %v10570, %v10641
      %v10643 = vpop.f32.mrf.mxu0
      %v10644 = vadd.f32 %v10570, %v10643
      %10645 = vmatmul.bf16.gmra.mxu0 %v10588
      %v10646 = vpop.f32.mrf.mxu0
      %v10647 = vadd.f32 %v10570, %v10646
      %v10648 = vpop.f32.mrf.mxu0
      %v10649 = vadd.f32 %v10570, %v10648
      %10650 = vmatmul.bf16.gmra.mxu0 %v10591
      %v10651 = vpop.f32.mrf.mxu0
      %v10652 = vadd.f32 %v10570, %v10651
      %v10653 = vpop.f32.mrf.mxu0
      %v10654 = vadd.f32 %v10570, %v10653
      %10655 = vmatmul.bf16.gmra.mxu0 %v10594
      %v10656 = vpop.f32.mrf.mxu0
      %v10657 = vadd.f32 %v10570, %v10656
      %v10658 = vpop.f32.mrf.mxu0
      %v10659 = vadd.f32 %v10570, %v10658
      %10660 = vmatmul.bf16.gmra.mxu0 %v10597
      %v10661 = vpop.f32.mrf.mxu0
      %v10662 = vadd.f32 %v10570, %v10661
      %v10663 = vpop.f32.mrf.mxu0
      %v10664 = vadd.f32 %v10570, %v10663
      %10665 = vmatmul.bf16.gmra.mxu0 %v10600
      %v10666 = vpop.f32.mrf.mxu0
      %v10667 = vadd.f32 %v10570, %v10666
      %v10668 = vpop.f32.mrf.mxu0
      %v10669 = vadd.f32 %v10570, %v10668
      %10670 = vmatmul.bf16.gmra.mxu0 %v10603
      %v10671 = vpop.f32.mrf.mxu0
      %v10672 = vadd.f32 %v10570, %v10671
      %v10673 = vpop.f32.mrf.mxu0
      %v10674 = vadd.f32 %v10570, %v10673
      %10675 = vmatmul.bf16.gmra.mxu0 %v10606
      %v10676 = vpop.f32.mrf.mxu0
      %v10677 = vadd.f32 %v10570, %v10676
      %v10678 = vpop.f32.mrf.mxu0
      %v10679 = vadd.f32 %v10570, %v10678
      %10680 = vmatmul.bf16.gmra.mxu0 %v10609
      %v10681 = vpop.f32.mrf.mxu0
      %v10682 = vadd.f32 %v10570, %v10681
      %v10683 = vpop.f32.mrf.mxu0
      %v10684 = vadd.f32 %v10570, %v10683
      %10685 = vmatmul.bf16.gmra.mxu0 %v10612
      %v10686 = vpop.f32.mrf.mxu0
      %v10687 = vadd.f32 %v10570, %v10686
      %v10688 = vpop.f32.mrf.mxu0
      %v10689 = vadd.f32 %v10570, %v10688
      %10690 = vmatmul.bf16.gmra.mxu0 %v10615
      %v10691 = vpop.f32.mrf.mxu0
      %v10692 = vadd.f32 %v10570, %v10691
      %v10693 = vpop.f32.mrf.mxu0
      %v10694 = vadd.f32 %v10570, %v10693
      %10695 = vmatmul.bf16.gmra.mxu0 %v10618
      %v10696 = vpop.f32.mrf.mxu0
      %v10697 = vadd.f32 %v10570, %v10696
      %v10698 = vpop.f32.mrf.mxu0
      %v10699 = vadd.f32 %v10570, %v10698
      %10700 = vmatmul.bf16.gmra.mxu0 %v10621
      %v10701 = vpop.f32.mrf.mxu0
      %v10702 = vadd.f32 %v10570, %v10701
      %v10703 = vpop.f32.mrf.mxu0
      %v10704 = vadd.f32 %v10570, %v10703
      %10705 = vmatmul.bf16.gmra.mxu0 %v10624
      %v10706 = vpop.f32.mrf.mxu0
      %v10707 = vadd.f32 %v10570, %v10706
      %v10708 = vpop.f32.mrf.mxu0
      %v10709 = vadd.f32 %v10570, %v10708
      %10710 = vmatmul.bf16.gmra.mxu0 %v10627
      %v10711 = vpop.f32.mrf.mxu0
      %v10712 = vadd.f32 %v10570, %v10711
      %v10713 = vpop.f32.mrf.mxu0
      %v10714 = vadd.f32 %v10570, %v10713
      %10715 = vmatmul.bf16.gmra.mxu0 %v10630
      %v10716 = vpop.f32.mrf.mxu0
      %v10717 = vadd.f32 %v10570, %v10716
      %v10718 = vpop.f32.mrf.mxu0
      %v10719 = vadd.f32 %v10570, %v10718
      %10720 = vdwg.mxu0
      %v10721 = vmax.f32 %v10642, 0.0
      %v10722 = vmax.f32 %v10644, 0.0
      %v10723 = vmax.f32 %v10647, 0.0
      %v10724 = vmax.f32 %v10649, 0.0
      %v10725 = vmax.f32 %v10652, 0.0
      %v10726 = vmax.f32 %v10654, 0.0
      %v10727 = vmax.f32 %v10657, 0.0
      %v10728 = vmax.f32 %v10659, 0.0
      %v10729 = vmax.f32 %v10662, 0.0
      %v10730 = vmax.f32 %v10664, 0.0
      %v10731 = vmax.f32 %v10667, 0.0
      %v10732 = vmax.f32 %v10669, 0.0
      %v10733 = vmax.f32 %v10672, 0.0
      %v10734 = vmax.f32 %v10674, 0.0
      %v10735 = vmax.f32 %v10677, 0.0
      %v10736 = vmax.f32 %v10679, 0.0
      %v10737 = vmax.f32 %v10682, 0.0
      %v10738 = vmax.f32 %v10684, 0.0
      %v10739 = vmax.f32 %v10687, 0.0
      %v10740 = vmax.f32 %v10689, 0.0
      %v10741 = vmax.f32 %v10692, 0.0
      %v10742 = vmax.f32 %v10694, 0.0
      %v10743 = vmax.f32 %v10697, 0.0
      %v10744 = vmax.f32 %v10699, 0.0
      %v10745 = vmax.f32 %v10702, 0.0
      %v10746 = vmax.f32 %v10704, 0.0
      %v10747 = vmax.f32 %v10707, 0.0
      %v10748 = vmax.f32 %v10709, 0.0
      %v10749 = vmax.f32 %v10712, 0.0
      %v10750 = vmax.f32 %v10714, 0.0
      %v10751 = vmax.f32 %v10717, 0.0
      %v10752 = vmax.f32 %v10719, 0.0
      %v10753 = vpack.c.bf16 %v10722, %v10721
      %v10754 = vpack.c.bf16 %v10724, %v10723
      %v10755 = vpack.c.bf16 %v10726, %v10725
      %v10756 = vpack.c.bf16 %v10728, %v10727
      %v10757 = vpack.c.bf16 %v10730, %v10729
      %v10758 = vpack.c.bf16 %v10732, %v10731
      %v10759 = vpack.c.bf16 %v10734, %v10733
      %v10760 = vpack.c.bf16 %v10736, %v10735
      %v10761 = vpack.c.bf16 %v10738, %v10737
      %v10762 = vpack.c.bf16 %v10740, %v10739
      %v10763 = vpack.c.bf16 %v10742, %v10741
      %v10764 = vpack.c.bf16 %v10744, %v10743
      %v10765 = vpack.c.bf16 %v10746, %v10745
      %v10766 = vpack.c.bf16 %v10748, %v10747
      %v10767 = vpack.c.bf16 %v10750, %v10749
      %v10768 = vpack.c.bf16 %v10752, %v10751
      %s10769 = scalar_lea.vmem %s8, 48
      %v10770 = vld [vmem:[%s10769] sm:$0xf]
      %v10771 = vld [vmem:[%s10769 + $0x4] sm:$0xf]
      %v10772 = vld [vmem:[%s10769 + $0x8] sm:$0xf]
      %v10773 = vld [vmem:[%s10769 + $0xc] sm:$0xf]
      %s10774 = scalar_lea.vmem %s9, 3
      %v10775 = vld [vmem:[%s10774] sm:$0x1]
      %v10777 = vperm.slane %v10775, 0
      %v10783 = vunpack.c.l.b16 %v10770
      %v10784 = vunpack.c.l.b16 %v10771
      %v10785 = vunpack.c.l.b16 %v10772
      %v10786 = vunpack.c.l.b16 %v10773
      %v10787 = vpack.c.b16 %v10784, %v10783
      %v10788 = vpack.c.b16 %v10786, %v10785
      %v10792 = vsel %vm7607, %v10753, 0
      %v10795 = vsel %vm7607, %v10754, 0
      %v10798 = vsel %vm7607, %v10755, 0
      %v10801 = vsel %vm7607, %v10756, 0
      %v10804 = vsel %vm7607, %v10757, 0
      %v10807 = vsel %vm7607, %v10758, 0
      %v10810 = vsel %vm7607, %v10759, 0
      %v10813 = vsel %vm7607, %v10760, 0
      %v10816 = vsel %vm7607, %v10761, 0
      %v10819 = vsel %vm7607, %v10762, 0
      %v10822 = vsel %vm7607, %v10763, 0
      %v10825 = vsel %vm7607, %v10764, 0
      %v10828 = vsel %vm7607, %v10765, 0
      %v10831 = vsel %vm7607, %v10766, 0
      %v10834 = vsel %vm7607, %v10767, 0
      %v10837 = vsel %vm7607, %v10768, 0
      %10839 = vmatpush.bf16.msra.mxu0 0
      %10840 = vmatpush.bf16.msra.mxu0 0
      %10841 = vmatpush.bf16.msra.mxu0 0
      %10842 = vmatpush.bf16.msra.mxu0 0
      %10843 = vmatpush.bf16.msra.mxu0 0
      %10844 = vmatpush.bf16.msra.mxu0 0
      %10845 = vmatpush.bf16.msra.mxu0 %v10788
      %10846 = vmatpush.bf16.msra.mxu0 %v10787
      %10847 = vmatmul.bf16.gmra.mxu0 %v10792
      %v10848 = vpop.f32.mrf.mxu0
      %v10849 = vadd.f32 %v10777, %v10848
      %v10850 = vpop.f32.mrf.mxu0
      %v10851 = vadd.f32 %v10777, %v10850
      %10852 = vmatmul.bf16.gmra.mxu0 %v10795
      %v10853 = vpop.f32.mrf.mxu0
      %v10854 = vadd.f32 %v10777, %v10853
      %v10855 = vpop.f32.mrf.mxu0
      %v10856 = vadd.f32 %v10777, %v10855
      %10857 = vmatmul.bf16.gmra.mxu0 %v10798
      %v10858 = vpop.f32.mrf.mxu0
      %v10859 = vadd.f32 %v10777, %v10858
      %v10860 = vpop.f32.mrf.mxu0
      %v10861 = vadd.f32 %v10777, %v10860
      %10862 = vmatmul.bf16.gmra.mxu0 %v10801
      %v10863 = vpop.f32.mrf.mxu0
      %v10864 = vadd.f32 %v10777, %v10863
      %v10865 = vpop.f32.mrf.mxu0
      %v10866 = vadd.f32 %v10777, %v10865
      %10867 = vmatmul.bf16.gmra.mxu0 %v10804
      %v10868 = vpop.f32.mrf.mxu0
      %v10869 = vadd.f32 %v10777, %v10868
      %v10870 = vpop.f32.mrf.mxu0
      %v10871 = vadd.f32 %v10777, %v10870
      %10872 = vmatmul.bf16.gmra.mxu0 %v10807
      %v10873 = vpop.f32.mrf.mxu0
      %v10874 = vadd.f32 %v10777, %v10873
      %v10875 = vpop.f32.mrf.mxu0
      %v10876 = vadd.f32 %v10777, %v10875
      %10877 = vmatmul.bf16.gmra.mxu0 %v10810
      %v10878 = vpop.f32.mrf.mxu0
      %v10879 = vadd.f32 %v10777, %v10878
      %v10880 = vpop.f32.mrf.mxu0
      %v10881 = vadd.f32 %v10777, %v10880
      %10882 = vmatmul.bf16.gmra.mxu0 %v10813
      %v10883 = vpop.f32.mrf.mxu0
      %v10884 = vadd.f32 %v10777, %v10883
      %v10885 = vpop.f32.mrf.mxu0
      %v10886 = vadd.f32 %v10777, %v10885
      %10887 = vmatmul.bf16.gmra.mxu0 %v10816
      %v10888 = vpop.f32.mrf.mxu0
      %v10889 = vadd.f32 %v10777, %v10888
      %v10890 = vpop.f32.mrf.mxu0
      %v10891 = vadd.f32 %v10777, %v10890
      %10892 = vmatmul.bf16.gmra.mxu0 %v10819
      %v10893 = vpop.f32.mrf.mxu0
      %v10894 = vadd.f32 %v10777, %v10893
      %v10895 = vpop.f32.mrf.mxu0
      %v10896 = vadd.f32 %v10777, %v10895
      %10897 = vmatmul.bf16.gmra.mxu0 %v10822
      %v10898 = vpop.f32.mrf.mxu0
      %v10899 = vadd.f32 %v10777, %v10898
      %v10900 = vpop.f32.mrf.mxu0
      %v10901 = vadd.f32 %v10777, %v10900
      %10902 = vmatmul.bf16.gmra.mxu0 %v10825
      %v10903 = vpop.f32.mrf.mxu0
      %v10904 = vadd.f32 %v10777, %v10903
      %v10905 = vpop.f32.mrf.mxu0
      %v10906 = vadd.f32 %v10777, %v10905
      %10907 = vmatmul.bf16.gmra.mxu0 %v10828
      %v10908 = vpop.f32.mrf.mxu0
      %v10909 = vadd.f32 %v10777, %v10908
      %v10910 = vpop.f32.mrf.mxu0
      %v10911 = vadd.f32 %v10777, %v10910
      %10912 = vmatmul.bf16.gmra.mxu0 %v10831
      %v10913 = vpop.f32.mrf.mxu0
      %v10914 = vadd.f32 %v10777, %v10913
      %v10915 = vpop.f32.mrf.mxu0
      %v10916 = vadd.f32 %v10777, %v10915
      %10917 = vmatmul.bf16.gmra.mxu0 %v10834
      %v10918 = vpop.f32.mrf.mxu0
      %v10919 = vadd.f32 %v10777, %v10918
      %v10920 = vpop.f32.mrf.mxu0
      %v10921 = vadd.f32 %v10777, %v10920
      %10922 = vmatmul.bf16.gmra.mxu0 %v10837
      %v10923 = vpop.f32.mrf.mxu0
      %v10924 = vadd.f32 %v10777, %v10923
      %v10925 = vpop.f32.mrf.mxu0
      %v10926 = vadd.f32 %v10777, %v10925
      %10927 = vdwg.mxu0
      %v10928 = vadd.f32 %v10482, %v10849
      %v10929 = vadd.f32 %v10483, %v10851
      %v10930 = vadd.f32 %v10484, %v10854
      %v10931 = vadd.f32 %v10485, %v10856
      %v10932 = vadd.f32 %v10486, %v10859
      %v10933 = vadd.f32 %v10487, %v10861
      %v10934 = vadd.f32 %v10488, %v10864
      %v10935 = vadd.f32 %v10489, %v10866
      %v10936 = vadd.f32 %v10490, %v10869
      %v10937 = vadd.f32 %v10491, %v10871
      %v10938 = vadd.f32 %v10492, %v10874
      %v10939 = vadd.f32 %v10493, %v10876
      %v10940 = vadd.f32 %v10494, %v10879
      %v10941 = vadd.f32 %v10495, %v10881
      %v10942 = vadd.f32 %v10496, %v10884
      %v10943 = vadd.f32 %v10497, %v10886
      %v10944 = vadd.f32 %v10498, %v10889
      %v10945 = vadd.f32 %v10499, %v10891
      %v10946 = vadd.f32 %v10500, %v10894
      %v10947 = vadd.f32 %v10501, %v10896
      %v10948 = vadd.f32 %v10502, %v10899
      %v10949 = vadd.f32 %v10503, %v10901
      %v10950 = vadd.f32 %v10504, %v10904
      %v10951 = vadd.f32 %v10505, %v10906
      %v10952 = vadd.f32 %v10506, %v10909
      %v10953 = vadd.f32 %v10507, %v10911
      %v10954 = vadd.f32 %v10508, %v10914
      %v10955 = vadd.f32 %v10509, %v10916
      %v10956 = vadd.f32 %v10510, %v10919
      %v10957 = vadd.f32 %v10511, %v10921
      %v10958 = vadd.f32 %v10512, %v10924
      %v10959 = vadd.f32 %v10513, %v10926
      %s10960 = scalar_lea.vmem %s4, 192
      %v10961 = vld [vmem:[%s10960] sm:$0xf]
      %v10962 = vld [vmem:[%s10960 + $0x4] sm:$0xf]
      %v10963 = vld [vmem:[%s10960 + $0x8] sm:$0xf]
      %v10964 = vld [vmem:[%s10960 + $0xc] sm:$0xf]
      %v10965 = vld [vmem:[%s10960 + $0x10] sm:$0xf]
      %v10966 = vld [vmem:[%s10960 + $0x14] sm:$0xf]
      %v10967 = vld [vmem:[%s10960 + $0x18] sm:$0xf]
      %v10968 = vld [vmem:[%s10960 + $0x1c] sm:$0xf]
      %v10969 = vld [vmem:[%s10960 + $0x20] sm:$0xf]
      %v10970 = vld [vmem:[%s10960 + $0x24] sm:$0xf]
      %v10971 = vld [vmem:[%s10960 + $0x28] sm:$0xf]
      %v10972 = vld [vmem:[%s10960 + $0x2c] sm:$0xf]
      %v10985 = vunpack.c.l.b16 %v10961
      %v10986 = vunpack.c.l.b16 %v10962
      %v10987 = vunpack.c.l.b16 %v10963
      %v10988 = vunpack.c.l.b16 %v10964
      %v10989 = vunpack.c.l.b16 %v10965
      %v10990 = vunpack.c.l.b16 %v10966
      %v10991 = vunpack.c.l.b16 %v10967
      %v10992 = vunpack.c.l.b16 %v10968
      %v10993 = vunpack.c.l.b16 %v10969
      %v10994 = vunpack.c.l.b16 %v10970
      %v10995 = vunpack.c.l.b16 %v10971
      %v10996 = vunpack.c.l.b16 %v10972
      %v10997 = vpack.c.b16 %v10986, %v10985
      %v10998 = vpack.c.b16 %v10988, %v10987
      %v10999 = vpack.c.b16 %v10990, %v10989
      %v11000 = vpack.c.b16 %v10992, %v10991
      %v11001 = vpack.c.b16 %v10994, %v10993
      %v11002 = vpack.c.b16 %v10996, %v10995
      %11009 = vmatpush.bf16.msra.mxu0 0
      %11010 = vmatpush.bf16.msra.mxu0 0
      %11011 = vmatpush.bf16.msra.mxu0 %v11002
      %11012 = vmatpush.bf16.msra.mxu0 %v11001
      %11013 = vmatpush.bf16.msra.mxu0 %v11000
      %11014 = vmatpush.bf16.msra.mxu0 %v10999
      %11015 = vmatpush.bf16.msra.mxu0 %v10998
      %11016 = vmatpush.bf16.msra.mxu0 %v10997
      %11017 = vmatmul.bf16.gmra.mxu0 %v8355
      %v11018 = vpop.f32.mrf.mxu0
      %v11019 = vadd.f32 0.0, %v11018
      %v11020 = vpop.f32.mrf.mxu0
      %v11021 = vadd.f32 0.0, %v11020
      %11022 = vmatmul.bf16.gmra.mxu0 %v8358
      %v11023 = vpop.f32.mrf.mxu0
      %v11024 = vadd.f32 0.0, %v11023
      %v11025 = vpop.f32.mrf.mxu0
      %v11026 = vadd.f32 0.0, %v11025
      %11027 = vmatmul.bf16.gmra.mxu0 %v8361
      %v11028 = vpop.f32.mrf.mxu0
      %v11029 = vadd.f32 0.0, %v11028
      %v11030 = vpop.f32.mrf.mxu0
      %v11031 = vadd.f32 0.0, %v11030
      %11032 = vmatmul.bf16.gmra.mxu0 %v8364
      %v11033 = vpop.f32.mrf.mxu0
      %v11034 = vadd.f32 0.0, %v11033
      %v11035 = vpop.f32.mrf.mxu0
      %v11036 = vadd.f32 0.0, %v11035
      %11037 = vmatmul.bf16.gmra.mxu0 %v8367
      %v11038 = vpop.f32.mrf.mxu0
      %v11039 = vadd.f32 0.0, %v11038
      %v11040 = vpop.f32.mrf.mxu0
      %v11041 = vadd.f32 0.0, %v11040
      %11042 = vmatmul.bf16.gmra.mxu0 %v8370
      %v11043 = vpop.f32.mrf.mxu0
      %v11044 = vadd.f32 0.0, %v11043
      %v11045 = vpop.f32.mrf.mxu0
      %v11046 = vadd.f32 0.0, %v11045
      %11047 = vmatmul.bf16.gmra.mxu0 %v8373
      %v11048 = vpop.f32.mrf.mxu0
      %v11049 = vadd.f32 0.0, %v11048
      %v11050 = vpop.f32.mrf.mxu0
      %v11051 = vadd.f32 0.0, %v11050
      %11052 = vmatmul.bf16.gmra.mxu0 %v8376
      %v11053 = vpop.f32.mrf.mxu0
      %v11054 = vadd.f32 0.0, %v11053
      %v11055 = vpop.f32.mrf.mxu0
      %v11056 = vadd.f32 0.0, %v11055
      %11057 = vmatmul.bf16.gmra.mxu0 %v8379
      %v11058 = vpop.f32.mrf.mxu0
      %v11059 = vadd.f32 0.0, %v11058
      %v11060 = vpop.f32.mrf.mxu0
      %v11061 = vadd.f32 0.0, %v11060
      %11062 = vmatmul.bf16.gmra.mxu0 %v8382
      %v11063 = vpop.f32.mrf.mxu0
      %v11064 = vadd.f32 0.0, %v11063
      %v11065 = vpop.f32.mrf.mxu0
      %v11066 = vadd.f32 0.0, %v11065
      %11067 = vmatmul.bf16.gmra.mxu0 %v8385
      %v11068 = vpop.f32.mrf.mxu0
      %v11069 = vadd.f32 0.0, %v11068
      %v11070 = vpop.f32.mrf.mxu0
      %v11071 = vadd.f32 0.0, %v11070
      %11072 = vmatmul.bf16.gmra.mxu0 %v8388
      %v11073 = vpop.f32.mrf.mxu0
      %v11074 = vadd.f32 0.0, %v11073
      %v11075 = vpop.f32.mrf.mxu0
      %v11076 = vadd.f32 0.0, %v11075
      %11077 = vmatmul.bf16.gmra.mxu0 %v8391
      %v11078 = vpop.f32.mrf.mxu0
      %v11079 = vadd.f32 0.0, %v11078
      %v11080 = vpop.f32.mrf.mxu0
      %v11081 = vadd.f32 0.0, %v11080
      %11082 = vmatmul.bf16.gmra.mxu0 %v8394
      %v11083 = vpop.f32.mrf.mxu0
      %v11084 = vadd.f32 0.0, %v11083
      %v11085 = vpop.f32.mrf.mxu0
      %v11086 = vadd.f32 0.0, %v11085
      %11087 = vmatmul.bf16.gmra.mxu0 %v8397
      %v11088 = vpop.f32.mrf.mxu0
      %v11089 = vadd.f32 0.0, %v11088
      %v11090 = vpop.f32.mrf.mxu0
      %v11091 = vadd.f32 0.0, %v11090
      %11092 = vmatmul.bf16.gmra.mxu0 %v8400
      %v11093 = vpop.f32.mrf.mxu0
      %v11094 = vadd.f32 0.0, %v11093
      %v11095 = vpop.f32.mrf.mxu0
      %v11096 = vadd.f32 0.0, %v11095
      %11097 = vdwg.mxu0
      %v11098 = vadd.f32 %v10928, %v11019
      %v11099 = vadd.f32 %v10929, %v11021
      %v11100 = vadd.f32 %v10930, %v11024
      %v11101 = vadd.f32 %v10931, %v11026
      %v11102 = vadd.f32 %v10932, %v11029
      %v11103 = vadd.f32 %v10933, %v11031
      %v11104 = vadd.f32 %v10934, %v11034
      %v11105 = vadd.f32 %v10935, %v11036
      %v11106 = vadd.f32 %v10936, %v11039
      %v11107 = vadd.f32 %v10937, %v11041
      %v11108 = vadd.f32 %v10938, %v11044
      %v11109 = vadd.f32 %v10939, %v11046
      %v11110 = vadd.f32 %v10940, %v11049
      %v11111 = vadd.f32 %v10941, %v11051
      %v11112 = vadd.f32 %v10942, %v11054
      %v11113 = vadd.f32 %v10943, %v11056
      %v11114 = vadd.f32 %v10944, %v11059
      %v11115 = vadd.f32 %v10945, %v11061
      %v11116 = vadd.f32 %v10946, %v11064
      %v11117 = vadd.f32 %v10947, %v11066
      %v11118 = vadd.f32 %v10948, %v11069
      %v11119 = vadd.f32 %v10949, %v11071
      %v11120 = vadd.f32 %v10950, %v11074
      %v11121 = vadd.f32 %v10951, %v11076
      %v11122 = vadd.f32 %v10952, %v11079
      %v11123 = vadd.f32 %v10953, %v11081
      %v11124 = vadd.f32 %v10954, %v11084
      %v11125 = vadd.f32 %v10955, %v11086
      %v11126 = vadd.f32 %v10956, %v11089
      %v11127 = vadd.f32 %v10957, %v11091
      %v11128 = vadd.f32 %v10958, %v11094
      %v11129 = vadd.f32 %v10959, %v11096
      %s11130 = scalar_lea.vmem %s5, 4
      %v11131 = vld [vmem:[%s11130] sm:$0x1]
      %v11133 = vperm.slane %v11131, 0
      %v11135 = vadd.f32 %v11098, %v11133
      %v11136 = vadd.f32 %v11099, %v11133
      %v11137 = vadd.f32 %v11100, %v11133
      %v11138 = vadd.f32 %v11101, %v11133
      %v11139 = vadd.f32 %v11102, %v11133
      %v11140 = vadd.f32 %v11103, %v11133
      %v11141 = vadd.f32 %v11104, %v11133
      %v11142 = vadd.f32 %v11105, %v11133
      %v11143 = vadd.f32 %v11106, %v11133
      %v11144 = vadd.f32 %v11107, %v11133
      %v11145 = vadd.f32 %v11108, %v11133
      %v11146 = vadd.f32 %v11109, %v11133
      %v11147 = vadd.f32 %v11110, %v11133
      %v11148 = vadd.f32 %v11111, %v11133
      %v11149 = vadd.f32 %v11112, %v11133
      %v11150 = vadd.f32 %v11113, %v11133
      %v11151 = vadd.f32 %v11114, %v11133
      %v11152 = vadd.f32 %v11115, %v11133
      %v11153 = vadd.f32 %v11116, %v11133
      %v11154 = vadd.f32 %v11117, %v11133
      %v11155 = vadd.f32 %v11118, %v11133
      %v11156 = vadd.f32 %v11119, %v11133
      %v11157 = vadd.f32 %v11120, %v11133
      %v11158 = vadd.f32 %v11121, %v11133
      %v11159 = vadd.f32 %v11122, %v11133
      %v11160 = vadd.f32 %v11123, %v11133
      %v11161 = vadd.f32 %v11124, %v11133
      %v11162 = vadd.f32 %v11125, %v11133
      %v11163 = vadd.f32 %v11126, %v11133
      %v11164 = vadd.f32 %v11127, %v11133
      %v11165 = vadd.f32 %v11128, %v11133
      %v11166 = vadd.f32 %v11129, %v11133
      %v11167 = vmax.f32 %v11135, 0.0
      %v11168 = vmax.f32 %v11136, 0.0
      %v11169 = vmax.f32 %v11137, 0.0
      %v11170 = vmax.f32 %v11138, 0.0
      %v11171 = vmax.f32 %v11139, 0.0
      %v11172 = vmax.f32 %v11140, 0.0
      %v11173 = vmax.f32 %v11141, 0.0
      %v11174 = vmax.f32 %v11142, 0.0
      %v11175 = vmax.f32 %v11143, 0.0
      %v11176 = vmax.f32 %v11144, 0.0
      %v11177 = vmax.f32 %v11145, 0.0
      %v11178 = vmax.f32 %v11146, 0.0
      %v11179 = vmax.f32 %v11147, 0.0
      %v11180 = vmax.f32 %v11148, 0.0
      %v11181 = vmax.f32 %v11149, 0.0
      %v11182 = vmax.f32 %v11150, 0.0
      %v11183 = vmax.f32 %v11151, 0.0
      %v11184 = vmax.f32 %v11152, 0.0
      %v11185 = vmax.f32 %v11153, 0.0
      %v11186 = vmax.f32 %v11154, 0.0
      %v11187 = vmax.f32 %v11155, 0.0
      %v11188 = vmax.f32 %v11156, 0.0
      %v11189 = vmax.f32 %v11157, 0.0
      %v11190 = vmax.f32 %v11158, 0.0
      %v11191 = vmax.f32 %v11159, 0.0
      %v11192 = vmax.f32 %v11160, 0.0
      %v11193 = vmax.f32 %v11161, 0.0
      %v11194 = vmax.f32 %v11162, 0.0
      %v11195 = vmax.f32 %v11163, 0.0
      %v11196 = vmax.f32 %v11164, 0.0
      %v11197 = vmax.f32 %v11165, 0.0
      %v11198 = vmax.f32 %v11166, 0.0
      %v11199 = vpack.c.bf16 %v11168, %v11167
      %v11200 = vpack.c.bf16 %v11170, %v11169
      %v11201 = vpack.c.bf16 %v11172, %v11171
      %v11202 = vpack.c.bf16 %v11174, %v11173
      %v11203 = vpack.c.bf16 %v11176, %v11175
      %v11204 = vpack.c.bf16 %v11178, %v11177
      %v11205 = vpack.c.bf16 %v11180, %v11179
      %v11206 = vpack.c.bf16 %v11182, %v11181
      %v11207 = vpack.c.bf16 %v11184, %v11183
      %v11208 = vpack.c.bf16 %v11186, %v11185
      %v11209 = vpack.c.bf16 %v11188, %v11187
      %v11210 = vpack.c.bf16 %v11190, %v11189
      %v11211 = vpack.c.bf16 %v11192, %v11191
      %v11212 = vpack.c.bf16 %v11194, %v11193
      %v11213 = vpack.c.bf16 %v11196, %v11195
      %v11214 = vpack.c.bf16 %v11198, %v11197
      %s11215 = scalar_lea.vmem %s6, 64
      %v11216 = vld [vmem:[%s11215] sm:$0xf]
      %v11217 = vld [vmem:[%s11215 + $0x4] sm:$0xf]
      %v11218 = vld [vmem:[%s11215 + $0x8] sm:$0xf]
      %v11219 = vld [vmem:[%s11215 + $0xc] sm:$0xf]
      %s11220 = scalar_lea.vmem %s7, 4
      %v11221 = vld [vmem:[%s11220] sm:$0x1]
      %v11223 = vperm.slane %v11221, 0
      %v11229 = vunpack.c.l.b16 %v11216
      %v11230 = vunpack.c.l.b16 %v11217
      %v11231 = vunpack.c.l.b16 %v11218
      %v11232 = vunpack.c.l.b16 %v11219
      %v11233 = vpack.c.b16 %v11230, %v11229
      %v11234 = vpack.c.b16 %v11232, %v11231
      %v11238 = vsel %vm7607, %v11199, 0
      %v11241 = vsel %vm7607, %v11200, 0
      %v11244 = vsel %vm7607, %v11201, 0
      %v11247 = vsel %vm7607, %v11202, 0
      %v11250 = vsel %vm7607, %v11203, 0
      %v11253 = vsel %vm7607, %v11204, 0
      %v11256 = vsel %vm7607, %v11205, 0
      %v11259 = vsel %vm7607, %v11206, 0
      %v11262 = vsel %vm7607, %v11207, 0
      %v11265 = vsel %vm7607, %v11208, 0
      %v11268 = vsel %vm7607, %v11209, 0
      %v11271 = vsel %vm7607, %v11210, 0
      %v11274 = vsel %vm7607, %v11211, 0
      %v11277 = vsel %vm7607, %v11212, 0
      %v11280 = vsel %vm7607, %v11213, 0
      %v11283 = vsel %vm7607, %v11214, 0
      %11285 = vmatpush.bf16.msra.mxu0 0
      %11286 = vmatpush.bf16.msra.mxu0 0
      %11287 = vmatpush.bf16.msra.mxu0 0
      %11288 = vmatpush.bf16.msra.mxu0 0
      %11289 = vmatpush.bf16.msra.mxu0 0
      %11290 = vmatpush.bf16.msra.mxu0 0
      %11291 = vmatpush.bf16.msra.mxu0 %v11234
      %11292 = vmatpush.bf16.msra.mxu0 %v11233
      %11293 = vmatmul.bf16.gmra.mxu0 %v11238
      %v11294 = vpop.f32.mrf.mxu0
      %v11295 = vadd.f32 %v11223, %v11294
      %v11296 = vpop.f32.mrf.mxu0
      %v11297 = vadd.f32 %v11223, %v11296
      %11298 = vmatmul.bf16.gmra.mxu0 %v11241
      %v11299 = vpop.f32.mrf.mxu0
      %v11300 = vadd.f32 %v11223, %v11299
      %v11301 = vpop.f32.mrf.mxu0
      %v11302 = vadd.f32 %v11223, %v11301
      %11303 = vmatmul.bf16.gmra.mxu0 %v11244
      %v11304 = vpop.f32.mrf.mxu0
      %v11305 = vadd.f32 %v11223, %v11304
      %v11306 = vpop.f32.mrf.mxu0
      %v11307 = vadd.f32 %v11223, %v11306
      %11308 = vmatmul.bf16.gmra.mxu0 %v11247
      %v11309 = vpop.f32.mrf.mxu0
      %v11310 = vadd.f32 %v11223, %v11309
      %v11311 = vpop.f32.mrf.mxu0
      %v11312 = vadd.f32 %v11223, %v11311
      %11313 = vmatmul.bf16.gmra.mxu0 %v11250
      %v11314 = vpop.f32.mrf.mxu0
      %v11315 = vadd.f32 %v11223, %v11314
      %v11316 = vpop.f32.mrf.mxu0
      %v11317 = vadd.f32 %v11223, %v11316
      %11318 = vmatmul.bf16.gmra.mxu0 %v11253
      %v11319 = vpop.f32.mrf.mxu0
      %v11320 = vadd.f32 %v11223, %v11319
      %v11321 = vpop.f32.mrf.mxu0
      %v11322 = vadd.f32 %v11223, %v11321
      %11323 = vmatmul.bf16.gmra.mxu0 %v11256
      %v11324 = vpop.f32.mrf.mxu0
      %v11325 = vadd.f32 %v11223, %v11324
      %v11326 = vpop.f32.mrf.mxu0
      %v11327 = vadd.f32 %v11223, %v11326
      %11328 = vmatmul.bf16.gmra.mxu0 %v11259
      %v11329 = vpop.f32.mrf.mxu0
      %v11330 = vadd.f32 %v11223, %v11329
      %v11331 = vpop.f32.mrf.mxu0
      %v11332 = vadd.f32 %v11223, %v11331
      %11333 = vmatmul.bf16.gmra.mxu0 %v11262
      %v11334 = vpop.f32.mrf.mxu0
      %v11335 = vadd.f32 %v11223, %v11334
      %v11336 = vpop.f32.mrf.mxu0
      %v11337 = vadd.f32 %v11223, %v11336
      %11338 = vmatmul.bf16.gmra.mxu0 %v11265
      %v11339 = vpop.f32.mrf.mxu0
      %v11340 = vadd.f32 %v11223, %v11339
      %v11341 = vpop.f32.mrf.mxu0
      %v11342 = vadd.f32 %v11223, %v11341
      %11343 = vmatmul.bf16.gmra.mxu0 %v11268
      %v11344 = vpop.f32.mrf.mxu0
      %v11345 = vadd.f32 %v11223, %v11344
      %v11346 = vpop.f32.mrf.mxu0
      %v11347 = vadd.f32 %v11223, %v11346
      %11348 = vmatmul.bf16.gmra.mxu0 %v11271
      %v11349 = vpop.f32.mrf.mxu0
      %v11350 = vadd.f32 %v11223, %v11349
      %v11351 = vpop.f32.mrf.mxu0
      %v11352 = vadd.f32 %v11223, %v11351
      %11353 = vmatmul.bf16.gmra.mxu0 %v11274
      %v11354 = vpop.f32.mrf.mxu0
      %v11355 = vadd.f32 %v11223, %v11354
      %v11356 = vpop.f32.mrf.mxu0
      %v11357 = vadd.f32 %v11223, %v11356
      %11358 = vmatmul.bf16.gmra.mxu0 %v11277
      %v11359 = vpop.f32.mrf.mxu0
      %v11360 = vadd.f32 %v11223, %v11359
      %v11361 = vpop.f32.mrf.mxu0
      %v11362 = vadd.f32 %v11223, %v11361
      %11363 = vmatmul.bf16.gmra.mxu0 %v11280
      %v11364 = vpop.f32.mrf.mxu0
      %v11365 = vadd.f32 %v11223, %v11364
      %v11366 = vpop.f32.mrf.mxu0
      %v11367 = vadd.f32 %v11223, %v11366
      %11368 = vmatmul.bf16.gmra.mxu0 %v11283
      %v11369 = vpop.f32.mrf.mxu0
      %v11370 = vadd.f32 %v11223, %v11369
      %v11371 = vpop.f32.mrf.mxu0
      %v11372 = vadd.f32 %v11223, %v11371
      %11373 = vdwg.mxu0
      %v11374 = vmax.f32 %v11295, 0.0
      %v11375 = vmax.f32 %v11297, 0.0
      %v11376 = vmax.f32 %v11300, 0.0
      %v11377 = vmax.f32 %v11302, 0.0
      %v11378 = vmax.f32 %v11305, 0.0
      %v11379 = vmax.f32 %v11307, 0.0
      %v11380 = vmax.f32 %v11310, 0.0
      %v11381 = vmax.f32 %v11312, 0.0
      %v11382 = vmax.f32 %v11315, 0.0
      %v11383 = vmax.f32 %v11317, 0.0
      %v11384 = vmax.f32 %v11320, 0.0
      %v11385 = vmax.f32 %v11322, 0.0
      %v11386 = vmax.f32 %v11325, 0.0
      %v11387 = vmax.f32 %v11327, 0.0
      %v11388 = vmax.f32 %v11330, 0.0
      %v11389 = vmax.f32 %v11332, 0.0
      %v11390 = vmax.f32 %v11335, 0.0
      %v11391 = vmax.f32 %v11337, 0.0
      %v11392 = vmax.f32 %v11340, 0.0
      %v11393 = vmax.f32 %v11342, 0.0
      %v11394 = vmax.f32 %v11345, 0.0
      %v11395 = vmax.f32 %v11347, 0.0
      %v11396 = vmax.f32 %v11350, 0.0
      %v11397 = vmax.f32 %v11352, 0.0
      %v11398 = vmax.f32 %v11355, 0.0
      %v11399 = vmax.f32 %v11357, 0.0
      %v11400 = vmax.f32 %v11360, 0.0
      %v11401 = vmax.f32 %v11362, 0.0
      %v11402 = vmax.f32 %v11365, 0.0
      %v11403 = vmax.f32 %v11367, 0.0
      %v11404 = vmax.f32 %v11370, 0.0
      %v11405 = vmax.f32 %v11372, 0.0
      %v11406 = vpack.c.bf16 %v11375, %v11374
      %v11407 = vpack.c.bf16 %v11377, %v11376
      %v11408 = vpack.c.bf16 %v11379, %v11378
      %v11409 = vpack.c.bf16 %v11381, %v11380
      %v11410 = vpack.c.bf16 %v11383, %v11382
      %v11411 = vpack.c.bf16 %v11385, %v11384
      %v11412 = vpack.c.bf16 %v11387, %v11386
      %v11413 = vpack.c.bf16 %v11389, %v11388
      %v11414 = vpack.c.bf16 %v11391, %v11390
      %v11415 = vpack.c.bf16 %v11393, %v11392
      %v11416 = vpack.c.bf16 %v11395, %v11394
      %v11417 = vpack.c.bf16 %v11397, %v11396
      %v11418 = vpack.c.bf16 %v11399, %v11398
      %v11419 = vpack.c.bf16 %v11401, %v11400
      %v11420 = vpack.c.bf16 %v11403, %v11402
      %v11421 = vpack.c.bf16 %v11405, %v11404
      %s11422 = scalar_lea.vmem %s8, 64
      %v11423 = vld [vmem:[%s11422] sm:$0xf]
      %v11424 = vld [vmem:[%s11422 + $0x4] sm:$0xf]
      %v11425 = vld [vmem:[%s11422 + $0x8] sm:$0xf]
      %v11426 = vld [vmem:[%s11422 + $0xc] sm:$0xf]
      %s11427 = scalar_lea.vmem %s9, 4
      %v11428 = vld [vmem:[%s11427] sm:$0x1]
      %v11430 = vperm.slane %v11428, 0
      %v11436 = vunpack.c.l.b16 %v11423
      %v11437 = vunpack.c.l.b16 %v11424
      %v11438 = vunpack.c.l.b16 %v11425
      %v11439 = vunpack.c.l.b16 %v11426
      %v11440 = vpack.c.b16 %v11437, %v11436
      %v11441 = vpack.c.b16 %v11439, %v11438
      %v11445 = vsel %vm7607, %v11406, 0
      %v11448 = vsel %vm7607, %v11407, 0
      %v11451 = vsel %vm7607, %v11408, 0
      %v11454 = vsel %vm7607, %v11409, 0
      %v11457 = vsel %vm7607, %v11410, 0
      %v11460 = vsel %vm7607, %v11411, 0
      %v11463 = vsel %vm7607, %v11412, 0
      %v11466 = vsel %vm7607, %v11413, 0
      %v11469 = vsel %vm7607, %v11414, 0
      %v11472 = vsel %vm7607, %v11415, 0
      %v11475 = vsel %vm7607, %v11416, 0
      %v11478 = vsel %vm7607, %v11417, 0
      %v11481 = vsel %vm7607, %v11418, 0
      %v11484 = vsel %vm7607, %v11419, 0
      %v11487 = vsel %vm7607, %v11420, 0
      %v11490 = vsel %vm7607, %v11421, 0
      %11492 = vmatpush.bf16.msra.mxu0 0
      %11493 = vmatpush.bf16.msra.mxu0 0
      %11494 = vmatpush.bf16.msra.mxu0 0
      %11495 = vmatpush.bf16.msra.mxu0 0
      %11496 = vmatpush.bf16.msra.mxu0 0
      %11497 = vmatpush.bf16.msra.mxu0 0
      %11498 = vmatpush.bf16.msra.mxu0 %v11441
      %11499 = vmatpush.bf16.msra.mxu0 %v11440
      %11500 = vmatmul.bf16.gmra.mxu0 %v11445
      %v11501 = vpop.f32.mrf.mxu0
      %v11502 = vadd.f32 %v11430, %v11501
      %v11503 = vpop.f32.mrf.mxu0
      %v11504 = vadd.f32 %v11430, %v11503
      %11505 = vmatmul.bf16.gmra.mxu0 %v11448
      %v11506 = vpop.f32.mrf.mxu0
      %v11507 = vadd.f32 %v11430, %v11506
      %v11508 = vpop.f32.mrf.mxu0
      %v11509 = vadd.f32 %v11430, %v11508
      %11510 = vmatmul.bf16.gmra.mxu0 %v11451
      %v11511 = vpop.f32.mrf.mxu0
      %v11512 = vadd.f32 %v11430, %v11511
      %v11513 = vpop.f32.mrf.mxu0
      %v11514 = vadd.f32 %v11430, %v11513
      %11515 = vmatmul.bf16.gmra.mxu0 %v11454
      %v11516 = vpop.f32.mrf.mxu0
      %v11517 = vadd.f32 %v11430, %v11516
      %v11518 = vpop.f32.mrf.mxu0
      %v11519 = vadd.f32 %v11430, %v11518
      %11520 = vmatmul.bf16.gmra.mxu0 %v11457
      %v11521 = vpop.f32.mrf.mxu0
      %v11522 = vadd.f32 %v11430, %v11521
      %v11523 = vpop.f32.mrf.mxu0
      %v11524 = vadd.f32 %v11430, %v11523
      %11525 = vmatmul.bf16.gmra.mxu0 %v11460
      %v11526 = vpop.f32.mrf.mxu0
      %v11527 = vadd.f32 %v11430, %v11526
      %v11528 = vpop.f32.mrf.mxu0
      %v11529 = vadd.f32 %v11430, %v11528
      %11530 = vmatmul.bf16.gmra.mxu0 %v11463
      %v11531 = vpop.f32.mrf.mxu0
      %v11532 = vadd.f32 %v11430, %v11531
      %v11533 = vpop.f32.mrf.mxu0
      %v11534 = vadd.f32 %v11430, %v11533
      %11535 = vmatmul.bf16.gmra.mxu0 %v11466
      %v11536 = vpop.f32.mrf.mxu0
      %v11537 = vadd.f32 %v11430, %v11536
      %v11538 = vpop.f32.mrf.mxu0
      %v11539 = vadd.f32 %v11430, %v11538
      %11540 = vmatmul.bf16.gmra.mxu0 %v11469
      %v11541 = vpop.f32.mrf.mxu0
      %v11542 = vadd.f32 %v11430, %v11541
      %v11543 = vpop.f32.mrf.mxu0
      %v11544 = vadd.f32 %v11430, %v11543
      %11545 = vmatmul.bf16.gmra.mxu0 %v11472
      %v11546 = vpop.f32.mrf.mxu0
      %v11547 = vadd.f32 %v11430, %v11546
      %v11548 = vpop.f32.mrf.mxu0
      %v11549 = vadd.f32 %v11430, %v11548
      %11550 = vmatmul.bf16.gmra.mxu0 %v11475
      %v11551 = vpop.f32.mrf.mxu0
      %v11552 = vadd.f32 %v11430, %v11551
      %v11553 = vpop.f32.mrf.mxu0
      %v11554 = vadd.f32 %v11430, %v11553
      %11555 = vmatmul.bf16.gmra.mxu0 %v11478
      %v11556 = vpop.f32.mrf.mxu0
      %v11557 = vadd.f32 %v11430, %v11556
      %v11558 = vpop.f32.mrf.mxu0
      %v11559 = vadd.f32 %v11430, %v11558
      %11560 = vmatmul.bf16.gmra.mxu0 %v11481
      %v11561 = vpop.f32.mrf.mxu0
      %v11562 = vadd.f32 %v11430, %v11561
      %v11563 = vpop.f32.mrf.mxu0
      %v11564 = vadd.f32 %v11430, %v11563
      %11565 = vmatmul.bf16.gmra.mxu0 %v11484
      %v11566 = vpop.f32.mrf.mxu0
      %v11567 = vadd.f32 %v11430, %v11566
      %v11568 = vpop.f32.mrf.mxu0
      %v11569 = vadd.f32 %v11430, %v11568
      %11570 = vmatmul.bf16.gmra.mxu0 %v11487
      %v11571 = vpop.f32.mrf.mxu0
      %v11572 = vadd.f32 %v11430, %v11571
      %v11573 = vpop.f32.mrf.mxu0
      %v11574 = vadd.f32 %v11430, %v11573
      %11575 = vmatmul.bf16.gmra.mxu0 %v11490
      %v11576 = vpop.f32.mrf.mxu0
      %v11577 = vadd.f32 %v11430, %v11576
      %v11578 = vpop.f32.mrf.mxu0
      %v11579 = vadd.f32 %v11430, %v11578
      %11580 = vdwg.mxu0
      %v11581 = vadd.f32 %v11135, %v11502
      %v11582 = vadd.f32 %v11136, %v11504
      %v11583 = vadd.f32 %v11137, %v11507
      %v11584 = vadd.f32 %v11138, %v11509
      %v11585 = vadd.f32 %v11139, %v11512
      %v11586 = vadd.f32 %v11140, %v11514
      %v11587 = vadd.f32 %v11141, %v11517
      %v11588 = vadd.f32 %v11142, %v11519
      %v11589 = vadd.f32 %v11143, %v11522
      %v11590 = vadd.f32 %v11144, %v11524
      %v11591 = vadd.f32 %v11145, %v11527
      %v11592 = vadd.f32 %v11146, %v11529
      %v11593 = vadd.f32 %v11147, %v11532
      %v11594 = vadd.f32 %v11148, %v11534
      %v11595 = vadd.f32 %v11149, %v11537
      %v11596 = vadd.f32 %v11150, %v11539
      %v11597 = vadd.f32 %v11151, %v11542
      %v11598 = vadd.f32 %v11152, %v11544
      %v11599 = vadd.f32 %v11153, %v11547
      %v11600 = vadd.f32 %v11154, %v11549
      %v11601 = vadd.f32 %v11155, %v11552
      %v11602 = vadd.f32 %v11156, %v11554
      %v11603 = vadd.f32 %v11157, %v11557
      %v11604 = vadd.f32 %v11158, %v11559
      %v11605 = vadd.f32 %v11159, %v11562
      %v11606 = vadd.f32 %v11160, %v11564
      %v11607 = vadd.f32 %v11161, %v11567
      %v11608 = vadd.f32 %v11162, %v11569
      %v11609 = vadd.f32 %v11163, %v11572
      %v11610 = vadd.f32 %v11164, %v11574
      %v11611 = vadd.f32 %v11165, %v11577
      %v11612 = vadd.f32 %v11166, %v11579
      %v11613 = vmax.f32 %v11581, 0.0
      %v11614 = vmax.f32 %v11582, 0.0
      %v11615 = vmax.f32 %v11583, 0.0
      %v11616 = vmax.f32 %v11584, 0.0
      %v11617 = vmax.f32 %v11585, 0.0
      %v11618 = vmax.f32 %v11586, 0.0
      %v11619 = vmax.f32 %v11587, 0.0
      %v11620 = vmax.f32 %v11588, 0.0
      %v11621 = vmax.f32 %v11589, 0.0
      %v11622 = vmax.f32 %v11590, 0.0
      %v11623 = vmax.f32 %v11591, 0.0
      %v11624 = vmax.f32 %v11592, 0.0
      %v11625 = vmax.f32 %v11593, 0.0
      %v11626 = vmax.f32 %v11594, 0.0
      %v11627 = vmax.f32 %v11595, 0.0
      %v11628 = vmax.f32 %v11596, 0.0
      %v11629 = vmax.f32 %v11597, 0.0
      %v11630 = vmax.f32 %v11598, 0.0
      %v11631 = vmax.f32 %v11599, 0.0
      %v11632 = vmax.f32 %v11600, 0.0
      %v11633 = vmax.f32 %v11601, 0.0
      %v11634 = vmax.f32 %v11602, 0.0
      %v11635 = vmax.f32 %v11603, 0.0
      %v11636 = vmax.f32 %v11604, 0.0
      %v11637 = vmax.f32 %v11605, 0.0
      %v11638 = vmax.f32 %v11606, 0.0
      %v11639 = vmax.f32 %v11607, 0.0
      %v11640 = vmax.f32 %v11608, 0.0
      %v11641 = vmax.f32 %v11609, 0.0
      %v11642 = vmax.f32 %v11610, 0.0
      %v11643 = vmax.f32 %v11611, 0.0
      %v11644 = vmax.f32 %v11612, 0.0
      %v11645 = vpack.c.bf16 %v11614, %v11613
      %v11646 = vpack.c.bf16 %v11616, %v11615
      %v11647 = vpack.c.bf16 %v11618, %v11617
      %v11648 = vpack.c.bf16 %v11620, %v11619
      %v11649 = vpack.c.bf16 %v11622, %v11621
      %v11650 = vpack.c.bf16 %v11624, %v11623
      %v11651 = vpack.c.bf16 %v11626, %v11625
      %v11652 = vpack.c.bf16 %v11628, %v11627
      %v11653 = vpack.c.bf16 %v11630, %v11629
      %v11654 = vpack.c.bf16 %v11632, %v11631
      %v11655 = vpack.c.bf16 %v11634, %v11633
      %v11656 = vpack.c.bf16 %v11636, %v11635
      %v11657 = vpack.c.bf16 %v11638, %v11637
      %v11658 = vpack.c.bf16 %v11640, %v11639
      %v11659 = vpack.c.bf16 %v11642, %v11641
      %v11660 = vpack.c.bf16 %v11644, %v11643
      %v11661 = vld [vmem:[%s10] sm:$0xf]
      %v11662 = vld [vmem:[%s10 + $0x4] sm:$0xf]
      %v11663 = vld [vmem:[%s10 + $0x8] sm:$0xf]
      %v11664 = vld [vmem:[%s10 + $0xc] sm:$0xf]
      %v11665 = vld [vmem:[#allocation2] sm:$0x1]
      %v11667 = vperm.slane %v11665, 0
      %v11673 = vunpack.c.l.b16 %v11661
      %v11674 = vunpack.c.l.b16 %v11662
      %v11675 = vunpack.c.l.b16 %v11663
      %v11676 = vunpack.c.l.b16 %v11664
      %v11677 = vpack.c.b16 %v11674, %v11673
      %v11678 = vpack.c.b16 %v11676, %v11675
      %v11682 = vsel %vm7607, %v11645, 0
      %v11685 = vsel %vm7607, %v11646, 0
      %v11688 = vsel %vm7607, %v11647, 0
      %v11691 = vsel %vm7607, %v11648, 0
      %v11694 = vsel %vm7607, %v11649, 0
      %v11697 = vsel %vm7607, %v11650, 0
      %v11700 = vsel %vm7607, %v11651, 0
      %v11703 = vsel %vm7607, %v11652, 0
      %v11706 = vsel %vm7607, %v11653, 0
      %v11709 = vsel %vm7607, %v11654, 0
      %v11712 = vsel %vm7607, %v11655, 0
      %v11715 = vsel %vm7607, %v11656, 0
      %v11718 = vsel %vm7607, %v11657, 0
      %v11721 = vsel %vm7607, %v11658, 0
      %v11724 = vsel %vm7607, %v11659, 0
      %v11727 = vsel %vm7607, %v11660, 0
      %11729 = vmatpush.bf16.msra.mxu0 0
      %11730 = vmatpush.bf16.msra.mxu0 0
      %11731 = vmatpush.bf16.msra.mxu0 0
      %11732 = vmatpush.bf16.msra.mxu0 0
      %11733 = vmatpush.bf16.msra.mxu0 0
      %11734 = vmatpush.bf16.msra.mxu0 0
      %11735 = vmatpush.bf16.msra.mxu0 %v11678
      %11736 = vmatpush.bf16.msra.mxu0 %v11677
      %11737 = vmatmul.bf16.gmra.mxu0 %v11682
      %v11738 = vpop.f32.mrf.mxu0
      %v11739 = vadd.f32 %v11667, %v11738
      %v11740 = vpop.f32.mrf.mxu0
      %v11741 = vadd.f32 %v11667, %v11740
      %11742 = vmatmul.bf16.gmra.mxu0 %v11685
      %v11743 = vpop.f32.mrf.mxu0
      %v11744 = vadd.f32 %v11667, %v11743
      %v11745 = vpop.f32.mrf.mxu0
      %v11746 = vadd.f32 %v11667, %v11745
      %11747 = vmatmul.bf16.gmra.mxu0 %v11688
      %v11748 = vpop.f32.mrf.mxu0
      %v11749 = vadd.f32 %v11667, %v11748
      %v11750 = vpop.f32.mrf.mxu0
      %v11751 = vadd.f32 %v11667, %v11750
      %11752 = vmatmul.bf16.gmra.mxu0 %v11691
      %v11753 = vpop.f32.mrf.mxu0
      %v11754 = vadd.f32 %v11667, %v11753
      %v11755 = vpop.f32.mrf.mxu0
      %v11756 = vadd.f32 %v11667, %v11755
      %11757 = vmatmul.bf16.gmra.mxu0 %v11694
      %v11758 = vpop.f32.mrf.mxu0
      %v11759 = vadd.f32 %v11667, %v11758
      %v11760 = vpop.f32.mrf.mxu0
      %v11761 = vadd.f32 %v11667, %v11760
      %11762 = vmatmul.bf16.gmra.mxu0 %v11697
      %v11763 = vpop.f32.mrf.mxu0
      %v11764 = vadd.f32 %v11667, %v11763
      %v11765 = vpop.f32.mrf.mxu0
      %v11766 = vadd.f32 %v11667, %v11765
      %11767 = vmatmul.bf16.gmra.mxu0 %v11700
      %v11768 = vpop.f32.mrf.mxu0
      %v11769 = vadd.f32 %v11667, %v11768
      %v11770 = vpop.f32.mrf.mxu0
      %v11771 = vadd.f32 %v11667, %v11770
      %11772 = vmatmul.bf16.gmra.mxu0 %v11703
      %v11773 = vpop.f32.mrf.mxu0
      %v11774 = vadd.f32 %v11667, %v11773
      %v11775 = vpop.f32.mrf.mxu0
      %v11776 = vadd.f32 %v11667, %v11775
      %11777 = vmatmul.bf16.gmra.mxu0 %v11706
      %v11778 = vpop.f32.mrf.mxu0
      %v11779 = vadd.f32 %v11667, %v11778
      %v11780 = vpop.f32.mrf.mxu0
      %v11781 = vadd.f32 %v11667, %v11780
      %11782 = vmatmul.bf16.gmra.mxu0 %v11709
      %v11783 = vpop.f32.mrf.mxu0
      %v11784 = vadd.f32 %v11667, %v11783
      %v11785 = vpop.f32.mrf.mxu0
      %v11786 = vadd.f32 %v11667, %v11785
      %11787 = vmatmul.bf16.gmra.mxu0 %v11712
      %v11788 = vpop.f32.mrf.mxu0
      %v11789 = vadd.f32 %v11667, %v11788
      %v11790 = vpop.f32.mrf.mxu0
      %v11791 = vadd.f32 %v11667, %v11790
      %11792 = vmatmul.bf16.gmra.mxu0 %v11715
      %v11793 = vpop.f32.mrf.mxu0
      %v11794 = vadd.f32 %v11667, %v11793
      %v11795 = vpop.f32.mrf.mxu0
      %v11796 = vadd.f32 %v11667, %v11795
      %11797 = vmatmul.bf16.gmra.mxu0 %v11718
      %v11798 = vpop.f32.mrf.mxu0
      %v11799 = vadd.f32 %v11667, %v11798
      %v11800 = vpop.f32.mrf.mxu0
      %v11801 = vadd.f32 %v11667, %v11800
      %11802 = vmatmul.bf16.gmra.mxu0 %v11721
      %v11803 = vpop.f32.mrf.mxu0
      %v11804 = vadd.f32 %v11667, %v11803
      %v11805 = vpop.f32.mrf.mxu0
      %v11806 = vadd.f32 %v11667, %v11805
      %11807 = vmatmul.bf16.gmra.mxu0 %v11724
      %v11808 = vpop.f32.mrf.mxu0
      %v11809 = vadd.f32 %v11667, %v11808
      %v11810 = vpop.f32.mrf.mxu0
      %v11811 = vadd.f32 %v11667, %v11810
      %11812 = vmatmul.bf16.gmra.mxu0 %v11727
      %v11813 = vpop.f32.mrf.mxu0
      %v11814 = vadd.f32 %v11667, %v11813
      %v11815 = vpop.f32.mrf.mxu0
      %v11816 = vadd.f32 %v11667, %v11815
      %11817 = vdwg.mxu0
      %vm11818 = vcmask 7168
      %11819 = vst.msk [vmem:[%s473] sm:$0xff] %vm11818, %v11739
      %11820 = vst.msk [vmem:[%s473 + $0x8] sm:$0xff] %vm11818, %v11741
      %11821 = vst.msk [vmem:[%s473 + $0x10] sm:$0xff] %vm11818, %v11744
      %11822 = vst.msk [vmem:[%s473 + $0x18] sm:$0xff] %vm11818, %v11746
      %11823 = vst.msk [vmem:[%s473 + $0x20] sm:$0xff] %vm11818, %v11749
      %11824 = vst.msk [vmem:[%s473 + $0x28] sm:$0xff] %vm11818, %v11751
      %11825 = vst.msk [vmem:[%s473 + $0x30] sm:$0xff] %vm11818, %v11754
      %11826 = vst.msk [vmem:[%s473 + $0x38] sm:$0xff] %vm11818, %v11756
      %11827 = vst.msk [vmem:[%s473 + $0x40] sm:$0xff] %vm11818, %v11759
      %11828 = vst.msk [vmem:[%s473 + $0x48] sm:$0xff] %vm11818, %v11761
      %11829 = vst.msk [vmem:[%s473 + $0x50] sm:$0xff] %vm11818, %v11764
      %11830 = vst.msk [vmem:[%s473 + $0x58] sm:$0xff] %vm11818, %v11766
      %11831 = vst.msk [vmem:[%s473 + $0x60] sm:$0xff] %vm11818, %v11769
      %11832 = vst.msk [vmem:[%s473 + $0x68] sm:$0xff] %vm11818, %v11771
      %11833 = vst.msk [vmem:[%s473 + $0x70] sm:$0xff] %vm11818, %v11774
      %11834 = vst.msk [vmem:[%s473 + $0x78] sm:$0xff] %vm11818, %v11776
      %11835 = vst.msk [vmem:[%s473 + $0x80] sm:$0xff] %vm11818, %v11779
      %11836 = vst.msk [vmem:[%s473 + $0x88] sm:$0xff] %vm11818, %v11781
      %11837 = vst.msk [vmem:[%s473 + $0x90] sm:$0xff] %vm11818, %v11784
      %11838 = vst.msk [vmem:[%s473 + $0x98] sm:$0xff] %vm11818, %v11786
      %11839 = vst.msk [vmem:[%s473 + $0xa0] sm:$0xff] %vm11818, %v11789
      %11840 = vst.msk [vmem:[%s473 + $0xa8] sm:$0xff] %vm11818, %v11791
      %11841 = vst.msk [vmem:[%s473 + $0xb0] sm:$0xff] %vm11818, %v11794
      %11842 = vst.msk [vmem:[%s473 + $0xb8] sm:$0xff] %vm11818, %v11796
      %11843 = vst.msk [vmem:[%s473 + $0xc0] sm:$0xff] %vm11818, %v11799
      %11844 = vst.msk [vmem:[%s473 + $0xc8] sm:$0xff] %vm11818, %v11801
      %11845 = vst.msk [vmem:[%s473 + $0xd0] sm:$0xff] %vm11818, %v11804
      %11846 = vst.msk [vmem:[%s473 + $0xd8] sm:$0xff] %vm11818, %v11806
      %11847 = vst.msk [vmem:[%s473 + $0xe0] sm:$0xff] %vm11818, %v11809
      %11848 = vst.msk [vmem:[%s473 + $0xe8] sm:$0xff] %vm11818, %v11811
      %11849 = vst.msk [vmem:[%s473 + $0xf0] sm:$0xff] %vm11818, %v11814
      %11850 = vst.msk [vmem:[%s473 + $0xf8] sm:$0xff] %vm11818, %v11816
      %s11851 = smul.u32 32, %s30
      %p11852 = scmp.lt.s32.totalorder %s29, 1
      %s11853 = scalar_select %p11852, %s29, 1
      %p11854 = scmp.lt.s32.totalorder %s11851, 63
      %s11855 = scalar_select %p11854, %s11851, 63
      %s11856 = smul.addr %s11853, 64
      %s11857 = sadd.s32 %s11855, %s11856
      %s11858 = smul.addr %s11857, 8
      %s11859 = scalar_lea.vmem %s12, %s11858
      // Predicated region
      $region69: #{local_decoder_forward.1} parent=67 // pred_check
        %p11860 = pneg %p321
      $region70: #{local_decoder_forward.1} parent=67 // pred_check_branch
        %11862 = sbr.rel (%p11860) target = $region72
      $region71: #{local_decoder_forward.1} parent=67 // pred_region
        %s11863 = smul.u32 32, %s30
      $region72: #{local_decoder_forward.1} parent=67 // pred_fallthru
        _
    $region68: #{local_decoder_forward.1} parent=5 // pred_fallthru
      _
    %p11864 = scmp.le.s32.totalorder 2, %s20
    // Predicated region
    $region73: #{local_decoder_forward.1} parent=5 // pred_check
      %p11865 = pneg %p11864
    $region74: #{local_decoder_forward.1} parent=5 // pred_check_branch
      %11867 = sbr.rel (%p11865) target = $region76
    $region75: #{local_decoder_forward.1} parent=5 // pred_region
      %s11868 = ssub.s32 %s20, 2
      // Predicated region
      $region77: #{local_decoder_forward.1} parent=75 // pred_check
        %p11869 = pneg %p327
      $region78: #{local_decoder_forward.1} parent=75 // pred_check_branch
        %11871 = sbr.rel (%p11869) target = $region80
      $region79: #{local_decoder_forward.1} parent=75 // pred_region
        %s11872 = smul.u32 32, %s32
        %p11873 = scmp.lt.s32.totalorder %s31, 1
        %s11874 = scalar_select %p11873, %s31, 1
        %p11875 = scmp.lt.s32.totalorder %s11872, 63
        %s11876 = scalar_select %p11875, %s11872, 63
        %s11877 = smul.addr %s11874, 64
        %s11878 = sadd.s32 %s11876, %s11877
        %s11879 = smul.addr %s11878, 8
        %s11880 = scalar_lea.vmem %s12, %s11879
      $region80: #{local_decoder_forward.1} parent=75 // pred_fallthru
        _
    $region76: #{local_decoder_forward.1} parent=5 // pred_fallthru
      _
  $region6: #{local_decoder_forward.1} parent=0 // loop_footer
    %s24 = sadd.s32 1, %s20
  $region7: #{local_decoder_forward.1} parent=0 // loop_footer_branch
    %19 = sbr.rel target = $region3
  $region8: #{local_decoder_forward.1} parent=0 // loop_exit
    _

</llo_original>
